<compile_context>
chip_gen: v5e
topology: v5e:2x2
jax: 0.10.0
libtpu: 0.0.40
codegen_flags: <defaults>
</compile_context>

<pallas_src>
import jax
import jax.numpy as jnp
from jax.experimental import pallas as pl
from jax.experimental.pallas import tpu as pltpu

CONV_OUT = 64        # nn.Conv1d(out_channels=64)
HIDDEN = 128         # nn.LSTM(hidden_size=128)
FF_CHUNK_STEPS = 16  # pooled timesteps per feed-forward chunk (static slices)


# ---------------------------------------------------------------------------
# Fused kernel: one batch tile per grid step.
# Feed-forward activations are feature-major (channels on sublanes,
# time*batch on lanes); the recurrence runs row-major (batch on sublanes,
# hidden on lanes) so the per-step gx slice is a sublane-dim dynamic slice.
# ---------------------------------------------------------------------------
def fused_cnn_lstm_kernel(x_ref, wconv_ref, bconv_ref, wih_ref, whh_ref,
                          blstm_ref, wfc_ref, bfc_ref, o_ref, gx_ref):
    # x_ref:     (1, 3C, S*BT)  im2col columns; cols [0,T*BT) = even conv
    #                           windows, cols [T*BT, 2*T*BT) = odd windows;
    #                           column index inside a half = t*BT + b
    # wconv_ref: (64, 3C)       wconv[o, k*C+c] == torch conv.weight[o, c, k]
    # bconv_ref: (1, 64)
    # wih_ref:   (64, 4H)       == torch lstm.weight_ih_l0.T (gate order i,f,g,o)
    # whh_ref:   (H, 4H)        == torch lstm.weight_hh_l0.T
    # blstm_ref: (1, 4H)        == (b_ih + b_hh)
    # wfc_ref:   (H, NCP)       fc.weight.T padded to a multiple of 128 lanes
    # bfc_ref:   (1, NCP)
    # o_ref:     (1, BT, NCP)
    # gx_ref:    VMEM (T*BT, 4H)  hoisted input-projection gates (only scratch)
    BT = o_ref.shape[1]
    T = x_ref.shape[2] // BT // 2
    H = whh_ref.shape[0]
    HBT = BT // 2
    f32 = jnp.float32

    wcv = wconv_ref[...]            # (64, 3C)   hoisted weight loads
    bconv = bconv_ref[...]          # (1, 64)
    wih = wih_ref[...]              # (64, 4H)
    blstm = blstm_ref[...]          # (1, 4H)

    # ---- Conv1d(k=3, pad=1) + ReLU + MaxPool1d(2) + hoisted LSTM input
    #      projection, chunked over pooled timesteps (static Python slices so
    #      transient VMEM stays bounded regardless of S). ----
    off_odd = T * BT
    ch = min(T, FF_CHUNK_STEPS)
    for lo in range(0, T, ch):
        hi = min(lo + ch, T)
        n = (hi - lo) * BT
        xe = x_ref[0, :, lo * BT:lo * BT + n]                       # (3C, n)
        xo = x_ref[0, :, off_odd + lo * BT:off_odd + lo * BT + n]   # (3C, n)
        # single K=3C matmul per parity (im2col already folds the 3 taps)
        ce = jnp.dot(wcv, xe, preferred_element_type=f32)           # (64, n)
        co = jnp.dot(wcv, xo, preferred_element_type=f32)           # (64, n)
        # maxpool over the (even, odd) pair; bias+ReLU commute with the max
        pooled = jnp.maximum(jnp.maximum(ce, co).T + bconv, 0.0)    # (n, 64)
        gx_ref[lo * BT:lo * BT + n, :] = (
            jnp.dot(pooled, wih, preferred_element_type=f32) + blstm)

    # ---- LSTM recurrence: two independent half-batch chains interleaved in
    #      each step to hide MXU-pop / EUP latency of the serial chain. ----
    whh = whh_ref[...]              # (H, 4H) hoisted

    def cell(h, c, gx):
        gates = gx + jnp.dot(h, whh, preferred_element_type=f32)    # (HBT, 4H)
        i_g = jax.nn.sigmoid(gates[:, 0 * H:1 * H])
        f_g = jax.nn.sigmoid(gates[:, 1 * H:2 * H])
        g_g = jnp.tanh(gates[:, 2 * H:3 * H])
        o_g = jax.nn.sigmoid(gates[:, 3 * H:4 * H])
        c_new = f_g * c + i_g * g_g
        return o_g * jnp.tanh(c_new), c_new

    def step(t, carry):
        h0, c0, h1, c1 = carry
        gxt = gx_ref[pl.ds(pl.multiple_of(t * BT, BT), BT), :]      # (BT, 4H)
        h0, c0 = cell(h0, c0, gxt[:HBT, :])
        h1, c1 = cell(h1, c1, gxt[HBT:, :])
        return h0, c0, h1, c1

    z = jnp.zeros((HBT, H), f32)
    h0, _, h1, _ = jax.lax.fori_loop(0, T, step, (z, z, z, z),
                                     unroll=min(T, 4))

    # ---- final Linear, lane-dense (multiple-of-128) store ----
    wfc = wfc_ref[...]
    bfc = bfc_ref[...]
    o_ref[0, :HBT, :] = (jnp.dot(h0, wfc, preferred_element_type=f32)
                         + bfc).astype(o_ref.dtype)
    o_ref[0, HBT:, :] = (jnp.dot(h1, wfc, preferred_element_type=f32)
                         + bfc).astype(o_ref.dtype)


# ---------------------------------------------------------------------------
# Wrapper: layout glue on the (small) raw input + pallas_call plumbing.
# ---------------------------------------------------------------------------
def _round_up(v, m):
    return -(-v // m) * m


def _vmem_capacity_bytes():
    try:
        return int(pltpu.get_tpu_info().vmem_capacity_bytes)
    except Exception:
        return 64 * 1024 * 1024      # conservative (v7x physical per-TC VMEM)


def cnn_lstm_forward(x, params, *, batch_tile=128):
    # x: (B, S, num_features) float32 -- same input as the PyTorch module.
    # batch_tile: 128 keeps every lane dim exactly one vreg wide; 256 can help
    # MXU utilization on v6e (128 MiB VMEM) once S is moderate.
    B, S, C = x.shape
    assert S % 2 == 0, "MaxPool1d(kernel_size=2) needs an even sequence length"
    T = S // 2
    H = HIDDEN
    num_classes = params["wfc"].shape[1]
    NCP = _round_up(num_classes, 128)           # lane-dense FC store

    BT = batch_tile
    assert BT % 16 == 0, "batch_tile must be a multiple of 16 (two >=8-row chains)"
    n_tiles = -(-B // BT)
    Bp = n_tiles * BT

    f32 = jnp.float32
    x = x.astype(f32)

    # Glue (runs once in XLA on the small raw input):
    #  - pad batch to a tile multiple, zero-pad time by 1 (Conv1d padding=1)
    #  - build a feature-major im2col slab: row = k*C + c, column = t*BT + b,
    #    with even-output-time windows in the first T*BT columns and
    #    odd-output-time windows in the last T*BT columns.
    x_p = jnp.pad(x, ((0, Bp - B), (1, 1), (0, 0)))               # (Bp, S+2, C)

    def taps(parity):
        w = jnp.stack([x_p[:, k + parity:k + parity + 2 * T:2, :]
                       for k in range(3)], axis=0)                # (3, Bp, T, C)
        w = (w.reshape(3, n_tiles, BT, T, C)
              .transpose(1, 0, 4, 3, 2))                          # (nt, 3, C, T, BT)
        return w.reshape(n_tiles, 3 * C, T * BT)

    x_cols = jnp.concatenate([taps(0), taps(1)], axis=2)          # (nt, 3C, S*BT)

    wconv_im = params["wconv"].transpose(2, 0, 1).reshape(CONV_OUT, 3 * C)
    wfc_p = jnp.pad(params["wfc"], ((0, 0), (0, NCP - num_classes)))
    bfc_p = jnp.pad(params["bfc"], ((0, 0), (0, NCP - num_classes)))

    # ---- VMEM budget: assert it fits and set the scoped limit explicitly ----
    ch = min(T, FF_CHUNK_STEPS)
    x_block_b = _round_up(3 * C, 8) * S * BT * 4
    out_block_b = BT * NCP * 4
    gx_b = T * BT * 4 * H * 4
    w_b = 4 * (CONV_OUT * 128 + CONV_OUT * 4 * H + H * 4 * H + H * NCP
               + 128 + 4 * H + NCP)
    transient_b = 4 * ch * BT * (2 * CONV_OUT + 2 * 128 + 4 * H)
    est = gx_b + 2 * (x_block_b + out_block_b + w_b) + transient_b
    cap = _vmem_capacity_bytes()
    assert est <= int(0.9 * cap), (
        f"estimated VMEM {est / 2**20:.1f} MiB exceeds ~90% of "
        f"{cap / 2**20:.0f} MiB; reduce batch_tile or sequence length")
    vmem_limit = int(min(cap, max(est + (8 << 20), 32 << 20)))

    out = pl.pallas_call(
        fused_cnn_lstm_kernel,
        out_shape=jax.ShapeDtypeStruct((n_tiles, BT, NCP), f32),
        grid=(n_tiles,),
        in_specs=[
            pl.BlockSpec((1, 3 * C, S * BT), lambda i: (i, 0, 0)),
            pl.BlockSpec((CONV_OUT, 3 * C), lambda i: (0, 0)),
            pl.BlockSpec((1, CONV_OUT), lambda i: (0, 0)),
            pl.BlockSpec((CONV_OUT, 4 * H), lambda i: (0, 0)),
            pl.BlockSpec((H, 4 * H), lambda i: (0, 0)),
            pl.BlockSpec((1, 4 * H), lambda i: (0, 0)),
            pl.BlockSpec((H, NCP), lambda i: (0, 0)),
            pl.BlockSpec((1, NCP), lambda i: (0, 0)),
        ],
        out_specs=pl.BlockSpec((1, BT, NCP), lambda i: (i, 0, 0)),
        scratch_shapes=[pltpu.VMEM((T * BT, 4 * H), f32)],
        compiler_params=pltpu.CompilerParams(
            dimension_semantics=("parallel",),
            vmem_limit_bytes=vmem_limit),
    )(x_cols, wconv_im, params["bconv"], params["wih"], params["whh"],
      params["blstm"], wfc_p, bfc_p)

    return out.reshape(Bp, NCP)[:B, :num_classes]


# ---------------------------------------------------------------------------
# Pure-JAX reference (correctness check only)
# ---------------------------------------------------------------------------
def reference_forward(x, params):
    B, S, C = x.shape
    H = HIDDEN
    x_pad = jnp.pad(x, ((0, 0), (1, 1), (0, 0)))
    conv = jnp.zeros((B, S, CONV_OUT), jnp.float32)
    for k in range(3):
        conv = conv + jnp.einsum('btc,co->bto',
                                 x_pad[:, k:k + S, :], params["wconv"][k])
    conv = jnp.maximum(conv + params["bconv"][0], 0.0)
    pooled = jnp.max(conv.reshape(B, S // 2, 2, CONV_OUT), axis=2)
    h = jnp.zeros((B, H), jnp.float32)
    c = jnp.zeros((B, H), jnp.float32)
    for t in range(S // 2):
        xt = pooled[:, t, :]
        gates = xt @ params["wih"] + h @ params["whh"] + params["blstm"][0]
        i = jax.nn.sigmoid(gates[:, :H])
        f = jax.nn.sigmoid(gates[:, H:2 * H])
        g = jnp.tanh(gates[:, 2 * H:3 * H])
        o = jax.nn.sigmoid(gates[:, 3 * H:4 * H])
        c = f * c + i * g
        h = o * jnp.tanh(c)
    return h @ params["wfc"] + params["bfc"][0]


if __name__ == "__main__":
    B, S, num_features, num_classes = 2, 8, 4, 3

    key = jax.random.PRNGKey(0)
    keys = jax.random.split(key, 8)
    scale = 0.1
    # Deterministic synthetic parameters (shapes from the module's __init__),
    # stored pre-transposed for the matmul layout used inside the kernel.
    # NOTE: "wconv"[k, c, o] == torch conv.weight[o, c, k];
    #       "blstm" is the fused (b_ih + b_hh) bias, gate order i, f, g, o.
    params = {
        "wconv": scale * jax.random.normal(keys[0], (3, num_features, CONV_OUT), jnp.float32),
        "bconv": scale * jax.random.normal(keys[1], (1, CONV_OUT), jnp.float32),
        "wih":   scale * jax.random.normal(keys[2], (CONV_OUT, 4 * HIDDEN), jnp.float32),
        "whh":   scale * jax.random.normal(keys[3], (HIDDEN, 4 * HIDDEN), jnp.float32),
        "blstm": scale * jax.random.normal(keys[4], (1, 4 * HIDDEN), jnp.float32),
        "wfc":   scale * jax.random.normal(keys[5], (HIDDEN, num_classes), jnp.float32),
        "bfc":   scale * jax.random.normal(keys[6], (1, num_classes), jnp.float32),
    }
    x = jax.random.normal(keys[7], (B, S, num_features), jnp.float32)

    out = jax.block_until_ready(cnn_lstm_forward(x, params))
    ref = reference_forward(x, params)

    assert out.shape == (B, num_classes)
    assert jnp.allclose(out, ref, rtol=1e-3, atol=1e-3), (out, ref)
    print("KERNEL_OK")
</pallas_src>

<mosaic_0001>
module attributes {stable_mosaic.version = 11 : i64} {
  func.func @fused_cnn_lstm_kernel(%arg0: i32, %arg1: memref<1x12x1024xf32, #tpu.memory_space<vmem>>, %arg2: memref<64x12xf32, #tpu.memory_space<vmem>>, %arg3: memref<1x64xf32, #tpu.memory_space<vmem>>, %arg4: memref<64x512xf32, #tpu.memory_space<vmem>>, %arg5: memref<128x512xf32, #tpu.memory_space<vmem>>, %arg6: memref<1x512xf32, #tpu.memory_space<vmem>>, %arg7: memref<128x128xf32, #tpu.memory_space<vmem>>, %arg8: memref<1x128xf32, #tpu.memory_space<vmem>>, %arg9: memref<1x128x128xf32, #tpu.memory_space<vmem>>, %arg10: memref<512x512xf32, #tpu.memory_space<vmem>>) attributes {dimension_semantics = [#tpu.dimension_semantics<parallel>], iteration_bounds = array<i64: 1>, scalar_prefetch = 0 : i64, scratch_operands = 1 : i64, tpu.core_type = #tpu.core_type<tc>, window_params = [{transform_indices = @transform_0, window_bounds = array<i64: 1, 12, 1024>}, {pipeline_mode = #tpu.pipeline_mode<synchronous>, transform_indices = @transform_1, window_bounds = array<i64: 64, 12>}, {pipeline_mode = #tpu.pipeline_mode<synchronous>, transform_indices = @transform_2, window_bounds = array<i64: 1, 64>}, {pipeline_mode = #tpu.pipeline_mode<synchronous>, transform_indices = @transform_3, window_bounds = array<i64: 64, 512>}, {pipeline_mode = #tpu.pipeline_mode<synchronous>, transform_indices = @transform_4, window_bounds = array<i64: 128, 512>}, {pipeline_mode = #tpu.pipeline_mode<synchronous>, transform_indices = @transform_5, window_bounds = array<i64: 1, 512>}, {pipeline_mode = #tpu.pipeline_mode<synchronous>, transform_indices = @transform_6, window_bounds = array<i64: 128, 128>}, {pipeline_mode = #tpu.pipeline_mode<synchronous>, transform_indices = @transform_7, window_bounds = array<i64: 1, 128>}, {transform_indices = @transform_8, window_bounds = array<i64: 1, 128, 128>}]} {
    %c0 = arith.constant 0 : index
    %c0_0 = arith.constant 0 : index
    %0 = vector.load %arg2[%c0, %c0_0] : memref<64x12xf32, #tpu.memory_space<vmem>>, vector<64x12xf32>
    %c0_1 = arith.constant 0 : index
    %c0_2 = arith.constant 0 : index
    %1 = vector.load %arg3[%c0_1, %c0_2] : memref<1x64xf32, #tpu.memory_space<vmem>>, vector<1x64xf32>
    %c0_3 = arith.constant 0 : index
    %c0_4 = arith.constant 0 : index
    %2 = vector.load %arg4[%c0_3, %c0_4] : memref<64x512xf32, #tpu.memory_space<vmem>>, vector<64x512xf32>
    %c0_5 = arith.constant 0 : index
    %c0_6 = arith.constant 0 : index
    %3 = vector.load %arg6[%c0_5, %c0_6] : memref<1x512xf32, #tpu.memory_space<vmem>>, vector<1x512xf32>
    %c0_7 = arith.constant 0 : index
    %c0_8 = arith.constant 0 : index
    %c0_9 = arith.constant 0 : index
    %4 = vector.load %arg1[%c0_7, %c0_8, %c0_9] : memref<1x12x1024xf32, #tpu.memory_space<vmem>>, vector<1x12x512xf32>
    %5 = vector.shape_cast %4 : vector<1x12x512xf32> to vector<12x512xf32>
    %c0_10 = arith.constant 0 : index
    %c0_11 = arith.constant 0 : index
    %c512 = arith.constant 512 : index
    %6 = vector.load %arg1[%c0_10, %c0_11, %c512] : memref<1x12x1024xf32, #tpu.memory_space<vmem>>, vector<1x12x512xf32>
    %7 = vector.shape_cast %6 : vector<1x12x512xf32> to vector<12x512xf32>
    %cst = arith.constant dense<0.000000e+00> : vector<64x512xf32>
    %8 = tpu.matmul %0, %5, %cst {dimension_numbers = #tpu.dot_dimension_numbers<[1], [0], [0], [1], [0, 0, 1, 1], [], []>} : vector<64x12xf32>, vector<12x512xf32>, vector<64x512xf32> -> vector<64x512xf32>
    %cst_12 = arith.constant dense<0.000000e+00> : vector<64x512xf32>
    %9 = tpu.matmul %0, %7, %cst_12 {dimension_numbers = #tpu.dot_dimension_numbers<[1], [0], [0], [1], [0, 0, 1, 1], [], []>} : vector<64x12xf32>, vector<12x512xf32>, vector<64x512xf32> -> vector<64x512xf32>
    %10 = arith.maximumf %8, %9 : vector<64x512xf32>
    %11 = tpu.transpose %10, [1, 0] : vector<64x512xf32> -> vector<512x64xf32>
    %12 = vector.broadcast %1 : vector<1x64xf32> to vector<512x64xf32>
    %13 = arith.addf %11, %12 : vector<512x64xf32>
    %cst_13 = arith.constant 0.000000e+00 : f32
    %14 = vector.broadcast %cst_13 : f32 to vector<512x64xf32>
    %15 = arith.maximumf %13, %14 : vector<512x64xf32>
    %cst_14 = arith.constant dense<0.000000e+00> : vector<512x512xf32>
    %16 = tpu.matmul %15, %2, %cst_14 {dimension_numbers = #tpu.dot_dimension_numbers<[1], [0], [0], [1], [0, 0, 1, 1], [], []>} : vector<512x64xf32>, vector<64x512xf32>, vector<512x512xf32> -> vector<512x512xf32>
    %17 = vector.broadcast %3 : vector<1x512xf32> to vector<512x512xf32>
    %18 = arith.addf %16, %17 : vector<512x512xf32>
    %c0_15 = arith.constant 0 : index
    %c0_16 = arith.constant 0 : index
    %19 = vector.load %arg10[%c0_15, %c0_16] : memref<512x512xf32, #tpu.memory_space<vmem>>, vector<512x512xf32>
    tpu.vector_store %arg10[%c0_15, %c0_16], %18 {strides = array<i32>} : memref<512x512xf32, #tpu.memory_space<vmem>>, vector<512x512xf32>,
    %c0_17 = arith.constant 0 : index
    %c0_18 = arith.constant 0 : index
    %20 = vector.load %arg5[%c0_17, %c0_18] : memref<128x512xf32, #tpu.memory_space<vmem>>, vector<128x512xf32>
    %cst_19 = arith.constant 0.000000e+00 : f32
    %21 = vector.broadcast %cst_19 : f32 to vector<64x128xf32>
    %c0_i32 = arith.constant 0 : i32
    %c128_i32 = arith.constant 128 : i32
    %22 = arith.muli %c0_i32, %c128_i32 : i32
    %23 = tpu.assume_multiple %22, 128 : i32
    %24 = arith.index_cast %23 : i32 to index
    %c0_20 = arith.constant 0 : index
    %25 = vector.load %arg10[%24, %c0_20] : memref<512x512xf32, #tpu.memory_space<vmem>>, vector<128x512xf32>
    %26 = vector.extract_strided_slice %25 {offsets = [0, 0], sizes = [64, 512], strides = [1, 1]} : vector<128x512xf32> to vector<64x512xf32>
    %cst_21 = arith.constant dense<0.000000e+00> : vector<64x512xf32>
    %27 = tpu.matmul %21, %20, %cst_21 {dimension_numbers = #tpu.dot_dimension_numbers<[1], [0], [0], [1], [0, 0, 1, 1], [], []>} : vector<64x128xf32>, vector<128x512xf32>, vector<64x512xf32> -> vector<64x512xf32>
    %28 = arith.addf %26, %27 : vector<64x512xf32>
    %29 = vector.extract_strided_slice %28 {offsets = [0, 0], sizes = [64, 128], strides = [1, 1]} : vector<64x512xf32> to vector<64x128xf32>
    %30 = arith.negf %29 : vector<64x128xf32>
    %31 = math.exp %30 : vector<64x128xf32>
    %cst_22 = arith.constant 1.000000e+00 : f32
    %32 = vector.broadcast %cst_22 : f32 to vector<64x128xf32>
    %33 = arith.addf %32, %31 : vector<64x128xf32>
    %34 = arith.divf %32, %33 : vector<64x128xf32>
    %35 = vector.extract_strided_slice %28 {offsets = [0, 128], sizes = [64, 128], strides = [1, 1]} : vector<64x512xf32> to vector<64x128xf32>
    %36 = arith.negf %35 : vector<64x128xf32>
    %37 = math.exp %36 : vector<64x128xf32>
    %cst_23 = arith.constant 1.000000e+00 : f32
    %38 = vector.broadcast %cst_23 : f32 to vector<64x128xf32>
    %39 = arith.addf %38, %37 : vector<64x128xf32>
    %40 = arith.divf %38, %39 : vector<64x128xf32>
    %41 = vector.extract_strided_slice %28 {offsets = [0, 256], sizes = [64, 128], strides = [1, 1]} : vector<64x512xf32> to vector<64x128xf32>
    %42 = math.tanh %41 : vector<64x128xf32>
    %43 = vector.extract_strided_slice %28 {offsets = [0, 384], sizes = [64, 128], strides = [1, 1]} : vector<64x512xf32> to vector<64x128xf32>
    %44 = arith.negf %43 : vector<64x128xf32>
    %45 = math.exp %44 : vector<64x128xf32>
    %cst_24 = arith.constant 1.000000e+00 : f32
    %46 = vector.broadcast %cst_24 : f32 to vector<64x128xf32>
    %47 = arith.addf %46, %45 : vector<64x128xf32>
    %48 = arith.divf %46, %47 : vector<64x128xf32>
    %49 = arith.mulf %40, %21 : vector<64x128xf32>
    %50 = arith.mulf %34, %42 : vector<64x128xf32>
    %51 = arith.addf %49, %50 : vector<64x128xf32>
    %52 = math.tanh %51 : vector<64x128xf32>
    %53 = arith.mulf %48, %52 : vector<64x128xf32>
    %54 = vector.extract_strided_slice %25 {offsets = [64, 0], sizes = [64, 512], strides = [1, 1]} : vector<128x512xf32> to vector<64x512xf32>
    %cst_25 = arith.constant dense<0.000000e+00> : vector<64x512xf32>
    %55 = tpu.matmul %21, %20, %cst_25 {dimension_numbers = #tpu.dot_dimension_numbers<[1], [0], [0], [1], [0, 0, 1, 1], [], []>} : vector<64x128xf32>, vector<128x512xf32>, vector<64x512xf32> -> vector<64x512xf32>
    %56 = arith.addf %54, %55 : vector<64x512xf32>
    %57 = vector.extract_strided_slice %56 {offsets = [0, 0], sizes = [64, 128], strides = [1, 1]} : vector<64x512xf32> to vector<64x128xf32>
    %58 = arith.negf %57 : vector<64x128xf32>
    %59 = math.exp %58 : vector<64x128xf32>
    %cst_26 = arith.constant 1.000000e+00 : f32
    %60 = vector.broadcast %cst_26 : f32 to vector<64x128xf32>
    %61 = arith.addf %60, %59 : vector<64x128xf32>
    %62 = arith.divf %60, %61 : vector<64x128xf32>
    %63 = vector.extract_strided_slice %56 {offsets = [0, 128], sizes = [64, 128], strides = [1, 1]} : vector<64x512xf32> to vector<64x128xf32>
    %64 = arith.negf %63 : vector<64x128xf32>
    %65 = math.exp %64 : vector<64x128xf32>
    %cst_27 = arith.constant 1.000000e+00 : f32
    %66 = vector.broadcast %cst_27 : f32 to vector<64x128xf32>
    %67 = arith.addf %66, %65 : vector<64x128xf32>
    %68 = arith.divf %66, %67 : vector<64x128xf32>
    %69 = vector.extract_strided_slice %56 {offsets = [0, 256], sizes = [64, 128], strides = [1, 1]} : vector<64x512xf32> to vector<64x128xf32>
    %70 = math.tanh %69 : vector<64x128xf32>
    %71 = vector.extract_strided_slice %56 {offsets = [0, 384], sizes = [64, 128], strides = [1, 1]} : vector<64x512xf32> to vector<64x128xf32>
    %72 = arith.negf %71 : vector<64x128xf32>
    %73 = math.exp %72 : vector<64x128xf32>
    %cst_28 = arith.constant 1.000000e+00 : f32
    %74 = vector.broadcast %cst_28 : f32 to vector<64x128xf32>
    %75 = arith.addf %74, %73 : vector<64x128xf32>
    %76 = arith.divf %74, %75 : vector<64x128xf32>
    %77 = arith.mulf %68, %21 : vector<64x128xf32>
    %78 = arith.mulf %62, %70 : vector<64x128xf32>
    %79 = arith.addf %77, %78 : vector<64x128xf32>
    %80 = math.tanh %79 : vector<64x128xf32>
    %81 = arith.mulf %76, %80 : vector<64x128xf32>
    %c1_i32 = arith.constant 1 : i32
    %c128_i32_29 = arith.constant 128 : i32
    %82 = arith.muli %c1_i32, %c128_i32_29 : i32
    %83 = tpu.assume_multiple %82, 128 : i32
    %84 = arith.index_cast %83 : i32 to index
    %c0_30 = arith.constant 0 : index
    %85 = vector.load %arg10[%84, %c0_30] : memref<512x512xf32, #tpu.memory_space<vmem>>, vector<128x512xf32>
    %86 = vector.extract_strided_slice %85 {offsets = [0, 0], sizes = [64, 512], strides = [1, 1]} : vector<128x512xf32> to vector<64x512xf32>
    %cst_31 = arith.constant dense<0.000000e+00> : vector<64x512xf32>
    %87 = tpu.matmul %53, %20, %cst_31 {dimension_numbers = #tpu.dot_dimension_numbers<[1], [0], [0], [1], [0, 0, 1, 1], [], []>} : vector<64x128xf32>, vector<128x512xf32>, vector<64x512xf32> -> vector<64x512xf32>
    %88 = arith.addf %86, %87 : vector<64x512xf32>
    %89 = vector.extract_strided_slice %88 {offsets = [0, 0], sizes = [64, 128], strides = [1, 1]} : vector<64x512xf32> to vector<64x128xf32>
    %90 = arith.negf %89 : vector<64x128xf32>
    %91 = math.exp %90 : vector<64x128xf32>
    %cst_32 = arith.constant 1.000000e+00 : f32
    %92 = vector.broadcast %cst_32 : f32 to vector<64x128xf32>
    %93 = arith.addf %92, %91 : vector<64x128xf32>
    %94 = arith.divf %92, %93 : vector<64x128xf32>
    %95 = vector.extract_strided_slice %88 {offsets = [0, 128], sizes = [64, 128], strides = [1, 1]} : vector<64x512xf32> to vector<64x128xf32>
    %96 = arith.negf %95 : vector<64x128xf32>
    %97 = math.exp %96 : vector<64x128xf32>
    %cst_33 = arith.constant 1.000000e+00 : f32
    %98 = vector.broadcast %cst_33 : f32 to vector<64x128xf32>
    %99 = arith.addf %98, %97 : vector<64x128xf32>
    %100 = arith.divf %98, %99 : vector<64x128xf32>
    %101 = vector.extract_strided_slice %88 {offsets = [0, 256], sizes = [64, 128], strides = [1, 1]} : vector<64x512xf32> to vector<64x128xf32>
    %102 = math.tanh %101 : vector<64x128xf32>
    %103 = vector.extract_strided_slice %88 {offsets = [0, 384], sizes = [64, 128], strides = [1, 1]} : vector<64x512xf32> to vector<64x128xf32>
    %104 = arith.negf %103 : vector<64x128xf32>
    %105 = math.exp %104 : vector<64x128xf32>
    %cst_34 = arith.constant 1.000000e+00 : f32
    %106 = vector.broadcast %cst_34 : f32 to vector<64x128xf32>
    %107 = arith.addf %106, %105 : vector<64x128xf32>
    %108 = arith.divf %106, %107 : vector<64x128xf32>
    %109 = arith.mulf %100, %51 : vector<64x128xf32>
    %110 = arith.mulf %94, %102 : vector<64x128xf32>
    %111 = arith.addf %109, %110 : vector<64x128xf32>
    %112 = math.tanh %111 : vector<64x128xf32>
    %113 = arith.mulf %108, %112 : vector<64x128xf32>
    %114 = vector.extract_strided_slice %85 {offsets = [64, 0], sizes = [64, 512], strides = [1, 1]} : vector<128x512xf32> to vector<64x512xf32>
    %cst_35 = arith.constant dense<0.000000e+00> : vector<64x512xf32>
    %115 = tpu.matmul %81, %20, %cst_35 {dimension_numbers = #tpu.dot_dimension_numbers<[1], [0], [0], [1], [0, 0, 1, 1], [], []>} : vector<64x128xf32>, vector<128x512xf32>, vector<64x512xf32> -> vector<64x512xf32>
    %116 = arith.addf %114, %115 : vector<64x512xf32>
    %117 = vector.extract_strided_slice %116 {offsets = [0, 0], sizes = [64, 128], strides = [1, 1]} : vector<64x512xf32> to vector<64x128xf32>
    %118 = arith.negf %117 : vector<64x128xf32>
    %119 = math.exp %118 : vector<64x128xf32>
    %cst_36 = arith.constant 1.000000e+00 : f32
    %120 = vector.broadcast %cst_36 : f32 to vector<64x128xf32>
    %121 = arith.addf %120, %119 : vector<64x128xf32>
    %122 = arith.divf %120, %121 : vector<64x128xf32>
    %123 = vector.extract_strided_slice %116 {offsets = [0, 128], sizes = [64, 128], strides = [1, 1]} : vector<64x512xf32> to vector<64x128xf32>
    %124 = arith.negf %123 : vector<64x128xf32>
    %125 = math.exp %124 : vector<64x128xf32>
    %cst_37 = arith.constant 1.000000e+00 : f32
    %126 = vector.broadcast %cst_37 : f32 to vector<64x128xf32>
    %127 = arith.addf %126, %125 : vector<64x128xf32>
    %128 = arith.divf %126, %127 : vector<64x128xf32>
    %129 = vector.extract_strided_slice %116 {offsets = [0, 256], sizes = [64, 128], strides = [1, 1]} : vector<64x512xf32> to vector<64x128xf32>
    %130 = math.tanh %129 : vector<64x128xf32>
    %131 = vector.extract_strided_slice %116 {offsets = [0, 384], sizes = [64, 128], strides = [1, 1]} : vector<64x512xf32> to vector<64x128xf32>
    %132 = arith.negf %131 : vector<64x128xf32>
    %133 = math.exp %132 : vector<64x128xf32>
    %cst_38 = arith.constant 1.000000e+00 : f32
    %134 = vector.broadcast %cst_38 : f32 to vector<64x128xf32>
    %135 = arith.addf %134, %133 : vector<64x128xf32>
    %136 = arith.divf %134, %135 : vector<64x128xf32>
    %137 = arith.mulf %128, %79 : vector<64x128xf32>
    %138 = arith.mulf %122, %130 : vector<64x128xf32>
    %139 = arith.addf %137, %138 : vector<64x128xf32>
    %140 = math.tanh %139 : vector<64x128xf32>
    %141 = arith.mulf %136, %140 : vector<64x128xf32>
    %c2_i32 = arith.constant 2 : i32
    %c128_i32_39 = arith.constant 128 : i32
    %142 = arith.muli %c2_i32, %c128_i32_39 : i32
    %143 = tpu.assume_multiple %142, 128 : i32
    %144 = arith.index_cast %143 : i32 to index
    %c0_40 = arith.constant 0 : index
    %145 = vector.load %arg10[%144, %c0_40] : memref<512x512xf32, #tpu.memory_space<vmem>>, vector<128x512xf32>
    %146 = vector.extract_strided_slice %145 {offsets = [0, 0], sizes = [64, 512], strides = [1, 1]} : vector<128x512xf32> to vector<64x512xf32>
    %cst_41 = arith.constant dense<0.000000e+00> : vector<64x512xf32>
    %147 = tpu.matmul %113, %20, %cst_41 {dimension_numbers = #tpu.dot_dimension_numbers<[1], [0], [0], [1], [0, 0, 1, 1], [], []>} : vector<64x128xf32>, vector<128x512xf32>, vector<64x512xf32> -> vector<64x512xf32>
    %148 = arith.addf %146, %147 : vector<64x512xf32>
    %149 = vector.extract_strided_slice %148 {offsets = [0, 0], sizes = [64, 128], strides = [1, 1]} : vector<64x512xf32> to vector<64x128xf32>
    %150 = arith.negf %149 : vector<64x128xf32>
    %151 = math.exp %150 : vector<64x128xf32>
    %cst_42 = arith.constant 1.000000e+00 : f32
    %152 = vector.broadcast %cst_42 : f32 to vector<64x128xf32>
    %153 = arith.addf %152, %151 : vector<64x128xf32>
    %154 = arith.divf %152, %153 : vector<64x128xf32>
    %155 = vector.extract_strided_slice %148 {offsets = [0, 128], sizes = [64, 128], strides = [1, 1]} : vector<64x512xf32> to vector<64x128xf32>
    %156 = arith.negf %155 : vector<64x128xf32>
    %157 = math.exp %156 : vector<64x128xf32>
    %cst_43 = arith.constant 1.000000e+00 : f32
    %158 = vector.broadcast %cst_43 : f32 to vector<64x128xf32>
    %159 = arith.addf %158, %157 : vector<64x128xf32>
    %160 = arith.divf %158, %159 : vector<64x128xf32>
    %161 = vector.extract_strided_slice %148 {offsets = [0, 256], sizes = [64, 128], strides = [1, 1]} : vector<64x512xf32> to vector<64x128xf32>
    %162 = math.tanh %161 : vector<64x128xf32>
    %163 = vector.extract_strided_slice %148 {offsets = [0, 384], sizes = [64, 128], strides = [1, 1]} : vector<64x512xf32> to vector<64x128xf32>
    %164 = arith.negf %163 : vector<64x128xf32>
    %165 = math.exp %164 : vector<64x128xf32>
    %cst_44 = arith.constant 1.000000e+00 : f32
    %166 = vector.broadcast %cst_44 : f32 to vector<64x128xf32>
    %167 = arith.addf %166, %165 : vector<64x128xf32>
    %168 = arith.divf %166, %167 : vector<64x128xf32>
    %169 = arith.mulf %160, %111 : vector<64x128xf32>
    %170 = arith.mulf %154, %162 : vector<64x128xf32>
    %171 = arith.addf %169, %170 : vector<64x128xf32>
    %172 = math.tanh %171 : vector<64x128xf32>
    %173 = arith.mulf %168, %172 : vector<64x128xf32>
    %174 = vector.extract_strided_slice %145 {offsets = [64, 0], sizes = [64, 512], strides = [1, 1]} : vector<128x512xf32> to vector<64x512xf32>
    %cst_45 = arith.constant dense<0.000000e+00> : vector<64x512xf32>
    %175 = tpu.matmul %141, %20, %cst_45 {dimension_numbers = #tpu.dot_dimension_numbers<[1], [0], [0], [1], [0, 0, 1, 1], [], []>} : vector<64x128xf32>, vector<128x512xf32>, vector<64x512xf32> -> vector<64x512xf32>
    %176 = arith.addf %174, %175 : vector<64x512xf32>
    %177 = vector.extract_strided_slice %176 {offsets = [0, 0], sizes = [64, 128], strides = [1, 1]} : vector<64x512xf32> to vector<64x128xf32>
    %178 = arith.negf %177 : vector<64x128xf32>
    %179 = math.exp %178 : vector<64x128xf32>
    %cst_46 = arith.constant 1.000000e+00 : f32
    %180 = vector.broadcast %cst_46 : f32 to vector<64x128xf32>
    %181 = arith.addf %180, %179 : vector<64x128xf32>
    %182 = arith.divf %180, %181 : vector<64x128xf32>
    %183 = vector.extract_strided_slice %176 {offsets = [0, 128], sizes = [64, 128], strides = [1, 1]} : vector<64x512xf32> to vector<64x128xf32>
    %184 = arith.negf %183 : vector<64x128xf32>
    %185 = math.exp %184 : vector<64x128xf32>
    %cst_47 = arith.constant 1.000000e+00 : f32
    %186 = vector.broadcast %cst_47 : f32 to vector<64x128xf32>
    %187 = arith.addf %186, %185 : vector<64x128xf32>
    %188 = arith.divf %186, %187 : vector<64x128xf32>
    %189 = vector.extract_strided_slice %176 {offsets = [0, 256], sizes = [64, 128], strides = [1, 1]} : vector<64x512xf32> to vector<64x128xf32>
    %190 = math.tanh %189 : vector<64x128xf32>
    %191 = vector.extract_strided_slice %176 {offsets = [0, 384], sizes = [64, 128], strides = [1, 1]} : vector<64x512xf32> to vector<64x128xf32>
    %192 = arith.negf %191 : vector<64x128xf32>
    %193 = math.exp %192 : vector<64x128xf32>
    %cst_48 = arith.constant 1.000000e+00 : f32
    %194 = vector.broadcast %cst_48 : f32 to vector<64x128xf32>
    %195 = arith.addf %194, %193 : vector<64x128xf32>
    %196 = arith.divf %194, %195 : vector<64x128xf32>
    %197 = arith.mulf %188, %139 : vector<64x128xf32>
    %198 = arith.mulf %182, %190 : vector<64x128xf32>
    %199 = arith.addf %197, %198 : vector<64x128xf32>
    %200 = math.tanh %199 : vector<64x128xf32>
    %201 = arith.mulf %196, %200 : vector<64x128xf32>
    %c3_i32 = arith.constant 3 : i32
    %c128_i32_49 = arith.constant 128 : i32
    %202 = arith.muli %c3_i32, %c128_i32_49 : i32
    %203 = tpu.assume_multiple %202, 128 : i32
    %204 = arith.index_cast %203 : i32 to index
    %c0_50 = arith.constant 0 : index
    %205 = vector.load %arg10[%204, %c0_50] : memref<512x512xf32, #tpu.memory_space<vmem>>, vector<128x512xf32>
    %206 = vector.extract_strided_slice %205 {offsets = [0, 0], sizes = [64, 512], strides = [1, 1]} : vector<128x512xf32> to vector<64x512xf32>
    %cst_51 = arith.constant dense<0.000000e+00> : vector<64x512xf32>
    %207 = tpu.matmul %173, %20, %cst_51 {dimension_numbers = #tpu.dot_dimension_numbers<[1], [0], [0], [1], [0, 0, 1, 1], [], []>} : vector<64x128xf32>, vector<128x512xf32>, vector<64x512xf32> -> vector<64x512xf32>
    %208 = arith.addf %206, %207 : vector<64x512xf32>
    %209 = vector.extract_strided_slice %208 {offsets = [0, 0], sizes = [64, 128], strides = [1, 1]} : vector<64x512xf32> to vector<64x128xf32>
    %210 = arith.negf %209 : vector<64x128xf32>
    %211 = math.exp %210 : vector<64x128xf32>
    %cst_52 = arith.constant 1.000000e+00 : f32
    %212 = vector.broadcast %cst_52 : f32 to vector<64x128xf32>
    %213 = arith.addf %212, %211 : vector<64x128xf32>
    %214 = arith.divf %212, %213 : vector<64x128xf32>
    %215 = vector.extract_strided_slice %208 {offsets = [0, 128], sizes = [64, 128], strides = [1, 1]} : vector<64x512xf32> to vector<64x128xf32>
    %216 = arith.negf %215 : vector<64x128xf32>
    %217 = math.exp %216 : vector<64x128xf32>
    %cst_53 = arith.constant 1.000000e+00 : f32
    %218 = vector.broadcast %cst_53 : f32 to vector<64x128xf32>
    %219 = arith.addf %218, %217 : vector<64x128xf32>
    %220 = arith.divf %218, %219 : vector<64x128xf32>
    %221 = vector.extract_strided_slice %208 {offsets = [0, 256], sizes = [64, 128], strides = [1, 1]} : vector<64x512xf32> to vector<64x128xf32>
    %222 = math.tanh %221 : vector<64x128xf32>
    %223 = vector.extract_strided_slice %208 {offsets = [0, 384], sizes = [64, 128], strides = [1, 1]} : vector<64x512xf32> to vector<64x128xf32>
    %224 = arith.negf %223 : vector<64x128xf32>
    %225 = math.exp %224 : vector<64x128xf32>
    %cst_54 = arith.constant 1.000000e+00 : f32
    %226 = vector.broadcast %cst_54 : f32 to vector<64x128xf32>
    %227 = arith.addf %226, %225 : vector<64x128xf32>
    %228 = arith.divf %226, %227 : vector<64x128xf32>
    %229 = arith.mulf %220, %171 : vector<64x128xf32>
    %230 = arith.mulf %214, %222 : vector<64x128xf32>
    %231 = arith.addf %229, %230 : vector<64x128xf32>
    %232 = math.tanh %231 : vector<64x128xf32>
    %233 = arith.mulf %228, %232 : vector<64x128xf32>
    %234 = vector.extract_strided_slice %205 {offsets = [64, 0], sizes = [64, 512], strides = [1, 1]} : vector<128x512xf32> to vector<64x512xf32>
    %cst_55 = arith.constant dense<0.000000e+00> : vector<64x512xf32>
    %235 = tpu.matmul %201, %20, %cst_55 {dimension_numbers = #tpu.dot_dimension_numbers<[1], [0], [0], [1], [0, 0, 1, 1], [], []>} : vector<64x128xf32>, vector<128x512xf32>, vector<64x512xf32> -> vector<64x512xf32>
    %236 = arith.addf %234, %235 : vector<64x512xf32>
    %237 = vector.extract_strided_slice %236 {offsets = [0, 0], sizes = [64, 128], strides = [1, 1]} : vector<64x512xf32> to vector<64x128xf32>
    %238 = arith.negf %237 : vector<64x128xf32>
    %239 = math.exp %238 : vector<64x128xf32>
    %cst_56 = arith.constant 1.000000e+00 : f32
    %240 = vector.broadcast %cst_56 : f32 to vector<64x128xf32>
    %241 = arith.addf %240, %239 : vector<64x128xf32>
    %242 = arith.divf %240, %241 : vector<64x128xf32>
    %243 = vector.extract_strided_slice %236 {offsets = [0, 128], sizes = [64, 128], strides = [1, 1]} : vector<64x512xf32> to vector<64x128xf32>
    %244 = arith.negf %243 : vector<64x128xf32>
    %245 = math.exp %244 : vector<64x128xf32>
    %cst_57 = arith.constant 1.000000e+00 : f32
    %246 = vector.broadcast %cst_57 : f32 to vector<64x128xf32>
    %247 = arith.addf %246, %245 : vector<64x128xf32>
    %248 = arith.divf %246, %247 : vector<64x128xf32>
    %249 = vector.extract_strided_slice %236 {offsets = [0, 256], sizes = [64, 128], strides = [1, 1]} : vector<64x512xf32> to vector<64x128xf32>
    %250 = math.tanh %249 : vector<64x128xf32>
    %251 = vector.extract_strided_slice %236 {offsets = [0, 384], sizes = [64, 128], strides = [1, 1]} : vector<64x512xf32> to vector<64x128xf32>
    %252 = arith.negf %251 : vector<64x128xf32>
    %253 = math.exp %252 : vector<64x128xf32>
    %cst_58 = arith.constant 1.000000e+00 : f32
    %254 = vector.broadcast %cst_58 : f32 to vector<64x128xf32>
    %255 = arith.addf %254, %253 : vector<64x128xf32>
    %256 = arith.divf %254, %255 : vector<64x128xf32>
    %257 = arith.mulf %248, %199 : vector<64x128xf32>
    %258 = arith.mulf %242, %250 : vector<64x128xf32>
    %259 = arith.addf %257, %258 : vector<64x128xf32>
    %260 = math.tanh %259 : vector<64x128xf32>
    %261 = arith.mulf %256, %260 : vector<64x128xf32>
    %c4_i32 = arith.constant 4 : i32
    %c0_59 = arith.constant 0 : index
    %c0_60 = arith.constant 0 : index
    %262 = vector.load %arg7[%c0_59, %c0_60] : memref<128x128xf32, #tpu.memory_space<vmem>>, vector<128x128xf32>
    %c0_61 = arith.constant 0 : index
    %c0_62 = arith.constant 0 : index
    %263 = vector.load %arg8[%c0_61, %c0_62] : memref<1x128xf32, #tpu.memory_space<vmem>>, vector<1x128xf32>
    %cst_63 = arith.constant dense<0.000000e+00> : vector<64x128xf32>
    %264 = tpu.matmul %233, %262, %cst_63 {dimension_numbers = #tpu.dot_dimension_numbers<[1], [0], [0], [1], [0, 0, 1, 1], [], []>} : vector<64x128xf32>, vector<128x128xf32>, vector<64x128xf32> -> vector<64x128xf32>
    %265 = vector.broadcast %263 : vector<1x128xf32> to vector<64x128xf32>
    %266 = arith.addf %264, %265 : vector<64x128xf32>
    %c0_64 = arith.constant 0 : index
    %c0_65 = arith.constant 0 : index
    %c0_66 = arith.constant 0 : index
    %267 = vector.load %arg9[%c0_64, %c0_65, %c0_66] : memref<1x128x128xf32, #tpu.memory_space<vmem>>, vector<1x64x128xf32>
    %268 = vector.shape_cast %267 : vector<1x64x128xf32> to vector<64x128xf32>
    %269 = vector.shape_cast %266 : vector<64x128xf32> to vector<1x64x128xf32>
    tpu.vector_store %arg9[%c0_64, %c0_65, %c0_66], %269 {strides = array<i32>} : memref<1x128x128xf32, #tpu.memory_space<vmem>>, vector<1x64x128xf32>,
    %cst_67 = arith.constant dense<0.000000e+00> : vector<64x128xf32>
    %270 = tpu.matmul %261, %262, %cst_67 {dimension_numbers = #tpu.dot_dimension_numbers<[1], [0], [0], [1], [0, 0, 1, 1], [], []>} : vector<64x128xf32>, vector<128x128xf32>, vector<64x128xf32> -> vector<64x128xf32>
    %271 = vector.broadcast %263 : vector<1x128xf32> to vector<64x128xf32>
    %272 = arith.addf %270, %271 : vector<64x128xf32>
    %c0_68 = arith.constant 0 : index
    %c64 = arith.constant 64 : index
    %c0_69 = arith.constant 0 : index
    %273 = vector.load %arg9[%c0_68, %c64, %c0_69] : memref<1x128x128xf32, #tpu.memory_space<vmem>>, vector<1x64x128xf32>
    %274 = vector.shape_cast %273 : vector<1x64x128xf32> to vector<64x128xf32>
    %275 = vector.shape_cast %272 : vector<64x128xf32> to vector<1x64x128xf32>
    tpu.vector_store %arg9[%c0_68, %c64, %c0_69], %275 {strides = array<i32>} : memref<1x128x128xf32, #tpu.memory_space<vmem>>, vector<1x64x128xf32>,
    return
  }
  func.func @transform_0(%arg0: i32) -> (i32, i32, i32) {
    %c0_i32 = arith.constant 0 : i32
    %c0_i32_0 = arith.constant 0 : i32
    %c0_i32_1 = arith.constant 0 : i32
    return %arg0, %c0_i32, %c0_i32_0 : i32, i32, i32
  }
  func.func @transform_1(%arg0: i32) -> (i32, i32) {
    %c0_i32 = arith.constant 0 : i32
    %c0_i32_0 = arith.constant 0 : i32
    %c0_i32_1 = arith.constant 0 : i32
    return %c0_i32, %c0_i32_0 : i32, i32
  }
  func.func @transform_2(%arg0: i32) -> (i32, i32) {
    %c0_i32 = arith.constant 0 : i32
    %c0_i32_0 = arith.constant 0 : i32
    %c0_i32_1 = arith.constant 0 : i32
    return %c0_i32, %c0_i32_0 : i32, i32
  }
  func.func @transform_3(%arg0: i32) -> (i32, i32) {
    %c0_i32 = arith.constant 0 : i32
    %c0_i32_0 = arith.constant 0 : i32
    %c0_i32_1 = arith.constant 0 : i32
    return %c0_i32, %c0_i32_0 : i32, i32
  }
  func.func @transform_4(%arg0: i32) -> (i32, i32) {
    %c0_i32 = arith.constant 0 : i32
    %c0_i32_0 = arith.constant 0 : i32
    %c0_i32_1 = arith.constant 0 : i32
    return %c0_i32, %c0_i32_0 : i32, i32
  }
  func.func @transform_5(%arg0: i32) -> (i32, i32) {
    %c0_i32 = arith.constant 0 : i32
    %c0_i32_0 = arith.constant 0 : i32
    %c0_i32_1 = arith.constant 0 : i32
    return %c0_i32, %c0_i32_0 : i32, i32
  }
  func.func @transform_6(%arg0: i32) -> (i32, i32) {
    %c0_i32 = arith.constant 0 : i32
    %c0_i32_0 = arith.constant 0 : i32
    %c0_i32_1 = arith.constant 0 : i32
    return %c0_i32, %c0_i32_0 : i32, i32
  }
  func.func @transform_7(%arg0: i32) -> (i32, i32) {
    %c0_i32 = arith.constant 0 : i32
    %c0_i32_0 = arith.constant 0 : i32
    %c0_i32_1 = arith.constant 0 : i32
    return %c0_i32, %c0_i32_0 : i32, i32
  }
  func.func @transform_8(%arg0: i32) -> (i32, i32, i32) {
    %c0_i32 = arith.constant 0 : i32
    %c0_i32_0 = arith.constant 0 : i32
    %c0_i32_1 = arith.constant 0 : i32
    return %arg0, %c0_i32, %c0_i32_0 : i32, i32, i32
  }
}

</mosaic_0001>

<llo_original>
// kernel: tpu_custom_call.1
$region0: #{tpu_custom_call.1}
  #allocation0 [shape = 'u32[]', space=smem, size = 0x4, offset = 0x4, fixed_abs, tag = 'smem constant byte address 0x4 - core index']
  #allocation1 [shape = 'u32[72,128]{1,0:T(1,128)}', space=vmem, size = 0x9000, scoped, tag = 'internal scratch']
  #allocation2 [shape = 'f32[512,512]{1,0:T(8,128)}', space=vmem, size = 0x100000, scoped, tag = 'scratch operand']
  %s0 = inlined_call_operand.vmem [shape: f32[1,12,1024], index: 0, kind: input, shape index: {}]
  %s1 = inlined_call_operand.vmem [shape: f32[64,12], index: 1, kind: input, shape index: {}]
  %s2 = inlined_call_operand.vmem [shape: f32[1,64], index: 2, kind: input, shape index: {}]
  %s3 = inlined_call_operand.vmem [shape: f32[64,512], index: 3, kind: input, shape index: {}]
  %s4 = inlined_call_operand.hbm [shape: f32[128,512], index: 4, kind: input, shape index: {}]
  %s5 = inlined_call_operand.vmem [shape: f32[1,512], index: 5, kind: input, shape index: {}]
  %s6 = inlined_call_operand.hbm [shape: f32[128,128], index: 6, kind: input, shape index: {}]
  %s7 = inlined_call_operand.vmem [shape: f32[1,128], index: 7, kind: input, shape index: {}]
  %s8 = inlined_call_operand.hbm [shape: f32[1,128,128], index: 8, kind: output, shape index: {}]
  %s9 = sld [smem:[#allocation0]]
  $region50: #{tpu_custom_call.1} parent=0
    _
  %s11 = ssub.s32 1, %s9
  %s12 = scalar_select 0, %s11, %s9
  $region1: #{tpu_custom_call.1} parent=0
    #allocation3 [shape = 'u8[262144]{0}', space=vmem, size = 0x40000, scoped, tag = 'input window, operand 4, single buffered']
    #allocation4 [shape = 's32[1]{0}', space=sflag, size = 0x4, scoped, tag = 'scoped memory for tpu_custom_call.1']
    #allocation5 [shape = 's32[1]{0}', space=sflag, size = 0x4, scoped, tag = 'scoped memory for tpu_custom_call.1']
    #allocation6 [shape = 'u8[65536]{0}', space=vmem, size = 0x10000, scoped, tag = 'input window, operand 6, single buffered']
    #allocation7 [shape = 's32[1]{0}', space=sflag, size = 0x4, scoped, tag = 'scoped memory for tpu_custom_call.1']
    #allocation8 [shape = 'u8[65536]{0}', space=vmem, size = 0x10000, scoped, tag = 'output window, operand 0, single buffered']
    %13 = vsyncpa [#allocation4], 0
    %14 = vsyncpa [#allocation7], 0
    %15 = vsyncpa [#allocation5], 0
    // Predicated region
    $region2: #{tpu_custom_call.1} parent=1 // pred_check
      _
    $region3: #{tpu_custom_call.1} parent=1 // pred_check_branch
      %17 = sbr.rel (0) target = $region5
    $region4: #{tpu_custom_call.1} parent=1 // pred_region
      _
    $region5: #{tpu_custom_call.1} parent=1 // pred_fallthru
      _
    // Predicated region
    $region6: #{tpu_custom_call.1} parent=1 // pred_check
      _
    $region7: #{tpu_custom_call.1} parent=1 // pred_check_branch
      %19 = sbr.rel (0) target = $region9
    $region8: #{tpu_custom_call.1} parent=1 // pred_region
      _
    $region9: #{tpu_custom_call.1} parent=1 // pred_fallthru
      _
    // Predicated region
    $region10: #{tpu_custom_call.1} parent=1 // pred_check
      _
    $region11: #{tpu_custom_call.1} parent=1 // pred_check_branch
      %21 = sbr.rel (0) target = $region13
    $region12: #{tpu_custom_call.1} parent=1 // pred_region
      _
    $region13: #{tpu_custom_call.1} parent=1 // pred_fallthru
      _
    // Predicated region
    $region14: #{tpu_custom_call.1} parent=1 // pred_check
      _
    $region15: #{tpu_custom_call.1} parent=1 // pred_check_branch
      %23 = sbr.rel (0) target = $region17
    $region16: #{tpu_custom_call.1} parent=1 // pred_region
      _
    $region17: #{tpu_custom_call.1} parent=1 // pred_fallthru
      _
    // Predicated region
    $region18: #{tpu_custom_call.1} parent=1 // pred_check
      _
    $region19: #{tpu_custom_call.1} parent=1 // pred_check_branch
      %25 = sbr.rel (0) target = $region21
    $region20: #{tpu_custom_call.1} parent=1 // pred_region
      %27 = vsyncadd [#allocation4], 0
      %s28 = sshll.u32 %s4, 4
      %s29 = int_to_ptr.hbm [resolvable:$true] %s28
      %s30 = sshll.u32 [#allocation3], 4
      %s31 = int_to_ptr.vmem [resolvable:$true] %s30
      %36 = dma.hbm_to_vmem [thread:$0]  %s29, 8192, %s31, [#allocation4], 512, 512, 32
    $region21: #{tpu_custom_call.1} parent=1 // pred_fallthru
      _
    // Predicated region
    $region22: #{tpu_custom_call.1} parent=1 // pred_check
      _
    $region23: #{tpu_custom_call.1} parent=1 // pred_check_branch
      %38 = sbr.rel (0) target = $region25
    $region24: #{tpu_custom_call.1} parent=1 // pred_region
      _
    $region25: #{tpu_custom_call.1} parent=1 // pred_fallthru
      _
    // Predicated region
    $region26: #{tpu_custom_call.1} parent=1 // pred_check
      _
    $region27: #{tpu_custom_call.1} parent=1 // pred_check_branch
      %40 = sbr.rel (0) target = $region29
    $region28: #{tpu_custom_call.1} parent=1 // pred_region
      %42 = vsyncadd [#allocation7], 0
      %s43 = sshll.u32 %s6, 4
      %s44 = int_to_ptr.hbm [resolvable:$true] %s43
      %s45 = sshll.u32 [#allocation6], 4
      %s46 = int_to_ptr.vmem [resolvable:$true] %s45
      %51 = dma.hbm_to_vmem [thread:$0]  %s44, 2048, %s46, [#allocation7], 128, 128, 8
    $region29: #{tpu_custom_call.1} parent=1 // pred_fallthru
      _
    // Predicated region
    $region30: #{tpu_custom_call.1} parent=1 // pred_check
      _
    $region31: #{tpu_custom_call.1} parent=1 // pred_check_branch
      %53 = sbr.rel (0) target = $region33
    $region32: #{tpu_custom_call.1} parent=1 // pred_region
      _
    $region33: #{tpu_custom_call.1} parent=1 // pred_fallthru
      _
    // Predicated region
    $region34: #{tpu_custom_call.1} parent=1 // pred_check
      _
    $region35: #{tpu_custom_call.1} parent=1 // pred_check_branch
      %55 = sbr.rel (0) target = $region37
    $region36: #{tpu_custom_call.1} parent=1 // pred_region
      %57 = dma.done [#allocation4], 8192
    $region37: #{tpu_custom_call.1} parent=1 // pred_fallthru
      _
    // Predicated region
    $region38: #{tpu_custom_call.1} parent=1 // pred_check
      _
    $region39: #{tpu_custom_call.1} parent=1 // pred_check_branch
      %59 = sbr.rel (0) target = $region41
    $region40: #{tpu_custom_call.1} parent=1 // pred_region
      %61 = dma.done [#allocation7], 2048
    $region41: #{tpu_custom_call.1} parent=1 // pred_fallthru
      _
    %v62 = vld [vmem:[%s1] sm:$0xff]
    %v63 = vld [vmem:[%s1 + $0x8] sm:$0xff]
    %v64 = vld [vmem:[%s1 + $0x10] sm:$0xff]
    %v65 = vld [vmem:[%s1 + $0x18] sm:$0xff]
    %v66 = vld [vmem:[%s1 + $0x20] sm:$0xff]
    %v67 = vld [vmem:[%s1 + $0x28] sm:$0xff]
    %v68 = vld [vmem:[%s1 + $0x30] sm:$0xff]
    %v69 = vld [vmem:[%s1 + $0x38] sm:$0xff]
    %v70 = vld [vmem:[%s2] sm:$0x1]
    %v71 = vld [vmem:[%s3] sm:$0xff]
    %v72 = vld [vmem:[%s3 + $0x8] sm:$0xff]
    %v73 = vld [vmem:[%s3 + $0x10] sm:$0xff]
    %v74 = vld [vmem:[%s3 + $0x18] sm:$0xff]
    %v75 = vld [vmem:[%s3 + $0x20] sm:$0xff]
    %v76 = vld [vmem:[%s3 + $0x28] sm:$0xff]
    %v77 = vld [vmem:[%s3 + $0x30] sm:$0xff]
    %v78 = vld [vmem:[%s3 + $0x38] sm:$0xff]
    %v79 = vld [vmem:[%s3 + $0x40] sm:$0xff]
    %v80 = vld [vmem:[%s3 + $0x48] sm:$0xff]
    %v81 = vld [vmem:[%s3 + $0x50] sm:$0xff]
    %v82 = vld [vmem:[%s3 + $0x58] sm:$0xff]
    %v83 = vld [vmem:[%s3 + $0x60] sm:$0xff]
    %v84 = vld [vmem:[%s3 + $0x68] sm:$0xff]
    %v85 = vld [vmem:[%s3 + $0x70] sm:$0xff]
    %v86 = vld [vmem:[%s3 + $0x78] sm:$0xff]
    %v87 = vld [vmem:[%s3 + $0x80] sm:$0xff]
    %v88 = vld [vmem:[%s3 + $0x88] sm:$0xff]
    %v89 = vld [vmem:[%s3 + $0x90] sm:$0xff]
    %v90 = vld [vmem:[%s3 + $0x98] sm:$0xff]
    %v91 = vld [vmem:[%s3 + $0xa0] sm:$0xff]
    %v92 = vld [vmem:[%s3 + $0xa8] sm:$0xff]
    %v93 = vld [vmem:[%s3 + $0xb0] sm:$0xff]
    %v94 = vld [vmem:[%s3 + $0xb8] sm:$0xff]
    %v95 = vld [vmem:[%s3 + $0xc0] sm:$0xff]
    %v96 = vld [vmem:[%s3 + $0xc8] sm:$0xff]
    %v97 = vld [vmem:[%s3 + $0xd0] sm:$0xff]
    %v98 = vld [vmem:[%s3 + $0xd8] sm:$0xff]
    %v99 = vld [vmem:[%s3 + $0xe0] sm:$0xff]
    %v100 = vld [vmem:[%s3 + $0xe8] sm:$0xff]
    %v101 = vld [vmem:[%s3 + $0xf0] sm:$0xff]
    %v102 = vld [vmem:[%s3 + $0xf8] sm:$0xff]
    %v103 = vld [vmem:[%s5] sm:$0xf]
    %v104 = vld [vmem:[%s0] sm:$0xff]
    %v105 = vld [vmem:[%s0 + $0x8] sm:$0xff]
    %v106 = vld [vmem:[%s0 + $0x10] sm:$0xff]
    %v107 = vld [vmem:[%s0 + $0x18] sm:$0xff]
    %v108 = vld [vmem:[%s0 + $0x40] sm:$0xf]
    %v109 = vld [vmem:[%s0 + $0x48] sm:$0xf]
    %v110 = vld [vmem:[%s0 + $0x50] sm:$0xf]
    %v111 = vld [vmem:[%s0 + $0x58] sm:$0xf]
    %v112 = vld [vmem:[%s0 + $0x20] sm:$0xff]
    %v113 = vld [vmem:[%s0 + $0x28] sm:$0xff]
    %v114 = vld [vmem:[%s0 + $0x30] sm:$0xff]
    %v115 = vld [vmem:[%s0 + $0x38] sm:$0xff]
    %v116 = vld [vmem:[%s0 + $0x60] sm:$0xf]
    %v117 = vld [vmem:[%s0 + $0x68] sm:$0xf]
    %v118 = vld [vmem:[%s0 + $0x70] sm:$0xf]
    %v119 = vld [vmem:[%s0 + $0x78] sm:$0xf]
    %vm120 = vcmask 97280
    %v122 = vsel %vm120, %v62, 0
    %v125 = vsel %vm120, %v63, 0
    %v128 = vsel %vm120, %v64, 0
    %v131 = vsel %vm120, %v65, 0
    %v134 = vsel %vm120, %v66, 0
    %v137 = vsel %vm120, %v67, 0
    %v140 = vsel %vm120, %v68, 0
    %v143 = vsel %vm120, %v69, 0
    %vm145 = vcmask 1043456
    %v147 = vsel %vm145, %v108, 0
    %v150 = vsel %vm145, %v109, 0
    %v153 = vsel %vm145, %v110, 0
    %v156 = vsel %vm145, %v111, 0
    %158 = vmatpush.msra.mxu0 0.0
    %159 = vmatpush.msra.mxu0 0.0
    %160 = vmatpush.msra.mxu0 0.0
    %161 = vmatpush.msra.mxu0 0.0
    %162 = vmatpush.msra.mxu0 0.0
    %163 = vmatpush.msra.mxu0 0.0
    %164 = vmatpush.msra.mxu0 0.0
    %165 = vmatpush.msra.mxu0 0.0
    %166 = vmatpush.msra.mxu0 0.0
    %167 = vmatpush.msra.mxu0 0.0
    %168 = vmatpush.msra.mxu0 0.0
    %169 = vmatpush.msra.mxu0 0.0
    %170 = vmatpush.msra.mxu0 0.0
    %171 = vmatpush.msra.mxu0 0.0
    %172 = vmatpush.msra.mxu0 %v147
    %173 = vmatpush.msra.mxu0 %v104
    %174 = vmatmul.f32.gmra.mxu0 %v122
    %v175 = vpop.f32.mrf.mxu0
    %v176 = vadd.f32 0.0, %v175
    %177 = vmatmul.f32.gmra.mxu0 %v125
    %v178 = vpop.f32.mrf.mxu0
    %v179 = vadd.f32 0.0, %v178
    %180 = vmatmul.f32.gmra.mxu0 %v128
    %v181 = vpop.f32.mrf.mxu0
    %v182 = vadd.f32 0.0, %v181
    %183 = vmatmul.f32.gmra.mxu0 %v131
    %v184 = vpop.f32.mrf.mxu0
    %v185 = vadd.f32 0.0, %v184
    %186 = vmatmul.f32.gmra.mxu0 %v134
    %v187 = vpop.f32.mrf.mxu0
    %v188 = vadd.f32 0.0, %v187
    %189 = vmatmul.f32.gmra.mxu0 %v137
    %v190 = vpop.f32.mrf.mxu0
    %v191 = vadd.f32 0.0, %v190
    %192 = vmatmul.f32.gmra.mxu0 %v140
    %v193 = vpop.f32.mrf.mxu0
    %v194 = vadd.f32 0.0, %v193
    %195 = vmatmul.f32.gmra.mxu0 %v143
    %v196 = vpop.f32.mrf.mxu0
    %v197 = vadd.f32 0.0, %v196
    %198 = vdwg.mxu0
    %199 = vmatpush.msra.mxu0 0.0
    %200 = vmatpush.msra.mxu0 0.0
    %201 = vmatpush.msra.mxu0 0.0
    %202 = vmatpush.msra.mxu0 0.0
    %203 = vmatpush.msra.mxu0 0.0
    %204 = vmatpush.msra.mxu0 0.0
    %205 = vmatpush.msra.mxu0 0.0
    %206 = vmatpush.msra.mxu0 0.0
    %207 = vmatpush.msra.mxu0 0.0
    %208 = vmatpush.msra.mxu0 0.0
    %209 = vmatpush.msra.mxu0 0.0
    %210 = vmatpush.msra.mxu0 0.0
    %211 = vmatpush.msra.mxu0 0.0
    %212 = vmatpush.msra.mxu0 0.0
    %213 = vmatpush.msra.mxu0 %v150
    %214 = vmatpush.msra.mxu0 %v105
    %215 = vmatmul.f32.gmra.mxu0 %v122
    %v216 = vpop.f32.mrf.mxu0
    %v217 = vadd.f32 0.0, %v216
    %218 = vmatmul.f32.gmra.mxu0 %v125
    %v219 = vpop.f32.mrf.mxu0
    %v220 = vadd.f32 0.0, %v219
    %221 = vmatmul.f32.gmra.mxu0 %v128
    %v222 = vpop.f32.mrf.mxu0
    %v223 = vadd.f32 0.0, %v222
    %224 = vmatmul.f32.gmra.mxu0 %v131
    %v225 = vpop.f32.mrf.mxu0
    %v226 = vadd.f32 0.0, %v225
    %227 = vmatmul.f32.gmra.mxu0 %v134
    %v228 = vpop.f32.mrf.mxu0
    %v229 = vadd.f32 0.0, %v228
    %230 = vmatmul.f32.gmra.mxu0 %v137
    %v231 = vpop.f32.mrf.mxu0
    %v232 = vadd.f32 0.0, %v231
    %233 = vmatmul.f32.gmra.mxu0 %v140
    %v234 = vpop.f32.mrf.mxu0
    %v235 = vadd.f32 0.0, %v234
    %236 = vmatmul.f32.gmra.mxu0 %v143
    %v237 = vpop.f32.mrf.mxu0
    %v238 = vadd.f32 0.0, %v237
    %239 = vdwg.mxu0
    %240 = vmatpush.msra.mxu0 0.0
    %241 = vmatpush.msra.mxu0 0.0
    %242 = vmatpush.msra.mxu0 0.0
    %243 = vmatpush.msra.mxu0 0.0
    %244 = vmatpush.msra.mxu0 0.0
    %245 = vmatpush.msra.mxu0 0.0
    %246 = vmatpush.msra.mxu0 0.0
    %247 = vmatpush.msra.mxu0 0.0
    %248 = vmatpush.msra.mxu0 0.0
    %249 = vmatpush.msra.mxu0 0.0
    %250 = vmatpush.msra.mxu0 0.0
    %251 = vmatpush.msra.mxu0 0.0
    %252 = vmatpush.msra.mxu0 0.0
    %253 = vmatpush.msra.mxu0 0.0
    %254 = vmatpush.msra.mxu0 %v153
    %255 = vmatpush.msra.mxu0 %v106
    %256 = vmatmul.f32.gmra.mxu0 %v122
    %v257 = vpop.f32.mrf.mxu0
    %v258 = vadd.f32 0.0, %v257
    %259 = vmatmul.f32.gmra.mxu0 %v125
    %v260 = vpop.f32.mrf.mxu0
    %v261 = vadd.f32 0.0, %v260
    %262 = vmatmul.f32.gmra.mxu0 %v128
    %v263 = vpop.f32.mrf.mxu0
    %v264 = vadd.f32 0.0, %v263
    %265 = vmatmul.f32.gmra.mxu0 %v131
    %v266 = vpop.f32.mrf.mxu0
    %v267 = vadd.f32 0.0, %v266
    %268 = vmatmul.f32.gmra.mxu0 %v134
    %v269 = vpop.f32.mrf.mxu0
    %v270 = vadd.f32 0.0, %v269
    %271 = vmatmul.f32.gmra.mxu0 %v137
    %v272 = vpop.f32.mrf.mxu0
    %v273 = vadd.f32 0.0, %v272
    %274 = vmatmul.f32.gmra.mxu0 %v140
    %v275 = vpop.f32.mrf.mxu0
    %v276 = vadd.f32 0.0, %v275
    %277 = vmatmul.f32.gmra.mxu0 %v143
    %v278 = vpop.f32.mrf.mxu0
    %v279 = vadd.f32 0.0, %v278
    %280 = vdwg.mxu0
    %281 = vmatpush.msra.mxu0 0.0
    %282 = vmatpush.msra.mxu0 0.0
    %283 = vmatpush.msra.mxu0 0.0
    %284 = vmatpush.msra.mxu0 0.0
    %285 = vmatpush.msra.mxu0 0.0
    %286 = vmatpush.msra.mxu0 0.0
    %287 = vmatpush.msra.mxu0 0.0
    %288 = vmatpush.msra.mxu0 0.0
    %289 = vmatpush.msra.mxu0 0.0
    %290 = vmatpush.msra.mxu0 0.0
    %291 = vmatpush.msra.mxu0 0.0
    %292 = vmatpush.msra.mxu0 0.0
    %293 = vmatpush.msra.mxu0 0.0
    %294 = vmatpush.msra.mxu0 0.0
    %295 = vmatpush.msra.mxu0 %v156
    %296 = vmatpush.msra.mxu0 %v107
    %297 = vmatmul.f32.gmra.mxu0 %v122
    %v298 = vpop.f32.mrf.mxu0
    %v299 = vadd.f32 0.0, %v298
    %300 = vmatmul.f32.gmra.mxu0 %v125
    %v301 = vpop.f32.mrf.mxu0
    %v302 = vadd.f32 0.0, %v301
    %303 = vmatmul.f32.gmra.mxu0 %v128
    %v304 = vpop.f32.mrf.mxu0
    %v305 = vadd.f32 0.0, %v304
    %306 = vmatmul.f32.gmra.mxu0 %v131
    %v307 = vpop.f32.mrf.mxu0
    %v308 = vadd.f32 0.0, %v307
    %309 = vmatmul.f32.gmra.mxu0 %v134
    %v310 = vpop.f32.mrf.mxu0
    %v311 = vadd.f32 0.0, %v310
    %312 = vmatmul.f32.gmra.mxu0 %v137
    %v313 = vpop.f32.mrf.mxu0
    %v314 = vadd.f32 0.0, %v313
    %315 = vmatmul.f32.gmra.mxu0 %v140
    %v316 = vpop.f32.mrf.mxu0
    %v317 = vadd.f32 0.0, %v316
    %318 = vmatmul.f32.gmra.mxu0 %v143
    %v319 = vpop.f32.mrf.mxu0
    %v320 = vadd.f32 0.0, %v319
    %321 = vdwg.mxu0
    %v323 = vsel %vm145, %v116, 0
    %v326 = vsel %vm145, %v117, 0
    %v329 = vsel %vm145, %v118, 0
    %v332 = vsel %vm145, %v119, 0
    %334 = vmatpush.msra.mxu0 0.0
    %335 = vmatpush.msra.mxu0 0.0
    %336 = vmatpush.msra.mxu0 0.0
    %337 = vmatpush.msra.mxu0 0.0
    %338 = vmatpush.msra.mxu0 0.0
    %339 = vmatpush.msra.mxu0 0.0
    %340 = vmatpush.msra.mxu0 0.0
    %341 = vmatpush.msra.mxu0 0.0
    %342 = vmatpush.msra.mxu0 0.0
    %343 = vmatpush.msra.mxu0 0.0
    %344 = vmatpush.msra.mxu0 0.0
    %345 = vmatpush.msra.mxu0 0.0
    %346 = vmatpush.msra.mxu0 0.0
    %347 = vmatpush.msra.mxu0 0.0
    %348 = vmatpush.msra.mxu0 %v323
    %349 = vmatpush.msra.mxu0 %v112
    %350 = vmatmul.f32.gmra.mxu0 %v122
    %v351 = vpop.f32.mrf.mxu0
    %v352 = vadd.f32 0.0, %v351
    %353 = vmatmul.f32.gmra.mxu0 %v125
    %v354 = vpop.f32.mrf.mxu0
    %v355 = vadd.f32 0.0, %v354
    %356 = vmatmul.f32.gmra.mxu0 %v128
    %v357 = vpop.f32.mrf.mxu0
    %v358 = vadd.f32 0.0, %v357
    %359 = vmatmul.f32.gmra.mxu0 %v131
    %v360 = vpop.f32.mrf.mxu0
    %v361 = vadd.f32 0.0, %v360
    %362 = vmatmul.f32.gmra.mxu0 %v134
    %v363 = vpop.f32.mrf.mxu0
    %v364 = vadd.f32 0.0, %v363
    %365 = vmatmul.f32.gmra.mxu0 %v137
    %v366 = vpop.f32.mrf.mxu0
    %v367 = vadd.f32 0.0, %v366
    %368 = vmatmul.f32.gmra.mxu0 %v140
    %v369 = vpop.f32.mrf.mxu0
    %v370 = vadd.f32 0.0, %v369
    %371 = vmatmul.f32.gmra.mxu0 %v143
    %v372 = vpop.f32.mrf.mxu0
    %v373 = vadd.f32 0.0, %v372
    %374 = vdwg.mxu0
    %375 = vmatpush.msra.mxu0 0.0
    %376 = vmatpush.msra.mxu0 0.0
    %377 = vmatpush.msra.mxu0 0.0
    %378 = vmatpush.msra.mxu0 0.0
    %379 = vmatpush.msra.mxu0 0.0
    %380 = vmatpush.msra.mxu0 0.0
    %381 = vmatpush.msra.mxu0 0.0
    %382 = vmatpush.msra.mxu0 0.0
    %383 = vmatpush.msra.mxu0 0.0
    %384 = vmatpush.msra.mxu0 0.0
    %385 = vmatpush.msra.mxu0 0.0
    %386 = vmatpush.msra.mxu0 0.0
    %387 = vmatpush.msra.mxu0 0.0
    %388 = vmatpush.msra.mxu0 0.0
    %389 = vmatpush.msra.mxu0 %v326
    %390 = vmatpush.msra.mxu0 %v113
    %391 = vmatmul.f32.gmra.mxu0 %v122
    %v392 = vpop.f32.mrf.mxu0
    %v393 = vadd.f32 0.0, %v392
    %394 = vmatmul.f32.gmra.mxu0 %v125
    %v395 = vpop.f32.mrf.mxu0
    %v396 = vadd.f32 0.0, %v395
    %397 = vmatmul.f32.gmra.mxu0 %v128
    %v398 = vpop.f32.mrf.mxu0
    %v399 = vadd.f32 0.0, %v398
    %400 = vmatmul.f32.gmra.mxu0 %v131
    %v401 = vpop.f32.mrf.mxu0
    %v402 = vadd.f32 0.0, %v401
    %403 = vmatmul.f32.gmra.mxu0 %v134
    %v404 = vpop.f32.mrf.mxu0
    %v405 = vadd.f32 0.0, %v404
    %406 = vmatmul.f32.gmra.mxu0 %v137
    %v407 = vpop.f32.mrf.mxu0
    %v408 = vadd.f32 0.0, %v407
    %409 = vmatmul.f32.gmra.mxu0 %v140
    %v410 = vpop.f32.mrf.mxu0
    %v411 = vadd.f32 0.0, %v410
    %412 = vmatmul.f32.gmra.mxu0 %v143
    %v413 = vpop.f32.mrf.mxu0
    %v414 = vadd.f32 0.0, %v413
    %415 = vdwg.mxu0
    %416 = vmatpush.msra.mxu0 0.0
    %417 = vmatpush.msra.mxu0 0.0
    %418 = vmatpush.msra.mxu0 0.0
    %419 = vmatpush.msra.mxu0 0.0
    %420 = vmatpush.msra.mxu0 0.0
    %421 = vmatpush.msra.mxu0 0.0
    %422 = vmatpush.msra.mxu0 0.0
    %423 = vmatpush.msra.mxu0 0.0
    %424 = vmatpush.msra.mxu0 0.0
    %425 = vmatpush.msra.mxu0 0.0
    %426 = vmatpush.msra.mxu0 0.0
    %427 = vmatpush.msra.mxu0 0.0
    %428 = vmatpush.msra.mxu0 0.0
    %429 = vmatpush.msra.mxu0 0.0
    %430 = vmatpush.msra.mxu0 %v329
    %431 = vmatpush.msra.mxu0 %v114
    %432 = vmatmul.f32.gmra.mxu0 %v122
    %v433 = vpop.f32.mrf.mxu0
    %v434 = vadd.f32 0.0, %v433
    %435 = vmatmul.f32.gmra.mxu0 %v125
    %v436 = vpop.f32.mrf.mxu0
    %v437 = vadd.f32 0.0, %v436
    %438 = vmatmul.f32.gmra.mxu0 %v128
    %v439 = vpop.f32.mrf.mxu0
    %v440 = vadd.f32 0.0, %v439
    %441 = vmatmul.f32.gmra.mxu0 %v131
    %v442 = vpop.f32.mrf.mxu0
    %v443 = vadd.f32 0.0, %v442
    %444 = vmatmul.f32.gmra.mxu0 %v134
    %v445 = vpop.f32.mrf.mxu0
    %v446 = vadd.f32 0.0, %v445
    %447 = vmatmul.f32.gmra.mxu0 %v137
    %v448 = vpop.f32.mrf.mxu0
    %v449 = vadd.f32 0.0, %v448
    %450 = vmatmul.f32.gmra.mxu0 %v140
    %v451 = vpop.f32.mrf.mxu0
    %v452 = vadd.f32 0.0, %v451
    %453 = vmatmul.f32.gmra.mxu0 %v143
    %v454 = vpop.f32.mrf.mxu0
    %v455 = vadd.f32 0.0, %v454
    %456 = vdwg.mxu0
    %457 = vmatpush.msra.mxu0 0.0
    %458 = vmatpush.msra.mxu0 0.0
    %459 = vmatpush.msra.mxu0 0.0
    %460 = vmatpush.msra.mxu0 0.0
    %461 = vmatpush.msra.mxu0 0.0
    %462 = vmatpush.msra.mxu0 0.0
    %463 = vmatpush.msra.mxu0 0.0
    %464 = vmatpush.msra.mxu0 0.0
    %465 = vmatpush.msra.mxu0 0.0
    %466 = vmatpush.msra.mxu0 0.0
    %467 = vmatpush.msra.mxu0 0.0
    %468 = vmatpush.msra.mxu0 0.0
    %469 = vmatpush.msra.mxu0 0.0
    %470 = vmatpush.msra.mxu0 0.0
    %471 = vmatpush.msra.mxu0 %v332
    %472 = vmatpush.msra.mxu0 %v115
    %473 = vmatmul.f32.gmra.mxu0 %v122
    %v474 = vpop.f32.mrf.mxu0
    %v475 = vadd.f32 0.0, %v474
    %476 = vmatmul.f32.gmra.mxu0 %v125
    %v477 = vpop.f32.mrf.mxu0
    %v478 = vadd.f32 0.0, %v477
    %479 = vmatmul.f32.gmra.mxu0 %v128
    %v480 = vpop.f32.mrf.mxu0
    %v481 = vadd.f32 0.0, %v480
    %482 = vmatmul.f32.gmra.mxu0 %v131
    %v483 = vpop.f32.mrf.mxu0
    %v484 = vadd.f32 0.0, %v483
    %485 = vmatmul.f32.gmra.mxu0 %v134
    %v486 = vpop.f32.mrf.mxu0
    %v487 = vadd.f32 0.0, %v486
    %488 = vmatmul.f32.gmra.mxu0 %v137
    %v489 = vpop.f32.mrf.mxu0
    %v490 = vadd.f32 0.0, %v489
    %491 = vmatmul.f32.gmra.mxu0 %v140
    %v492 = vpop.f32.mrf.mxu0
    %v493 = vadd.f32 0.0, %v492
    %494 = vmatmul.f32.gmra.mxu0 %v143
    %v495 = vpop.f32.mrf.mxu0
    %v496 = vadd.f32 0.0, %v495
    %497 = vdwg.mxu0
    %v498 = vmax.f32 %v176, %v352
    %v499 = vmax.f32 %v217, %v393
    %v500 = vmax.f32 %v258, %v434
    %v501 = vmax.f32 %v299, %v475
    %v502 = vmax.f32 %v179, %v355
    %v503 = vmax.f32 %v220, %v396
    %v504 = vmax.f32 %v261, %v437
    %v505 = vmax.f32 %v302, %v478
    %v506 = vmax.f32 %v182, %v358
    %v507 = vmax.f32 %v223, %v399
    %v508 = vmax.f32 %v264, %v440
    %v509 = vmax.f32 %v305, %v481
    %v510 = vmax.f32 %v185, %v361
    %v511 = vmax.f32 %v226, %v402
    %v512 = vmax.f32 %v267, %v443
    %v513 = vmax.f32 %v308, %v484
    %v514 = vmax.f32 %v188, %v364
    %v515 = vmax.f32 %v229, %v405
    %v516 = vmax.f32 %v270, %v446
    %v517 = vmax.f32 %v311, %v487
    %v518 = vmax.f32 %v191, %v367
    %v519 = vmax.f32 %v232, %v408
    %v520 = vmax.f32 %v273, %v449
    %v521 = vmax.f32 %v314, %v490
    %v522 = vmax.f32 %v194, %v370
    %v523 = vmax.f32 %v235, %v411
    %v524 = vmax.f32 %v276, %v452
    %v525 = vmax.f32 %v317, %v493
    %v526 = vmax.f32 %v197, %v373
    %v527 = vmax.f32 %v238, %v414
    %v528 = vmax.f32 %v279, %v455
    %v529 = vmax.f32 %v320, %v496
    %530 = vxpose.xlu0.b32.start [1/16] %v498, 128
    %531 = vxpose.xlu0.b32.cont [2/16] %v502, 128
    %532 = vxpose.xlu0.b32.cont [3/16] %v506, 128
    %533 = vxpose.xlu0.b32.cont [4/16] %v510, 128
    %534 = vxpose.xlu0.b32.cont [5/16] %v514, 128
    %535 = vxpose.xlu0.b32.cont [6/16] %v518, 128
    %536 = vxpose.xlu0.b32.cont [7/16] %v522, 128
    %537 = vxpose.xlu0.b32.cont [8/16] %v526, 128
    %538 = vxpose.xlu0.b32.cont [9/16] 0.0, 128
    %539 = vxpose.xlu0.b32.cont [10/16] 0.0, 128
    %540 = vxpose.xlu0.b32.cont [11/16] 0.0, 128
    %541 = vxpose.xlu0.b32.cont [12/16] 0.0, 128
    %542 = vxpose.xlu0.b32.cont [13/16] 0.0, 128
    %543 = vxpose.xlu0.b32.cont [14/16] 0.0, 128
    %544 = vxpose.xlu0.b32.cont [15/16] 0.0, 128
    %545 = vxpose.xlu0.b32.end [16/16] 0.0, 128
    %v546 = vpop.trf.xlu0
    %v547 = vpop.trf.xlu0
    %v548 = vpop.trf.xlu0
    %v549 = vpop.trf.xlu0
    %v550 = vpop.trf.xlu0
    %v551 = vpop.trf.xlu0
    %v552 = vpop.trf.xlu0
    %v553 = vpop.trf.xlu0
    %v554 = vpop.trf.xlu0
    %v555 = vpop.trf.xlu0
    %v556 = vpop.trf.xlu0
    %v557 = vpop.trf.xlu0
    %v558 = vpop.trf.xlu0
    %v559 = vpop.trf.xlu0
    %v560 = vpop.trf.xlu0
    %v561 = vpop.trf.xlu0
    %562 = vxpose.xlu0.b32.start [1/16] %v499, 128
    %563 = vxpose.xlu0.b32.cont [2/16] %v503, 128
    %564 = vxpose.xlu0.b32.cont [3/16] %v507, 128
    %565 = vxpose.xlu0.b32.cont [4/16] %v511, 128
    %566 = vxpose.xlu0.b32.cont [5/16] %v515, 128
    %567 = vxpose.xlu0.b32.cont [6/16] %v519, 128
    %568 = vxpose.xlu0.b32.cont [7/16] %v523, 128
    %569 = vxpose.xlu0.b32.cont [8/16] %v527, 128
    %570 = vxpose.xlu0.b32.cont [9/16] 0.0, 128
    %571 = vxpose.xlu0.b32.cont [10/16] 0.0, 128
    %572 = vxpose.xlu0.b32.cont [11/16] 0.0, 128
    %573 = vxpose.xlu0.b32.cont [12/16] 0.0, 128
    %574 = vxpose.xlu0.b32.cont [13/16] 0.0, 128
    %575 = vxpose.xlu0.b32.cont [14/16] 0.0, 128
    %576 = vxpose.xlu0.b32.cont [15/16] 0.0, 128
    %577 = vxpose.xlu0.b32.end [16/16] 0.0, 128
    %v578 = vpop.trf.xlu0
    %v579 = vpop.trf.xlu0
    %v580 = vpop.trf.xlu0
    %v581 = vpop.trf.xlu0
    %v582 = vpop.trf.xlu0
    %v583 = vpop.trf.xlu0
    %v584 = vpop.trf.xlu0
    %v585 = vpop.trf.xlu0
    %v586 = vpop.trf.xlu0
    %v587 = vpop.trf.xlu0
    %v588 = vpop.trf.xlu0
    %v589 = vpop.trf.xlu0
    %v590 = vpop.trf.xlu0
    %v591 = vpop.trf.xlu0
    %v592 = vpop.trf.xlu0
    %v593 = vpop.trf.xlu0
    %594 = vxpose.xlu0.b32.start [1/16] %v500, 128
    %595 = vxpose.xlu0.b32.cont [2/16] %v504, 128
    %596 = vxpose.xlu0.b32.cont [3/16] %v508, 128
    %597 = vxpose.xlu0.b32.cont [4/16] %v512, 128
    %598 = vxpose.xlu0.b32.cont [5/16] %v516, 128
    %599 = vxpose.xlu0.b32.cont [6/16] %v520, 128
    %600 = vxpose.xlu0.b32.cont [7/16] %v524, 128
    %601 = vxpose.xlu0.b32.cont [8/16] %v528, 128
    %602 = vxpose.xlu0.b32.cont [9/16] 0.0, 128
    %603 = vxpose.xlu0.b32.cont [10/16] 0.0, 128
    %604 = vxpose.xlu0.b32.cont [11/16] 0.0, 128
    %605 = vxpose.xlu0.b32.cont [12/16] 0.0, 128
    %606 = vxpose.xlu0.b32.cont [13/16] 0.0, 128
    %607 = vxpose.xlu0.b32.cont [14/16] 0.0, 128
    %608 = vxpose.xlu0.b32.cont [15/16] 0.0, 128
    %609 = vxpose.xlu0.b32.end [16/16] 0.0, 128
    %v610 = vpop.trf.xlu0
    %v611 = vpop.trf.xlu0
    %v612 = vpop.trf.xlu0
    %v613 = vpop.trf.xlu0
    %v614 = vpop.trf.xlu0
    %v615 = vpop.trf.xlu0
    %v616 = vpop.trf.xlu0
    %v617 = vpop.trf.xlu0
    %v618 = vpop.trf.xlu0
    %v619 = vpop.trf.xlu0
    %v620 = vpop.trf.xlu0
    %v621 = vpop.trf.xlu0
    %v622 = vpop.trf.xlu0
    %v623 = vpop.trf.xlu0
    %v624 = vpop.trf.xlu0
    %v625 = vpop.trf.xlu0
    %626 = vxpose.xlu0.b32.start [1/16] %v501, 128
    %627 = vxpose.xlu0.b32.cont [2/16] %v505, 128
    %628 = vxpose.xlu0.b32.cont [3/16] %v509, 128
    %629 = vxpose.xlu0.b32.cont [4/16] %v513, 128
    %630 = vxpose.xlu0.b32.cont [5/16] %v517, 128
    %631 = vxpose.xlu0.b32.cont [6/16] %v521, 128
    %632 = vxpose.xlu0.b32.cont [7/16] %v525, 128
    %633 = vxpose.xlu0.b32.cont [8/16] %v529, 128
    %634 = vxpose.xlu0.b32.cont [9/16] 0.0, 128
    %635 = vxpose.xlu0.b32.cont [10/16] 0.0, 128
    %636 = vxpose.xlu0.b32.cont [11/16] 0.0, 128
    %637 = vxpose.xlu0.b32.cont [12/16] 0.0, 128
    %638 = vxpose.xlu0.b32.cont [13/16] 0.0, 128
    %639 = vxpose.xlu0.b32.cont [14/16] 0.0, 128
    %640 = vxpose.xlu0.b32.cont [15/16] 0.0, 128
    %641 = vxpose.xlu0.b32.end [16/16] 0.0, 128
    %v642 = vpop.trf.xlu0
    %v643 = vpop.trf.xlu0
    %v644 = vpop.trf.xlu0
    %v645 = vpop.trf.xlu0
    %v646 = vpop.trf.xlu0
    %v647 = vpop.trf.xlu0
    %v648 = vpop.trf.xlu0
    %v649 = vpop.trf.xlu0
    %v650 = vpop.trf.xlu0
    %v651 = vpop.trf.xlu0
    %v652 = vpop.trf.xlu0
    %v653 = vpop.trf.xlu0
    %v654 = vpop.trf.xlu0
    %v655 = vpop.trf.xlu0
    %v656 = vpop.trf.xlu0
    %v657 = vpop.trf.xlu0
    %v659 = vperm.slane %v70, 0
    %v661 = vadd.f32 %v546, %v659
    %v662 = vadd.f32 %v547, %v659
    %v663 = vadd.f32 %v548, %v659
    %v664 = vadd.f32 %v549, %v659
    %v665 = vadd.f32 %v550, %v659
    %v666 = vadd.f32 %v551, %v659
    %v667 = vadd.f32 %v552, %v659
    %v668 = vadd.f32 %v553, %v659
    %v669 = vadd.f32 %v554, %v659
    %v670 = vadd.f32 %v555, %v659
    %v671 = vadd.f32 %v556, %v659
    %v672 = vadd.f32 %v557, %v659
    %v673 = vadd.f32 %v558, %v659
    %v674 = vadd.f32 %v559, %v659
    %v675 = vadd.f32 %v560, %v659
    %v676 = vadd.f32 %v561, %v659
    %v677 = vadd.f32 %v578, %v659
    %v678 = vadd.f32 %v579, %v659
    %v679 = vadd.f32 %v580, %v659
    %v680 = vadd.f32 %v581, %v659
    %v681 = vadd.f32 %v582, %v659
    %v682 = vadd.f32 %v583, %v659
    %v683 = vadd.f32 %v584, %v659
    %v684 = vadd.f32 %v585, %v659
    %v685 = vadd.f32 %v586, %v659
    %v686 = vadd.f32 %v587, %v659
    %v687 = vadd.f32 %v588, %v659
    %v688 = vadd.f32 %v589, %v659
    %v689 = vadd.f32 %v590, %v659
    %v690 = vadd.f32 %v591, %v659
    %v691 = vadd.f32 %v592, %v659
    %v692 = vadd.f32 %v593, %v659
    %v693 = vadd.f32 %v610, %v659
    %v694 = vadd.f32 %v611, %v659
    %v695 = vadd.f32 %v612, %v659
    %v696 = vadd.f32 %v613, %v659
    %v697 = vadd.f32 %v614, %v659
    %v698 = vadd.f32 %v615, %v659
    %v699 = vadd.f32 %v616, %v659
    %v700 = vadd.f32 %v617, %v659
    %v701 = vadd.f32 %v618, %v659
    %v702 = vadd.f32 %v619, %v659
    %v703 = vadd.f32 %v620, %v659
    %v704 = vadd.f32 %v621, %v659
    %v705 = vadd.f32 %v622, %v659
    %v706 = vadd.f32 %v623, %v659
    %v707 = vadd.f32 %v624, %v659
    %v708 = vadd.f32 %v625, %v659
    %v709 = vadd.f32 %v642, %v659
    %v710 = vadd.f32 %v643, %v659
    %v711 = vadd.f32 %v644, %v659
    %v712 = vadd.f32 %v645, %v659
    %v713 = vadd.f32 %v646, %v659
    %v714 = vadd.f32 %v647, %v659
    %v715 = vadd.f32 %v648, %v659
    %v716 = vadd.f32 %v649, %v659
    %v717 = vadd.f32 %v650, %v659
    %v718 = vadd.f32 %v651, %v659
    %v719 = vadd.f32 %v652, %v659
    %v720 = vadd.f32 %v653, %v659
    %v721 = vadd.f32 %v654, %v659
    %v722 = vadd.f32 %v655, %v659
    %v723 = vadd.f32 %v656, %v659
    %v724 = vadd.f32 %v657, %v659
    %v725 = vmax.f32 %v661, 0.0
    %v726 = vmax.f32 %v662, 0.0
    %v727 = vmax.f32 %v663, 0.0
    %v728 = vmax.f32 %v664, 0.0
    %v729 = vmax.f32 %v665, 0.0
    %v730 = vmax.f32 %v666, 0.0
    %v731 = vmax.f32 %v667, 0.0
    %v732 = vmax.f32 %v668, 0.0
    %v733 = vmax.f32 %v669, 0.0
    %v734 = vmax.f32 %v670, 0.0
    %v735 = vmax.f32 %v671, 0.0
    %v736 = vmax.f32 %v672, 0.0
    %v737 = vmax.f32 %v673, 0.0
    %v738 = vmax.f32 %v674, 0.0
    %v739 = vmax.f32 %v675, 0.0
    %v740 = vmax.f32 %v676, 0.0
    %v741 = vmax.f32 %v677, 0.0
    %v742 = vmax.f32 %v678, 0.0
    %v743 = vmax.f32 %v679, 0.0
    %v744 = vmax.f32 %v680, 0.0
    %v745 = vmax.f32 %v681, 0.0
    %v746 = vmax.f32 %v682, 0.0
    %v747 = vmax.f32 %v683, 0.0
    %v748 = vmax.f32 %v684, 0.0
    %v749 = vmax.f32 %v685, 0.0
    %v750 = vmax.f32 %v686, 0.0
    %v751 = vmax.f32 %v687, 0.0
    %v752 = vmax.f32 %v688, 0.0
    %v753 = vmax.f32 %v689, 0.0
    %v754 = vmax.f32 %v690, 0.0
    %v755 = vmax.f32 %v691, 0.0
    %v756 = vmax.f32 %v692, 0.0
    %v757 = vmax.f32 %v693, 0.0
    %v758 = vmax.f32 %v694, 0.0
    %v759 = vmax.f32 %v695, 0.0
    %v760 = vmax.f32 %v696, 0.0
    %v761 = vmax.f32 %v697, 0.0
    %v762 = vmax.f32 %v698, 0.0
    %v763 = vmax.f32 %v699, 0.0
    %v764 = vmax.f32 %v700, 0.0
    %v765 = vmax.f32 %v701, 0.0
    %v766 = vmax.f32 %v702, 0.0
    %v767 = vmax.f32 %v703, 0.0
    %v768 = vmax.f32 %v704, 0.0
    %v769 = vmax.f32 %v705, 0.0
    %v770 = vmax.f32 %v706, 0.0
    %v771 = vmax.f32 %v707, 0.0
    %v772 = vmax.f32 %v708, 0.0
    %v773 = vmax.f32 %v709, 0.0
    %v774 = vmax.f32 %v710, 0.0
    %v775 = vmax.f32 %v711, 0.0
    %v776 = vmax.f32 %v712, 0.0
    %v777 = vmax.f32 %v713, 0.0
    %v778 = vmax.f32 %v714, 0.0
    %v779 = vmax.f32 %v715, 0.0
    %v780 = vmax.f32 %v716, 0.0
    %v781 = vmax.f32 %v717, 0.0
    %v782 = vmax.f32 %v718, 0.0
    %v783 = vmax.f32 %v719, 0.0
    %v784 = vmax.f32 %v720, 0.0
    %v785 = vmax.f32 %v721, 0.0
    %v786 = vmax.f32 %v722, 0.0
    %v787 = vmax.f32 %v723, 0.0
    %v788 = vmax.f32 %v724, 0.0
    %v790 = vperm.slane %v103, 0
    %v791 = vperm.slane %v103, 1
    %v792 = vperm.slane %v103, 2
    %v793 = vperm.slane %v103, 3
    %vm798 = vcmask 523264
    %v800 = vsel %vm798, %v725, 0
    %v803 = vsel %vm798, %v726, 0
    %v806 = vsel %vm798, %v727, 0
    %v809 = vsel %vm798, %v728, 0
    %v812 = vsel %vm798, %v729, 0
    %v815 = vsel %vm798, %v730, 0
    %v818 = vsel %vm798, %v731, 0
    %v821 = vsel %vm798, %v732, 0
    %v824 = vsel %vm798, %v733, 0
    %v827 = vsel %vm798, %v734, 0
    %v830 = vsel %vm798, %v735, 0
    %v833 = vsel %vm798, %v736, 0
    %v836 = vsel %vm798, %v737, 0
    %v839 = vsel %vm798, %v738, 0
    %v842 = vsel %vm798, %v739, 0
    %v845 = vsel %vm798, %v740, 0
    %v848 = vsel %vm798, %v741, 0
    %v851 = vsel %vm798, %v742, 0
    %v854 = vsel %vm798, %v743, 0
    %v857 = vsel %vm798, %v744, 0
    %v860 = vsel %vm798, %v745, 0
    %v863 = vsel %vm798, %v746, 0
    %v866 = vsel %vm798, %v747, 0
    %v869 = vsel %vm798, %v748, 0
    %v872 = vsel %vm798, %v749, 0
    %v875 = vsel %vm798, %v750, 0
    %v878 = vsel %vm798, %v751, 0
    %v881 = vsel %vm798, %v752, 0
    %v884 = vsel %vm798, %v753, 0
    %v887 = vsel %vm798, %v754, 0
    %v890 = vsel %vm798, %v755, 0
    %v893 = vsel %vm798, %v756, 0
    %v896 = vsel %vm798, %v757, 0
    %v899 = vsel %vm798, %v758, 0
    %v902 = vsel %vm798, %v759, 0
    %v905 = vsel %vm798, %v760, 0
    %v908 = vsel %vm798, %v761, 0
    %v911 = vsel %vm798, %v762, 0
    %v914 = vsel %vm798, %v763, 0
    %v917 = vsel %vm798, %v764, 0
    %v920 = vsel %vm798, %v765, 0
    %v923 = vsel %vm798, %v766, 0
    %v926 = vsel %vm798, %v767, 0
    %v929 = vsel %vm798, %v768, 0
    %v932 = vsel %vm798, %v769, 0
    %v935 = vsel %vm798, %v770, 0
    %v938 = vsel %vm798, %v771, 0
    %v941 = vsel %vm798, %v772, 0
    %v944 = vsel %vm798, %v773, 0
    %v947 = vsel %vm798, %v774, 0
    %v950 = vsel %vm798, %v775, 0
    %v953 = vsel %vm798, %v776, 0
    %v956 = vsel %vm798, %v777, 0
    %v959 = vsel %vm798, %v778, 0
    %v962 = vsel %vm798, %v779, 0
    %v965 = vsel %vm798, %v780, 0
    %v968 = vsel %vm798, %v781, 0
    %v971 = vsel %vm798, %v782, 0
    %v974 = vsel %vm798, %v783, 0
    %v977 = vsel %vm798, %v784, 0
    %v980 = vsel %vm798, %v785, 0
    %v983 = vsel %vm798, %v786, 0
    %v986 = vsel %vm798, %v787, 0
    %v989 = vsel %vm798, %v788, 0
    %991 = vmatpush.msra.mxu0 0.0
    %992 = vmatpush.msra.mxu0 0.0
    %993 = vmatpush.msra.mxu0 0.0
    %994 = vmatpush.msra.mxu0 0.0
    %995 = vmatpush.msra.mxu0 0.0
    %996 = vmatpush.msra.mxu0 0.0
    %997 = vmatpush.msra.mxu0 0.0
    %998 = vmatpush.msra.mxu0 0.0
    %999 = vmatpush.msra.mxu0 %v99
    %1000 = vmatpush.msra.mxu0 %v95
    %1001 = vmatpush.msra.mxu0 %v91
    %1002 = vmatpush.msra.mxu0 %v87
    %1003 = vmatpush.msra.mxu0 %v83
    %1004 = vmatpush.msra.mxu0 %v79
    %1005 = vmatpush.msra.mxu0 %v75
    %1006 = vmatpush.msra.mxu0 %v71
    %1007 = vmatmul.f32.gmra.mxu0 %v800
    %v1008 = vpop.f32.mrf.mxu0
    %v1009 = vadd.f32 %v790, %v1008
    %1010 = vmatmul.f32.gmra.mxu0 %v803
    %v1011 = vpop.f32.mrf.mxu0
    %v1012 = vadd.f32 %v790, %v1011
    %1013 = vmatmul.f32.gmra.mxu0 %v806
    %v1014 = vpop.f32.mrf.mxu0
    %v1015 = vadd.f32 %v790, %v1014
    %1016 = vmatmul.f32.gmra.mxu0 %v809
    %v1017 = vpop.f32.mrf.mxu0
    %v1018 = vadd.f32 %v790, %v1017
    %1019 = vmatmul.f32.gmra.mxu0 %v812
    %v1020 = vpop.f32.mrf.mxu0
    %v1021 = vadd.f32 %v790, %v1020
    %1022 = vmatmul.f32.gmra.mxu0 %v815
    %v1023 = vpop.f32.mrf.mxu0
    %v1024 = vadd.f32 %v790, %v1023
    %1025 = vmatmul.f32.gmra.mxu0 %v818
    %v1026 = vpop.f32.mrf.mxu0
    %v1027 = vadd.f32 %v790, %v1026
    %1028 = vmatmul.f32.gmra.mxu0 %v821
    %v1029 = vpop.f32.mrf.mxu0
    %v1030 = vadd.f32 %v790, %v1029
    %1031 = vmatmul.f32.gmra.mxu0 %v824
    %v1032 = vpop.f32.mrf.mxu0
    %v1033 = vadd.f32 %v790, %v1032
    %1034 = vmatmul.f32.gmra.mxu0 %v827
    %v1035 = vpop.f32.mrf.mxu0
    %v1036 = vadd.f32 %v790, %v1035
    %1037 = vmatmul.f32.gmra.mxu0 %v830
    %v1038 = vpop.f32.mrf.mxu0
    %v1039 = vadd.f32 %v790, %v1038
    %1040 = vmatmul.f32.gmra.mxu0 %v833
    %v1041 = vpop.f32.mrf.mxu0
    %v1042 = vadd.f32 %v790, %v1041
    %1043 = vmatmul.f32.gmra.mxu0 %v836
    %v1044 = vpop.f32.mrf.mxu0
    %v1045 = vadd.f32 %v790, %v1044
    %1046 = vmatmul.f32.gmra.mxu0 %v839
    %v1047 = vpop.f32.mrf.mxu0
    %v1048 = vadd.f32 %v790, %v1047
    %1049 = vmatmul.f32.gmra.mxu0 %v842
    %v1050 = vpop.f32.mrf.mxu0
    %v1051 = vadd.f32 %v790, %v1050
    %1052 = vmatmul.f32.gmra.mxu0 %v845
    %v1053 = vpop.f32.mrf.mxu0
    %v1054 = vadd.f32 %v790, %v1053
    %1055 = vmatmul.f32.gmra.mxu0 %v848
    %v1056 = vpop.f32.mrf.mxu0
    %v1057 = vadd.f32 %v790, %v1056
    %1058 = vmatmul.f32.gmra.mxu0 %v851
    %v1059 = vpop.f32.mrf.mxu0
    %v1060 = vadd.f32 %v790, %v1059
    %1061 = vmatmul.f32.gmra.mxu0 %v854
    %v1062 = vpop.f32.mrf.mxu0
    %v1063 = vadd.f32 %v790, %v1062
    %1064 = vmatmul.f32.gmra.mxu0 %v857
    %v1065 = vpop.f32.mrf.mxu0
    %v1066 = vadd.f32 %v790, %v1065
    %1067 = vmatmul.f32.gmra.mxu0 %v860
    %v1068 = vpop.f32.mrf.mxu0
    %v1069 = vadd.f32 %v790, %v1068
    %1070 = vmatmul.f32.gmra.mxu0 %v863
    %v1071 = vpop.f32.mrf.mxu0
    %v1072 = vadd.f32 %v790, %v1071
    %1073 = vmatmul.f32.gmra.mxu0 %v866
    %v1074 = vpop.f32.mrf.mxu0
    %v1075 = vadd.f32 %v790, %v1074
    %1076 = vmatmul.f32.gmra.mxu0 %v869
    %v1077 = vpop.f32.mrf.mxu0
    %v1078 = vadd.f32 %v790, %v1077
    %1079 = vmatmul.f32.gmra.mxu0 %v872
    %v1080 = vpop.f32.mrf.mxu0
    %v1081 = vadd.f32 %v790, %v1080
    %1082 = vmatmul.f32.gmra.mxu0 %v875
    %v1083 = vpop.f32.mrf.mxu0
    %v1084 = vadd.f32 %v790, %v1083
    %1085 = vmatmul.f32.gmra.mxu0 %v878
    %v1086 = vpop.f32.mrf.mxu0
    %v1087 = vadd.f32 %v790, %v1086
    %1088 = vmatmul.f32.gmra.mxu0 %v881
    %v1089 = vpop.f32.mrf.mxu0
    %v1090 = vadd.f32 %v790, %v1089
    %1091 = vmatmul.f32.gmra.mxu0 %v884
    %v1092 = vpop.f32.mrf.mxu0
    %v1093 = vadd.f32 %v790, %v1092
    %1094 = vmatmul.f32.gmra.mxu0 %v887
    %v1095 = vpop.f32.mrf.mxu0
    %v1096 = vadd.f32 %v790, %v1095
    %1097 = vmatmul.f32.gmra.mxu0 %v890
    %v1098 = vpop.f32.mrf.mxu0
    %v1099 = vadd.f32 %v790, %v1098
    %1100 = vmatmul.f32.gmra.mxu0 %v893
    %v1101 = vpop.f32.mrf.mxu0
    %v1102 = vadd.f32 %v790, %v1101
    %1103 = vmatmul.f32.gmra.mxu0 %v896
    %v1104 = vpop.f32.mrf.mxu0
    %v1105 = vadd.f32 %v790, %v1104
    %1106 = vmatmul.f32.gmra.mxu0 %v899
    %v1107 = vpop.f32.mrf.mxu0
    %v1108 = vadd.f32 %v790, %v1107
    %1109 = vmatmul.f32.gmra.mxu0 %v902
    %v1110 = vpop.f32.mrf.mxu0
    %v1111 = vadd.f32 %v790, %v1110
    %1112 = vmatmul.f32.gmra.mxu0 %v905
    %v1113 = vpop.f32.mrf.mxu0
    %v1114 = vadd.f32 %v790, %v1113
    %1115 = vmatmul.f32.gmra.mxu0 %v908
    %v1116 = vpop.f32.mrf.mxu0
    %v1117 = vadd.f32 %v790, %v1116
    %1118 = vmatmul.f32.gmra.mxu0 %v911
    %v1119 = vpop.f32.mrf.mxu0
    %v1120 = vadd.f32 %v790, %v1119
    %1121 = vmatmul.f32.gmra.mxu0 %v914
    %v1122 = vpop.f32.mrf.mxu0
    %v1123 = vadd.f32 %v790, %v1122
    %1124 = vmatmul.f32.gmra.mxu0 %v917
    %v1125 = vpop.f32.mrf.mxu0
    %v1126 = vadd.f32 %v790, %v1125
    %1127 = vmatmul.f32.gmra.mxu0 %v920
    %v1128 = vpop.f32.mrf.mxu0
    %v1129 = vadd.f32 %v790, %v1128
    %1130 = vmatmul.f32.gmra.mxu0 %v923
    %v1131 = vpop.f32.mrf.mxu0
    %v1132 = vadd.f32 %v790, %v1131
    %1133 = vmatmul.f32.gmra.mxu0 %v926
    %v1134 = vpop.f32.mrf.mxu0
    %v1135 = vadd.f32 %v790, %v1134
    %1136 = vmatmul.f32.gmra.mxu0 %v929
    %v1137 = vpop.f32.mrf.mxu0
    %v1138 = vadd.f32 %v790, %v1137
    %1139 = vmatmul.f32.gmra.mxu0 %v932
    %v1140 = vpop.f32.mrf.mxu0
    %v1141 = vadd.f32 %v790, %v1140
    %1142 = vmatmul.f32.gmra.mxu0 %v935
    %v1143 = vpop.f32.mrf.mxu0
    %v1144 = vadd.f32 %v790, %v1143
    %1145 = vmatmul.f32.gmra.mxu0 %v938
    %v1146 = vpop.f32.mrf.mxu0
    %v1147 = vadd.f32 %v790, %v1146
    %1148 = vmatmul.f32.gmra.mxu0 %v941
    %v1149 = vpop.f32.mrf.mxu0
    %v1150 = vadd.f32 %v790, %v1149
    %1151 = vmatmul.f32.gmra.mxu0 %v944
    %v1152 = vpop.f32.mrf.mxu0
    %v1153 = vadd.f32 %v790, %v1152
    %1154 = vmatmul.f32.gmra.mxu0 %v947
    %v1155 = vpop.f32.mrf.mxu0
    %v1156 = vadd.f32 %v790, %v1155
    %1157 = vmatmul.f32.gmra.mxu0 %v950
    %v1158 = vpop.f32.mrf.mxu0
    %v1159 = vadd.f32 %v790, %v1158
    %1160 = vmatmul.f32.gmra.mxu0 %v953
    %v1161 = vpop.f32.mrf.mxu0
    %v1162 = vadd.f32 %v790, %v1161
    %1163 = vmatmul.f32.gmra.mxu0 %v956
    %v1164 = vpop.f32.mrf.mxu0
    %v1165 = vadd.f32 %v790, %v1164
    %1166 = vmatmul.f32.gmra.mxu0 %v959
    %v1167 = vpop.f32.mrf.mxu0
    %v1168 = vadd.f32 %v790, %v1167
    %1169 = vmatmul.f32.gmra.mxu0 %v962
    %v1170 = vpop.f32.mrf.mxu0
    %v1171 = vadd.f32 %v790, %v1170
    %1172 = vmatmul.f32.gmra.mxu0 %v965
    %v1173 = vpop.f32.mrf.mxu0
    %v1174 = vadd.f32 %v790, %v1173
    %1175 = vmatmul.f32.gmra.mxu0 %v968
    %v1176 = vpop.f32.mrf.mxu0
    %v1177 = vadd.f32 %v790, %v1176
    %1178 = vmatmul.f32.gmra.mxu0 %v971
    %v1179 = vpop.f32.mrf.mxu0
    %v1180 = vadd.f32 %v790, %v1179
    %1181 = vmatmul.f32.gmra.mxu0 %v974
    %v1182 = vpop.f32.mrf.mxu0
    %v1183 = vadd.f32 %v790, %v1182
    %1184 = vmatmul.f32.gmra.mxu0 %v977
    %v1185 = vpop.f32.mrf.mxu0
    %v1186 = vadd.f32 %v790, %v1185
    %1187 = vmatmul.f32.gmra.mxu0 %v980
    %v1188 = vpop.f32.mrf.mxu0
    %v1189 = vadd.f32 %v790, %v1188
    %1190 = vmatmul.f32.gmra.mxu0 %v983
    %v1191 = vpop.f32.mrf.mxu0
    %v1192 = vadd.f32 %v790, %v1191
    %1193 = vmatmul.f32.gmra.mxu0 %v986
    %v1194 = vpop.f32.mrf.mxu0
    %v1195 = vadd.f32 %v790, %v1194
    %1196 = vmatmul.f32.gmra.mxu0 %v989
    %v1197 = vpop.f32.mrf.mxu0
    %v1198 = vadd.f32 %v790, %v1197
    %1199 = vdwg.mxu0
    %1200 = vmatpush.msra.mxu0 0.0
    %1201 = vmatpush.msra.mxu0 0.0
    %1202 = vmatpush.msra.mxu0 0.0
    %1203 = vmatpush.msra.mxu0 0.0
    %1204 = vmatpush.msra.mxu0 0.0
    %1205 = vmatpush.msra.mxu0 0.0
    %1206 = vmatpush.msra.mxu0 0.0
    %1207 = vmatpush.msra.mxu0 0.0
    %1208 = vmatpush.msra.mxu0 %v100
    %1209 = vmatpush.msra.mxu0 %v96
    %1210 = vmatpush.msra.mxu0 %v92
    %1211 = vmatpush.msra.mxu0 %v88
    %1212 = vmatpush.msra.mxu0 %v84
    %1213 = vmatpush.msra.mxu0 %v80
    %1214 = vmatpush.msra.mxu0 %v76
    %1215 = vmatpush.msra.mxu0 %v72
    %1216 = vmatmul.f32.gmra.mxu0 %v800
    %v1217 = vpop.f32.mrf.mxu0
    %v1218 = vadd.f32 %v791, %v1217
    %1219 = vmatmul.f32.gmra.mxu0 %v803
    %v1220 = vpop.f32.mrf.mxu0
    %v1221 = vadd.f32 %v791, %v1220
    %1222 = vmatmul.f32.gmra.mxu0 %v806
    %v1223 = vpop.f32.mrf.mxu0
    %v1224 = vadd.f32 %v791, %v1223
    %1225 = vmatmul.f32.gmra.mxu0 %v809
    %v1226 = vpop.f32.mrf.mxu0
    %v1227 = vadd.f32 %v791, %v1226
    %1228 = vmatmul.f32.gmra.mxu0 %v812
    %v1229 = vpop.f32.mrf.mxu0
    %v1230 = vadd.f32 %v791, %v1229
    %1231 = vmatmul.f32.gmra.mxu0 %v815
    %v1232 = vpop.f32.mrf.mxu0
    %v1233 = vadd.f32 %v791, %v1232
    %1234 = vmatmul.f32.gmra.mxu0 %v818
    %v1235 = vpop.f32.mrf.mxu0
    %v1236 = vadd.f32 %v791, %v1235
    %1237 = vmatmul.f32.gmra.mxu0 %v821
    %v1238 = vpop.f32.mrf.mxu0
    %v1239 = vadd.f32 %v791, %v1238
    %1240 = vmatmul.f32.gmra.mxu0 %v824
    %v1241 = vpop.f32.mrf.mxu0
    %v1242 = vadd.f32 %v791, %v1241
    %1243 = vmatmul.f32.gmra.mxu0 %v827
    %v1244 = vpop.f32.mrf.mxu0
    %v1245 = vadd.f32 %v791, %v1244
    %1246 = vmatmul.f32.gmra.mxu0 %v830
    %v1247 = vpop.f32.mrf.mxu0
    %v1248 = vadd.f32 %v791, %v1247
    %1249 = vmatmul.f32.gmra.mxu0 %v833
    %v1250 = vpop.f32.mrf.mxu0
    %v1251 = vadd.f32 %v791, %v1250
    %1252 = vmatmul.f32.gmra.mxu0 %v836
    %v1253 = vpop.f32.mrf.mxu0
    %v1254 = vadd.f32 %v791, %v1253
    %1255 = vmatmul.f32.gmra.mxu0 %v839
    %v1256 = vpop.f32.mrf.mxu0
    %v1257 = vadd.f32 %v791, %v1256
    %1258 = vmatmul.f32.gmra.mxu0 %v842
    %v1259 = vpop.f32.mrf.mxu0
    %v1260 = vadd.f32 %v791, %v1259
    %1261 = vmatmul.f32.gmra.mxu0 %v845
    %v1262 = vpop.f32.mrf.mxu0
    %v1263 = vadd.f32 %v791, %v1262
    %1264 = vmatmul.f32.gmra.mxu0 %v848
    %v1265 = vpop.f32.mrf.mxu0
    %v1266 = vadd.f32 %v791, %v1265
    %1267 = vmatmul.f32.gmra.mxu0 %v851
    %v1268 = vpop.f32.mrf.mxu0
    %v1269 = vadd.f32 %v791, %v1268
    %1270 = vmatmul.f32.gmra.mxu0 %v854
    %v1271 = vpop.f32.mrf.mxu0
    %v1272 = vadd.f32 %v791, %v1271
    %1273 = vmatmul.f32.gmra.mxu0 %v857
    %v1274 = vpop.f32.mrf.mxu0
    %v1275 = vadd.f32 %v791, %v1274
    %1276 = vmatmul.f32.gmra.mxu0 %v860
    %v1277 = vpop.f32.mrf.mxu0
    %v1278 = vadd.f32 %v791, %v1277
    %1279 = vmatmul.f32.gmra.mxu0 %v863
    %v1280 = vpop.f32.mrf.mxu0
    %v1281 = vadd.f32 %v791, %v1280
    %1282 = vmatmul.f32.gmra.mxu0 %v866
    %v1283 = vpop.f32.mrf.mxu0
    %v1284 = vadd.f32 %v791, %v1283
    %1285 = vmatmul.f32.gmra.mxu0 %v869
    %v1286 = vpop.f32.mrf.mxu0
    %v1287 = vadd.f32 %v791, %v1286
    %1288 = vmatmul.f32.gmra.mxu0 %v872
    %v1289 = vpop.f32.mrf.mxu0
    %v1290 = vadd.f32 %v791, %v1289
    %1291 = vmatmul.f32.gmra.mxu0 %v875
    %v1292 = vpop.f32.mrf.mxu0
    %v1293 = vadd.f32 %v791, %v1292
    %1294 = vmatmul.f32.gmra.mxu0 %v878
    %v1295 = vpop.f32.mrf.mxu0
    %v1296 = vadd.f32 %v791, %v1295
    %1297 = vmatmul.f32.gmra.mxu0 %v881
    %v1298 = vpop.f32.mrf.mxu0
    %v1299 = vadd.f32 %v791, %v1298
    %1300 = vmatmul.f32.gmra.mxu0 %v884
    %v1301 = vpop.f32.mrf.mxu0
    %v1302 = vadd.f32 %v791, %v1301
    %1303 = vmatmul.f32.gmra.mxu0 %v887
    %v1304 = vpop.f32.mrf.mxu0
    %v1305 = vadd.f32 %v791, %v1304
    %1306 = vmatmul.f32.gmra.mxu0 %v890
    %v1307 = vpop.f32.mrf.mxu0
    %v1308 = vadd.f32 %v791, %v1307
    %1309 = vmatmul.f32.gmra.mxu0 %v893
    %v1310 = vpop.f32.mrf.mxu0
    %v1311 = vadd.f32 %v791, %v1310
    %1312 = vmatmul.f32.gmra.mxu0 %v896
    %v1313 = vpop.f32.mrf.mxu0
    %v1314 = vadd.f32 %v791, %v1313
    %1315 = vmatmul.f32.gmra.mxu0 %v899
    %v1316 = vpop.f32.mrf.mxu0
    %v1317 = vadd.f32 %v791, %v1316
    %1318 = vmatmul.f32.gmra.mxu0 %v902
    %v1319 = vpop.f32.mrf.mxu0
    %v1320 = vadd.f32 %v791, %v1319
    %1321 = vmatmul.f32.gmra.mxu0 %v905
    %v1322 = vpop.f32.mrf.mxu0
    %v1323 = vadd.f32 %v791, %v1322
    %1324 = vmatmul.f32.gmra.mxu0 %v908
    %v1325 = vpop.f32.mrf.mxu0
    %v1326 = vadd.f32 %v791, %v1325
    %1327 = vmatmul.f32.gmra.mxu0 %v911
    %v1328 = vpop.f32.mrf.mxu0
    %v1329 = vadd.f32 %v791, %v1328
    %1330 = vmatmul.f32.gmra.mxu0 %v914
    %v1331 = vpop.f32.mrf.mxu0
    %v1332 = vadd.f32 %v791, %v1331
    %1333 = vmatmul.f32.gmra.mxu0 %v917
    %v1334 = vpop.f32.mrf.mxu0
    %v1335 = vadd.f32 %v791, %v1334
    %1336 = vmatmul.f32.gmra.mxu0 %v920
    %v1337 = vpop.f32.mrf.mxu0
    %v1338 = vadd.f32 %v791, %v1337
    %1339 = vmatmul.f32.gmra.mxu0 %v923
    %v1340 = vpop.f32.mrf.mxu0
    %v1341 = vadd.f32 %v791, %v1340
    %1342 = vmatmul.f32.gmra.mxu0 %v926
    %v1343 = vpop.f32.mrf.mxu0
    %v1344 = vadd.f32 %v791, %v1343
    %1345 = vmatmul.f32.gmra.mxu0 %v929
    %v1346 = vpop.f32.mrf.mxu0
    %v1347 = vadd.f32 %v791, %v1346
    %1348 = vmatmul.f32.gmra.mxu0 %v932
    %v1349 = vpop.f32.mrf.mxu0
    %v1350 = vadd.f32 %v791, %v1349
    %1351 = vmatmul.f32.gmra.mxu0 %v935
    %v1352 = vpop.f32.mrf.mxu0
    %v1353 = vadd.f32 %v791, %v1352
    %1354 = vmatmul.f32.gmra.mxu0 %v938
    %v1355 = vpop.f32.mrf.mxu0
    %v1356 = vadd.f32 %v791, %v1355
    %1357 = vmatmul.f32.gmra.mxu0 %v941
    %v1358 = vpop.f32.mrf.mxu0
    %v1359 = vadd.f32 %v791, %v1358
    %1360 = vmatmul.f32.gmra.mxu0 %v944
    %v1361 = vpop.f32.mrf.mxu0
    %v1362 = vadd.f32 %v791, %v1361
    %1363 = vmatmul.f32.gmra.mxu0 %v947
    %v1364 = vpop.f32.mrf.mxu0
    %v1365 = vadd.f32 %v791, %v1364
    %1366 = vmatmul.f32.gmra.mxu0 %v950
    %v1367 = vpop.f32.mrf.mxu0
    %v1368 = vadd.f32 %v791, %v1367
    %1369 = vmatmul.f32.gmra.mxu0 %v953
    %v1370 = vpop.f32.mrf.mxu0
    %v1371 = vadd.f32 %v791, %v1370
    %1372 = vmatmul.f32.gmra.mxu0 %v956
    %v1373 = vpop.f32.mrf.mxu0
    %v1374 = vadd.f32 %v791, %v1373
    %1375 = vmatmul.f32.gmra.mxu0 %v959
    %v1376 = vpop.f32.mrf.mxu0
    %v1377 = vadd.f32 %v791, %v1376
    %1378 = vmatmul.f32.gmra.mxu0 %v962
    %v1379 = vpop.f32.mrf.mxu0
    %v1380 = vadd.f32 %v791, %v1379
    %1381 = vmatmul.f32.gmra.mxu0 %v965
    %v1382 = vpop.f32.mrf.mxu0
    %v1383 = vadd.f32 %v791, %v1382
    %1384 = vmatmul.f32.gmra.mxu0 %v968
    %v1385 = vpop.f32.mrf.mxu0
    %v1386 = vadd.f32 %v791, %v1385
    %1387 = vmatmul.f32.gmra.mxu0 %v971
    %v1388 = vpop.f32.mrf.mxu0
    %v1389 = vadd.f32 %v791, %v1388
    %1390 = vmatmul.f32.gmra.mxu0 %v974
    %v1391 = vpop.f32.mrf.mxu0
    %v1392 = vadd.f32 %v791, %v1391
    %1393 = vmatmul.f32.gmra.mxu0 %v977
    %v1394 = vpop.f32.mrf.mxu0
    %v1395 = vadd.f32 %v791, %v1394
    %1396 = vmatmul.f32.gmra.mxu0 %v980
    %v1397 = vpop.f32.mrf.mxu0
    %v1398 = vadd.f32 %v791, %v1397
    %1399 = vmatmul.f32.gmra.mxu0 %v983
    %v1400 = vpop.f32.mrf.mxu0
    %v1401 = vadd.f32 %v791, %v1400
    %1402 = vmatmul.f32.gmra.mxu0 %v986
    %v1403 = vpop.f32.mrf.mxu0
    %v1404 = vadd.f32 %v791, %v1403
    %1405 = vmatmul.f32.gmra.mxu0 %v989
    %v1406 = vpop.f32.mrf.mxu0
    %v1407 = vadd.f32 %v791, %v1406
    %1408 = vdwg.mxu0
    %1409 = vmatpush.msra.mxu0 0.0
    %1410 = vmatpush.msra.mxu0 0.0
    %1411 = vmatpush.msra.mxu0 0.0
    %1412 = vmatpush.msra.mxu0 0.0
    %1413 = vmatpush.msra.mxu0 0.0
    %1414 = vmatpush.msra.mxu0 0.0
    %1415 = vmatpush.msra.mxu0 0.0
    %1416 = vmatpush.msra.mxu0 0.0
    %1417 = vmatpush.msra.mxu0 %v101
    %1418 = vmatpush.msra.mxu0 %v97
    %1419 = vmatpush.msra.mxu0 %v93
    %1420 = vmatpush.msra.mxu0 %v89
    %1421 = vmatpush.msra.mxu0 %v85
    %1422 = vmatpush.msra.mxu0 %v81
    %1423 = vmatpush.msra.mxu0 %v77
    %1424 = vmatpush.msra.mxu0 %v73
    %1425 = vmatmul.f32.gmra.mxu0 %v800
    %v1426 = vpop.f32.mrf.mxu0
    %v1427 = vadd.f32 %v792, %v1426
    %1428 = vmatmul.f32.gmra.mxu0 %v803
    %v1429 = vpop.f32.mrf.mxu0
    %v1430 = vadd.f32 %v792, %v1429
    %1431 = vmatmul.f32.gmra.mxu0 %v806
    %v1432 = vpop.f32.mrf.mxu0
    %v1433 = vadd.f32 %v792, %v1432
    %1434 = vmatmul.f32.gmra.mxu0 %v809
    %v1435 = vpop.f32.mrf.mxu0
    %v1436 = vadd.f32 %v792, %v1435
    %1437 = vmatmul.f32.gmra.mxu0 %v812
    %v1438 = vpop.f32.mrf.mxu0
    %v1439 = vadd.f32 %v792, %v1438
    %1440 = vmatmul.f32.gmra.mxu0 %v815
    %v1441 = vpop.f32.mrf.mxu0
    %v1442 = vadd.f32 %v792, %v1441
    %1443 = vmatmul.f32.gmra.mxu0 %v818
    %v1444 = vpop.f32.mrf.mxu0
    %v1445 = vadd.f32 %v792, %v1444
    %1446 = vmatmul.f32.gmra.mxu0 %v821
    %v1447 = vpop.f32.mrf.mxu0
    %v1448 = vadd.f32 %v792, %v1447
    %1449 = vmatmul.f32.gmra.mxu0 %v824
    %v1450 = vpop.f32.mrf.mxu0
    %v1451 = vadd.f32 %v792, %v1450
    %1452 = vmatmul.f32.gmra.mxu0 %v827
    %v1453 = vpop.f32.mrf.mxu0
    %v1454 = vadd.f32 %v792, %v1453
    %1455 = vmatmul.f32.gmra.mxu0 %v830
    %v1456 = vpop.f32.mrf.mxu0
    %v1457 = vadd.f32 %v792, %v1456
    %1458 = vmatmul.f32.gmra.mxu0 %v833
    %v1459 = vpop.f32.mrf.mxu0
    %v1460 = vadd.f32 %v792, %v1459
    %1461 = vmatmul.f32.gmra.mxu0 %v836
    %v1462 = vpop.f32.mrf.mxu0
    %v1463 = vadd.f32 %v792, %v1462
    %1464 = vmatmul.f32.gmra.mxu0 %v839
    %v1465 = vpop.f32.mrf.mxu0
    %v1466 = vadd.f32 %v792, %v1465
    %1467 = vmatmul.f32.gmra.mxu0 %v842
    %v1468 = vpop.f32.mrf.mxu0
    %v1469 = vadd.f32 %v792, %v1468
    %1470 = vmatmul.f32.gmra.mxu0 %v845
    %v1471 = vpop.f32.mrf.mxu0
    %v1472 = vadd.f32 %v792, %v1471
    %1473 = vmatmul.f32.gmra.mxu0 %v848
    %v1474 = vpop.f32.mrf.mxu0
    %v1475 = vadd.f32 %v792, %v1474
    %1476 = vmatmul.f32.gmra.mxu0 %v851
    %v1477 = vpop.f32.mrf.mxu0
    %v1478 = vadd.f32 %v792, %v1477
    %1479 = vmatmul.f32.gmra.mxu0 %v854
    %v1480 = vpop.f32.mrf.mxu0
    %v1481 = vadd.f32 %v792, %v1480
    %1482 = vmatmul.f32.gmra.mxu0 %v857
    %v1483 = vpop.f32.mrf.mxu0
    %v1484 = vadd.f32 %v792, %v1483
    %1485 = vmatmul.f32.gmra.mxu0 %v860
    %v1486 = vpop.f32.mrf.mxu0
    %v1487 = vadd.f32 %v792, %v1486
    %1488 = vmatmul.f32.gmra.mxu0 %v863
    %v1489 = vpop.f32.mrf.mxu0
    %v1490 = vadd.f32 %v792, %v1489
    %1491 = vmatmul.f32.gmra.mxu0 %v866
    %v1492 = vpop.f32.mrf.mxu0
    %v1493 = vadd.f32 %v792, %v1492
    %1494 = vmatmul.f32.gmra.mxu0 %v869
    %v1495 = vpop.f32.mrf.mxu0
    %v1496 = vadd.f32 %v792, %v1495
    %1497 = vmatmul.f32.gmra.mxu0 %v872
    %v1498 = vpop.f32.mrf.mxu0
    %v1499 = vadd.f32 %v792, %v1498
    %1500 = vmatmul.f32.gmra.mxu0 %v875
    %v1501 = vpop.f32.mrf.mxu0
    %v1502 = vadd.f32 %v792, %v1501
    %1503 = vmatmul.f32.gmra.mxu0 %v878
    %v1504 = vpop.f32.mrf.mxu0
    %v1505 = vadd.f32 %v792, %v1504
    %1506 = vmatmul.f32.gmra.mxu0 %v881
    %v1507 = vpop.f32.mrf.mxu0
    %v1508 = vadd.f32 %v792, %v1507
    %1509 = vmatmul.f32.gmra.mxu0 %v884
    %v1510 = vpop.f32.mrf.mxu0
    %v1511 = vadd.f32 %v792, %v1510
    %1512 = vmatmul.f32.gmra.mxu0 %v887
    %v1513 = vpop.f32.mrf.mxu0
    %v1514 = vadd.f32 %v792, %v1513
    %1515 = vmatmul.f32.gmra.mxu0 %v890
    %v1516 = vpop.f32.mrf.mxu0
    %v1517 = vadd.f32 %v792, %v1516
    %1518 = vmatmul.f32.gmra.mxu0 %v893
    %v1519 = vpop.f32.mrf.mxu0
    %v1520 = vadd.f32 %v792, %v1519
    %1521 = vmatmul.f32.gmra.mxu0 %v896
    %v1522 = vpop.f32.mrf.mxu0
    %v1523 = vadd.f32 %v792, %v1522
    %1524 = vmatmul.f32.gmra.mxu0 %v899
    %v1525 = vpop.f32.mrf.mxu0
    %v1526 = vadd.f32 %v792, %v1525
    %1527 = vmatmul.f32.gmra.mxu0 %v902
    %v1528 = vpop.f32.mrf.mxu0
    %v1529 = vadd.f32 %v792, %v1528
    %1530 = vmatmul.f32.gmra.mxu0 %v905
    %v1531 = vpop.f32.mrf.mxu0
    %v1532 = vadd.f32 %v792, %v1531
    %1533 = vmatmul.f32.gmra.mxu0 %v908
    %v1534 = vpop.f32.mrf.mxu0
    %v1535 = vadd.f32 %v792, %v1534
    %1536 = vmatmul.f32.gmra.mxu0 %v911
    %v1537 = vpop.f32.mrf.mxu0
    %v1538 = vadd.f32 %v792, %v1537
    %1539 = vmatmul.f32.gmra.mxu0 %v914
    %v1540 = vpop.f32.mrf.mxu0
    %v1541 = vadd.f32 %v792, %v1540
    %1542 = vmatmul.f32.gmra.mxu0 %v917
    %v1543 = vpop.f32.mrf.mxu0
    %v1544 = vadd.f32 %v792, %v1543
    %1545 = vmatmul.f32.gmra.mxu0 %v920
    %v1546 = vpop.f32.mrf.mxu0
    %v1547 = vadd.f32 %v792, %v1546
    %1548 = vmatmul.f32.gmra.mxu0 %v923
    %v1549 = vpop.f32.mrf.mxu0
    %v1550 = vadd.f32 %v792, %v1549
    %1551 = vmatmul.f32.gmra.mxu0 %v926
    %v1552 = vpop.f32.mrf.mxu0
    %v1553 = vadd.f32 %v792, %v1552
    %1554 = vmatmul.f32.gmra.mxu0 %v929
    %v1555 = vpop.f32.mrf.mxu0
    %v1556 = vadd.f32 %v792, %v1555
    %1557 = vmatmul.f32.gmra.mxu0 %v932
    %v1558 = vpop.f32.mrf.mxu0
    %v1559 = vadd.f32 %v792, %v1558
    %1560 = vmatmul.f32.gmra.mxu0 %v935
    %v1561 = vpop.f32.mrf.mxu0
    %v1562 = vadd.f32 %v792, %v1561
    %1563 = vmatmul.f32.gmra.mxu0 %v938
    %v1564 = vpop.f32.mrf.mxu0
    %v1565 = vadd.f32 %v792, %v1564
    %1566 = vmatmul.f32.gmra.mxu0 %v941
    %v1567 = vpop.f32.mrf.mxu0
    %v1568 = vadd.f32 %v792, %v1567
    %1569 = vmatmul.f32.gmra.mxu0 %v944
    %v1570 = vpop.f32.mrf.mxu0
    %v1571 = vadd.f32 %v792, %v1570
    %1572 = vmatmul.f32.gmra.mxu0 %v947
    %v1573 = vpop.f32.mrf.mxu0
    %v1574 = vadd.f32 %v792, %v1573
    %1575 = vmatmul.f32.gmra.mxu0 %v950
    %v1576 = vpop.f32.mrf.mxu0
    %v1577 = vadd.f32 %v792, %v1576
    %1578 = vmatmul.f32.gmra.mxu0 %v953
    %v1579 = vpop.f32.mrf.mxu0
    %v1580 = vadd.f32 %v792, %v1579
    %1581 = vmatmul.f32.gmra.mxu0 %v956
    %v1582 = vpop.f32.mrf.mxu0
    %v1583 = vadd.f32 %v792, %v1582
    %1584 = vmatmul.f32.gmra.mxu0 %v959
    %v1585 = vpop.f32.mrf.mxu0
    %v1586 = vadd.f32 %v792, %v1585
    %1587 = vmatmul.f32.gmra.mxu0 %v962
    %v1588 = vpop.f32.mrf.mxu0
    %v1589 = vadd.f32 %v792, %v1588
    %1590 = vmatmul.f32.gmra.mxu0 %v965
    %v1591 = vpop.f32.mrf.mxu0
    %v1592 = vadd.f32 %v792, %v1591
    %1593 = vmatmul.f32.gmra.mxu0 %v968
    %v1594 = vpop.f32.mrf.mxu0
    %v1595 = vadd.f32 %v792, %v1594
    %1596 = vmatmul.f32.gmra.mxu0 %v971
    %v1597 = vpop.f32.mrf.mxu0
    %v1598 = vadd.f32 %v792, %v1597
    %1599 = vmatmul.f32.gmra.mxu0 %v974
    %v1600 = vpop.f32.mrf.mxu0
    %v1601 = vadd.f32 %v792, %v1600
    %1602 = vmatmul.f32.gmra.mxu0 %v977
    %v1603 = vpop.f32.mrf.mxu0
    %v1604 = vadd.f32 %v792, %v1603
    %1605 = vmatmul.f32.gmra.mxu0 %v980
    %v1606 = vpop.f32.mrf.mxu0
    %v1607 = vadd.f32 %v792, %v1606
    %1608 = vmatmul.f32.gmra.mxu0 %v983
    %v1609 = vpop.f32.mrf.mxu0
    %v1610 = vadd.f32 %v792, %v1609
    %1611 = vmatmul.f32.gmra.mxu0 %v986
    %v1612 = vpop.f32.mrf.mxu0
    %v1613 = vadd.f32 %v792, %v1612
    %1614 = vmatmul.f32.gmra.mxu0 %v989
    %v1615 = vpop.f32.mrf.mxu0
    %v1616 = vadd.f32 %v792, %v1615
    %1617 = vdwg.mxu0
    %1618 = vmatpush.msra.mxu0 0.0
    %1619 = vmatpush.msra.mxu0 0.0
    %1620 = vmatpush.msra.mxu0 0.0
    %1621 = vmatpush.msra.mxu0 0.0
    %1622 = vmatpush.msra.mxu0 0.0
    %1623 = vmatpush.msra.mxu0 0.0
    %1624 = vmatpush.msra.mxu0 0.0
    %1625 = vmatpush.msra.mxu0 0.0
    %1626 = vmatpush.msra.mxu0 %v102
    %1627 = vmatpush.msra.mxu0 %v98
    %1628 = vmatpush.msra.mxu0 %v94
    %1629 = vmatpush.msra.mxu0 %v90
    %1630 = vmatpush.msra.mxu0 %v86
    %1631 = vmatpush.msra.mxu0 %v82
    %1632 = vmatpush.msra.mxu0 %v78
    %1633 = vmatpush.msra.mxu0 %v74
    %1634 = vmatmul.f32.gmra.mxu0 %v800
    %v1635 = vpop.f32.mrf.mxu0
    %v1636 = vadd.f32 %v793, %v1635
    %1637 = vmatmul.f32.gmra.mxu0 %v803
    %v1638 = vpop.f32.mrf.mxu0
    %v1639 = vadd.f32 %v793, %v1638
    %1640 = vmatmul.f32.gmra.mxu0 %v806
    %v1641 = vpop.f32.mrf.mxu0
    %v1642 = vadd.f32 %v793, %v1641
    %1643 = vmatmul.f32.gmra.mxu0 %v809
    %v1644 = vpop.f32.mrf.mxu0
    %v1645 = vadd.f32 %v793, %v1644
    %1646 = vmatmul.f32.gmra.mxu0 %v812
    %v1647 = vpop.f32.mrf.mxu0
    %v1648 = vadd.f32 %v793, %v1647
    %1649 = vmatmul.f32.gmra.mxu0 %v815
    %v1650 = vpop.f32.mrf.mxu0
    %v1651 = vadd.f32 %v793, %v1650
    %1652 = vmatmul.f32.gmra.mxu0 %v818
    %v1653 = vpop.f32.mrf.mxu0
    %v1654 = vadd.f32 %v793, %v1653
    %1655 = vmatmul.f32.gmra.mxu0 %v821
    %v1656 = vpop.f32.mrf.mxu0
    %v1657 = vadd.f32 %v793, %v1656
    %1658 = vmatmul.f32.gmra.mxu0 %v824
    %v1659 = vpop.f32.mrf.mxu0
    %v1660 = vadd.f32 %v793, %v1659
    %1661 = vmatmul.f32.gmra.mxu0 %v827
    %v1662 = vpop.f32.mrf.mxu0
    %v1663 = vadd.f32 %v793, %v1662
    %1664 = vmatmul.f32.gmra.mxu0 %v830
    %v1665 = vpop.f32.mrf.mxu0
    %v1666 = vadd.f32 %v793, %v1665
    %1667 = vmatmul.f32.gmra.mxu0 %v833
    %v1668 = vpop.f32.mrf.mxu0
    %v1669 = vadd.f32 %v793, %v1668
    %1670 = vmatmul.f32.gmra.mxu0 %v836
    %v1671 = vpop.f32.mrf.mxu0
    %v1672 = vadd.f32 %v793, %v1671
    %1673 = vmatmul.f32.gmra.mxu0 %v839
    %v1674 = vpop.f32.mrf.mxu0
    %v1675 = vadd.f32 %v793, %v1674
    %1676 = vmatmul.f32.gmra.mxu0 %v842
    %v1677 = vpop.f32.mrf.mxu0
    %v1678 = vadd.f32 %v793, %v1677
    %1679 = vmatmul.f32.gmra.mxu0 %v845
    %v1680 = vpop.f32.mrf.mxu0
    %v1681 = vadd.f32 %v793, %v1680
    %1682 = vmatmul.f32.gmra.mxu0 %v848
    %v1683 = vpop.f32.mrf.mxu0
    %v1684 = vadd.f32 %v793, %v1683
    %1685 = vmatmul.f32.gmra.mxu0 %v851
    %v1686 = vpop.f32.mrf.mxu0
    %v1687 = vadd.f32 %v793, %v1686
    %1688 = vmatmul.f32.gmra.mxu0 %v854
    %v1689 = vpop.f32.mrf.mxu0
    %v1690 = vadd.f32 %v793, %v1689
    %1691 = vmatmul.f32.gmra.mxu0 %v857
    %v1692 = vpop.f32.mrf.mxu0
    %v1693 = vadd.f32 %v793, %v1692
    %1694 = vmatmul.f32.gmra.mxu0 %v860
    %v1695 = vpop.f32.mrf.mxu0
    %v1696 = vadd.f32 %v793, %v1695
    %1697 = vmatmul.f32.gmra.mxu0 %v863
    %v1698 = vpop.f32.mrf.mxu0
    %v1699 = vadd.f32 %v793, %v1698
    %1700 = vmatmul.f32.gmra.mxu0 %v866
    %v1701 = vpop.f32.mrf.mxu0
    %v1702 = vadd.f32 %v793, %v1701
    %1703 = vmatmul.f32.gmra.mxu0 %v869
    %v1704 = vpop.f32.mrf.mxu0
    %v1705 = vadd.f32 %v793, %v1704
    %1706 = vmatmul.f32.gmra.mxu0 %v872
    %v1707 = vpop.f32.mrf.mxu0
    %v1708 = vadd.f32 %v793, %v1707
    %1709 = vmatmul.f32.gmra.mxu0 %v875
    %v1710 = vpop.f32.mrf.mxu0
    %v1711 = vadd.f32 %v793, %v1710
    %1712 = vmatmul.f32.gmra.mxu0 %v878
    %v1713 = vpop.f32.mrf.mxu0
    %v1714 = vadd.f32 %v793, %v1713
    %1715 = vmatmul.f32.gmra.mxu0 %v881
    %v1716 = vpop.f32.mrf.mxu0
    %v1717 = vadd.f32 %v793, %v1716
    %1718 = vmatmul.f32.gmra.mxu0 %v884
    %v1719 = vpop.f32.mrf.mxu0
    %v1720 = vadd.f32 %v793, %v1719
    %1721 = vmatmul.f32.gmra.mxu0 %v887
    %v1722 = vpop.f32.mrf.mxu0
    %v1723 = vadd.f32 %v793, %v1722
    %1724 = vmatmul.f32.gmra.mxu0 %v890
    %v1725 = vpop.f32.mrf.mxu0
    %v1726 = vadd.f32 %v793, %v1725
    %1727 = vmatmul.f32.gmra.mxu0 %v893
    %v1728 = vpop.f32.mrf.mxu0
    %v1729 = vadd.f32 %v793, %v1728
    %1730 = vmatmul.f32.gmra.mxu0 %v896
    %v1731 = vpop.f32.mrf.mxu0
    %v1732 = vadd.f32 %v793, %v1731
    %1733 = vmatmul.f32.gmra.mxu0 %v899
    %v1734 = vpop.f32.mrf.mxu0
    %v1735 = vadd.f32 %v793, %v1734
    %1736 = vmatmul.f32.gmra.mxu0 %v902
    %v1737 = vpop.f32.mrf.mxu0
    %v1738 = vadd.f32 %v793, %v1737
    %1739 = vmatmul.f32.gmra.mxu0 %v905
    %v1740 = vpop.f32.mrf.mxu0
    %v1741 = vadd.f32 %v793, %v1740
    %1742 = vmatmul.f32.gmra.mxu0 %v908
    %v1743 = vpop.f32.mrf.mxu0
    %v1744 = vadd.f32 %v793, %v1743
    %1745 = vmatmul.f32.gmra.mxu0 %v911
    %v1746 = vpop.f32.mrf.mxu0
    %v1747 = vadd.f32 %v793, %v1746
    %1748 = vmatmul.f32.gmra.mxu0 %v914
    %v1749 = vpop.f32.mrf.mxu0
    %v1750 = vadd.f32 %v793, %v1749
    %1751 = vmatmul.f32.gmra.mxu0 %v917
    %v1752 = vpop.f32.mrf.mxu0
    %v1753 = vadd.f32 %v793, %v1752
    %1754 = vmatmul.f32.gmra.mxu0 %v920
    %v1755 = vpop.f32.mrf.mxu0
    %v1756 = vadd.f32 %v793, %v1755
    %1757 = vmatmul.f32.gmra.mxu0 %v923
    %v1758 = vpop.f32.mrf.mxu0
    %v1759 = vadd.f32 %v793, %v1758
    %1760 = vmatmul.f32.gmra.mxu0 %v926
    %v1761 = vpop.f32.mrf.mxu0
    %v1762 = vadd.f32 %v793, %v1761
    %1763 = vmatmul.f32.gmra.mxu0 %v929
    %v1764 = vpop.f32.mrf.mxu0
    %v1765 = vadd.f32 %v793, %v1764
    %1766 = vmatmul.f32.gmra.mxu0 %v932
    %v1767 = vpop.f32.mrf.mxu0
    %v1768 = vadd.f32 %v793, %v1767
    %1769 = vmatmul.f32.gmra.mxu0 %v935
    %v1770 = vpop.f32.mrf.mxu0
    %v1771 = vadd.f32 %v793, %v1770
    %1772 = vmatmul.f32.gmra.mxu0 %v938
    %v1773 = vpop.f32.mrf.mxu0
    %v1774 = vadd.f32 %v793, %v1773
    %1775 = vmatmul.f32.gmra.mxu0 %v941
    %v1776 = vpop.f32.mrf.mxu0
    %v1777 = vadd.f32 %v793, %v1776
    %1778 = vmatmul.f32.gmra.mxu0 %v944
    %v1779 = vpop.f32.mrf.mxu0
    %v1780 = vadd.f32 %v793, %v1779
    %1781 = vmatmul.f32.gmra.mxu0 %v947
    %v1782 = vpop.f32.mrf.mxu0
    %v1783 = vadd.f32 %v793, %v1782
    %1784 = vmatmul.f32.gmra.mxu0 %v950
    %v1785 = vpop.f32.mrf.mxu0
    %v1786 = vadd.f32 %v793, %v1785
    %1787 = vmatmul.f32.gmra.mxu0 %v953
    %v1788 = vpop.f32.mrf.mxu0
    %v1789 = vadd.f32 %v793, %v1788
    %1790 = vmatmul.f32.gmra.mxu0 %v956
    %v1791 = vpop.f32.mrf.mxu0
    %v1792 = vadd.f32 %v793, %v1791
    %1793 = vmatmul.f32.gmra.mxu0 %v959
    %v1794 = vpop.f32.mrf.mxu0
    %v1795 = vadd.f32 %v793, %v1794
    %1796 = vmatmul.f32.gmra.mxu0 %v962
    %v1797 = vpop.f32.mrf.mxu0
    %v1798 = vadd.f32 %v793, %v1797
    %1799 = vmatmul.f32.gmra.mxu0 %v965
    %v1800 = vpop.f32.mrf.mxu0
    %v1801 = vadd.f32 %v793, %v1800
    %1802 = vmatmul.f32.gmra.mxu0 %v968
    %v1803 = vpop.f32.mrf.mxu0
    %v1804 = vadd.f32 %v793, %v1803
    %1805 = vmatmul.f32.gmra.mxu0 %v971
    %v1806 = vpop.f32.mrf.mxu0
    %v1807 = vadd.f32 %v793, %v1806
    %1808 = vmatmul.f32.gmra.mxu0 %v974
    %v1809 = vpop.f32.mrf.mxu0
    %v1810 = vadd.f32 %v793, %v1809
    %1811 = vmatmul.f32.gmra.mxu0 %v977
    %v1812 = vpop.f32.mrf.mxu0
    %v1813 = vadd.f32 %v793, %v1812
    %1814 = vmatmul.f32.gmra.mxu0 %v980
    %v1815 = vpop.f32.mrf.mxu0
    %v1816 = vadd.f32 %v793, %v1815
    %1817 = vmatmul.f32.gmra.mxu0 %v983
    %v1818 = vpop.f32.mrf.mxu0
    %v1819 = vadd.f32 %v793, %v1818
    %1820 = vmatmul.f32.gmra.mxu0 %v986
    %v1821 = vpop.f32.mrf.mxu0
    %v1822 = vadd.f32 %v793, %v1821
    %1823 = vmatmul.f32.gmra.mxu0 %v989
    %v1824 = vpop.f32.mrf.mxu0
    %v1825 = vadd.f32 %v793, %v1824
    %1826 = vdwg.mxu0
    %1827 = vst [vmem:[#allocation2] sm:$0xff] %v1009
    %1828 = vst [vmem:[#allocation2 + $0x8] sm:$0xff] %v1218
    %1829 = vst [vmem:[#allocation2 + $0x10] sm:$0xff] %v1427
    %1830 = vst [vmem:[#allocation2 + $0x18] sm:$0xff] %v1636
    %1831 = vst [vmem:[#allocation2 + $0x20] sm:$0xff] %v1012
    %1832 = vst [vmem:[#allocation2 + $0x28] sm:$0xff] %v1221
    %1833 = vst [vmem:[#allocation2 + $0x30] sm:$0xff] %v1430
    %1834 = vst [vmem:[#allocation2 + $0x38] sm:$0xff] %v1639
    %1835 = vst [vmem:[#allocation2 + $0x40] sm:$0xff] %v1015
    %1836 = vst [vmem:[#allocation2 + $0x48] sm:$0xff] %v1224
    %1837 = vst [vmem:[#allocation2 + $0x50] sm:$0xff] %v1433
    %1838 = vst [vmem:[#allocation2 + $0x58] sm:$0xff] %v1642
    %1839 = vst [vmem:[#allocation2 + $0x60] sm:$0xff] %v1018
    %1840 = vst [vmem:[#allocation2 + $0x68] sm:$0xff] %v1227
    %1841 = vst [vmem:[#allocation2 + $0x70] sm:$0xff] %v1436
    %1842 = vst [vmem:[#allocation2 + $0x78] sm:$0xff] %v1645
    %1843 = vst [vmem:[#allocation2 + $0x80] sm:$0xff] %v1021
    %1844 = vst [vmem:[#allocation2 + $0x88] sm:$0xff] %v1230
    %1845 = vst [vmem:[#allocation2 + $0x90] sm:$0xff] %v1439
    %1846 = vst [vmem:[#allocation2 + $0x98] sm:$0xff] %v1648
    %1847 = vst [vmem:[#allocation2 + $0xa0] sm:$0xff] %v1024
    %1848 = vst [vmem:[#allocation2 + $0xa8] sm:$0xff] %v1233
    %1849 = vst [vmem:[#allocation2 + $0xb0] sm:$0xff] %v1442
    %1850 = vst [vmem:[#allocation2 + $0xb8] sm:$0xff] %v1651
    %1851 = vst [vmem:[#allocation2 + $0xc0] sm:$0xff] %v1027
    %1852 = vst [vmem:[#allocation2 + $0xc8] sm:$0xff] %v1236
    %1853 = vst [vmem:[#allocation2 + $0xd0] sm:$0xff] %v1445
    %1854 = vst [vmem:[#allocation2 + $0xd8] sm:$0xff] %v1654
    %1855 = vst [vmem:[#allocation2 + $0xe0] sm:$0xff] %v1030
    %1856 = vst [vmem:[#allocation2 + $0xe8] sm:$0xff] %v1239
    %1857 = vst [vmem:[#allocation2 + $0xf0] sm:$0xff] %v1448
    %1858 = vst [vmem:[#allocation2 + $0xf8] sm:$0xff] %v1657
    %1859 = vst [vmem:[#allocation2 + $0x100] sm:$0xff] %v1033
    %1860 = vst [vmem:[#allocation2 + $0x108] sm:$0xff] %v1242
    %1861 = vst [vmem:[#allocation2 + $0x110] sm:$0xff] %v1451
    %1862 = vst [vmem:[#allocation2 + $0x118] sm:$0xff] %v1660
    %1863 = vst [vmem:[#allocation2 + $0x120] sm:$0xff] %v1036
    %1864 = vst [vmem:[#allocation2 + $0x128] sm:$0xff] %v1245
    %1865 = vst [vmem:[#allocation2 + $0x130] sm:$0xff] %v1454
    %1866 = vst [vmem:[#allocation2 + $0x138] sm:$0xff] %v1663
    %1867 = vst [vmem:[#allocation2 + $0x140] sm:$0xff] %v1039
    %1868 = vst [vmem:[#allocation2 + $0x148] sm:$0xff] %v1248
    %1869 = vst [vmem:[#allocation2 + $0x150] sm:$0xff] %v1457
    %1870 = vst [vmem:[#allocation2 + $0x158] sm:$0xff] %v1666
    %1871 = vst [vmem:[#allocation2 + $0x160] sm:$0xff] %v1042
    %1872 = vst [vmem:[#allocation2 + $0x168] sm:$0xff] %v1251
    %1873 = vst [vmem:[#allocation2 + $0x170] sm:$0xff] %v1460
    %1874 = vst [vmem:[#allocation2 + $0x178] sm:$0xff] %v1669
    %1875 = vst [vmem:[#allocation2 + $0x180] sm:$0xff] %v1045
    %1876 = vst [vmem:[#allocation2 + $0x188] sm:$0xff] %v1254
    %1877 = vst [vmem:[#allocation2 + $0x190] sm:$0xff] %v1463
    %1878 = vst [vmem:[#allocation2 + $0x198] sm:$0xff] %v1672
    %1879 = vst [vmem:[#allocation2 + $0x1a0] sm:$0xff] %v1048
    %1880 = vst [vmem:[#allocation2 + $0x1a8] sm:$0xff] %v1257
    %1881 = vst [vmem:[#allocation2 + $0x1b0] sm:$0xff] %v1466
    %1882 = vst [vmem:[#allocation2 + $0x1b8] sm:$0xff] %v1675
    %1883 = vst [vmem:[#allocation2 + $0x1c0] sm:$0xff] %v1051
    %1884 = vst [vmem:[#allocation2 + $0x1c8] sm:$0xff] %v1260
    %1885 = vst [vmem:[#allocation2 + $0x1d0] sm:$0xff] %v1469
    %1886 = vst [vmem:[#allocation2 + $0x1d8] sm:$0xff] %v1678
    %1887 = vst [vmem:[#allocation2 + $0x1e0] sm:$0xff] %v1054
    %1888 = vst [vmem:[#allocation2 + $0x1e8] sm:$0xff] %v1263
    %1889 = vst [vmem:[#allocation2 + $0x1f0] sm:$0xff] %v1472
    %1890 = vst [vmem:[#allocation2 + $0x1f8] sm:$0xff] %v1681
    %1891 = vst [vmem:[#allocation2 + $0x200] sm:$0xff] %v1057
    %1892 = vst [vmem:[#allocation2 + $0x208] sm:$0xff] %v1266
    %1893 = vst [vmem:[#allocation2 + $0x210] sm:$0xff] %v1475
    %1894 = vst [vmem:[#allocation2 + $0x218] sm:$0xff] %v1684
    %1895 = vst [vmem:[#allocation2 + $0x220] sm:$0xff] %v1060
    %1896 = vst [vmem:[#allocation2 + $0x228] sm:$0xff] %v1269
    %1897 = vst [vmem:[#allocation2 + $0x230] sm:$0xff] %v1478
    %1898 = vst [vmem:[#allocation2 + $0x238] sm:$0xff] %v1687
    %1899 = vst [vmem:[#allocation2 + $0x240] sm:$0xff] %v1063
    %1900 = vst [vmem:[#allocation2 + $0x248] sm:$0xff] %v1272
    %1901 = vst [vmem:[#allocation2 + $0x250] sm:$0xff] %v1481
    %1902 = vst [vmem:[#allocation2 + $0x258] sm:$0xff] %v1690
    %1903 = vst [vmem:[#allocation2 + $0x260] sm:$0xff] %v1066
    %1904 = vst [vmem:[#allocation2 + $0x268] sm:$0xff] %v1275
    %1905 = vst [vmem:[#allocation2 + $0x270] sm:$0xff] %v1484
    %1906 = vst [vmem:[#allocation2 + $0x278] sm:$0xff] %v1693
    %1907 = vst [vmem:[#allocation2 + $0x280] sm:$0xff] %v1069
    %1908 = vst [vmem:[#allocation2 + $0x288] sm:$0xff] %v1278
    %1909 = vst [vmem:[#allocation2 + $0x290] sm:$0xff] %v1487
    %1910 = vst [vmem:[#allocation2 + $0x298] sm:$0xff] %v1696
    %1911 = vst [vmem:[#allocation2 + $0x2a0] sm:$0xff] %v1072
    %1912 = vst [vmem:[#allocation2 + $0x2a8] sm:$0xff] %v1281
    %1913 = vst [vmem:[#allocation2 + $0x2b0] sm:$0xff] %v1490
    %1914 = vst [vmem:[#allocation2 + $0x2b8] sm:$0xff] %v1699
    %1915 = vst [vmem:[#allocation2 + $0x2c0] sm:$0xff] %v1075
    %1916 = vst [vmem:[#allocation2 + $0x2c8] sm:$0xff] %v1284
    %1917 = vst [vmem:[#allocation2 + $0x2d0] sm:$0xff] %v1493
    %1918 = vst [vmem:[#allocation2 + $0x2d8] sm:$0xff] %v1702
    %1919 = vst [vmem:[#allocation2 + $0x2e0] sm:$0xff] %v1078
    %1920 = vst [vmem:[#allocation2 + $0x2e8] sm:$0xff] %v1287
    %1921 = vst [vmem:[#allocation2 + $0x2f0] sm:$0xff] %v1496
    %1922 = vst [vmem:[#allocation2 + $0x2f8] sm:$0xff] %v1705
    %1923 = vst [vmem:[#allocation2 + $0x300] sm:$0xff] %v1081
    %1924 = vst [vmem:[#allocation2 + $0x308] sm:$0xff] %v1290
    %1925 = vst [vmem:[#allocation2 + $0x310] sm:$0xff] %v1499
    %1926 = vst [vmem:[#allocation2 + $0x318] sm:$0xff] %v1708
    %1927 = vst [vmem:[#allocation2 + $0x320] sm:$0xff] %v1084
    %1928 = vst [vmem:[#allocation2 + $0x328] sm:$0xff] %v1293
    %1929 = vst [vmem:[#allocation2 + $0x330] sm:$0xff] %v1502
    %1930 = vst [vmem:[#allocation2 + $0x338] sm:$0xff] %v1711
    %1931 = vst [vmem:[#allocation2 + $0x340] sm:$0xff] %v1087
    %1932 = vst [vmem:[#allocation2 + $0x348] sm:$0xff] %v1296
    %1933 = vst [vmem:[#allocation2 + $0x350] sm:$0xff] %v1505
    %1934 = vst [vmem:[#allocation2 + $0x358] sm:$0xff] %v1714
    %1935 = vst [vmem:[#allocation2 + $0x360] sm:$0xff] %v1090
    %1936 = vst [vmem:[#allocation2 + $0x368] sm:$0xff] %v1299
    %1937 = vst [vmem:[#allocation2 + $0x370] sm:$0xff] %v1508
    %1938 = vst [vmem:[#allocation2 + $0x378] sm:$0xff] %v1717
    %1939 = vst [vmem:[#allocation2 + $0x380] sm:$0xff] %v1093
    %1940 = vst [vmem:[#allocation2 + $0x388] sm:$0xff] %v1302
    %1941 = vst [vmem:[#allocation2 + $0x390] sm:$0xff] %v1511
    %1942 = vst [vmem:[#allocation2 + $0x398] sm:$0xff] %v1720
    %1943 = vst [vmem:[#allocation2 + $0x3a0] sm:$0xff] %v1096
    %1944 = vst [vmem:[#allocation2 + $0x3a8] sm:$0xff] %v1305
    %1945 = vst [vmem:[#allocation2 + $0x3b0] sm:$0xff] %v1514
    %1946 = vst [vmem:[#allocation2 + $0x3b8] sm:$0xff] %v1723
    %1947 = vst [vmem:[#allocation2 + $0x3c0] sm:$0xff] %v1099
    %1948 = vst [vmem:[#allocation2 + $0x3c8] sm:$0xff] %v1308
    %1949 = vst [vmem:[#allocation2 + $0x3d0] sm:$0xff] %v1517
    %1950 = vst [vmem:[#allocation2 + $0x3d8] sm:$0xff] %v1726
    %1951 = vst [vmem:[#allocation2 + $0x3e0] sm:$0xff] %v1102
    %1952 = vst [vmem:[#allocation2 + $0x3e8] sm:$0xff] %v1311
    %1953 = vst [vmem:[#allocation2 + $0x3f0] sm:$0xff] %v1520
    %1954 = vst [vmem:[#allocation2 + $0x3f8] sm:$0xff] %v1729
    %1955 = vst [vmem:[#allocation2 + $0x400] sm:$0xff] %v1105
    %1956 = vst [vmem:[#allocation2 + $0x408] sm:$0xff] %v1314
    %1957 = vst [vmem:[#allocation2 + $0x410] sm:$0xff] %v1523
    %1958 = vst [vmem:[#allocation2 + $0x418] sm:$0xff] %v1732
    %1959 = vst [vmem:[#allocation2 + $0x420] sm:$0xff] %v1108
    %1960 = vst [vmem:[#allocation2 + $0x428] sm:$0xff] %v1317
    %1961 = vst [vmem:[#allocation2 + $0x430] sm:$0xff] %v1526
    %1962 = vst [vmem:[#allocation2 + $0x438] sm:$0xff] %v1735
    %1963 = vst [vmem:[#allocation2 + $0x440] sm:$0xff] %v1111
    %1964 = vst [vmem:[#allocation2 + $0x448] sm:$0xff] %v1320
    %1965 = vst [vmem:[#allocation2 + $0x450] sm:$0xff] %v1529
    %1966 = vst [vmem:[#allocation2 + $0x458] sm:$0xff] %v1738
    %1967 = vst [vmem:[#allocation2 + $0x460] sm:$0xff] %v1114
    %1968 = vst [vmem:[#allocation2 + $0x468] sm:$0xff] %v1323
    %1969 = vst [vmem:[#allocation2 + $0x470] sm:$0xff] %v1532
    %1970 = vst [vmem:[#allocation2 + $0x478] sm:$0xff] %v1741
    %1971 = vst [vmem:[#allocation2 + $0x480] sm:$0xff] %v1117
    %1972 = vst [vmem:[#allocation2 + $0x488] sm:$0xff] %v1326
    %1973 = vst [vmem:[#allocation2 + $0x490] sm:$0xff] %v1535
    %1974 = vst [vmem:[#allocation2 + $0x498] sm:$0xff] %v1744
    %1975 = vst [vmem:[#allocation2 + $0x4a0] sm:$0xff] %v1120
    %1976 = vst [vmem:[#allocation2 + $0x4a8] sm:$0xff] %v1329
    %1977 = vst [vmem:[#allocation2 + $0x4b0] sm:$0xff] %v1538
    %1978 = vst [vmem:[#allocation2 + $0x4b8] sm:$0xff] %v1747
    %1979 = vst [vmem:[#allocation2 + $0x4c0] sm:$0xff] %v1123
    %1980 = vst [vmem:[#allocation2 + $0x4c8] sm:$0xff] %v1332
    %1981 = vst [vmem:[#allocation2 + $0x4d0] sm:$0xff] %v1541
    %1982 = vst [vmem:[#allocation2 + $0x4d8] sm:$0xff] %v1750
    %1983 = vst [vmem:[#allocation2 + $0x4e0] sm:$0xff] %v1126
    %1984 = vst [vmem:[#allocation2 + $0x4e8] sm:$0xff] %v1335
    %1985 = vst [vmem:[#allocation2 + $0x4f0] sm:$0xff] %v1544
    %1986 = vst [vmem:[#allocation2 + $0x4f8] sm:$0xff] %v1753
    %1987 = vst [vmem:[#allocation2 + $0x500] sm:$0xff] %v1129
    %1988 = vst [vmem:[#allocation2 + $0x508] sm:$0xff] %v1338
    %1989 = vst [vmem:[#allocation2 + $0x510] sm:$0xff] %v1547
    %1990 = vst [vmem:[#allocation2 + $0x518] sm:$0xff] %v1756
    %1991 = vst [vmem:[#allocation2 + $0x520] sm:$0xff] %v1132
    %1992 = vst [vmem:[#allocation2 + $0x528] sm:$0xff] %v1341
    %1993 = vst [vmem:[#allocation2 + $0x530] sm:$0xff] %v1550
    %1994 = vst [vmem:[#allocation2 + $0x538] sm:$0xff] %v1759
    %1995 = vst [vmem:[#allocation2 + $0x540] sm:$0xff] %v1135
    %1996 = vst [vmem:[#allocation2 + $0x548] sm:$0xff] %v1344
    %1997 = vst [vmem:[#allocation2 + $0x550] sm:$0xff] %v1553
    %1998 = vst [vmem:[#allocation2 + $0x558] sm:$0xff] %v1762
    %1999 = vst [vmem:[#allocation2 + $0x560] sm:$0xff] %v1138
    %2000 = vst [vmem:[#allocation2 + $0x568] sm:$0xff] %v1347
    %2001 = vst [vmem:[#allocation2 + $0x570] sm:$0xff] %v1556
    %2002 = vst [vmem:[#allocation2 + $0x578] sm:$0xff] %v1765
    %2003 = vst [vmem:[#allocation2 + $0x580] sm:$0xff] %v1141
    %2004 = vst [vmem:[#allocation2 + $0x588] sm:$0xff] %v1350
    %2005 = vst [vmem:[#allocation2 + $0x590] sm:$0xff] %v1559
    %2006 = vst [vmem:[#allocation2 + $0x598] sm:$0xff] %v1768
    %2007 = vst [vmem:[#allocation2 + $0x5a0] sm:$0xff] %v1144
    %2008 = vst [vmem:[#allocation2 + $0x5a8] sm:$0xff] %v1353
    %2009 = vst [vmem:[#allocation2 + $0x5b0] sm:$0xff] %v1562
    %2010 = vst [vmem:[#allocation2 + $0x5b8] sm:$0xff] %v1771
    %2011 = vst [vmem:[#allocation2 + $0x5c0] sm:$0xff] %v1147
    %2012 = vst [vmem:[#allocation2 + $0x5c8] sm:$0xff] %v1356
    %2013 = vst [vmem:[#allocation2 + $0x5d0] sm:$0xff] %v1565
    %2014 = vst [vmem:[#allocation2 + $0x5d8] sm:$0xff] %v1774
    %2015 = vst [vmem:[#allocation2 + $0x5e0] sm:$0xff] %v1150
    %2016 = vst [vmem:[#allocation2 + $0x5e8] sm:$0xff] %v1359
    %2017 = vst [vmem:[#allocation2 + $0x5f0] sm:$0xff] %v1568
    %2018 = vst [vmem:[#allocation2 + $0x5f8] sm:$0xff] %v1777
    %2019 = vst [vmem:[#allocation2 + $0x600] sm:$0xff] %v1153
    %2020 = vst [vmem:[#allocation2 + $0x608] sm:$0xff] %v1362
    %2021 = vst [vmem:[#allocation2 + $0x610] sm:$0xff] %v1571
    %2022 = vst [vmem:[#allocation2 + $0x618] sm:$0xff] %v1780
    %2023 = vst [vmem:[#allocation2 + $0x620] sm:$0xff] %v1156
    %2024 = vst [vmem:[#allocation2 + $0x628] sm:$0xff] %v1365
    %2025 = vst [vmem:[#allocation2 + $0x630] sm:$0xff] %v1574
    %2026 = vst [vmem:[#allocation2 + $0x638] sm:$0xff] %v1783
    %2027 = vst [vmem:[#allocation2 + $0x640] sm:$0xff] %v1159
    %2028 = vst [vmem:[#allocation2 + $0x648] sm:$0xff] %v1368
    %2029 = vst [vmem:[#allocation2 + $0x650] sm:$0xff] %v1577
    %2030 = vst [vmem:[#allocation2 + $0x658] sm:$0xff] %v1786
    %2031 = vst [vmem:[#allocation2 + $0x660] sm:$0xff] %v1162
    %2032 = vst [vmem:[#allocation2 + $0x668] sm:$0xff] %v1371
    %2033 = vst [vmem:[#allocation2 + $0x670] sm:$0xff] %v1580
    %2034 = vst [vmem:[#allocation2 + $0x678] sm:$0xff] %v1789
    %2035 = vst [vmem:[#allocation2 + $0x680] sm:$0xff] %v1165
    %2036 = vst [vmem:[#allocation2 + $0x688] sm:$0xff] %v1374
    %2037 = vst [vmem:[#allocation2 + $0x690] sm:$0xff] %v1583
    %2038 = vst [vmem:[#allocation2 + $0x698] sm:$0xff] %v1792
    %2039 = vst [vmem:[#allocation2 + $0x6a0] sm:$0xff] %v1168
    %2040 = vst [vmem:[#allocation2 + $0x6a8] sm:$0xff] %v1377
    %2041 = vst [vmem:[#allocation2 + $0x6b0] sm:$0xff] %v1586
    %2042 = vst [vmem:[#allocation2 + $0x6b8] sm:$0xff] %v1795
    %2043 = vst [vmem:[#allocation2 + $0x6c0] sm:$0xff] %v1171
    %2044 = vst [vmem:[#allocation2 + $0x6c8] sm:$0xff] %v1380
    %2045 = vst [vmem:[#allocation2 + $0x6d0] sm:$0xff] %v1589
    %2046 = vst [vmem:[#allocation2 + $0x6d8] sm:$0xff] %v1798
    %2047 = vst [vmem:[#allocation2 + $0x6e0] sm:$0xff] %v1174
    %2048 = vst [vmem:[#allocation2 + $0x6e8] sm:$0xff] %v1383
    %2049 = vst [vmem:[#allocation2 + $0x6f0] sm:$0xff] %v1592
    %2050 = vst [vmem:[#allocation2 + $0x6f8] sm:$0xff] %v1801
    %2051 = vst [vmem:[#allocation2 + $0x700] sm:$0xff] %v1177
    %2052 = vst [vmem:[#allocation2 + $0x708] sm:$0xff] %v1386
    %2053 = vst [vmem:[#allocation2 + $0x710] sm:$0xff] %v1595
    %2054 = vst [vmem:[#allocation2 + $0x718] sm:$0xff] %v1804
    %2055 = vst [vmem:[#allocation2 + $0x720] sm:$0xff] %v1180
    %2056 = vst [vmem:[#allocation2 + $0x728] sm:$0xff] %v1389
    %2057 = vst [vmem:[#allocation2 + $0x730] sm:$0xff] %v1598
    %2058 = vst [vmem:[#allocation2 + $0x738] sm:$0xff] %v1807
    %2059 = vst [vmem:[#allocation2 + $0x740] sm:$0xff] %v1183
    %2060 = vst [vmem:[#allocation2 + $0x748] sm:$0xff] %v1392
    %2061 = vst [vmem:[#allocation2 + $0x750] sm:$0xff] %v1601
    %2062 = vst [vmem:[#allocation2 + $0x758] sm:$0xff] %v1810
    %2063 = vst [vmem:[#allocation2 + $0x760] sm:$0xff] %v1186
    %2064 = vst [vmem:[#allocation2 + $0x768] sm:$0xff] %v1395
    %2065 = vst [vmem:[#allocation2 + $0x770] sm:$0xff] %v1604
    %2066 = vst [vmem:[#allocation2 + $0x778] sm:$0xff] %v1813
    %2067 = vst [vmem:[#allocation2 + $0x780] sm:$0xff] %v1189
    %2068 = vst [vmem:[#allocation2 + $0x788] sm:$0xff] %v1398
    %2069 = vst [vmem:[#allocation2 + $0x790] sm:$0xff] %v1607
    %2070 = vst [vmem:[#allocation2 + $0x798] sm:$0xff] %v1816
    %2071 = vst [vmem:[#allocation2 + $0x7a0] sm:$0xff] %v1192
    %2072 = vst [vmem:[#allocation2 + $0x7a8] sm:$0xff] %v1401
    %2073 = vst [vmem:[#allocation2 + $0x7b0] sm:$0xff] %v1610
    %2074 = vst [vmem:[#allocation2 + $0x7b8] sm:$0xff] %v1819
    %2075 = vst [vmem:[#allocation2 + $0x7c0] sm:$0xff] %v1195
    %2076 = vst [vmem:[#allocation2 + $0x7c8] sm:$0xff] %v1404
    %2077 = vst [vmem:[#allocation2 + $0x7d0] sm:$0xff] %v1613
    %2078 = vst [vmem:[#allocation2 + $0x7d8] sm:$0xff] %v1822
    %2079 = vst [vmem:[#allocation2 + $0x7e0] sm:$0xff] %v1198
    %2080 = vst [vmem:[#allocation2 + $0x7e8] sm:$0xff] %v1407
    %2081 = vst [vmem:[#allocation2 + $0x7f0] sm:$0xff] %v1616
    %2082 = vst [vmem:[#allocation2 + $0x7f8] sm:$0xff] %v1825
    %v2083 = vld [vmem:[#allocation3] sm:$0xff]
    %v2084 = vld [vmem:[#allocation3 + $0x8] sm:$0xff]
    %v2085 = vld [vmem:[#allocation3 + $0x10] sm:$0xff]
    %v2086 = vld [vmem:[#allocation3 + $0x18] sm:$0xff]
    %v2087 = vld [vmem:[#allocation3 + $0x20] sm:$0xff]
    %v2088 = vld [vmem:[#allocation3 + $0x28] sm:$0xff]
    %v2089 = vld [vmem:[#allocation3 + $0x30] sm:$0xff]
    %v2090 = vld [vmem:[#allocation3 + $0x38] sm:$0xff]
    %v2091 = vld [vmem:[#allocation3 + $0x40] sm:$0xff]
    %v2092 = vld [vmem:[#allocation3 + $0x48] sm:$0xff]
    %v2093 = vld [vmem:[#allocation3 + $0x50] sm:$0xff]
    %v2094 = vld [vmem:[#allocation3 + $0x58] sm:$0xff]
    %v2095 = vld [vmem:[#allocation3 + $0x60] sm:$0xff]
    %v2096 = vld [vmem:[#allocation3 + $0x68] sm:$0xff]
    %v2097 = vld [vmem:[#allocation3 + $0x70] sm:$0xff]
    %v2098 = vld [vmem:[#allocation3 + $0x78] sm:$0xff]
    %v2099 = vld [vmem:[#allocation3 + $0x80] sm:$0xff]
    %v2100 = vld [vmem:[#allocation3 + $0x88] sm:$0xff]
    %v2101 = vld [vmem:[#allocation3 + $0x90] sm:$0xff]
    %v2102 = vld [vmem:[#allocation3 + $0x98] sm:$0xff]
    %v2103 = vld [vmem:[#allocation3 + $0xa0] sm:$0xff]
    %v2104 = vld [vmem:[#allocation3 + $0xa8] sm:$0xff]
    %v2105 = vld [vmem:[#allocation3 + $0xb0] sm:$0xff]
    %v2106 = vld [vmem:[#allocation3 + $0xb8] sm:$0xff]
    %v2107 = vld [vmem:[#allocation3 + $0xc0] sm:$0xff]
    %v2108 = vld [vmem:[#allocation3 + $0xc8] sm:$0xff]
    %v2109 = vld [vmem:[#allocation3 + $0xd0] sm:$0xff]
    %v2110 = vld [vmem:[#allocation3 + $0xd8] sm:$0xff]
    %v2111 = vld [vmem:[#allocation3 + $0xe0] sm:$0xff]
    %v2112 = vld [vmem:[#allocation3 + $0xe8] sm:$0xff]
    %v2113 = vld [vmem:[#allocation3 + $0xf0] sm:$0xff]
    %v2114 = vld [vmem:[#allocation3 + $0xf8] sm:$0xff]
    %v2115 = vld [vmem:[#allocation3 + $0x100] sm:$0xff]
    %v2116 = vld [vmem:[#allocation3 + $0x108] sm:$0xff]
    %v2117 = vld [vmem:[#allocation3 + $0x110] sm:$0xff]
    %v2118 = vld [vmem:[#allocation3 + $0x118] sm:$0xff]
    %v2119 = vld [vmem:[#allocation3 + $0x120] sm:$0xff]
    %v2120 = vld [vmem:[#allocation3 + $0x128] sm:$0xff]
    %v2121 = vld [vmem:[#allocation3 + $0x130] sm:$0xff]
    %v2122 = vld [vmem:[#allocation3 + $0x138] sm:$0xff]
    %v2123 = vld [vmem:[#allocation3 + $0x140] sm:$0xff]
    %v2124 = vld [vmem:[#allocation3 + $0x148] sm:$0xff]
    %v2125 = vld [vmem:[#allocation3 + $0x150] sm:$0xff]
    %v2126 = vld [vmem:[#allocation3 + $0x158] sm:$0xff]
    %v2127 = vld [vmem:[#allocation3 + $0x160] sm:$0xff]
    %v2128 = vld [vmem:[#allocation3 + $0x168] sm:$0xff]
    %v2129 = vld [vmem:[#allocation3 + $0x170] sm:$0xff]
    %v2130 = vld [vmem:[#allocation3 + $0x178] sm:$0xff]
    %v2131 = vld [vmem:[#allocation3 + $0x180] sm:$0xff]
    %v2132 = vld [vmem:[#allocation3 + $0x188] sm:$0xff]
    %v2133 = vld [vmem:[#allocation3 + $0x190] sm:$0xff]
    %v2134 = vld [vmem:[#allocation3 + $0x198] sm:$0xff]
    %v2135 = vld [vmem:[#allocation3 + $0x1a0] sm:$0xff]
    %v2136 = vld [vmem:[#allocation3 + $0x1a8] sm:$0xff]
    %v2137 = vld [vmem:[#allocation3 + $0x1b0] sm:$0xff]
    %v2138 = vld [vmem:[#allocation3 + $0x1b8] sm:$0xff]
    %v2139 = vld [vmem:[#allocation3 + $0x1c0] sm:$0xff]
    %v2140 = vld [vmem:[#allocation3 + $0x1c8] sm:$0xff]
    %v2141 = vld [vmem:[#allocation3 + $0x1d0] sm:$0xff]
    %v2142 = vld [vmem:[#allocation3 + $0x1d8] sm:$0xff]
    %v2143 = vld [vmem:[#allocation3 + $0x1e0] sm:$0xff]
    %v2144 = vld [vmem:[#allocation3 + $0x1e8] sm:$0xff]
    %v2145 = vld [vmem:[#allocation3 + $0x1f0] sm:$0xff]
    %v2146 = vld [vmem:[#allocation3 + $0x1f8] sm:$0xff]
    %s2147 = smul.u32 0, 4
    %s2148 = smul.addr %s2147, 8
    %s2149 = scalar_lea.vmem [#allocation2], %s2148
    %v2150 = vld [vmem:[%s2149] sm:$0xff]
    %v2151 = vld [vmem:[%s2149 + $0x8] sm:$0xff]
    %v2152 = vld [vmem:[%s2149 + $0x10] sm:$0xff]
    %v2153 = vld [vmem:[%s2149 + $0x18] sm:$0xff]
    %v2154 = vld [vmem:[%s2149 + $0x20] sm:$0xff]
    %v2155 = vld [vmem:[%s2149 + $0x28] sm:$0xff]
    %v2156 = vld [vmem:[%s2149 + $0x30] sm:$0xff]
    %v2157 = vld [vmem:[%s2149 + $0x38] sm:$0xff]
    %v2158 = vld [vmem:[%s2149 + $0x40] sm:$0xff]
    %v2159 = vld [vmem:[%s2149 + $0x48] sm:$0xff]
    %v2160 = vld [vmem:[%s2149 + $0x50] sm:$0xff]
    %v2161 = vld [vmem:[%s2149 + $0x58] sm:$0xff]
    %v2162 = vld [vmem:[%s2149 + $0x60] sm:$0xff]
    %v2163 = vld [vmem:[%s2149 + $0x68] sm:$0xff]
    %v2164 = vld [vmem:[%s2149 + $0x70] sm:$0xff]
    %v2165 = vld [vmem:[%s2149 + $0x78] sm:$0xff]
    %v2166 = vld [vmem:[%s2149 + $0x80] sm:$0xff]
    %v2167 = vld [vmem:[%s2149 + $0x88] sm:$0xff]
    %v2168 = vld [vmem:[%s2149 + $0x90] sm:$0xff]
    %v2169 = vld [vmem:[%s2149 + $0x98] sm:$0xff]
    %v2170 = vld [vmem:[%s2149 + $0xa0] sm:$0xff]
    %v2171 = vld [vmem:[%s2149 + $0xa8] sm:$0xff]
    %v2172 = vld [vmem:[%s2149 + $0xb0] sm:$0xff]
    %v2173 = vld [vmem:[%s2149 + $0xb8] sm:$0xff]
    %v2174 = vld [vmem:[%s2149 + $0xc0] sm:$0xff]
    %v2175 = vld [vmem:[%s2149 + $0xc8] sm:$0xff]
    %v2176 = vld [vmem:[%s2149 + $0xd0] sm:$0xff]
    %v2177 = vld [vmem:[%s2149 + $0xd8] sm:$0xff]
    %v2178 = vld [vmem:[%s2149 + $0xe0] sm:$0xff]
    %v2179 = vld [vmem:[%s2149 + $0xe8] sm:$0xff]
    %v2180 = vld [vmem:[%s2149 + $0xf0] sm:$0xff]
    %v2181 = vld [vmem:[%s2149 + $0xf8] sm:$0xff]
    %v2182 = vld [vmem:[%s2149 + $0x100] sm:$0xff]
    %v2183 = vld [vmem:[%s2149 + $0x108] sm:$0xff]
    %v2184 = vld [vmem:[%s2149 + $0x110] sm:$0xff]
    %v2185 = vld [vmem:[%s2149 + $0x118] sm:$0xff]
    %v2186 = vld [vmem:[%s2149 + $0x120] sm:$0xff]
    %v2187 = vld [vmem:[%s2149 + $0x128] sm:$0xff]
    %v2188 = vld [vmem:[%s2149 + $0x130] sm:$0xff]
    %v2189 = vld [vmem:[%s2149 + $0x138] sm:$0xff]
    %v2190 = vld [vmem:[%s2149 + $0x140] sm:$0xff]
    %v2191 = vld [vmem:[%s2149 + $0x148] sm:$0xff]
    %v2192 = vld [vmem:[%s2149 + $0x150] sm:$0xff]
    %v2193 = vld [vmem:[%s2149 + $0x158] sm:$0xff]
    %v2194 = vld [vmem:[%s2149 + $0x160] sm:$0xff]
    %v2195 = vld [vmem:[%s2149 + $0x168] sm:$0xff]
    %v2196 = vld [vmem:[%s2149 + $0x170] sm:$0xff]
    %v2197 = vld [vmem:[%s2149 + $0x178] sm:$0xff]
    %v2198 = vld [vmem:[%s2149 + $0x180] sm:$0xff]
    %v2199 = vld [vmem:[%s2149 + $0x188] sm:$0xff]
    %v2200 = vld [vmem:[%s2149 + $0x190] sm:$0xff]
    %v2201 = vld [vmem:[%s2149 + $0x198] sm:$0xff]
    %v2202 = vld [vmem:[%s2149 + $0x1a0] sm:$0xff]
    %v2203 = vld [vmem:[%s2149 + $0x1a8] sm:$0xff]
    %v2204 = vld [vmem:[%s2149 + $0x1b0] sm:$0xff]
    %v2205 = vld [vmem:[%s2149 + $0x1b8] sm:$0xff]
    %v2206 = vld [vmem:[%s2149 + $0x1c0] sm:$0xff]
    %v2207 = vld [vmem:[%s2149 + $0x1c8] sm:$0xff]
    %v2208 = vld [vmem:[%s2149 + $0x1d0] sm:$0xff]
    %v2209 = vld [vmem:[%s2149 + $0x1d8] sm:$0xff]
    %v2210 = vld [vmem:[%s2149 + $0x1e0] sm:$0xff]
    %v2211 = vld [vmem:[%s2149 + $0x1e8] sm:$0xff]
    %v2212 = vld [vmem:[%s2149 + $0x1f0] sm:$0xff]
    %v2213 = vld [vmem:[%s2149 + $0x1f8] sm:$0xff]
    %2214 = vmatpush.msra.mxu0 %v2143
    %2215 = vmatpush.msra.mxu0 %v2139
    %2216 = vmatpush.msra.mxu0 %v2135
    %2217 = vmatpush.msra.mxu0 %v2131
    %2218 = vmatpush.msra.mxu0 %v2127
    %2219 = vmatpush.msra.mxu0 %v2123
    %2220 = vmatpush.msra.mxu0 %v2119
    %2221 = vmatpush.msra.mxu0 %v2115
    %2222 = vmatpush.msra.mxu0 %v2111
    %2223 = vmatpush.msra.mxu0 %v2107
    %2224 = vmatpush.msra.mxu0 %v2103
    %2225 = vmatpush.msra.mxu0 %v2099
    %2226 = vmatpush.msra.mxu0 %v2095
    %2227 = vmatpush.msra.mxu0 %v2091
    %2228 = vmatpush.msra.mxu0 %v2087
    %2229 = vmatpush.msra.mxu0 %v2083
    %2230 = vmatmul.f32.gmra.mxu0 0.0
    %v2231 = vpop.f32.mrf.mxu0
    %v2232 = vadd.f32 0.0, %v2231
    %2233 = vmatmul.f32.gmra.mxu0 0.0
    %v2234 = vpop.f32.mrf.mxu0
    %v2235 = vadd.f32 0.0, %v2234
    %2236 = vmatmul.f32.gmra.mxu0 0.0
    %v2237 = vpop.f32.mrf.mxu0
    %v2238 = vadd.f32 0.0, %v2237
    %2239 = vmatmul.f32.gmra.mxu0 0.0
    %v2240 = vpop.f32.mrf.mxu0
    %v2241 = vadd.f32 0.0, %v2240
    %2242 = vmatmul.f32.gmra.mxu0 0.0
    %v2243 = vpop.f32.mrf.mxu0
    %v2244 = vadd.f32 0.0, %v2243
    %2245 = vmatmul.f32.gmra.mxu0 0.0
    %v2246 = vpop.f32.mrf.mxu0
    %v2247 = vadd.f32 0.0, %v2246
    %2248 = vmatmul.f32.gmra.mxu0 0.0
    %v2249 = vpop.f32.mrf.mxu0
    %v2250 = vadd.f32 0.0, %v2249
    %2251 = vmatmul.f32.gmra.mxu0 0.0
    %v2252 = vpop.f32.mrf.mxu0
    %v2253 = vadd.f32 0.0, %v2252
    %2254 = vdwg.mxu0
    %2255 = vmatpush.msra.mxu0 %v2144
    %2256 = vmatpush.msra.mxu0 %v2140
    %2257 = vmatpush.msra.mxu0 %v2136
    %2258 = vmatpush.msra.mxu0 %v2132
    %2259 = vmatpush.msra.mxu0 %v2128
    %2260 = vmatpush.msra.mxu0 %v2124
    %2261 = vmatpush.msra.mxu0 %v2120
    %2262 = vmatpush.msra.mxu0 %v2116
    %2263 = vmatpush.msra.mxu0 %v2112
    %2264 = vmatpush.msra.mxu0 %v2108
    %2265 = vmatpush.msra.mxu0 %v2104
    %2266 = vmatpush.msra.mxu0 %v2100
    %2267 = vmatpush.msra.mxu0 %v2096
    %2268 = vmatpush.msra.mxu0 %v2092
    %2269 = vmatpush.msra.mxu0 %v2088
    %2270 = vmatpush.msra.mxu0 %v2084
    %2271 = vmatmul.f32.gmra.mxu0 0.0
    %v2272 = vpop.f32.mrf.mxu0
    %v2273 = vadd.f32 0.0, %v2272
    %2274 = vmatmul.f32.gmra.mxu0 0.0
    %v2275 = vpop.f32.mrf.mxu0
    %v2276 = vadd.f32 0.0, %v2275
    %2277 = vmatmul.f32.gmra.mxu0 0.0
    %v2278 = vpop.f32.mrf.mxu0
    %v2279 = vadd.f32 0.0, %v2278
    %2280 = vmatmul.f32.gmra.mxu0 0.0
    %v2281 = vpop.f32.mrf.mxu0
    %v2282 = vadd.f32 0.0, %v2281
    %2283 = vmatmul.f32.gmra.mxu0 0.0
    %v2284 = vpop.f32.mrf.mxu0
    %v2285 = vadd.f32 0.0, %v2284
    %2286 = vmatmul.f32.gmra.mxu0 0.0
    %v2287 = vpop.f32.mrf.mxu0
    %v2288 = vadd.f32 0.0, %v2287
    %2289 = vmatmul.f32.gmra.mxu0 0.0
    %v2290 = vpop.f32.mrf.mxu0
    %v2291 = vadd.f32 0.0, %v2290
    %2292 = vmatmul.f32.gmra.mxu0 0.0
    %v2293 = vpop.f32.mrf.mxu0
    %v2294 = vadd.f32 0.0, %v2293
    %2295 = vdwg.mxu0
    %2296 = vmatpush.msra.mxu0 %v2145
    %2297 = vmatpush.msra.mxu0 %v2141
    %2298 = vmatpush.msra.mxu0 %v2137
    %2299 = vmatpush.msra.mxu0 %v2133
    %2300 = vmatpush.msra.mxu0 %v2129
    %2301 = vmatpush.msra.mxu0 %v2125
    %2302 = vmatpush.msra.mxu0 %v2121
    %2303 = vmatpush.msra.mxu0 %v2117
    %2304 = vmatpush.msra.mxu0 %v2113
    %2305 = vmatpush.msra.mxu0 %v2109
    %2306 = vmatpush.msra.mxu0 %v2105
    %2307 = vmatpush.msra.mxu0 %v2101
    %2308 = vmatpush.msra.mxu0 %v2097
    %2309 = vmatpush.msra.mxu0 %v2093
    %2310 = vmatpush.msra.mxu0 %v2089
    %2311 = vmatpush.msra.mxu0 %v2085
    %2312 = vmatmul.f32.gmra.mxu0 0.0
    %v2313 = vpop.f32.mrf.mxu0
    %v2314 = vadd.f32 0.0, %v2313
    %2315 = vmatmul.f32.gmra.mxu0 0.0
    %v2316 = vpop.f32.mrf.mxu0
    %v2317 = vadd.f32 0.0, %v2316
    %2318 = vmatmul.f32.gmra.mxu0 0.0
    %v2319 = vpop.f32.mrf.mxu0
    %v2320 = vadd.f32 0.0, %v2319
    %2321 = vmatmul.f32.gmra.mxu0 0.0
    %v2322 = vpop.f32.mrf.mxu0
    %v2323 = vadd.f32 0.0, %v2322
    %2324 = vmatmul.f32.gmra.mxu0 0.0
    %v2325 = vpop.f32.mrf.mxu0
    %v2326 = vadd.f32 0.0, %v2325
    %2327 = vmatmul.f32.gmra.mxu0 0.0
    %v2328 = vpop.f32.mrf.mxu0
    %v2329 = vadd.f32 0.0, %v2328
    %2330 = vmatmul.f32.gmra.mxu0 0.0
    %v2331 = vpop.f32.mrf.mxu0
    %v2332 = vadd.f32 0.0, %v2331
    %2333 = vmatmul.f32.gmra.mxu0 0.0
    %v2334 = vpop.f32.mrf.mxu0
    %v2335 = vadd.f32 0.0, %v2334
    %2336 = vdwg.mxu0
    %2337 = vmatpush.msra.mxu0 %v2146
    %2338 = vmatpush.msra.mxu0 %v2142
    %2339 = vmatpush.msra.mxu0 %v2138
    %2340 = vmatpush.msra.mxu0 %v2134
    %2341 = vmatpush.msra.mxu0 %v2130
    %2342 = vmatpush.msra.mxu0 %v2126
    %2343 = vmatpush.msra.mxu0 %v2122
    %2344 = vmatpush.msra.mxu0 %v2118
    %2345 = vmatpush.msra.mxu0 %v2114
    %2346 = vmatpush.msra.mxu0 %v2110
    %2347 = vmatpush.msra.mxu0 %v2106
    %2348 = vmatpush.msra.mxu0 %v2102
    %2349 = vmatpush.msra.mxu0 %v2098
    %2350 = vmatpush.msra.mxu0 %v2094
    %2351 = vmatpush.msra.mxu0 %v2090
    %2352 = vmatpush.msra.mxu0 %v2086
    %2353 = vmatmul.f32.gmra.mxu0 0.0
    %v2354 = vpop.f32.mrf.mxu0
    %v2355 = vadd.f32 0.0, %v2354
    %2356 = vmatmul.f32.gmra.mxu0 0.0
    %v2357 = vpop.f32.mrf.mxu0
    %v2358 = vadd.f32 0.0, %v2357
    %2359 = vmatmul.f32.gmra.mxu0 0.0
    %v2360 = vpop.f32.mrf.mxu0
    %v2361 = vadd.f32 0.0, %v2360
    %2362 = vmatmul.f32.gmra.mxu0 0.0
    %v2363 = vpop.f32.mrf.mxu0
    %v2364 = vadd.f32 0.0, %v2363
    %2365 = vmatmul.f32.gmra.mxu0 0.0
    %v2366 = vpop.f32.mrf.mxu0
    %v2367 = vadd.f32 0.0, %v2366
    %2368 = vmatmul.f32.gmra.mxu0 0.0
    %v2369 = vpop.f32.mrf.mxu0
    %v2370 = vadd.f32 0.0, %v2369
    %2371 = vmatmul.f32.gmra.mxu0 0.0
    %v2372 = vpop.f32.mrf.mxu0
    %v2373 = vadd.f32 0.0, %v2372
    %2374 = vmatmul.f32.gmra.mxu0 0.0
    %v2375 = vpop.f32.mrf.mxu0
    %v2376 = vadd.f32 0.0, %v2375
    %2377 = vdwg.mxu0
    %v2378 = vadd.f32 %v2150, %v2232
    %v2379 = vadd.f32 %v2151, %v2273
    %v2380 = vadd.f32 %v2152, %v2314
    %v2381 = vadd.f32 %v2153, %v2355
    %v2382 = vadd.f32 %v2154, %v2235
    %v2383 = vadd.f32 %v2155, %v2276
    %v2384 = vadd.f32 %v2156, %v2317
    %v2385 = vadd.f32 %v2157, %v2358
    %v2386 = vadd.f32 %v2158, %v2238
    %v2387 = vadd.f32 %v2159, %v2279
    %v2388 = vadd.f32 %v2160, %v2320
    %v2389 = vadd.f32 %v2161, %v2361
    %v2390 = vadd.f32 %v2162, %v2241
    %v2391 = vadd.f32 %v2163, %v2282
    %v2392 = vadd.f32 %v2164, %v2323
    %v2393 = vadd.f32 %v2165, %v2364
    %v2394 = vadd.f32 %v2166, %v2244
    %v2395 = vadd.f32 %v2167, %v2285
    %v2396 = vadd.f32 %v2168, %v2326
    %v2397 = vadd.f32 %v2169, %v2367
    %v2398 = vadd.f32 %v2170, %v2247
    %v2399 = vadd.f32 %v2171, %v2288
    %v2400 = vadd.f32 %v2172, %v2329
    %v2401 = vadd.f32 %v2173, %v2370
    %v2402 = vadd.f32 %v2174, %v2250
    %v2403 = vadd.f32 %v2175, %v2291
    %v2404 = vadd.f32 %v2176, %v2332
    %v2405 = vadd.f32 %v2177, %v2373
    %v2406 = vadd.f32 %v2178, %v2253
    %v2407 = vadd.f32 %v2179, %v2294
    %v2408 = vadd.f32 %v2180, %v2335
    %v2409 = vadd.f32 %v2181, %v2376
    %v2410 = vxor.u32 %v2378, 2147483648
    %v2411 = vxor.u32 %v2382, 2147483648
    %v2412 = vxor.u32 %v2386, 2147483648
    %v2413 = vxor.u32 %v2390, 2147483648
    %v2414 = vxor.u32 %v2394, 2147483648
    %v2415 = vxor.u32 %v2398, 2147483648
    %v2416 = vxor.u32 %v2402, 2147483648
    %v2417 = vxor.u32 %v2406, 2147483648
    %v2418 = vmul.f32 %v2410, 1.442695
    %v2419 = vpow.pop %v2418
    %v2420 = vmul.f32 %v2411, 1.442695
    %v2421 = vpow.pop %v2420
    %v2422 = vmul.f32 %v2412, 1.442695
    %v2423 = vpow.pop %v2422
    %v2424 = vmul.f32 %v2413, 1.442695
    %v2425 = vpow.pop %v2424
    %v2426 = vmul.f32 %v2414, 1.442695
    %v2427 = vpow.pop %v2426
    %v2428 = vmul.f32 %v2415, 1.442695
    %v2429 = vpow.pop %v2428
    %v2430 = vmul.f32 %v2416, 1.442695
    %v2431 = vpow.pop %v2430
    %v2432 = vmul.f32 %v2417, 1.442695
    %v2433 = vpow.pop %v2432
    %v2434 = vadd.f32 %v2419, 1.0
    %v2435 = vadd.f32 %v2421, 1.0
    %v2436 = vadd.f32 %v2423, 1.0
    %v2437 = vadd.f32 %v2425, 1.0
    %v2438 = vadd.f32 %v2427, 1.0
    %v2439 = vadd.f32 %v2429, 1.0
    %v2440 = vadd.f32 %v2431, 1.0
    %v2441 = vadd.f32 %v2433, 1.0
    %v2442 = vrcp.pop %v2434
    %v2443 = vmul.f32 %v2434, %v2442
    %v2444 = vsub.f32 1.0, %v2443
    %v2445 = vmul.f32 %v2442, %v2444
    %v2446 = vadd.f32 %v2442, %v2445
    %vm2447 = vweird.f32 %v2434
    %vm2448 = vweird.f32 %v2442
    %vm2449 = vmor %vm2447, %vm2448
    %v2450 = vsel %vm2449, %v2442, %v2446
    %v2451 = vand.u32 2147483647, %v2434
    %vm2452 = vcmp.eq.f32.partialorder %v2451, 8.507059e+37
    %v2453 = vand.u32 %v2434, 2147483648
    %v2454 = vor.u32 1.1754944e-38, %v2453
    %v2455 = vsel %vm2452, %v2454, %v2450
    %v2456 = vmul.f32 1.0, %v2455
    %v2457 = vrcp.pop %v2435
    %v2458 = vmul.f32 %v2435, %v2457
    %v2459 = vsub.f32 1.0, %v2458
    %v2460 = vmul.f32 %v2457, %v2459
    %v2461 = vadd.f32 %v2457, %v2460
    %vm2462 = vweird.f32 %v2435
    %vm2463 = vweird.f32 %v2457
    %vm2464 = vmor %vm2462, %vm2463
    %v2465 = vsel %vm2464, %v2457, %v2461
    %v2466 = vand.u32 2147483647, %v2435
    %vm2467 = vcmp.eq.f32.partialorder %v2466, 8.507059e+37
    %v2468 = vand.u32 %v2435, 2147483648
    %v2469 = vor.u32 1.1754944e-38, %v2468
    %v2470 = vsel %vm2467, %v2469, %v2465
    %v2471 = vmul.f32 1.0, %v2470
    %v2472 = vrcp.pop %v2436
    %v2473 = vmul.f32 %v2436, %v2472
    %v2474 = vsub.f32 1.0, %v2473
    %v2475 = vmul.f32 %v2472, %v2474
    %v2476 = vadd.f32 %v2472, %v2475
    %vm2477 = vweird.f32 %v2436
    %vm2478 = vweird.f32 %v2472
    %vm2479 = vmor %vm2477, %vm2478
    %v2480 = vsel %vm2479, %v2472, %v2476
    %v2481 = vand.u32 2147483647, %v2436
    %vm2482 = vcmp.eq.f32.partialorder %v2481, 8.507059e+37
    %v2483 = vand.u32 %v2436, 2147483648
    %v2484 = vor.u32 1.1754944e-38, %v2483
    %v2485 = vsel %vm2482, %v2484, %v2480
    %v2486 = vmul.f32 1.0, %v2485
    %v2487 = vrcp.pop %v2437
    %v2488 = vmul.f32 %v2437, %v2487
    %v2489 = vsub.f32 1.0, %v2488
    %v2490 = vmul.f32 %v2487, %v2489
    %v2491 = vadd.f32 %v2487, %v2490
    %vm2492 = vweird.f32 %v2437
    %vm2493 = vweird.f32 %v2487
    %vm2494 = vmor %vm2492, %vm2493
    %v2495 = vsel %vm2494, %v2487, %v2491
    %v2496 = vand.u32 2147483647, %v2437
    %vm2497 = vcmp.eq.f32.partialorder %v2496, 8.507059e+37
    %v2498 = vand.u32 %v2437, 2147483648
    %v2499 = vor.u32 1.1754944e-38, %v2498
    %v2500 = vsel %vm2497, %v2499, %v2495
    %v2501 = vmul.f32 1.0, %v2500
    %v2502 = vrcp.pop %v2438
    %v2503 = vmul.f32 %v2438, %v2502
    %v2504 = vsub.f32 1.0, %v2503
    %v2505 = vmul.f32 %v2502, %v2504
    %v2506 = vadd.f32 %v2502, %v2505
    %vm2507 = vweird.f32 %v2438
    %vm2508 = vweird.f32 %v2502
    %vm2509 = vmor %vm2507, %vm2508
    %v2510 = vsel %vm2509, %v2502, %v2506
    %v2511 = vand.u32 2147483647, %v2438
    %vm2512 = vcmp.eq.f32.partialorder %v2511, 8.507059e+37
    %v2513 = vand.u32 %v2438, 2147483648
    %v2514 = vor.u32 1.1754944e-38, %v2513
    %v2515 = vsel %vm2512, %v2514, %v2510
    %v2516 = vmul.f32 1.0, %v2515
    %v2517 = vrcp.pop %v2439
    %v2518 = vmul.f32 %v2439, %v2517
    %v2519 = vsub.f32 1.0, %v2518
    %v2520 = vmul.f32 %v2517, %v2519
    %v2521 = vadd.f32 %v2517, %v2520
    %vm2522 = vweird.f32 %v2439
    %vm2523 = vweird.f32 %v2517
    %vm2524 = vmor %vm2522, %vm2523
    %v2525 = vsel %vm2524, %v2517, %v2521
    %v2526 = vand.u32 2147483647, %v2439
    %vm2527 = vcmp.eq.f32.partialorder %v2526, 8.507059e+37
    %v2528 = vand.u32 %v2439, 2147483648
    %v2529 = vor.u32 1.1754944e-38, %v2528
    %v2530 = vsel %vm2527, %v2529, %v2525
    %v2531 = vmul.f32 1.0, %v2530
    %v2532 = vrcp.pop %v2440
    %v2533 = vmul.f32 %v2440, %v2532
    %v2534 = vsub.f32 1.0, %v2533
    %v2535 = vmul.f32 %v2532, %v2534
    %v2536 = vadd.f32 %v2532, %v2535
    %vm2537 = vweird.f32 %v2440
    %vm2538 = vweird.f32 %v2532
    %vm2539 = vmor %vm2537, %vm2538
    %v2540 = vsel %vm2539, %v2532, %v2536
    %v2541 = vand.u32 2147483647, %v2440
    %vm2542 = vcmp.eq.f32.partialorder %v2541, 8.507059e+37
    %v2543 = vand.u32 %v2440, 2147483648
    %v2544 = vor.u32 1.1754944e-38, %v2543
    %v2545 = vsel %vm2542, %v2544, %v2540
    %v2546 = vmul.f32 1.0, %v2545
    %v2547 = vrcp.pop %v2441
    %v2548 = vmul.f32 %v2441, %v2547
    %v2549 = vsub.f32 1.0, %v2548
    %v2550 = vmul.f32 %v2547, %v2549
    %v2551 = vadd.f32 %v2547, %v2550
    %vm2552 = vweird.f32 %v2441
    %vm2553 = vweird.f32 %v2547
    %vm2554 = vmor %vm2552, %vm2553
    %v2555 = vsel %vm2554, %v2547, %v2551
    %v2556 = vand.u32 2147483647, %v2441
    %vm2557 = vcmp.eq.f32.partialorder %v2556, 8.507059e+37
    %v2558 = vand.u32 %v2441, 2147483648
    %v2559 = vor.u32 1.1754944e-38, %v2558
    %v2560 = vsel %vm2557, %v2559, %v2555
    %v2561 = vmul.f32 1.0, %v2560
    %v2562 = vxor.u32 %v2379, 2147483648
    %v2563 = vxor.u32 %v2383, 2147483648
    %v2564 = vxor.u32 %v2387, 2147483648
    %v2565 = vxor.u32 %v2391, 2147483648
    %v2566 = vxor.u32 %v2395, 2147483648
    %v2567 = vxor.u32 %v2399, 2147483648
    %v2568 = vxor.u32 %v2403, 2147483648
    %v2569 = vxor.u32 %v2407, 2147483648
    %v2570 = vmul.f32 %v2562, 1.442695
    %v2571 = vpow.pop %v2570
    %v2572 = vmul.f32 %v2563, 1.442695
    %v2573 = vpow.pop %v2572
    %v2574 = vmul.f32 %v2564, 1.442695
    %v2575 = vpow.pop %v2574
    %v2576 = vmul.f32 %v2565, 1.442695
    %v2577 = vpow.pop %v2576
    %v2578 = vmul.f32 %v2566, 1.442695
    %v2579 = vpow.pop %v2578
    %v2580 = vmul.f32 %v2567, 1.442695
    %v2581 = vpow.pop %v2580
    %v2582 = vmul.f32 %v2568, 1.442695
    %v2583 = vpow.pop %v2582
    %v2584 = vmul.f32 %v2569, 1.442695
    %v2585 = vpow.pop %v2584
    %v2586 = vadd.f32 %v2571, 1.0
    %v2587 = vadd.f32 %v2573, 1.0
    %v2588 = vadd.f32 %v2575, 1.0
    %v2589 = vadd.f32 %v2577, 1.0
    %v2590 = vadd.f32 %v2579, 1.0
    %v2591 = vadd.f32 %v2581, 1.0
    %v2592 = vadd.f32 %v2583, 1.0
    %v2593 = vadd.f32 %v2585, 1.0
    %v2594 = vrcp.pop %v2586
    %v2595 = vmul.f32 %v2586, %v2594
    %v2596 = vsub.f32 1.0, %v2595
    %v2597 = vmul.f32 %v2594, %v2596
    %v2598 = vadd.f32 %v2594, %v2597
    %vm2599 = vweird.f32 %v2586
    %vm2600 = vweird.f32 %v2594
    %vm2601 = vmor %vm2599, %vm2600
    %v2602 = vsel %vm2601, %v2594, %v2598
    %v2603 = vand.u32 2147483647, %v2586
    %vm2604 = vcmp.eq.f32.partialorder %v2603, 8.507059e+37
    %v2605 = vand.u32 %v2586, 2147483648
    %v2606 = vor.u32 1.1754944e-38, %v2605
    %v2607 = vsel %vm2604, %v2606, %v2602
    %v2608 = vmul.f32 1.0, %v2607
    %v2609 = vrcp.pop %v2587
    %v2610 = vmul.f32 %v2587, %v2609
    %v2611 = vsub.f32 1.0, %v2610
    %v2612 = vmul.f32 %v2609, %v2611
    %v2613 = vadd.f32 %v2609, %v2612
    %vm2614 = vweird.f32 %v2587
    %vm2615 = vweird.f32 %v2609
    %vm2616 = vmor %vm2614, %vm2615
    %v2617 = vsel %vm2616, %v2609, %v2613
    %v2618 = vand.u32 2147483647, %v2587
    %vm2619 = vcmp.eq.f32.partialorder %v2618, 8.507059e+37
    %v2620 = vand.u32 %v2587, 2147483648
    %v2621 = vor.u32 1.1754944e-38, %v2620
    %v2622 = vsel %vm2619, %v2621, %v2617
    %v2623 = vmul.f32 1.0, %v2622
    %v2624 = vrcp.pop %v2588
    %v2625 = vmul.f32 %v2588, %v2624
    %v2626 = vsub.f32 1.0, %v2625
    %v2627 = vmul.f32 %v2624, %v2626
    %v2628 = vadd.f32 %v2624, %v2627
    %vm2629 = vweird.f32 %v2588
    %vm2630 = vweird.f32 %v2624
    %vm2631 = vmor %vm2629, %vm2630
    %v2632 = vsel %vm2631, %v2624, %v2628
    %v2633 = vand.u32 2147483647, %v2588
    %vm2634 = vcmp.eq.f32.partialorder %v2633, 8.507059e+37
    %v2635 = vand.u32 %v2588, 2147483648
    %v2636 = vor.u32 1.1754944e-38, %v2635
    %v2637 = vsel %vm2634, %v2636, %v2632
    %v2638 = vmul.f32 1.0, %v2637
    %v2639 = vrcp.pop %v2589
    %v2640 = vmul.f32 %v2589, %v2639
    %v2641 = vsub.f32 1.0, %v2640
    %v2642 = vmul.f32 %v2639, %v2641
    %v2643 = vadd.f32 %v2639, %v2642
    %vm2644 = vweird.f32 %v2589
    %vm2645 = vweird.f32 %v2639
    %vm2646 = vmor %vm2644, %vm2645
    %v2647 = vsel %vm2646, %v2639, %v2643
    %v2648 = vand.u32 2147483647, %v2589
    %vm2649 = vcmp.eq.f32.partialorder %v2648, 8.507059e+37
    %v2650 = vand.u32 %v2589, 2147483648
    %v2651 = vor.u32 1.1754944e-38, %v2650
    %v2652 = vsel %vm2649, %v2651, %v2647
    %v2653 = vmul.f32 1.0, %v2652
    %v2654 = vrcp.pop %v2590
    %v2655 = vmul.f32 %v2590, %v2654
    %v2656 = vsub.f32 1.0, %v2655
    %v2657 = vmul.f32 %v2654, %v2656
    %v2658 = vadd.f32 %v2654, %v2657
    %vm2659 = vweird.f32 %v2590
    %vm2660 = vweird.f32 %v2654
    %vm2661 = vmor %vm2659, %vm2660
    %v2662 = vsel %vm2661, %v2654, %v2658
    %v2663 = vand.u32 2147483647, %v2590
    %vm2664 = vcmp.eq.f32.partialorder %v2663, 8.507059e+37
    %v2665 = vand.u32 %v2590, 2147483648
    %v2666 = vor.u32 1.1754944e-38, %v2665
    %v2667 = vsel %vm2664, %v2666, %v2662
    %v2668 = vmul.f32 1.0, %v2667
    %v2669 = vrcp.pop %v2591
    %v2670 = vmul.f32 %v2591, %v2669
    %v2671 = vsub.f32 1.0, %v2670
    %v2672 = vmul.f32 %v2669, %v2671
    %v2673 = vadd.f32 %v2669, %v2672
    %vm2674 = vweird.f32 %v2591
    %vm2675 = vweird.f32 %v2669
    %vm2676 = vmor %vm2674, %vm2675
    %v2677 = vsel %vm2676, %v2669, %v2673
    %v2678 = vand.u32 2147483647, %v2591
    %vm2679 = vcmp.eq.f32.partialorder %v2678, 8.507059e+37
    %v2680 = vand.u32 %v2591, 2147483648
    %v2681 = vor.u32 1.1754944e-38, %v2680
    %v2682 = vsel %vm2679, %v2681, %v2677
    %v2683 = vmul.f32 1.0, %v2682
    %v2684 = vrcp.pop %v2592
    %v2685 = vmul.f32 %v2592, %v2684
    %v2686 = vsub.f32 1.0, %v2685
    %v2687 = vmul.f32 %v2684, %v2686
    %v2688 = vadd.f32 %v2684, %v2687
    %vm2689 = vweird.f32 %v2592
    %vm2690 = vweird.f32 %v2684
    %vm2691 = vmor %vm2689, %vm2690
    %v2692 = vsel %vm2691, %v2684, %v2688
    %v2693 = vand.u32 2147483647, %v2592
    %vm2694 = vcmp.eq.f32.partialorder %v2693, 8.507059e+37
    %v2695 = vand.u32 %v2592, 2147483648
    %v2696 = vor.u32 1.1754944e-38, %v2695
    %v2697 = vsel %vm2694, %v2696, %v2692
    %v2698 = vmul.f32 1.0, %v2697
    %v2699 = vrcp.pop %v2593
    %v2700 = vmul.f32 %v2593, %v2699
    %v2701 = vsub.f32 1.0, %v2700
    %v2702 = vmul.f32 %v2699, %v2701
    %v2703 = vadd.f32 %v2699, %v2702
    %vm2704 = vweird.f32 %v2593
    %vm2705 = vweird.f32 %v2699
    %vm2706 = vmor %vm2704, %vm2705
    %v2707 = vsel %vm2706, %v2699, %v2703
    %v2708 = vand.u32 2147483647, %v2593
    %vm2709 = vcmp.eq.f32.partialorder %v2708, 8.507059e+37
    %v2710 = vand.u32 %v2593, 2147483648
    %v2711 = vor.u32 1.1754944e-38, %v2710
    %v2712 = vsel %vm2709, %v2711, %v2707
    %v2713 = vmul.f32 1.0, %v2712
    %v2714 = vtanh.pop %v2380
    %v2715 = vtanh.pop %v2384
    %v2716 = vtanh.pop %v2388
    %v2717 = vtanh.pop %v2392
    %v2718 = vtanh.pop %v2396
    %v2719 = vtanh.pop %v2400
    %v2720 = vtanh.pop %v2404
    %v2721 = vtanh.pop %v2408
    %v2722 = vxor.u32 %v2381, 2147483648
    %v2723 = vxor.u32 %v2385, 2147483648
    %v2724 = vxor.u32 %v2389, 2147483648
    %v2725 = vxor.u32 %v2393, 2147483648
    %v2726 = vxor.u32 %v2397, 2147483648
    %v2727 = vxor.u32 %v2401, 2147483648
    %v2728 = vxor.u32 %v2405, 2147483648
    %v2729 = vxor.u32 %v2409, 2147483648
    %v2730 = vmul.f32 %v2722, 1.442695
    %v2731 = vpow.pop %v2730
    %v2732 = vmul.f32 %v2723, 1.442695
    %v2733 = vpow.pop %v2732
    %v2734 = vmul.f32 %v2724, 1.442695
    %v2735 = vpow.pop %v2734
    %v2736 = vmul.f32 %v2725, 1.442695
    %v2737 = vpow.pop %v2736
    %v2738 = vmul.f32 %v2726, 1.442695
    %v2739 = vpow.pop %v2738
    %v2740 = vmul.f32 %v2727, 1.442695
    %v2741 = vpow.pop %v2740
    %v2742 = vmul.f32 %v2728, 1.442695
    %v2743 = vpow.pop %v2742
    %v2744 = vmul.f32 %v2729, 1.442695
    %v2745 = vpow.pop %v2744
    %v2746 = vadd.f32 %v2731, 1.0
    %v2747 = vadd.f32 %v2733, 1.0
    %v2748 = vadd.f32 %v2735, 1.0
    %v2749 = vadd.f32 %v2737, 1.0
    %v2750 = vadd.f32 %v2739, 1.0
    %v2751 = vadd.f32 %v2741, 1.0
    %v2752 = vadd.f32 %v2743, 1.0
    %v2753 = vadd.f32 %v2745, 1.0
    %v2754 = vrcp.pop %v2746
    %v2755 = vmul.f32 %v2746, %v2754
    %v2756 = vsub.f32 1.0, %v2755
    %v2757 = vmul.f32 %v2754, %v2756
    %v2758 = vadd.f32 %v2754, %v2757
    %vm2759 = vweird.f32 %v2746
    %vm2760 = vweird.f32 %v2754
    %vm2761 = vmor %vm2759, %vm2760
    %v2762 = vsel %vm2761, %v2754, %v2758
    %v2763 = vand.u32 2147483647, %v2746
    %vm2764 = vcmp.eq.f32.partialorder %v2763, 8.507059e+37
    %v2765 = vand.u32 %v2746, 2147483648
    %v2766 = vor.u32 1.1754944e-38, %v2765
    %v2767 = vsel %vm2764, %v2766, %v2762
    %v2768 = vmul.f32 1.0, %v2767
    %v2769 = vrcp.pop %v2747
    %v2770 = vmul.f32 %v2747, %v2769
    %v2771 = vsub.f32 1.0, %v2770
    %v2772 = vmul.f32 %v2769, %v2771
    %v2773 = vadd.f32 %v2769, %v2772
    %vm2774 = vweird.f32 %v2747
    %vm2775 = vweird.f32 %v2769
    %vm2776 = vmor %vm2774, %vm2775
    %v2777 = vsel %vm2776, %v2769, %v2773
    %v2778 = vand.u32 2147483647, %v2747
    %vm2779 = vcmp.eq.f32.partialorder %v2778, 8.507059e+37
    %v2780 = vand.u32 %v2747, 2147483648
    %v2781 = vor.u32 1.1754944e-38, %v2780
    %v2782 = vsel %vm2779, %v2781, %v2777
    %v2783 = vmul.f32 1.0, %v2782
    %v2784 = vrcp.pop %v2748
    %v2785 = vmul.f32 %v2748, %v2784
    %v2786 = vsub.f32 1.0, %v2785
    %v2787 = vmul.f32 %v2784, %v2786
    %v2788 = vadd.f32 %v2784, %v2787
    %vm2789 = vweird.f32 %v2748
    %vm2790 = vweird.f32 %v2784
    %vm2791 = vmor %vm2789, %vm2790
    %v2792 = vsel %vm2791, %v2784, %v2788
    %v2793 = vand.u32 2147483647, %v2748
    %vm2794 = vcmp.eq.f32.partialorder %v2793, 8.507059e+37
    %v2795 = vand.u32 %v2748, 2147483648
    %v2796 = vor.u32 1.1754944e-38, %v2795
    %v2797 = vsel %vm2794, %v2796, %v2792
    %v2798 = vmul.f32 1.0, %v2797
    %v2799 = vrcp.pop %v2749
    %v2800 = vmul.f32 %v2749, %v2799
    %v2801 = vsub.f32 1.0, %v2800
    %v2802 = vmul.f32 %v2799, %v2801
    %v2803 = vadd.f32 %v2799, %v2802
    %vm2804 = vweird.f32 %v2749
    %vm2805 = vweird.f32 %v2799
    %vm2806 = vmor %vm2804, %vm2805
    %v2807 = vsel %vm2806, %v2799, %v2803
    %v2808 = vand.u32 2147483647, %v2749
    %vm2809 = vcmp.eq.f32.partialorder %v2808, 8.507059e+37
    %v2810 = vand.u32 %v2749, 2147483648
    %v2811 = vor.u32 1.1754944e-38, %v2810
    %v2812 = vsel %vm2809, %v2811, %v2807
    %v2813 = vmul.f32 1.0, %v2812
    %v2814 = vrcp.pop %v2750
    %v2815 = vmul.f32 %v2750, %v2814
    %v2816 = vsub.f32 1.0, %v2815
    %v2817 = vmul.f32 %v2814, %v2816
    %v2818 = vadd.f32 %v2814, %v2817
    %vm2819 = vweird.f32 %v2750
    %vm2820 = vweird.f32 %v2814
    %vm2821 = vmor %vm2819, %vm2820
    %v2822 = vsel %vm2821, %v2814, %v2818
    %v2823 = vand.u32 2147483647, %v2750
    %vm2824 = vcmp.eq.f32.partialorder %v2823, 8.507059e+37
    %v2825 = vand.u32 %v2750, 2147483648
    %v2826 = vor.u32 1.1754944e-38, %v2825
    %v2827 = vsel %vm2824, %v2826, %v2822
    %v2828 = vmul.f32 1.0, %v2827
    %v2829 = vrcp.pop %v2751
    %v2830 = vmul.f32 %v2751, %v2829
    %v2831 = vsub.f32 1.0, %v2830
    %v2832 = vmul.f32 %v2829, %v2831
    %v2833 = vadd.f32 %v2829, %v2832
    %vm2834 = vweird.f32 %v2751
    %vm2835 = vweird.f32 %v2829
    %vm2836 = vmor %vm2834, %vm2835
    %v2837 = vsel %vm2836, %v2829, %v2833
    %v2838 = vand.u32 2147483647, %v2751
    %vm2839 = vcmp.eq.f32.partialorder %v2838, 8.507059e+37
    %v2840 = vand.u32 %v2751, 2147483648
    %v2841 = vor.u32 1.1754944e-38, %v2840
    %v2842 = vsel %vm2839, %v2841, %v2837
    %v2843 = vmul.f32 1.0, %v2842
    %v2844 = vrcp.pop %v2752
    %v2845 = vmul.f32 %v2752, %v2844
    %v2846 = vsub.f32 1.0, %v2845
    %v2847 = vmul.f32 %v2844, %v2846
    %v2848 = vadd.f32 %v2844, %v2847
    %vm2849 = vweird.f32 %v2752
    %vm2850 = vweird.f32 %v2844
    %vm2851 = vmor %vm2849, %vm2850
    %v2852 = vsel %vm2851, %v2844, %v2848
    %v2853 = vand.u32 2147483647, %v2752
    %vm2854 = vcmp.eq.f32.partialorder %v2853, 8.507059e+37
    %v2855 = vand.u32 %v2752, 2147483648
    %v2856 = vor.u32 1.1754944e-38, %v2855
    %v2857 = vsel %vm2854, %v2856, %v2852
    %v2858 = vmul.f32 1.0, %v2857
    %v2859 = vrcp.pop %v2753
    %v2860 = vmul.f32 %v2753, %v2859
    %v2861 = vsub.f32 1.0, %v2860
    %v2862 = vmul.f32 %v2859, %v2861
    %v2863 = vadd.f32 %v2859, %v2862
    %vm2864 = vweird.f32 %v2753
    %vm2865 = vweird.f32 %v2859
    %vm2866 = vmor %vm2864, %vm2865
    %v2867 = vsel %vm2866, %v2859, %v2863
    %v2868 = vand.u32 2147483647, %v2753
    %vm2869 = vcmp.eq.f32.partialorder %v2868, 8.507059e+37
    %v2870 = vand.u32 %v2753, 2147483648
    %v2871 = vor.u32 1.1754944e-38, %v2870
    %v2872 = vsel %vm2869, %v2871, %v2867
    %v2873 = vmul.f32 1.0, %v2872
    %v2874 = vmul.f32 %v2608, 0.0
    %v2875 = vmul.f32 %v2623, 0.0
    %v2876 = vmul.f32 %v2638, 0.0
    %v2877 = vmul.f32 %v2653, 0.0
    %v2878 = vmul.f32 %v2668, 0.0
    %v2879 = vmul.f32 %v2683, 0.0
    %v2880 = vmul.f32 %v2698, 0.0
    %v2881 = vmul.f32 %v2713, 0.0
    %v2882 = vmul.f32 %v2456, %v2714
    %v2883 = vmul.f32 %v2471, %v2715
    %v2884 = vmul.f32 %v2486, %v2716
    %v2885 = vmul.f32 %v2501, %v2717
    %v2886 = vmul.f32 %v2516, %v2718
    %v2887 = vmul.f32 %v2531, %v2719
    %v2888 = vmul.f32 %v2546, %v2720
    %v2889 = vmul.f32 %v2561, %v2721
    %v2890 = vadd.f32 %v2874, %v2882
    %v2891 = vadd.f32 %v2875, %v2883
    %v2892 = vadd.f32 %v2876, %v2884
    %v2893 = vadd.f32 %v2877, %v2885
    %v2894 = vadd.f32 %v2878, %v2886
    %v2895 = vadd.f32 %v2879, %v2887
    %v2896 = vadd.f32 %v2880, %v2888
    %v2897 = vadd.f32 %v2881, %v2889
    %v2898 = vtanh.pop %v2890
    %v2899 = vtanh.pop %v2891
    %v2900 = vtanh.pop %v2892
    %v2901 = vtanh.pop %v2893
    %v2902 = vtanh.pop %v2894
    %v2903 = vtanh.pop %v2895
    %v2904 = vtanh.pop %v2896
    %v2905 = vtanh.pop %v2897
    %v2906 = vmul.f32 %v2768, %v2898
    %v2907 = vmul.f32 %v2783, %v2899
    %v2908 = vmul.f32 %v2798, %v2900
    %v2909 = vmul.f32 %v2813, %v2901
    %v2910 = vmul.f32 %v2828, %v2902
    %v2911 = vmul.f32 %v2843, %v2903
    %v2912 = vmul.f32 %v2858, %v2904
    %v2913 = vmul.f32 %v2873, %v2905
    %v2914 = vadd.f32 %v2182, %v2232
    %v2915 = vadd.f32 %v2183, %v2273
    %v2916 = vadd.f32 %v2184, %v2314
    %v2917 = vadd.f32 %v2185, %v2355
    %v2918 = vadd.f32 %v2186, %v2235
    %v2919 = vadd.f32 %v2187, %v2276
    %v2920 = vadd.f32 %v2188, %v2317
    %v2921 = vadd.f32 %v2189, %v2358
    %v2922 = vadd.f32 %v2190, %v2238
    %v2923 = vadd.f32 %v2191, %v2279
    %v2924 = vadd.f32 %v2192, %v2320
    %v2925 = vadd.f32 %v2193, %v2361
    %v2926 = vadd.f32 %v2194, %v2241
    %v2927 = vadd.f32 %v2195, %v2282
    %v2928 = vadd.f32 %v2196, %v2323
    %v2929 = vadd.f32 %v2197, %v2364
    %v2930 = vadd.f32 %v2198, %v2244
    %v2931 = vadd.f32 %v2199, %v2285
    %v2932 = vadd.f32 %v2200, %v2326
    %v2933 = vadd.f32 %v2201, %v2367
    %v2934 = vadd.f32 %v2202, %v2247
    %v2935 = vadd.f32 %v2203, %v2288
    %v2936 = vadd.f32 %v2204, %v2329
    %v2937 = vadd.f32 %v2205, %v2370
    %v2938 = vadd.f32 %v2206, %v2250
    %v2939 = vadd.f32 %v2207, %v2291
    %v2940 = vadd.f32 %v2208, %v2332
    %v2941 = vadd.f32 %v2209, %v2373
    %v2942 = vadd.f32 %v2210, %v2253
    %v2943 = vadd.f32 %v2211, %v2294
    %v2944 = vadd.f32 %v2212, %v2335
    %v2945 = vadd.f32 %v2213, %v2376
    %v2946 = vxor.u32 %v2914, 2147483648
    %v2947 = vxor.u32 %v2918, 2147483648
    %v2948 = vxor.u32 %v2922, 2147483648
    %v2949 = vxor.u32 %v2926, 2147483648
    %v2950 = vxor.u32 %v2930, 2147483648
    %v2951 = vxor.u32 %v2934, 2147483648
    %v2952 = vxor.u32 %v2938, 2147483648
    %v2953 = vxor.u32 %v2942, 2147483648
    %v2954 = vmul.f32 %v2946, 1.442695
    %v2955 = vpow.pop %v2954
    %v2956 = vmul.f32 %v2947, 1.442695
    %v2957 = vpow.pop %v2956
    %v2958 = vmul.f32 %v2948, 1.442695
    %v2959 = vpow.pop %v2958
    %v2960 = vmul.f32 %v2949, 1.442695
    %v2961 = vpow.pop %v2960
    %v2962 = vmul.f32 %v2950, 1.442695
    %v2963 = vpow.pop %v2962
    %v2964 = vmul.f32 %v2951, 1.442695
    %v2965 = vpow.pop %v2964
    %v2966 = vmul.f32 %v2952, 1.442695
    %v2967 = vpow.pop %v2966
    %v2968 = vmul.f32 %v2953, 1.442695
    %v2969 = vpow.pop %v2968
    %v2970 = vadd.f32 %v2955, 1.0
    %v2971 = vadd.f32 %v2957, 1.0
    %v2972 = vadd.f32 %v2959, 1.0
    %v2973 = vadd.f32 %v2961, 1.0
    %v2974 = vadd.f32 %v2963, 1.0
    %v2975 = vadd.f32 %v2965, 1.0
    %v2976 = vadd.f32 %v2967, 1.0
    %v2977 = vadd.f32 %v2969, 1.0
    %v2978 = vrcp.pop %v2970
    %v2979 = vmul.f32 %v2970, %v2978
    %v2980 = vsub.f32 1.0, %v2979
    %v2981 = vmul.f32 %v2978, %v2980
    %v2982 = vadd.f32 %v2978, %v2981
    %vm2983 = vweird.f32 %v2970
    %vm2984 = vweird.f32 %v2978
    %vm2985 = vmor %vm2983, %vm2984
    %v2986 = vsel %vm2985, %v2978, %v2982
    %v2987 = vand.u32 2147483647, %v2970
    %vm2988 = vcmp.eq.f32.partialorder %v2987, 8.507059e+37
    %v2989 = vand.u32 %v2970, 2147483648
    %v2990 = vor.u32 1.1754944e-38, %v2989
    %v2991 = vsel %vm2988, %v2990, %v2986
    %v2992 = vmul.f32 1.0, %v2991
    %v2993 = vrcp.pop %v2971
    %v2994 = vmul.f32 %v2971, %v2993
    %v2995 = vsub.f32 1.0, %v2994
    %v2996 = vmul.f32 %v2993, %v2995
    %v2997 = vadd.f32 %v2993, %v2996
    %vm2998 = vweird.f32 %v2971
    %vm2999 = vweird.f32 %v2993
    %vm3000 = vmor %vm2998, %vm2999
    %v3001 = vsel %vm3000, %v2993, %v2997
    %v3002 = vand.u32 2147483647, %v2971
    %vm3003 = vcmp.eq.f32.partialorder %v3002, 8.507059e+37
    %v3004 = vand.u32 %v2971, 2147483648
    %v3005 = vor.u32 1.1754944e-38, %v3004
    %v3006 = vsel %vm3003, %v3005, %v3001
    %v3007 = vmul.f32 1.0, %v3006
    %v3008 = vrcp.pop %v2972
    %v3009 = vmul.f32 %v2972, %v3008
    %v3010 = vsub.f32 1.0, %v3009
    %v3011 = vmul.f32 %v3008, %v3010
    %v3012 = vadd.f32 %v3008, %v3011
    %vm3013 = vweird.f32 %v2972
    %vm3014 = vweird.f32 %v3008
    %vm3015 = vmor %vm3013, %vm3014
    %v3016 = vsel %vm3015, %v3008, %v3012
    %v3017 = vand.u32 2147483647, %v2972
    %vm3018 = vcmp.eq.f32.partialorder %v3017, 8.507059e+37
    %v3019 = vand.u32 %v2972, 2147483648
    %v3020 = vor.u32 1.1754944e-38, %v3019
    %v3021 = vsel %vm3018, %v3020, %v3016
    %v3022 = vmul.f32 1.0, %v3021
    %v3023 = vrcp.pop %v2973
    %v3024 = vmul.f32 %v2973, %v3023
    %v3025 = vsub.f32 1.0, %v3024
    %v3026 = vmul.f32 %v3023, %v3025
    %v3027 = vadd.f32 %v3023, %v3026
    %vm3028 = vweird.f32 %v2973
    %vm3029 = vweird.f32 %v3023
    %vm3030 = vmor %vm3028, %vm3029
    %v3031 = vsel %vm3030, %v3023, %v3027
    %v3032 = vand.u32 2147483647, %v2973
    %vm3033 = vcmp.eq.f32.partialorder %v3032, 8.507059e+37
    %v3034 = vand.u32 %v2973, 2147483648
    %v3035 = vor.u32 1.1754944e-38, %v3034
    %v3036 = vsel %vm3033, %v3035, %v3031
    %v3037 = vmul.f32 1.0, %v3036
    %v3038 = vrcp.pop %v2974
    %v3039 = vmul.f32 %v2974, %v3038
    %v3040 = vsub.f32 1.0, %v3039
    %v3041 = vmul.f32 %v3038, %v3040
    %v3042 = vadd.f32 %v3038, %v3041
    %vm3043 = vweird.f32 %v2974
    %vm3044 = vweird.f32 %v3038
    %vm3045 = vmor %vm3043, %vm3044
    %v3046 = vsel %vm3045, %v3038, %v3042
    %v3047 = vand.u32 2147483647, %v2974
    %vm3048 = vcmp.eq.f32.partialorder %v3047, 8.507059e+37
    %v3049 = vand.u32 %v2974, 2147483648
    %v3050 = vor.u32 1.1754944e-38, %v3049
    %v3051 = vsel %vm3048, %v3050, %v3046
    %v3052 = vmul.f32 1.0, %v3051
    %v3053 = vrcp.pop %v2975
    %v3054 = vmul.f32 %v2975, %v3053
    %v3055 = vsub.f32 1.0, %v3054
    %v3056 = vmul.f32 %v3053, %v3055
    %v3057 = vadd.f32 %v3053, %v3056
    %vm3058 = vweird.f32 %v2975
    %vm3059 = vweird.f32 %v3053
    %vm3060 = vmor %vm3058, %vm3059
    %v3061 = vsel %vm3060, %v3053, %v3057
    %v3062 = vand.u32 2147483647, %v2975
    %vm3063 = vcmp.eq.f32.partialorder %v3062, 8.507059e+37
    %v3064 = vand.u32 %v2975, 2147483648
    %v3065 = vor.u32 1.1754944e-38, %v3064
    %v3066 = vsel %vm3063, %v3065, %v3061
    %v3067 = vmul.f32 1.0, %v3066
    %v3068 = vrcp.pop %v2976
    %v3069 = vmul.f32 %v2976, %v3068
    %v3070 = vsub.f32 1.0, %v3069
    %v3071 = vmul.f32 %v3068, %v3070
    %v3072 = vadd.f32 %v3068, %v3071
    %vm3073 = vweird.f32 %v2976
    %vm3074 = vweird.f32 %v3068
    %vm3075 = vmor %vm3073, %vm3074
    %v3076 = vsel %vm3075, %v3068, %v3072
    %v3077 = vand.u32 2147483647, %v2976
    %vm3078 = vcmp.eq.f32.partialorder %v3077, 8.507059e+37
    %v3079 = vand.u32 %v2976, 2147483648
    %v3080 = vor.u32 1.1754944e-38, %v3079
    %v3081 = vsel %vm3078, %v3080, %v3076
    %v3082 = vmul.f32 1.0, %v3081
    %v3083 = vrcp.pop %v2977
    %v3084 = vmul.f32 %v2977, %v3083
    %v3085 = vsub.f32 1.0, %v3084
    %v3086 = vmul.f32 %v3083, %v3085
    %v3087 = vadd.f32 %v3083, %v3086
    %vm3088 = vweird.f32 %v2977
    %vm3089 = vweird.f32 %v3083
    %vm3090 = vmor %vm3088, %vm3089
    %v3091 = vsel %vm3090, %v3083, %v3087
    %v3092 = vand.u32 2147483647, %v2977
    %vm3093 = vcmp.eq.f32.partialorder %v3092, 8.507059e+37
    %v3094 = vand.u32 %v2977, 2147483648
    %v3095 = vor.u32 1.1754944e-38, %v3094
    %v3096 = vsel %vm3093, %v3095, %v3091
    %v3097 = vmul.f32 1.0, %v3096
    %v3098 = vxor.u32 %v2915, 2147483648
    %v3099 = vxor.u32 %v2919, 2147483648
    %v3100 = vxor.u32 %v2923, 2147483648
    %v3101 = vxor.u32 %v2927, 2147483648
    %v3102 = vxor.u32 %v2931, 2147483648
    %v3103 = vxor.u32 %v2935, 2147483648
    %v3104 = vxor.u32 %v2939, 2147483648
    %v3105 = vxor.u32 %v2943, 2147483648
    %v3106 = vmul.f32 %v3098, 1.442695
    %v3107 = vpow.pop %v3106
    %v3108 = vmul.f32 %v3099, 1.442695
    %v3109 = vpow.pop %v3108
    %v3110 = vmul.f32 %v3100, 1.442695
    %v3111 = vpow.pop %v3110
    %v3112 = vmul.f32 %v3101, 1.442695
    %v3113 = vpow.pop %v3112
    %v3114 = vmul.f32 %v3102, 1.442695
    %v3115 = vpow.pop %v3114
    %v3116 = vmul.f32 %v3103, 1.442695
    %v3117 = vpow.pop %v3116
    %v3118 = vmul.f32 %v3104, 1.442695
    %v3119 = vpow.pop %v3118
    %v3120 = vmul.f32 %v3105, 1.442695
    %v3121 = vpow.pop %v3120
    %v3122 = vadd.f32 %v3107, 1.0
    %v3123 = vadd.f32 %v3109, 1.0
    %v3124 = vadd.f32 %v3111, 1.0
    %v3125 = vadd.f32 %v3113, 1.0
    %v3126 = vadd.f32 %v3115, 1.0
    %v3127 = vadd.f32 %v3117, 1.0
    %v3128 = vadd.f32 %v3119, 1.0
    %v3129 = vadd.f32 %v3121, 1.0
    %v3130 = vrcp.pop %v3122
    %v3131 = vmul.f32 %v3122, %v3130
    %v3132 = vsub.f32 1.0, %v3131
    %v3133 = vmul.f32 %v3130, %v3132
    %v3134 = vadd.f32 %v3130, %v3133
    %vm3135 = vweird.f32 %v3122
    %vm3136 = vweird.f32 %v3130
    %vm3137 = vmor %vm3135, %vm3136
    %v3138 = vsel %vm3137, %v3130, %v3134
    %v3139 = vand.u32 2147483647, %v3122
    %vm3140 = vcmp.eq.f32.partialorder %v3139, 8.507059e+37
    %v3141 = vand.u32 %v3122, 2147483648
    %v3142 = vor.u32 1.1754944e-38, %v3141
    %v3143 = vsel %vm3140, %v3142, %v3138
    %v3144 = vmul.f32 1.0, %v3143
    %v3145 = vrcp.pop %v3123
    %v3146 = vmul.f32 %v3123, %v3145
    %v3147 = vsub.f32 1.0, %v3146
    %v3148 = vmul.f32 %v3145, %v3147
    %v3149 = vadd.f32 %v3145, %v3148
    %vm3150 = vweird.f32 %v3123
    %vm3151 = vweird.f32 %v3145
    %vm3152 = vmor %vm3150, %vm3151
    %v3153 = vsel %vm3152, %v3145, %v3149
    %v3154 = vand.u32 2147483647, %v3123
    %vm3155 = vcmp.eq.f32.partialorder %v3154, 8.507059e+37
    %v3156 = vand.u32 %v3123, 2147483648
    %v3157 = vor.u32 1.1754944e-38, %v3156
    %v3158 = vsel %vm3155, %v3157, %v3153
    %v3159 = vmul.f32 1.0, %v3158
    %v3160 = vrcp.pop %v3124
    %v3161 = vmul.f32 %v3124, %v3160
    %v3162 = vsub.f32 1.0, %v3161
    %v3163 = vmul.f32 %v3160, %v3162
    %v3164 = vadd.f32 %v3160, %v3163
    %vm3165 = vweird.f32 %v3124
    %vm3166 = vweird.f32 %v3160
    %vm3167 = vmor %vm3165, %vm3166
    %v3168 = vsel %vm3167, %v3160, %v3164
    %v3169 = vand.u32 2147483647, %v3124
    %vm3170 = vcmp.eq.f32.partialorder %v3169, 8.507059e+37
    %v3171 = vand.u32 %v3124, 2147483648
    %v3172 = vor.u32 1.1754944e-38, %v3171
    %v3173 = vsel %vm3170, %v3172, %v3168
    %v3174 = vmul.f32 1.0, %v3173
    %v3175 = vrcp.pop %v3125
    %v3176 = vmul.f32 %v3125, %v3175
    %v3177 = vsub.f32 1.0, %v3176
    %v3178 = vmul.f32 %v3175, %v3177
    %v3179 = vadd.f32 %v3175, %v3178
    %vm3180 = vweird.f32 %v3125
    %vm3181 = vweird.f32 %v3175
    %vm3182 = vmor %vm3180, %vm3181
    %v3183 = vsel %vm3182, %v3175, %v3179
    %v3184 = vand.u32 2147483647, %v3125
    %vm3185 = vcmp.eq.f32.partialorder %v3184, 8.507059e+37
    %v3186 = vand.u32 %v3125, 2147483648
    %v3187 = vor.u32 1.1754944e-38, %v3186
    %v3188 = vsel %vm3185, %v3187, %v3183
    %v3189 = vmul.f32 1.0, %v3188
    %v3190 = vrcp.pop %v3126
    %v3191 = vmul.f32 %v3126, %v3190
    %v3192 = vsub.f32 1.0, %v3191
    %v3193 = vmul.f32 %v3190, %v3192
    %v3194 = vadd.f32 %v3190, %v3193
    %vm3195 = vweird.f32 %v3126
    %vm3196 = vweird.f32 %v3190
    %vm3197 = vmor %vm3195, %vm3196
    %v3198 = vsel %vm3197, %v3190, %v3194
    %v3199 = vand.u32 2147483647, %v3126
    %vm3200 = vcmp.eq.f32.partialorder %v3199, 8.507059e+37
    %v3201 = vand.u32 %v3126, 2147483648
    %v3202 = vor.u32 1.1754944e-38, %v3201
    %v3203 = vsel %vm3200, %v3202, %v3198
    %v3204 = vmul.f32 1.0, %v3203
    %v3205 = vrcp.pop %v3127
    %v3206 = vmul.f32 %v3127, %v3205
    %v3207 = vsub.f32 1.0, %v3206
    %v3208 = vmul.f32 %v3205, %v3207
    %v3209 = vadd.f32 %v3205, %v3208
    %vm3210 = vweird.f32 %v3127
    %vm3211 = vweird.f32 %v3205
    %vm3212 = vmor %vm3210, %vm3211
    %v3213 = vsel %vm3212, %v3205, %v3209
    %v3214 = vand.u32 2147483647, %v3127
    %vm3215 = vcmp.eq.f32.partialorder %v3214, 8.507059e+37
    %v3216 = vand.u32 %v3127, 2147483648
    %v3217 = vor.u32 1.1754944e-38, %v3216
    %v3218 = vsel %vm3215, %v3217, %v3213
    %v3219 = vmul.f32 1.0, %v3218
    %v3220 = vrcp.pop %v3128
    %v3221 = vmul.f32 %v3128, %v3220
    %v3222 = vsub.f32 1.0, %v3221
    %v3223 = vmul.f32 %v3220, %v3222
    %v3224 = vadd.f32 %v3220, %v3223
    %vm3225 = vweird.f32 %v3128
    %vm3226 = vweird.f32 %v3220
    %vm3227 = vmor %vm3225, %vm3226
    %v3228 = vsel %vm3227, %v3220, %v3224
    %v3229 = vand.u32 2147483647, %v3128
    %vm3230 = vcmp.eq.f32.partialorder %v3229, 8.507059e+37
    %v3231 = vand.u32 %v3128, 2147483648
    %v3232 = vor.u32 1.1754944e-38, %v3231
    %v3233 = vsel %vm3230, %v3232, %v3228
    %v3234 = vmul.f32 1.0, %v3233
    %v3235 = vrcp.pop %v3129
    %v3236 = vmul.f32 %v3129, %v3235
    %v3237 = vsub.f32 1.0, %v3236
    %v3238 = vmul.f32 %v3235, %v3237
    %v3239 = vadd.f32 %v3235, %v3238
    %vm3240 = vweird.f32 %v3129
    %vm3241 = vweird.f32 %v3235
    %vm3242 = vmor %vm3240, %vm3241
    %v3243 = vsel %vm3242, %v3235, %v3239
    %v3244 = vand.u32 2147483647, %v3129
    %vm3245 = vcmp.eq.f32.partialorder %v3244, 8.507059e+37
    %v3246 = vand.u32 %v3129, 2147483648
    %v3247 = vor.u32 1.1754944e-38, %v3246
    %v3248 = vsel %vm3245, %v3247, %v3243
    %v3249 = vmul.f32 1.0, %v3248
    %v3250 = vtanh.pop %v2916
    %v3251 = vtanh.pop %v2920
    %v3252 = vtanh.pop %v2924
    %v3253 = vtanh.pop %v2928
    %v3254 = vtanh.pop %v2932
    %v3255 = vtanh.pop %v2936
    %v3256 = vtanh.pop %v2940
    %v3257 = vtanh.pop %v2944
    %v3258 = vxor.u32 %v2917, 2147483648
    %v3259 = vxor.u32 %v2921, 2147483648
    %v3260 = vxor.u32 %v2925, 2147483648
    %v3261 = vxor.u32 %v2929, 2147483648
    %v3262 = vxor.u32 %v2933, 2147483648
    %v3263 = vxor.u32 %v2937, 2147483648
    %v3264 = vxor.u32 %v2941, 2147483648
    %v3265 = vxor.u32 %v2945, 2147483648
    %v3266 = vmul.f32 %v3258, 1.442695
    %v3267 = vpow.pop %v3266
    %v3268 = vmul.f32 %v3259, 1.442695
    %v3269 = vpow.pop %v3268
    %v3270 = vmul.f32 %v3260, 1.442695
    %v3271 = vpow.pop %v3270
    %v3272 = vmul.f32 %v3261, 1.442695
    %v3273 = vpow.pop %v3272
    %v3274 = vmul.f32 %v3262, 1.442695
    %v3275 = vpow.pop %v3274
    %v3276 = vmul.f32 %v3263, 1.442695
    %v3277 = vpow.pop %v3276
    %v3278 = vmul.f32 %v3264, 1.442695
    %v3279 = vpow.pop %v3278
    %v3280 = vmul.f32 %v3265, 1.442695
    %v3281 = vpow.pop %v3280
    %v3282 = vadd.f32 %v3267, 1.0
    %v3283 = vadd.f32 %v3269, 1.0
    %v3284 = vadd.f32 %v3271, 1.0
    %v3285 = vadd.f32 %v3273, 1.0
    %v3286 = vadd.f32 %v3275, 1.0
    %v3287 = vadd.f32 %v3277, 1.0
    %v3288 = vadd.f32 %v3279, 1.0
    %v3289 = vadd.f32 %v3281, 1.0
    %v3290 = vrcp.pop %v3282
    %v3291 = vmul.f32 %v3282, %v3290
    %v3292 = vsub.f32 1.0, %v3291
    %v3293 = vmul.f32 %v3290, %v3292
    %v3294 = vadd.f32 %v3290, %v3293
    %vm3295 = vweird.f32 %v3282
    %vm3296 = vweird.f32 %v3290
    %vm3297 = vmor %vm3295, %vm3296
    %v3298 = vsel %vm3297, %v3290, %v3294
    %v3299 = vand.u32 2147483647, %v3282
    %vm3300 = vcmp.eq.f32.partialorder %v3299, 8.507059e+37
    %v3301 = vand.u32 %v3282, 2147483648
    %v3302 = vor.u32 1.1754944e-38, %v3301
    %v3303 = vsel %vm3300, %v3302, %v3298
    %v3304 = vmul.f32 1.0, %v3303
    %v3305 = vrcp.pop %v3283
    %v3306 = vmul.f32 %v3283, %v3305
    %v3307 = vsub.f32 1.0, %v3306
    %v3308 = vmul.f32 %v3305, %v3307
    %v3309 = vadd.f32 %v3305, %v3308
    %vm3310 = vweird.f32 %v3283
    %vm3311 = vweird.f32 %v3305
    %vm3312 = vmor %vm3310, %vm3311
    %v3313 = vsel %vm3312, %v3305, %v3309
    %v3314 = vand.u32 2147483647, %v3283
    %vm3315 = vcmp.eq.f32.partialorder %v3314, 8.507059e+37
    %v3316 = vand.u32 %v3283, 2147483648
    %v3317 = vor.u32 1.1754944e-38, %v3316
    %v3318 = vsel %vm3315, %v3317, %v3313
    %v3319 = vmul.f32 1.0, %v3318
    %v3320 = vrcp.pop %v3284
    %v3321 = vmul.f32 %v3284, %v3320
    %v3322 = vsub.f32 1.0, %v3321
    %v3323 = vmul.f32 %v3320, %v3322
    %v3324 = vadd.f32 %v3320, %v3323
    %vm3325 = vweird.f32 %v3284
    %vm3326 = vweird.f32 %v3320
    %vm3327 = vmor %vm3325, %vm3326
    %v3328 = vsel %vm3327, %v3320, %v3324
    %v3329 = vand.u32 2147483647, %v3284
    %vm3330 = vcmp.eq.f32.partialorder %v3329, 8.507059e+37
    %v3331 = vand.u32 %v3284, 2147483648
    %v3332 = vor.u32 1.1754944e-38, %v3331
    %v3333 = vsel %vm3330, %v3332, %v3328
    %v3334 = vmul.f32 1.0, %v3333
    %v3335 = vrcp.pop %v3285
    %v3336 = vmul.f32 %v3285, %v3335
    %v3337 = vsub.f32 1.0, %v3336
    %v3338 = vmul.f32 %v3335, %v3337
    %v3339 = vadd.f32 %v3335, %v3338
    %vm3340 = vweird.f32 %v3285
    %vm3341 = vweird.f32 %v3335
    %vm3342 = vmor %vm3340, %vm3341
    %v3343 = vsel %vm3342, %v3335, %v3339
    %v3344 = vand.u32 2147483647, %v3285
    %vm3345 = vcmp.eq.f32.partialorder %v3344, 8.507059e+37
    %v3346 = vand.u32 %v3285, 2147483648
    %v3347 = vor.u32 1.1754944e-38, %v3346
    %v3348 = vsel %vm3345, %v3347, %v3343
    %v3349 = vmul.f32 1.0, %v3348
    %v3350 = vrcp.pop %v3286
    %v3351 = vmul.f32 %v3286, %v3350
    %v3352 = vsub.f32 1.0, %v3351
    %v3353 = vmul.f32 %v3350, %v3352
    %v3354 = vadd.f32 %v3350, %v3353
    %vm3355 = vweird.f32 %v3286
    %vm3356 = vweird.f32 %v3350
    %vm3357 = vmor %vm3355, %vm3356
    %v3358 = vsel %vm3357, %v3350, %v3354
    %v3359 = vand.u32 2147483647, %v3286
    %vm3360 = vcmp.eq.f32.partialorder %v3359, 8.507059e+37
    %v3361 = vand.u32 %v3286, 2147483648
    %v3362 = vor.u32 1.1754944e-38, %v3361
    %v3363 = vsel %vm3360, %v3362, %v3358
    %v3364 = vmul.f32 1.0, %v3363
    %v3365 = vrcp.pop %v3287
    %v3366 = vmul.f32 %v3287, %v3365
    %v3367 = vsub.f32 1.0, %v3366
    %v3368 = vmul.f32 %v3365, %v3367
    %v3369 = vadd.f32 %v3365, %v3368
    %vm3370 = vweird.f32 %v3287
    %vm3371 = vweird.f32 %v3365
    %vm3372 = vmor %vm3370, %vm3371
    %v3373 = vsel %vm3372, %v3365, %v3369
    %v3374 = vand.u32 2147483647, %v3287
    %vm3375 = vcmp.eq.f32.partialorder %v3374, 8.507059e+37
    %v3376 = vand.u32 %v3287, 2147483648
    %v3377 = vor.u32 1.1754944e-38, %v3376
    %v3378 = vsel %vm3375, %v3377, %v3373
    %v3379 = vmul.f32 1.0, %v3378
    %v3380 = vrcp.pop %v3288
    %v3381 = vmul.f32 %v3288, %v3380
    %v3382 = vsub.f32 1.0, %v3381
    %v3383 = vmul.f32 %v3380, %v3382
    %v3384 = vadd.f32 %v3380, %v3383
    %vm3385 = vweird.f32 %v3288
    %vm3386 = vweird.f32 %v3380
    %vm3387 = vmor %vm3385, %vm3386
    %v3388 = vsel %vm3387, %v3380, %v3384
    %v3389 = vand.u32 2147483647, %v3288
    %vm3390 = vcmp.eq.f32.partialorder %v3389, 8.507059e+37
    %v3391 = vand.u32 %v3288, 2147483648
    %v3392 = vor.u32 1.1754944e-38, %v3391
    %v3393 = vsel %vm3390, %v3392, %v3388
    %v3394 = vmul.f32 1.0, %v3393
    %v3395 = vrcp.pop %v3289
    %v3396 = vmul.f32 %v3289, %v3395
    %v3397 = vsub.f32 1.0, %v3396
    %v3398 = vmul.f32 %v3395, %v3397
    %v3399 = vadd.f32 %v3395, %v3398
    %vm3400 = vweird.f32 %v3289
    %vm3401 = vweird.f32 %v3395
    %vm3402 = vmor %vm3400, %vm3401
    %v3403 = vsel %vm3402, %v3395, %v3399
    %v3404 = vand.u32 2147483647, %v3289
    %vm3405 = vcmp.eq.f32.partialorder %v3404, 8.507059e+37
    %v3406 = vand.u32 %v3289, 2147483648
    %v3407 = vor.u32 1.1754944e-38, %v3406
    %v3408 = vsel %vm3405, %v3407, %v3403
    %v3409 = vmul.f32 1.0, %v3408
    %v3410 = vmul.f32 %v3144, 0.0
    %v3411 = vmul.f32 %v3159, 0.0
    %v3412 = vmul.f32 %v3174, 0.0
    %v3413 = vmul.f32 %v3189, 0.0
    %v3414 = vmul.f32 %v3204, 0.0
    %v3415 = vmul.f32 %v3219, 0.0
    %v3416 = vmul.f32 %v3234, 0.0
    %v3417 = vmul.f32 %v3249, 0.0
    %v3418 = vmul.f32 %v2992, %v3250
    %v3419 = vmul.f32 %v3007, %v3251
    %v3420 = vmul.f32 %v3022, %v3252
    %v3421 = vmul.f32 %v3037, %v3253
    %v3422 = vmul.f32 %v3052, %v3254
    %v3423 = vmul.f32 %v3067, %v3255
    %v3424 = vmul.f32 %v3082, %v3256
    %v3425 = vmul.f32 %v3097, %v3257
    %v3426 = vadd.f32 %v3410, %v3418
    %v3427 = vadd.f32 %v3411, %v3419
    %v3428 = vadd.f32 %v3412, %v3420
    %v3429 = vadd.f32 %v3413, %v3421
    %v3430 = vadd.f32 %v3414, %v3422
    %v3431 = vadd.f32 %v3415, %v3423
    %v3432 = vadd.f32 %v3416, %v3424
    %v3433 = vadd.f32 %v3417, %v3425
    %v3434 = vtanh.pop %v3426
    %v3435 = vtanh.pop %v3427
    %v3436 = vtanh.pop %v3428
    %v3437 = vtanh.pop %v3429
    %v3438 = vtanh.pop %v3430
    %v3439 = vtanh.pop %v3431
    %v3440 = vtanh.pop %v3432
    %v3441 = vtanh.pop %v3433
    %v3442 = vmul.f32 %v3304, %v3434
    %v3443 = vmul.f32 %v3319, %v3435
    %v3444 = vmul.f32 %v3334, %v3436
    %v3445 = vmul.f32 %v3349, %v3437
    %v3446 = vmul.f32 %v3364, %v3438
    %v3447 = vmul.f32 %v3379, %v3439
    %v3448 = vmul.f32 %v3394, %v3440
    %v3449 = vmul.f32 %v3409, %v3441
    %s3450 = smul.u32 16, 4
    %s3451 = smul.addr %s3450, 8
    %s3452 = scalar_lea.vmem [#allocation2], %s3451
    %v3453 = vld [vmem:[%s3452] sm:$0xff]
    %v3454 = vld [vmem:[%s3452 + $0x8] sm:$0xff]
    %v3455 = vld [vmem:[%s3452 + $0x10] sm:$0xff]
    %v3456 = vld [vmem:[%s3452 + $0x18] sm:$0xff]
    %v3457 = vld [vmem:[%s3452 + $0x20] sm:$0xff]
    %v3458 = vld [vmem:[%s3452 + $0x28] sm:$0xff]
    %v3459 = vld [vmem:[%s3452 + $0x30] sm:$0xff]
    %v3460 = vld [vmem:[%s3452 + $0x38] sm:$0xff]
    %v3461 = vld [vmem:[%s3452 + $0x40] sm:$0xff]
    %v3462 = vld [vmem:[%s3452 + $0x48] sm:$0xff]
    %v3463 = vld [vmem:[%s3452 + $0x50] sm:$0xff]
    %v3464 = vld [vmem:[%s3452 + $0x58] sm:$0xff]
    %v3465 = vld [vmem:[%s3452 + $0x60] sm:$0xff]
    %v3466 = vld [vmem:[%s3452 + $0x68] sm:$0xff]
    %v3467 = vld [vmem:[%s3452 + $0x70] sm:$0xff]
    %v3468 = vld [vmem:[%s3452 + $0x78] sm:$0xff]
    %v3469 = vld [vmem:[%s3452 + $0x80] sm:$0xff]
    %v3470 = vld [vmem:[%s3452 + $0x88] sm:$0xff]
    %v3471 = vld [vmem:[%s3452 + $0x90] sm:$0xff]
    %v3472 = vld [vmem:[%s3452 + $0x98] sm:$0xff]
    %v3473 = vld [vmem:[%s3452 + $0xa0] sm:$0xff]
    %v3474 = vld [vmem:[%s3452 + $0xa8] sm:$0xff]
    %v3475 = vld [vmem:[%s3452 + $0xb0] sm:$0xff]
    %v3476 = vld [vmem:[%s3452 + $0xb8] sm:$0xff]
    %v3477 = vld [vmem:[%s3452 + $0xc0] sm:$0xff]
    %v3478 = vld [vmem:[%s3452 + $0xc8] sm:$0xff]
    %v3479 = vld [vmem:[%s3452 + $0xd0] sm:$0xff]
    %v3480 = vld [vmem:[%s3452 + $0xd8] sm:$0xff]
    %v3481 = vld [vmem:[%s3452 + $0xe0] sm:$0xff]
    %v3482 = vld [vmem:[%s3452 + $0xe8] sm:$0xff]
    %v3483 = vld [vmem:[%s3452 + $0xf0] sm:$0xff]
    %v3484 = vld [vmem:[%s3452 + $0xf8] sm:$0xff]
    %v3485 = vld [vmem:[%s3452 + $0x100] sm:$0xff]
    %v3486 = vld [vmem:[%s3452 + $0x108] sm:$0xff]
    %v3487 = vld [vmem:[%s3452 + $0x110] sm:$0xff]
    %v3488 = vld [vmem:[%s3452 + $0x118] sm:$0xff]
    %v3489 = vld [vmem:[%s3452 + $0x120] sm:$0xff]
    %v3490 = vld [vmem:[%s3452 + $0x128] sm:$0xff]
    %v3491 = vld [vmem:[%s3452 + $0x130] sm:$0xff]
    %v3492 = vld [vmem:[%s3452 + $0x138] sm:$0xff]
    %v3493 = vld [vmem:[%s3452 + $0x140] sm:$0xff]
    %v3494 = vld [vmem:[%s3452 + $0x148] sm:$0xff]
    %v3495 = vld [vmem:[%s3452 + $0x150] sm:$0xff]
    %v3496 = vld [vmem:[%s3452 + $0x158] sm:$0xff]
    %v3497 = vld [vmem:[%s3452 + $0x160] sm:$0xff]
    %v3498 = vld [vmem:[%s3452 + $0x168] sm:$0xff]
    %v3499 = vld [vmem:[%s3452 + $0x170] sm:$0xff]
    %v3500 = vld [vmem:[%s3452 + $0x178] sm:$0xff]
    %v3501 = vld [vmem:[%s3452 + $0x180] sm:$0xff]
    %v3502 = vld [vmem:[%s3452 + $0x188] sm:$0xff]
    %v3503 = vld [vmem:[%s3452 + $0x190] sm:$0xff]
    %v3504 = vld [vmem:[%s3452 + $0x198] sm:$0xff]
    %v3505 = vld [vmem:[%s3452 + $0x1a0] sm:$0xff]
    %v3506 = vld [vmem:[%s3452 + $0x1a8] sm:$0xff]
    %v3507 = vld [vmem:[%s3452 + $0x1b0] sm:$0xff]
    %v3508 = vld [vmem:[%s3452 + $0x1b8] sm:$0xff]
    %v3509 = vld [vmem:[%s3452 + $0x1c0] sm:$0xff]
    %v3510 = vld [vmem:[%s3452 + $0x1c8] sm:$0xff]
    %v3511 = vld [vmem:[%s3452 + $0x1d0] sm:$0xff]
    %v3512 = vld [vmem:[%s3452 + $0x1d8] sm:$0xff]
    %v3513 = vld [vmem:[%s3452 + $0x1e0] sm:$0xff]
    %v3514 = vld [vmem:[%s3452 + $0x1e8] sm:$0xff]
    %v3515 = vld [vmem:[%s3452 + $0x1f0] sm:$0xff]
    %v3516 = vld [vmem:[%s3452 + $0x1f8] sm:$0xff]
    %3517 = vmatpush.msra.mxu0 %v2143
    %3518 = vmatpush.msra.mxu0 %v2139
    %3519 = vmatpush.msra.mxu0 %v2135
    %3520 = vmatpush.msra.mxu0 %v2131
    %3521 = vmatpush.msra.mxu0 %v2127
    %3522 = vmatpush.msra.mxu0 %v2123
    %3523 = vmatpush.msra.mxu0 %v2119
    %3524 = vmatpush.msra.mxu0 %v2115
    %3525 = vmatpush.msra.mxu0 %v2111
    %3526 = vmatpush.msra.mxu0 %v2107
    %3527 = vmatpush.msra.mxu0 %v2103
    %3528 = vmatpush.msra.mxu0 %v2099
    %3529 = vmatpush.msra.mxu0 %v2095
    %3530 = vmatpush.msra.mxu0 %v2091
    %3531 = vmatpush.msra.mxu0 %v2087
    %3532 = vmatpush.msra.mxu0 %v2083
    %3533 = vmatmul.f32.gmra.mxu0 %v2906
    %v3534 = vpop.f32.mrf.mxu0
    %v3535 = vadd.f32 0.0, %v3534
    %3536 = vmatmul.f32.gmra.mxu0 %v2907
    %v3537 = vpop.f32.mrf.mxu0
    %v3538 = vadd.f32 0.0, %v3537
    %3539 = vmatmul.f32.gmra.mxu0 %v2908
    %v3540 = vpop.f32.mrf.mxu0
    %v3541 = vadd.f32 0.0, %v3540
    %3542 = vmatmul.f32.gmra.mxu0 %v2909
    %v3543 = vpop.f32.mrf.mxu0
    %v3544 = vadd.f32 0.0, %v3543
    %3545 = vmatmul.f32.gmra.mxu0 %v2910
    %v3546 = vpop.f32.mrf.mxu0
    %v3547 = vadd.f32 0.0, %v3546
    %3548 = vmatmul.f32.gmra.mxu0 %v2911
    %v3549 = vpop.f32.mrf.mxu0
    %v3550 = vadd.f32 0.0, %v3549
    %3551 = vmatmul.f32.gmra.mxu0 %v2912
    %v3552 = vpop.f32.mrf.mxu0
    %v3553 = vadd.f32 0.0, %v3552
    %3554 = vmatmul.f32.gmra.mxu0 %v2913
    %v3555 = vpop.f32.mrf.mxu0
    %v3556 = vadd.f32 0.0, %v3555
    %3557 = vdwg.mxu0
    %3558 = vmatpush.msra.mxu0 %v2144
    %3559 = vmatpush.msra.mxu0 %v2140
    %3560 = vmatpush.msra.mxu0 %v2136
    %3561 = vmatpush.msra.mxu0 %v2132
    %3562 = vmatpush.msra.mxu0 %v2128
    %3563 = vmatpush.msra.mxu0 %v2124
    %3564 = vmatpush.msra.mxu0 %v2120
    %3565 = vmatpush.msra.mxu0 %v2116
    %3566 = vmatpush.msra.mxu0 %v2112
    %3567 = vmatpush.msra.mxu0 %v2108
    %3568 = vmatpush.msra.mxu0 %v2104
    %3569 = vmatpush.msra.mxu0 %v2100
    %3570 = vmatpush.msra.mxu0 %v2096
    %3571 = vmatpush.msra.mxu0 %v2092
    %3572 = vmatpush.msra.mxu0 %v2088
    %3573 = vmatpush.msra.mxu0 %v2084
    %3574 = vmatmul.f32.gmra.mxu0 %v2906
    %v3575 = vpop.f32.mrf.mxu0
    %v3576 = vadd.f32 0.0, %v3575
    %3577 = vmatmul.f32.gmra.mxu0 %v2907
    %v3578 = vpop.f32.mrf.mxu0
    %v3579 = vadd.f32 0.0, %v3578
    %3580 = vmatmul.f32.gmra.mxu0 %v2908
    %v3581 = vpop.f32.mrf.mxu0
    %v3582 = vadd.f32 0.0, %v3581
    %3583 = vmatmul.f32.gmra.mxu0 %v2909
    %v3584 = vpop.f32.mrf.mxu0
    %v3585 = vadd.f32 0.0, %v3584
    %3586 = vmatmul.f32.gmra.mxu0 %v2910
    %v3587 = vpop.f32.mrf.mxu0
    %v3588 = vadd.f32 0.0, %v3587
    %3589 = vmatmul.f32.gmra.mxu0 %v2911
    %v3590 = vpop.f32.mrf.mxu0
    %v3591 = vadd.f32 0.0, %v3590
    %3592 = vmatmul.f32.gmra.mxu0 %v2912
    %v3593 = vpop.f32.mrf.mxu0
    %v3594 = vadd.f32 0.0, %v3593
    %3595 = vmatmul.f32.gmra.mxu0 %v2913
    %v3596 = vpop.f32.mrf.mxu0
    %v3597 = vadd.f32 0.0, %v3596
    %3598 = vdwg.mxu0
    %3599 = vmatpush.msra.mxu0 %v2145
    %3600 = vmatpush.msra.mxu0 %v2141
    %3601 = vmatpush.msra.mxu0 %v2137
    %3602 = vmatpush.msra.mxu0 %v2133
    %3603 = vmatpush.msra.mxu0 %v2129
    %3604 = vmatpush.msra.mxu0 %v2125
    %3605 = vmatpush.msra.mxu0 %v2121
    %3606 = vmatpush.msra.mxu0 %v2117
    %3607 = vmatpush.msra.mxu0 %v2113
    %3608 = vmatpush.msra.mxu0 %v2109
    %3609 = vmatpush.msra.mxu0 %v2105
    %3610 = vmatpush.msra.mxu0 %v2101
    %3611 = vmatpush.msra.mxu0 %v2097
    %3612 = vmatpush.msra.mxu0 %v2093
    %3613 = vmatpush.msra.mxu0 %v2089
    %3614 = vmatpush.msra.mxu0 %v2085
    %3615 = vmatmul.f32.gmra.mxu0 %v2906
    %v3616 = vpop.f32.mrf.mxu0
    %v3617 = vadd.f32 0.0, %v3616
    %3618 = vmatmul.f32.gmra.mxu0 %v2907
    %v3619 = vpop.f32.mrf.mxu0
    %v3620 = vadd.f32 0.0, %v3619
    %3621 = vmatmul.f32.gmra.mxu0 %v2908
    %v3622 = vpop.f32.mrf.mxu0
    %v3623 = vadd.f32 0.0, %v3622
    %3624 = vmatmul.f32.gmra.mxu0 %v2909
    %v3625 = vpop.f32.mrf.mxu0
    %v3626 = vadd.f32 0.0, %v3625
    %3627 = vmatmul.f32.gmra.mxu0 %v2910
    %v3628 = vpop.f32.mrf.mxu0
    %v3629 = vadd.f32 0.0, %v3628
    %3630 = vmatmul.f32.gmra.mxu0 %v2911
    %v3631 = vpop.f32.mrf.mxu0
    %v3632 = vadd.f32 0.0, %v3631
    %3633 = vmatmul.f32.gmra.mxu0 %v2912
    %v3634 = vpop.f32.mrf.mxu0
    %v3635 = vadd.f32 0.0, %v3634
    %3636 = vmatmul.f32.gmra.mxu0 %v2913
    %v3637 = vpop.f32.mrf.mxu0
    %v3638 = vadd.f32 0.0, %v3637
    %3639 = vdwg.mxu0
    %3640 = vmatpush.msra.mxu0 %v2146
    %3641 = vmatpush.msra.mxu0 %v2142
    %3642 = vmatpush.msra.mxu0 %v2138
    %3643 = vmatpush.msra.mxu0 %v2134
    %3644 = vmatpush.msra.mxu0 %v2130
    %3645 = vmatpush.msra.mxu0 %v2126
    %3646 = vmatpush.msra.mxu0 %v2122
    %3647 = vmatpush.msra.mxu0 %v2118
    %3648 = vmatpush.msra.mxu0 %v2114
    %3649 = vmatpush.msra.mxu0 %v2110
    %3650 = vmatpush.msra.mxu0 %v2106
    %3651 = vmatpush.msra.mxu0 %v2102
    %3652 = vmatpush.msra.mxu0 %v2098
    %3653 = vmatpush.msra.mxu0 %v2094
    %3654 = vmatpush.msra.mxu0 %v2090
    %3655 = vmatpush.msra.mxu0 %v2086
    %3656 = vmatmul.f32.gmra.mxu0 %v2906
    %v3657 = vpop.f32.mrf.mxu0
    %v3658 = vadd.f32 0.0, %v3657
    %3659 = vmatmul.f32.gmra.mxu0 %v2907
    %v3660 = vpop.f32.mrf.mxu0
    %v3661 = vadd.f32 0.0, %v3660
    %3662 = vmatmul.f32.gmra.mxu0 %v2908
    %v3663 = vpop.f32.mrf.mxu0
    %v3664 = vadd.f32 0.0, %v3663
    %3665 = vmatmul.f32.gmra.mxu0 %v2909
    %v3666 = vpop.f32.mrf.mxu0
    %v3667 = vadd.f32 0.0, %v3666
    %3668 = vmatmul.f32.gmra.mxu0 %v2910
    %v3669 = vpop.f32.mrf.mxu0
    %v3670 = vadd.f32 0.0, %v3669
    %3671 = vmatmul.f32.gmra.mxu0 %v2911
    %v3672 = vpop.f32.mrf.mxu0
    %v3673 = vadd.f32 0.0, %v3672
    %3674 = vmatmul.f32.gmra.mxu0 %v2912
    %v3675 = vpop.f32.mrf.mxu0
    %v3676 = vadd.f32 0.0, %v3675
    %3677 = vmatmul.f32.gmra.mxu0 %v2913
    %v3678 = vpop.f32.mrf.mxu0
    %v3679 = vadd.f32 0.0, %v3678
    %3680 = vdwg.mxu0
    %v3681 = vadd.f32 %v3453, %v3535
    %v3682 = vadd.f32 %v3454, %v3576
    %v3683 = vadd.f32 %v3455, %v3617
    %v3684 = vadd.f32 %v3456, %v3658
    %v3685 = vadd.f32 %v3457, %v3538
    %v3686 = vadd.f32 %v3458, %v3579
    %v3687 = vadd.f32 %v3459, %v3620
    %v3688 = vadd.f32 %v3460, %v3661
    %v3689 = vadd.f32 %v3461, %v3541
    %v3690 = vadd.f32 %v3462, %v3582
    %v3691 = vadd.f32 %v3463, %v3623
    %v3692 = vadd.f32 %v3464, %v3664
    %v3693 = vadd.f32 %v3465, %v3544
    %v3694 = vadd.f32 %v3466, %v3585
    %v3695 = vadd.f32 %v3467, %v3626
    %v3696 = vadd.f32 %v3468, %v3667
    %v3697 = vadd.f32 %v3469, %v3547
    %v3698 = vadd.f32 %v3470, %v3588
    %v3699 = vadd.f32 %v3471, %v3629
    %v3700 = vadd.f32 %v3472, %v3670
    %v3701 = vadd.f32 %v3473, %v3550
    %v3702 = vadd.f32 %v3474, %v3591
    %v3703 = vadd.f32 %v3475, %v3632
    %v3704 = vadd.f32 %v3476, %v3673
    %v3705 = vadd.f32 %v3477, %v3553
    %v3706 = vadd.f32 %v3478, %v3594
    %v3707 = vadd.f32 %v3479, %v3635
    %v3708 = vadd.f32 %v3480, %v3676
    %v3709 = vadd.f32 %v3481, %v3556
    %v3710 = vadd.f32 %v3482, %v3597
    %v3711 = vadd.f32 %v3483, %v3638
    %v3712 = vadd.f32 %v3484, %v3679
    %v3713 = vxor.u32 %v3681, 2147483648
    %v3714 = vxor.u32 %v3685, 2147483648
    %v3715 = vxor.u32 %v3689, 2147483648
    %v3716 = vxor.u32 %v3693, 2147483648
    %v3717 = vxor.u32 %v3697, 2147483648
    %v3718 = vxor.u32 %v3701, 2147483648
    %v3719 = vxor.u32 %v3705, 2147483648
    %v3720 = vxor.u32 %v3709, 2147483648
    %v3721 = vmul.f32 %v3713, 1.442695
    %v3722 = vpow.pop %v3721
    %v3723 = vmul.f32 %v3714, 1.442695
    %v3724 = vpow.pop %v3723
    %v3725 = vmul.f32 %v3715, 1.442695
    %v3726 = vpow.pop %v3725
    %v3727 = vmul.f32 %v3716, 1.442695
    %v3728 = vpow.pop %v3727
    %v3729 = vmul.f32 %v3717, 1.442695
    %v3730 = vpow.pop %v3729
    %v3731 = vmul.f32 %v3718, 1.442695
    %v3732 = vpow.pop %v3731
    %v3733 = vmul.f32 %v3719, 1.442695
    %v3734 = vpow.pop %v3733
    %v3735 = vmul.f32 %v3720, 1.442695
    %v3736 = vpow.pop %v3735
    %v3737 = vadd.f32 %v3722, 1.0
    %v3738 = vadd.f32 %v3724, 1.0
    %v3739 = vadd.f32 %v3726, 1.0
    %v3740 = vadd.f32 %v3728, 1.0
    %v3741 = vadd.f32 %v3730, 1.0
    %v3742 = vadd.f32 %v3732, 1.0
    %v3743 = vadd.f32 %v3734, 1.0
    %v3744 = vadd.f32 %v3736, 1.0
    %v3745 = vrcp.pop %v3737
    %v3746 = vmul.f32 %v3737, %v3745
    %v3747 = vsub.f32 1.0, %v3746
    %v3748 = vmul.f32 %v3745, %v3747
    %v3749 = vadd.f32 %v3745, %v3748
    %vm3750 = vweird.f32 %v3737
    %vm3751 = vweird.f32 %v3745
    %vm3752 = vmor %vm3750, %vm3751
    %v3753 = vsel %vm3752, %v3745, %v3749
    %v3754 = vand.u32 2147483647, %v3737
    %vm3755 = vcmp.eq.f32.partialorder %v3754, 8.507059e+37
    %v3756 = vand.u32 %v3737, 2147483648
    %v3757 = vor.u32 1.1754944e-38, %v3756
    %v3758 = vsel %vm3755, %v3757, %v3753
    %v3759 = vmul.f32 1.0, %v3758
    %v3760 = vrcp.pop %v3738
    %v3761 = vmul.f32 %v3738, %v3760
    %v3762 = vsub.f32 1.0, %v3761
    %v3763 = vmul.f32 %v3760, %v3762
    %v3764 = vadd.f32 %v3760, %v3763
    %vm3765 = vweird.f32 %v3738
    %vm3766 = vweird.f32 %v3760
    %vm3767 = vmor %vm3765, %vm3766
    %v3768 = vsel %vm3767, %v3760, %v3764
    %v3769 = vand.u32 2147483647, %v3738
    %vm3770 = vcmp.eq.f32.partialorder %v3769, 8.507059e+37
    %v3771 = vand.u32 %v3738, 2147483648
    %v3772 = vor.u32 1.1754944e-38, %v3771
    %v3773 = vsel %vm3770, %v3772, %v3768
    %v3774 = vmul.f32 1.0, %v3773
    %v3775 = vrcp.pop %v3739
    %v3776 = vmul.f32 %v3739, %v3775
    %v3777 = vsub.f32 1.0, %v3776
    %v3778 = vmul.f32 %v3775, %v3777
    %v3779 = vadd.f32 %v3775, %v3778
    %vm3780 = vweird.f32 %v3739
    %vm3781 = vweird.f32 %v3775
    %vm3782 = vmor %vm3780, %vm3781
    %v3783 = vsel %vm3782, %v3775, %v3779
    %v3784 = vand.u32 2147483647, %v3739
    %vm3785 = vcmp.eq.f32.partialorder %v3784, 8.507059e+37
    %v3786 = vand.u32 %v3739, 2147483648
    %v3787 = vor.u32 1.1754944e-38, %v3786
    %v3788 = vsel %vm3785, %v3787, %v3783
    %v3789 = vmul.f32 1.0, %v3788
    %v3790 = vrcp.pop %v3740
    %v3791 = vmul.f32 %v3740, %v3790
    %v3792 = vsub.f32 1.0, %v3791
    %v3793 = vmul.f32 %v3790, %v3792
    %v3794 = vadd.f32 %v3790, %v3793
    %vm3795 = vweird.f32 %v3740
    %vm3796 = vweird.f32 %v3790
    %vm3797 = vmor %vm3795, %vm3796
    %v3798 = vsel %vm3797, %v3790, %v3794
    %v3799 = vand.u32 2147483647, %v3740
    %vm3800 = vcmp.eq.f32.partialorder %v3799, 8.507059e+37
    %v3801 = vand.u32 %v3740, 2147483648
    %v3802 = vor.u32 1.1754944e-38, %v3801
    %v3803 = vsel %vm3800, %v3802, %v3798
    %v3804 = vmul.f32 1.0, %v3803
    %v3805 = vrcp.pop %v3741
    %v3806 = vmul.f32 %v3741, %v3805
    %v3807 = vsub.f32 1.0, %v3806
    %v3808 = vmul.f32 %v3805, %v3807
    %v3809 = vadd.f32 %v3805, %v3808
    %vm3810 = vweird.f32 %v3741
    %vm3811 = vweird.f32 %v3805
    %vm3812 = vmor %vm3810, %vm3811
    %v3813 = vsel %vm3812, %v3805, %v3809
    %v3814 = vand.u32 2147483647, %v3741
    %vm3815 = vcmp.eq.f32.partialorder %v3814, 8.507059e+37
    %v3816 = vand.u32 %v3741, 2147483648
    %v3817 = vor.u32 1.1754944e-38, %v3816
    %v3818 = vsel %vm3815, %v3817, %v3813
    %v3819 = vmul.f32 1.0, %v3818
    %v3820 = vrcp.pop %v3742
    %v3821 = vmul.f32 %v3742, %v3820
    %v3822 = vsub.f32 1.0, %v3821
    %v3823 = vmul.f32 %v3820, %v3822
    %v3824 = vadd.f32 %v3820, %v3823
    %vm3825 = vweird.f32 %v3742
    %vm3826 = vweird.f32 %v3820
    %vm3827 = vmor %vm3825, %vm3826
    %v3828 = vsel %vm3827, %v3820, %v3824
    %v3829 = vand.u32 2147483647, %v3742
    %vm3830 = vcmp.eq.f32.partialorder %v3829, 8.507059e+37
    %v3831 = vand.u32 %v3742, 2147483648
    %v3832 = vor.u32 1.1754944e-38, %v3831
    %v3833 = vsel %vm3830, %v3832, %v3828
    %v3834 = vmul.f32 1.0, %v3833
    %v3835 = vrcp.pop %v3743
    %v3836 = vmul.f32 %v3743, %v3835
    %v3837 = vsub.f32 1.0, %v3836
    %v3838 = vmul.f32 %v3835, %v3837
    %v3839 = vadd.f32 %v3835, %v3838
    %vm3840 = vweird.f32 %v3743
    %vm3841 = vweird.f32 %v3835
    %vm3842 = vmor %vm3840, %vm3841
    %v3843 = vsel %vm3842, %v3835, %v3839
    %v3844 = vand.u32 2147483647, %v3743
    %vm3845 = vcmp.eq.f32.partialorder %v3844, 8.507059e+37
    %v3846 = vand.u32 %v3743, 2147483648
    %v3847 = vor.u32 1.1754944e-38, %v3846
    %v3848 = vsel %vm3845, %v3847, %v3843
    %v3849 = vmul.f32 1.0, %v3848
    %v3850 = vrcp.pop %v3744
    %v3851 = vmul.f32 %v3744, %v3850
    %v3852 = vsub.f32 1.0, %v3851
    %v3853 = vmul.f32 %v3850, %v3852
    %v3854 = vadd.f32 %v3850, %v3853
    %vm3855 = vweird.f32 %v3744
    %vm3856 = vweird.f32 %v3850
    %vm3857 = vmor %vm3855, %vm3856
    %v3858 = vsel %vm3857, %v3850, %v3854
    %v3859 = vand.u32 2147483647, %v3744
    %vm3860 = vcmp.eq.f32.partialorder %v3859, 8.507059e+37
    %v3861 = vand.u32 %v3744, 2147483648
    %v3862 = vor.u32 1.1754944e-38, %v3861
    %v3863 = vsel %vm3860, %v3862, %v3858
    %v3864 = vmul.f32 1.0, %v3863
    %v3865 = vxor.u32 %v3682, 2147483648
    %v3866 = vxor.u32 %v3686, 2147483648
    %v3867 = vxor.u32 %v3690, 2147483648
    %v3868 = vxor.u32 %v3694, 2147483648
    %v3869 = vxor.u32 %v3698, 2147483648
    %v3870 = vxor.u32 %v3702, 2147483648
    %v3871 = vxor.u32 %v3706, 2147483648
    %v3872 = vxor.u32 %v3710, 2147483648
    %v3873 = vmul.f32 %v3865, 1.442695
    %v3874 = vpow.pop %v3873
    %v3875 = vmul.f32 %v3866, 1.442695
    %v3876 = vpow.pop %v3875
    %v3877 = vmul.f32 %v3867, 1.442695
    %v3878 = vpow.pop %v3877
    %v3879 = vmul.f32 %v3868, 1.442695
    %v3880 = vpow.pop %v3879
    %v3881 = vmul.f32 %v3869, 1.442695
    %v3882 = vpow.pop %v3881
    %v3883 = vmul.f32 %v3870, 1.442695
    %v3884 = vpow.pop %v3883
    %v3885 = vmul.f32 %v3871, 1.442695
    %v3886 = vpow.pop %v3885
    %v3887 = vmul.f32 %v3872, 1.442695
    %v3888 = vpow.pop %v3887
    %v3889 = vadd.f32 %v3874, 1.0
    %v3890 = vadd.f32 %v3876, 1.0
    %v3891 = vadd.f32 %v3878, 1.0
    %v3892 = vadd.f32 %v3880, 1.0
    %v3893 = vadd.f32 %v3882, 1.0
    %v3894 = vadd.f32 %v3884, 1.0
    %v3895 = vadd.f32 %v3886, 1.0
    %v3896 = vadd.f32 %v3888, 1.0
    %v3897 = vrcp.pop %v3889
    %v3898 = vmul.f32 %v3889, %v3897
    %v3899 = vsub.f32 1.0, %v3898
    %v3900 = vmul.f32 %v3897, %v3899
    %v3901 = vadd.f32 %v3897, %v3900
    %vm3902 = vweird.f32 %v3889
    %vm3903 = vweird.f32 %v3897
    %vm3904 = vmor %vm3902, %vm3903
    %v3905 = vsel %vm3904, %v3897, %v3901
    %v3906 = vand.u32 2147483647, %v3889
    %vm3907 = vcmp.eq.f32.partialorder %v3906, 8.507059e+37
    %v3908 = vand.u32 %v3889, 2147483648
    %v3909 = vor.u32 1.1754944e-38, %v3908
    %v3910 = vsel %vm3907, %v3909, %v3905
    %v3911 = vmul.f32 1.0, %v3910
    %v3912 = vrcp.pop %v3890
    %v3913 = vmul.f32 %v3890, %v3912
    %v3914 = vsub.f32 1.0, %v3913
    %v3915 = vmul.f32 %v3912, %v3914
    %v3916 = vadd.f32 %v3912, %v3915
    %vm3917 = vweird.f32 %v3890
    %vm3918 = vweird.f32 %v3912
    %vm3919 = vmor %vm3917, %vm3918
    %v3920 = vsel %vm3919, %v3912, %v3916
    %v3921 = vand.u32 2147483647, %v3890
    %vm3922 = vcmp.eq.f32.partialorder %v3921, 8.507059e+37
    %v3923 = vand.u32 %v3890, 2147483648
    %v3924 = vor.u32 1.1754944e-38, %v3923
    %v3925 = vsel %vm3922, %v3924, %v3920
    %v3926 = vmul.f32 1.0, %v3925
    %v3927 = vrcp.pop %v3891
    %v3928 = vmul.f32 %v3891, %v3927
    %v3929 = vsub.f32 1.0, %v3928
    %v3930 = vmul.f32 %v3927, %v3929
    %v3931 = vadd.f32 %v3927, %v3930
    %vm3932 = vweird.f32 %v3891
    %vm3933 = vweird.f32 %v3927
    %vm3934 = vmor %vm3932, %vm3933
    %v3935 = vsel %vm3934, %v3927, %v3931
    %v3936 = vand.u32 2147483647, %v3891
    %vm3937 = vcmp.eq.f32.partialorder %v3936, 8.507059e+37
    %v3938 = vand.u32 %v3891, 2147483648
    %v3939 = vor.u32 1.1754944e-38, %v3938
    %v3940 = vsel %vm3937, %v3939, %v3935
    %v3941 = vmul.f32 1.0, %v3940
    %v3942 = vrcp.pop %v3892
    %v3943 = vmul.f32 %v3892, %v3942
    %v3944 = vsub.f32 1.0, %v3943
    %v3945 = vmul.f32 %v3942, %v3944
    %v3946 = vadd.f32 %v3942, %v3945
    %vm3947 = vweird.f32 %v3892
    %vm3948 = vweird.f32 %v3942
    %vm3949 = vmor %vm3947, %vm3948
    %v3950 = vsel %vm3949, %v3942, %v3946
    %v3951 = vand.u32 2147483647, %v3892
    %vm3952 = vcmp.eq.f32.partialorder %v3951, 8.507059e+37
    %v3953 = vand.u32 %v3892, 2147483648
    %v3954 = vor.u32 1.1754944e-38, %v3953
    %v3955 = vsel %vm3952, %v3954, %v3950
    %v3956 = vmul.f32 1.0, %v3955
    %v3957 = vrcp.pop %v3893
    %v3958 = vmul.f32 %v3893, %v3957
    %v3959 = vsub.f32 1.0, %v3958
    %v3960 = vmul.f32 %v3957, %v3959
    %v3961 = vadd.f32 %v3957, %v3960
    %vm3962 = vweird.f32 %v3893
    %vm3963 = vweird.f32 %v3957
    %vm3964 = vmor %vm3962, %vm3963
    %v3965 = vsel %vm3964, %v3957, %v3961
    %v3966 = vand.u32 2147483647, %v3893
    %vm3967 = vcmp.eq.f32.partialorder %v3966, 8.507059e+37
    %v3968 = vand.u32 %v3893, 2147483648
    %v3969 = vor.u32 1.1754944e-38, %v3968
    %v3970 = vsel %vm3967, %v3969, %v3965
    %v3971 = vmul.f32 1.0, %v3970
    %v3972 = vrcp.pop %v3894
    %v3973 = vmul.f32 %v3894, %v3972
    %v3974 = vsub.f32 1.0, %v3973
    %v3975 = vmul.f32 %v3972, %v3974
    %v3976 = vadd.f32 %v3972, %v3975
    %vm3977 = vweird.f32 %v3894
    %vm3978 = vweird.f32 %v3972
    %vm3979 = vmor %vm3977, %vm3978
    %v3980 = vsel %vm3979, %v3972, %v3976
    %v3981 = vand.u32 2147483647, %v3894
    %vm3982 = vcmp.eq.f32.partialorder %v3981, 8.507059e+37
    %v3983 = vand.u32 %v3894, 2147483648
    %v3984 = vor.u32 1.1754944e-38, %v3983
    %v3985 = vsel %vm3982, %v3984, %v3980
    %v3986 = vmul.f32 1.0, %v3985
    %v3987 = vrcp.pop %v3895
    %v3988 = vmul.f32 %v3895, %v3987
    %v3989 = vsub.f32 1.0, %v3988
    %v3990 = vmul.f32 %v3987, %v3989
    %v3991 = vadd.f32 %v3987, %v3990
    %vm3992 = vweird.f32 %v3895
    %vm3993 = vweird.f32 %v3987
    %vm3994 = vmor %vm3992, %vm3993
    %v3995 = vsel %vm3994, %v3987, %v3991
    %v3996 = vand.u32 2147483647, %v3895
    %vm3997 = vcmp.eq.f32.partialorder %v3996, 8.507059e+37
    %v3998 = vand.u32 %v3895, 2147483648
    %v3999 = vor.u32 1.1754944e-38, %v3998
    %v4000 = vsel %vm3997, %v3999, %v3995
    %v4001 = vmul.f32 1.0, %v4000
    %v4002 = vrcp.pop %v3896
    %v4003 = vmul.f32 %v3896, %v4002
    %v4004 = vsub.f32 1.0, %v4003
    %v4005 = vmul.f32 %v4002, %v4004
    %v4006 = vadd.f32 %v4002, %v4005
    %vm4007 = vweird.f32 %v3896
    %vm4008 = vweird.f32 %v4002
    %vm4009 = vmor %vm4007, %vm4008
    %v4010 = vsel %vm4009, %v4002, %v4006
    %v4011 = vand.u32 2147483647, %v3896
    %vm4012 = vcmp.eq.f32.partialorder %v4011, 8.507059e+37
    %v4013 = vand.u32 %v3896, 2147483648
    %v4014 = vor.u32 1.1754944e-38, %v4013
    %v4015 = vsel %vm4012, %v4014, %v4010
    %v4016 = vmul.f32 1.0, %v4015
    %v4017 = vtanh.pop %v3683
    %v4018 = vtanh.pop %v3687
    %v4019 = vtanh.pop %v3691
    %v4020 = vtanh.pop %v3695
    %v4021 = vtanh.pop %v3699
    %v4022 = vtanh.pop %v3703
    %v4023 = vtanh.pop %v3707
    %v4024 = vtanh.pop %v3711
    %v4025 = vxor.u32 %v3684, 2147483648
    %v4026 = vxor.u32 %v3688, 2147483648
    %v4027 = vxor.u32 %v3692, 2147483648
    %v4028 = vxor.u32 %v3696, 2147483648
    %v4029 = vxor.u32 %v3700, 2147483648
    %v4030 = vxor.u32 %v3704, 2147483648
    %v4031 = vxor.u32 %v3708, 2147483648
    %v4032 = vxor.u32 %v3712, 2147483648
    %v4033 = vmul.f32 %v4025, 1.442695
    %v4034 = vpow.pop %v4033
    %v4035 = vmul.f32 %v4026, 1.442695
    %v4036 = vpow.pop %v4035
    %v4037 = vmul.f32 %v4027, 1.442695
    %v4038 = vpow.pop %v4037
    %v4039 = vmul.f32 %v4028, 1.442695
    %v4040 = vpow.pop %v4039
    %v4041 = vmul.f32 %v4029, 1.442695
    %v4042 = vpow.pop %v4041
    %v4043 = vmul.f32 %v4030, 1.442695
    %v4044 = vpow.pop %v4043
    %v4045 = vmul.f32 %v4031, 1.442695
    %v4046 = vpow.pop %v4045
    %v4047 = vmul.f32 %v4032, 1.442695
    %v4048 = vpow.pop %v4047
    %v4049 = vadd.f32 %v4034, 1.0
    %v4050 = vadd.f32 %v4036, 1.0
    %v4051 = vadd.f32 %v4038, 1.0
    %v4052 = vadd.f32 %v4040, 1.0
    %v4053 = vadd.f32 %v4042, 1.0
    %v4054 = vadd.f32 %v4044, 1.0
    %v4055 = vadd.f32 %v4046, 1.0
    %v4056 = vadd.f32 %v4048, 1.0
    %v4057 = vrcp.pop %v4049
    %v4058 = vmul.f32 %v4049, %v4057
    %v4059 = vsub.f32 1.0, %v4058
    %v4060 = vmul.f32 %v4057, %v4059
    %v4061 = vadd.f32 %v4057, %v4060
    %vm4062 = vweird.f32 %v4049
    %vm4063 = vweird.f32 %v4057
    %vm4064 = vmor %vm4062, %vm4063
    %v4065 = vsel %vm4064, %v4057, %v4061
    %v4066 = vand.u32 2147483647, %v4049
    %vm4067 = vcmp.eq.f32.partialorder %v4066, 8.507059e+37
    %v4068 = vand.u32 %v4049, 2147483648
    %v4069 = vor.u32 1.1754944e-38, %v4068
    %v4070 = vsel %vm4067, %v4069, %v4065
    %v4071 = vmul.f32 1.0, %v4070
    %v4072 = vrcp.pop %v4050
    %v4073 = vmul.f32 %v4050, %v4072
    %v4074 = vsub.f32 1.0, %v4073
    %v4075 = vmul.f32 %v4072, %v4074
    %v4076 = vadd.f32 %v4072, %v4075
    %vm4077 = vweird.f32 %v4050
    %vm4078 = vweird.f32 %v4072
    %vm4079 = vmor %vm4077, %vm4078
    %v4080 = vsel %vm4079, %v4072, %v4076
    %v4081 = vand.u32 2147483647, %v4050
    %vm4082 = vcmp.eq.f32.partialorder %v4081, 8.507059e+37
    %v4083 = vand.u32 %v4050, 2147483648
    %v4084 = vor.u32 1.1754944e-38, %v4083
    %v4085 = vsel %vm4082, %v4084, %v4080
    %v4086 = vmul.f32 1.0, %v4085
    %v4087 = vrcp.pop %v4051
    %v4088 = vmul.f32 %v4051, %v4087
    %v4089 = vsub.f32 1.0, %v4088
    %v4090 = vmul.f32 %v4087, %v4089
    %v4091 = vadd.f32 %v4087, %v4090
    %vm4092 = vweird.f32 %v4051
    %vm4093 = vweird.f32 %v4087
    %vm4094 = vmor %vm4092, %vm4093
    %v4095 = vsel %vm4094, %v4087, %v4091
    %v4096 = vand.u32 2147483647, %v4051
    %vm4097 = vcmp.eq.f32.partialorder %v4096, 8.507059e+37
    %v4098 = vand.u32 %v4051, 2147483648
    %v4099 = vor.u32 1.1754944e-38, %v4098
    %v4100 = vsel %vm4097, %v4099, %v4095
    %v4101 = vmul.f32 1.0, %v4100
    %v4102 = vrcp.pop %v4052
    %v4103 = vmul.f32 %v4052, %v4102
    %v4104 = vsub.f32 1.0, %v4103
    %v4105 = vmul.f32 %v4102, %v4104
    %v4106 = vadd.f32 %v4102, %v4105
    %vm4107 = vweird.f32 %v4052
    %vm4108 = vweird.f32 %v4102
    %vm4109 = vmor %vm4107, %vm4108
    %v4110 = vsel %vm4109, %v4102, %v4106
    %v4111 = vand.u32 2147483647, %v4052
    %vm4112 = vcmp.eq.f32.partialorder %v4111, 8.507059e+37
    %v4113 = vand.u32 %v4052, 2147483648
    %v4114 = vor.u32 1.1754944e-38, %v4113
    %v4115 = vsel %vm4112, %v4114, %v4110
    %v4116 = vmul.f32 1.0, %v4115
    %v4117 = vrcp.pop %v4053
    %v4118 = vmul.f32 %v4053, %v4117
    %v4119 = vsub.f32 1.0, %v4118
    %v4120 = vmul.f32 %v4117, %v4119
    %v4121 = vadd.f32 %v4117, %v4120
    %vm4122 = vweird.f32 %v4053
    %vm4123 = vweird.f32 %v4117
    %vm4124 = vmor %vm4122, %vm4123
    %v4125 = vsel %vm4124, %v4117, %v4121
    %v4126 = vand.u32 2147483647, %v4053
    %vm4127 = vcmp.eq.f32.partialorder %v4126, 8.507059e+37
    %v4128 = vand.u32 %v4053, 2147483648
    %v4129 = vor.u32 1.1754944e-38, %v4128
    %v4130 = vsel %vm4127, %v4129, %v4125
    %v4131 = vmul.f32 1.0, %v4130
    %v4132 = vrcp.pop %v4054
    %v4133 = vmul.f32 %v4054, %v4132
    %v4134 = vsub.f32 1.0, %v4133
    %v4135 = vmul.f32 %v4132, %v4134
    %v4136 = vadd.f32 %v4132, %v4135
    %vm4137 = vweird.f32 %v4054
    %vm4138 = vweird.f32 %v4132
    %vm4139 = vmor %vm4137, %vm4138
    %v4140 = vsel %vm4139, %v4132, %v4136
    %v4141 = vand.u32 2147483647, %v4054
    %vm4142 = vcmp.eq.f32.partialorder %v4141, 8.507059e+37
    %v4143 = vand.u32 %v4054, 2147483648
    %v4144 = vor.u32 1.1754944e-38, %v4143
    %v4145 = vsel %vm4142, %v4144, %v4140
    %v4146 = vmul.f32 1.0, %v4145
    %v4147 = vrcp.pop %v4055
    %v4148 = vmul.f32 %v4055, %v4147
    %v4149 = vsub.f32 1.0, %v4148
    %v4150 = vmul.f32 %v4147, %v4149
    %v4151 = vadd.f32 %v4147, %v4150
    %vm4152 = vweird.f32 %v4055
    %vm4153 = vweird.f32 %v4147
    %vm4154 = vmor %vm4152, %vm4153
    %v4155 = vsel %vm4154, %v4147, %v4151
    %v4156 = vand.u32 2147483647, %v4055
    %vm4157 = vcmp.eq.f32.partialorder %v4156, 8.507059e+37
    %v4158 = vand.u32 %v4055, 2147483648
    %v4159 = vor.u32 1.1754944e-38, %v4158
    %v4160 = vsel %vm4157, %v4159, %v4155
    %v4161 = vmul.f32 1.0, %v4160
    %v4162 = vrcp.pop %v4056
    %v4163 = vmul.f32 %v4056, %v4162
    %v4164 = vsub.f32 1.0, %v4163
    %v4165 = vmul.f32 %v4162, %v4164
    %v4166 = vadd.f32 %v4162, %v4165
    %vm4167 = vweird.f32 %v4056
    %vm4168 = vweird.f32 %v4162
    %vm4169 = vmor %vm4167, %vm4168
    %v4170 = vsel %vm4169, %v4162, %v4166
    %v4171 = vand.u32 2147483647, %v4056
    %vm4172 = vcmp.eq.f32.partialorder %v4171, 8.507059e+37
    %v4173 = vand.u32 %v4056, 2147483648
    %v4174 = vor.u32 1.1754944e-38, %v4173
    %v4175 = vsel %vm4172, %v4174, %v4170
    %v4176 = vmul.f32 1.0, %v4175
    %v4177 = vmul.f32 %v3911, %v2890
    %v4178 = vmul.f32 %v3926, %v2891
    %v4179 = vmul.f32 %v3941, %v2892
    %v4180 = vmul.f32 %v3956, %v2893
    %v4181 = vmul.f32 %v3971, %v2894
    %v4182 = vmul.f32 %v3986, %v2895
    %v4183 = vmul.f32 %v4001, %v2896
    %v4184 = vmul.f32 %v4016, %v2897
    %v4185 = vmul.f32 %v3759, %v4017
    %v4186 = vmul.f32 %v3774, %v4018
    %v4187 = vmul.f32 %v3789, %v4019
    %v4188 = vmul.f32 %v3804, %v4020
    %v4189 = vmul.f32 %v3819, %v4021
    %v4190 = vmul.f32 %v3834, %v4022
    %v4191 = vmul.f32 %v3849, %v4023
    %v4192 = vmul.f32 %v3864, %v4024
    %v4193 = vadd.f32 %v4177, %v4185
    %v4194 = vadd.f32 %v4178, %v4186
    %v4195 = vadd.f32 %v4179, %v4187
    %v4196 = vadd.f32 %v4180, %v4188
    %v4197 = vadd.f32 %v4181, %v4189
    %v4198 = vadd.f32 %v4182, %v4190
    %v4199 = vadd.f32 %v4183, %v4191
    %v4200 = vadd.f32 %v4184, %v4192
    %v4201 = vtanh.pop %v4193
    %v4202 = vtanh.pop %v4194
    %v4203 = vtanh.pop %v4195
    %v4204 = vtanh.pop %v4196
    %v4205 = vtanh.pop %v4197
    %v4206 = vtanh.pop %v4198
    %v4207 = vtanh.pop %v4199
    %v4208 = vtanh.pop %v4200
    %v4209 = vmul.f32 %v4071, %v4201
    %v4210 = vmul.f32 %v4086, %v4202
    %v4211 = vmul.f32 %v4101, %v4203
    %v4212 = vmul.f32 %v4116, %v4204
    %v4213 = vmul.f32 %v4131, %v4205
    %v4214 = vmul.f32 %v4146, %v4206
    %v4215 = vmul.f32 %v4161, %v4207
    %v4216 = vmul.f32 %v4176, %v4208
    %4217 = vmatpush.msra.mxu0 %v2143
    %4218 = vmatpush.msra.mxu0 %v2139
    %4219 = vmatpush.msra.mxu0 %v2135
    %4220 = vmatpush.msra.mxu0 %v2131
    %4221 = vmatpush.msra.mxu0 %v2127
    %4222 = vmatpush.msra.mxu0 %v2123
    %4223 = vmatpush.msra.mxu0 %v2119
    %4224 = vmatpush.msra.mxu0 %v2115
    %4225 = vmatpush.msra.mxu0 %v2111
    %4226 = vmatpush.msra.mxu0 %v2107
    %4227 = vmatpush.msra.mxu0 %v2103
    %4228 = vmatpush.msra.mxu0 %v2099
    %4229 = vmatpush.msra.mxu0 %v2095
    %4230 = vmatpush.msra.mxu0 %v2091
    %4231 = vmatpush.msra.mxu0 %v2087
    %4232 = vmatpush.msra.mxu0 %v2083
    %4233 = vmatmul.f32.gmra.mxu0 %v3442
    %v4234 = vpop.f32.mrf.mxu0
    %v4235 = vadd.f32 0.0, %v4234
    %4236 = vmatmul.f32.gmra.mxu0 %v3443
    %v4237 = vpop.f32.mrf.mxu0
    %v4238 = vadd.f32 0.0, %v4237
    %4239 = vmatmul.f32.gmra.mxu0 %v3444
    %v4240 = vpop.f32.mrf.mxu0
    %v4241 = vadd.f32 0.0, %v4240
    %4242 = vmatmul.f32.gmra.mxu0 %v3445
    %v4243 = vpop.f32.mrf.mxu0
    %v4244 = vadd.f32 0.0, %v4243
    %4245 = vmatmul.f32.gmra.mxu0 %v3446
    %v4246 = vpop.f32.mrf.mxu0
    %v4247 = vadd.f32 0.0, %v4246
    %4248 = vmatmul.f32.gmra.mxu0 %v3447
    %v4249 = vpop.f32.mrf.mxu0
    %v4250 = vadd.f32 0.0, %v4249
    %4251 = vmatmul.f32.gmra.mxu0 %v3448
    %v4252 = vpop.f32.mrf.mxu0
    %v4253 = vadd.f32 0.0, %v4252
    %4254 = vmatmul.f32.gmra.mxu0 %v3449
    %v4255 = vpop.f32.mrf.mxu0
    %v4256 = vadd.f32 0.0, %v4255
    %4257 = vdwg.mxu0
    %4258 = vmatpush.msra.mxu0 %v2144
    %4259 = vmatpush.msra.mxu0 %v2140
    %4260 = vmatpush.msra.mxu0 %v2136
    %4261 = vmatpush.msra.mxu0 %v2132
    %4262 = vmatpush.msra.mxu0 %v2128
    %4263 = vmatpush.msra.mxu0 %v2124
    %4264 = vmatpush.msra.mxu0 %v2120
    %4265 = vmatpush.msra.mxu0 %v2116
    %4266 = vmatpush.msra.mxu0 %v2112
    %4267 = vmatpush.msra.mxu0 %v2108
    %4268 = vmatpush.msra.mxu0 %v2104
    %4269 = vmatpush.msra.mxu0 %v2100
    %4270 = vmatpush.msra.mxu0 %v2096
    %4271 = vmatpush.msra.mxu0 %v2092
    %4272 = vmatpush.msra.mxu0 %v2088
    %4273 = vmatpush.msra.mxu0 %v2084
    %4274 = vmatmul.f32.gmra.mxu0 %v3442
    %v4275 = vpop.f32.mrf.mxu0
    %v4276 = vadd.f32 0.0, %v4275
    %4277 = vmatmul.f32.gmra.mxu0 %v3443
    %v4278 = vpop.f32.mrf.mxu0
    %v4279 = vadd.f32 0.0, %v4278
    %4280 = vmatmul.f32.gmra.mxu0 %v3444
    %v4281 = vpop.f32.mrf.mxu0
    %v4282 = vadd.f32 0.0, %v4281
    %4283 = vmatmul.f32.gmra.mxu0 %v3445
    %v4284 = vpop.f32.mrf.mxu0
    %v4285 = vadd.f32 0.0, %v4284
    %4286 = vmatmul.f32.gmra.mxu0 %v3446
    %v4287 = vpop.f32.mrf.mxu0
    %v4288 = vadd.f32 0.0, %v4287
    %4289 = vmatmul.f32.gmra.mxu0 %v3447
    %v4290 = vpop.f32.mrf.mxu0
    %v4291 = vadd.f32 0.0, %v4290
    %4292 = vmatmul.f32.gmra.mxu0 %v3448
    %v4293 = vpop.f32.mrf.mxu0
    %v4294 = vadd.f32 0.0, %v4293
    %4295 = vmatmul.f32.gmra.mxu0 %v3449
    %v4296 = vpop.f32.mrf.mxu0
    %v4297 = vadd.f32 0.0, %v4296
    %4298 = vdwg.mxu0
    %4299 = vmatpush.msra.mxu0 %v2145
    %4300 = vmatpush.msra.mxu0 %v2141
    %4301 = vmatpush.msra.mxu0 %v2137
    %4302 = vmatpush.msra.mxu0 %v2133
    %4303 = vmatpush.msra.mxu0 %v2129
    %4304 = vmatpush.msra.mxu0 %v2125
    %4305 = vmatpush.msra.mxu0 %v2121
    %4306 = vmatpush.msra.mxu0 %v2117
    %4307 = vmatpush.msra.mxu0 %v2113
    %4308 = vmatpush.msra.mxu0 %v2109
    %4309 = vmatpush.msra.mxu0 %v2105
    %4310 = vmatpush.msra.mxu0 %v2101
    %4311 = vmatpush.msra.mxu0 %v2097
    %4312 = vmatpush.msra.mxu0 %v2093
    %4313 = vmatpush.msra.mxu0 %v2089
    %4314 = vmatpush.msra.mxu0 %v2085
    %4315 = vmatmul.f32.gmra.mxu0 %v3442
    %v4316 = vpop.f32.mrf.mxu0
    %v4317 = vadd.f32 0.0, %v4316
    %4318 = vmatmul.f32.gmra.mxu0 %v3443
    %v4319 = vpop.f32.mrf.mxu0
    %v4320 = vadd.f32 0.0, %v4319
    %4321 = vmatmul.f32.gmra.mxu0 %v3444
    %v4322 = vpop.f32.mrf.mxu0
    %v4323 = vadd.f32 0.0, %v4322
    %4324 = vmatmul.f32.gmra.mxu0 %v3445
    %v4325 = vpop.f32.mrf.mxu0
    %v4326 = vadd.f32 0.0, %v4325
    %4327 = vmatmul.f32.gmra.mxu0 %v3446
    %v4328 = vpop.f32.mrf.mxu0
    %v4329 = vadd.f32 0.0, %v4328
    %4330 = vmatmul.f32.gmra.mxu0 %v3447
    %v4331 = vpop.f32.mrf.mxu0
    %v4332 = vadd.f32 0.0, %v4331
    %4333 = vmatmul.f32.gmra.mxu0 %v3448
    %v4334 = vpop.f32.mrf.mxu0
    %v4335 = vadd.f32 0.0, %v4334
    %4336 = vmatmul.f32.gmra.mxu0 %v3449
    %v4337 = vpop.f32.mrf.mxu0
    %v4338 = vadd.f32 0.0, %v4337
    %4339 = vdwg.mxu0
    %4340 = vmatpush.msra.mxu0 %v2146
    %4341 = vmatpush.msra.mxu0 %v2142
    %4342 = vmatpush.msra.mxu0 %v2138
    %4343 = vmatpush.msra.mxu0 %v2134
    %4344 = vmatpush.msra.mxu0 %v2130
    %4345 = vmatpush.msra.mxu0 %v2126
    %4346 = vmatpush.msra.mxu0 %v2122
    %4347 = vmatpush.msra.mxu0 %v2118
    %4348 = vmatpush.msra.mxu0 %v2114
    %4349 = vmatpush.msra.mxu0 %v2110
    %4350 = vmatpush.msra.mxu0 %v2106
    %4351 = vmatpush.msra.mxu0 %v2102
    %4352 = vmatpush.msra.mxu0 %v2098
    %4353 = vmatpush.msra.mxu0 %v2094
    %4354 = vmatpush.msra.mxu0 %v2090
    %4355 = vmatpush.msra.mxu0 %v2086
    %4356 = vmatmul.f32.gmra.mxu0 %v3442
    %v4357 = vpop.f32.mrf.mxu0
    %v4358 = vadd.f32 0.0, %v4357
    %4359 = vmatmul.f32.gmra.mxu0 %v3443
    %v4360 = vpop.f32.mrf.mxu0
    %v4361 = vadd.f32 0.0, %v4360
    %4362 = vmatmul.f32.gmra.mxu0 %v3444
    %v4363 = vpop.f32.mrf.mxu0
    %v4364 = vadd.f32 0.0, %v4363
    %4365 = vmatmul.f32.gmra.mxu0 %v3445
    %v4366 = vpop.f32.mrf.mxu0
    %v4367 = vadd.f32 0.0, %v4366
    %4368 = vmatmul.f32.gmra.mxu0 %v3446
    %v4369 = vpop.f32.mrf.mxu0
    %v4370 = vadd.f32 0.0, %v4369
    %4371 = vmatmul.f32.gmra.mxu0 %v3447
    %v4372 = vpop.f32.mrf.mxu0
    %v4373 = vadd.f32 0.0, %v4372
    %4374 = vmatmul.f32.gmra.mxu0 %v3448
    %v4375 = vpop.f32.mrf.mxu0
    %v4376 = vadd.f32 0.0, %v4375
    %4377 = vmatmul.f32.gmra.mxu0 %v3449
    %v4378 = vpop.f32.mrf.mxu0
    %v4379 = vadd.f32 0.0, %v4378
    %4380 = vdwg.mxu0
    %v4381 = vadd.f32 %v3485, %v4235
    %v4382 = vadd.f32 %v3486, %v4276
    %v4383 = vadd.f32 %v3487, %v4317
    %v4384 = vadd.f32 %v3488, %v4358
    %v4385 = vadd.f32 %v3489, %v4238
    %v4386 = vadd.f32 %v3490, %v4279
    %v4387 = vadd.f32 %v3491, %v4320
    %v4388 = vadd.f32 %v3492, %v4361
    %v4389 = vadd.f32 %v3493, %v4241
    %v4390 = vadd.f32 %v3494, %v4282
    %v4391 = vadd.f32 %v3495, %v4323
    %v4392 = vadd.f32 %v3496, %v4364
    %v4393 = vadd.f32 %v3497, %v4244
    %v4394 = vadd.f32 %v3498, %v4285
    %v4395 = vadd.f32 %v3499, %v4326
    %v4396 = vadd.f32 %v3500, %v4367
    %v4397 = vadd.f32 %v3501, %v4247
    %v4398 = vadd.f32 %v3502, %v4288
    %v4399 = vadd.f32 %v3503, %v4329
    %v4400 = vadd.f32 %v3504, %v4370
    %v4401 = vadd.f32 %v3505, %v4250
    %v4402 = vadd.f32 %v3506, %v4291
    %v4403 = vadd.f32 %v3507, %v4332
    %v4404 = vadd.f32 %v3508, %v4373
    %v4405 = vadd.f32 %v3509, %v4253
    %v4406 = vadd.f32 %v3510, %v4294
    %v4407 = vadd.f32 %v3511, %v4335
    %v4408 = vadd.f32 %v3512, %v4376
    %v4409 = vadd.f32 %v3513, %v4256
    %v4410 = vadd.f32 %v3514, %v4297
    %v4411 = vadd.f32 %v3515, %v4338
    %v4412 = vadd.f32 %v3516, %v4379
    %v4413 = vxor.u32 %v4381, 2147483648
    %v4414 = vxor.u32 %v4385, 2147483648
    %v4415 = vxor.u32 %v4389, 2147483648
    %v4416 = vxor.u32 %v4393, 2147483648
    %v4417 = vxor.u32 %v4397, 2147483648
    %v4418 = vxor.u32 %v4401, 2147483648
    %v4419 = vxor.u32 %v4405, 2147483648
    %v4420 = vxor.u32 %v4409, 2147483648
    %v4421 = vmul.f32 %v4413, 1.442695
    %v4422 = vpow.pop %v4421
    %v4423 = vmul.f32 %v4414, 1.442695
    %v4424 = vpow.pop %v4423
    %v4425 = vmul.f32 %v4415, 1.442695
    %v4426 = vpow.pop %v4425
    %v4427 = vmul.f32 %v4416, 1.442695
    %v4428 = vpow.pop %v4427
    %v4429 = vmul.f32 %v4417, 1.442695
    %v4430 = vpow.pop %v4429
    %v4431 = vmul.f32 %v4418, 1.442695
    %v4432 = vpow.pop %v4431
    %v4433 = vmul.f32 %v4419, 1.442695
    %v4434 = vpow.pop %v4433
    %v4435 = vmul.f32 %v4420, 1.442695
    %v4436 = vpow.pop %v4435
    %v4437 = vadd.f32 %v4422, 1.0
    %v4438 = vadd.f32 %v4424, 1.0
    %v4439 = vadd.f32 %v4426, 1.0
    %v4440 = vadd.f32 %v4428, 1.0
    %v4441 = vadd.f32 %v4430, 1.0
    %v4442 = vadd.f32 %v4432, 1.0
    %v4443 = vadd.f32 %v4434, 1.0
    %v4444 = vadd.f32 %v4436, 1.0
    %v4445 = vrcp.pop %v4437
    %v4446 = vmul.f32 %v4437, %v4445
    %v4447 = vsub.f32 1.0, %v4446
    %v4448 = vmul.f32 %v4445, %v4447
    %v4449 = vadd.f32 %v4445, %v4448
    %vm4450 = vweird.f32 %v4437
    %vm4451 = vweird.f32 %v4445
    %vm4452 = vmor %vm4450, %vm4451
    %v4453 = vsel %vm4452, %v4445, %v4449
    %v4454 = vand.u32 2147483647, %v4437
    %vm4455 = vcmp.eq.f32.partialorder %v4454, 8.507059e+37
    %v4456 = vand.u32 %v4437, 2147483648
    %v4457 = vor.u32 1.1754944e-38, %v4456
    %v4458 = vsel %vm4455, %v4457, %v4453
    %v4459 = vmul.f32 1.0, %v4458
    %v4460 = vrcp.pop %v4438
    %v4461 = vmul.f32 %v4438, %v4460
    %v4462 = vsub.f32 1.0, %v4461
    %v4463 = vmul.f32 %v4460, %v4462
    %v4464 = vadd.f32 %v4460, %v4463
    %vm4465 = vweird.f32 %v4438
    %vm4466 = vweird.f32 %v4460
    %vm4467 = vmor %vm4465, %vm4466
    %v4468 = vsel %vm4467, %v4460, %v4464
    %v4469 = vand.u32 2147483647, %v4438
    %vm4470 = vcmp.eq.f32.partialorder %v4469, 8.507059e+37
    %v4471 = vand.u32 %v4438, 2147483648
    %v4472 = vor.u32 1.1754944e-38, %v4471
    %v4473 = vsel %vm4470, %v4472, %v4468
    %v4474 = vmul.f32 1.0, %v4473
    %v4475 = vrcp.pop %v4439
    %v4476 = vmul.f32 %v4439, %v4475
    %v4477 = vsub.f32 1.0, %v4476
    %v4478 = vmul.f32 %v4475, %v4477
    %v4479 = vadd.f32 %v4475, %v4478
    %vm4480 = vweird.f32 %v4439
    %vm4481 = vweird.f32 %v4475
    %vm4482 = vmor %vm4480, %vm4481
    %v4483 = vsel %vm4482, %v4475, %v4479
    %v4484 = vand.u32 2147483647, %v4439
    %vm4485 = vcmp.eq.f32.partialorder %v4484, 8.507059e+37
    %v4486 = vand.u32 %v4439, 2147483648
    %v4487 = vor.u32 1.1754944e-38, %v4486
    %v4488 = vsel %vm4485, %v4487, %v4483
    %v4489 = vmul.f32 1.0, %v4488
    %v4490 = vrcp.pop %v4440
    %v4491 = vmul.f32 %v4440, %v4490
    %v4492 = vsub.f32 1.0, %v4491
    %v4493 = vmul.f32 %v4490, %v4492
    %v4494 = vadd.f32 %v4490, %v4493
    %vm4495 = vweird.f32 %v4440
    %vm4496 = vweird.f32 %v4490
    %vm4497 = vmor %vm4495, %vm4496
    %v4498 = vsel %vm4497, %v4490, %v4494
    %v4499 = vand.u32 2147483647, %v4440
    %vm4500 = vcmp.eq.f32.partialorder %v4499, 8.507059e+37
    %v4501 = vand.u32 %v4440, 2147483648
    %v4502 = vor.u32 1.1754944e-38, %v4501
    %v4503 = vsel %vm4500, %v4502, %v4498
    %v4504 = vmul.f32 1.0, %v4503
    %v4505 = vrcp.pop %v4441
    %v4506 = vmul.f32 %v4441, %v4505
    %v4507 = vsub.f32 1.0, %v4506
    %v4508 = vmul.f32 %v4505, %v4507
    %v4509 = vadd.f32 %v4505, %v4508
    %vm4510 = vweird.f32 %v4441
    %vm4511 = vweird.f32 %v4505
    %vm4512 = vmor %vm4510, %vm4511
    %v4513 = vsel %vm4512, %v4505, %v4509
    %v4514 = vand.u32 2147483647, %v4441
    %vm4515 = vcmp.eq.f32.partialorder %v4514, 8.507059e+37
    %v4516 = vand.u32 %v4441, 2147483648
    %v4517 = vor.u32 1.1754944e-38, %v4516
    %v4518 = vsel %vm4515, %v4517, %v4513
    %v4519 = vmul.f32 1.0, %v4518
    %v4520 = vrcp.pop %v4442
    %v4521 = vmul.f32 %v4442, %v4520
    %v4522 = vsub.f32 1.0, %v4521
    %v4523 = vmul.f32 %v4520, %v4522
    %v4524 = vadd.f32 %v4520, %v4523
    %vm4525 = vweird.f32 %v4442
    %vm4526 = vweird.f32 %v4520
    %vm4527 = vmor %vm4525, %vm4526
    %v4528 = vsel %vm4527, %v4520, %v4524
    %v4529 = vand.u32 2147483647, %v4442
    %vm4530 = vcmp.eq.f32.partialorder %v4529, 8.507059e+37
    %v4531 = vand.u32 %v4442, 2147483648
    %v4532 = vor.u32 1.1754944e-38, %v4531
    %v4533 = vsel %vm4530, %v4532, %v4528
    %v4534 = vmul.f32 1.0, %v4533
    %v4535 = vrcp.pop %v4443
    %v4536 = vmul.f32 %v4443, %v4535
    %v4537 = vsub.f32 1.0, %v4536
    %v4538 = vmul.f32 %v4535, %v4537
    %v4539 = vadd.f32 %v4535, %v4538
    %vm4540 = vweird.f32 %v4443
    %vm4541 = vweird.f32 %v4535
    %vm4542 = vmor %vm4540, %vm4541
    %v4543 = vsel %vm4542, %v4535, %v4539
    %v4544 = vand.u32 2147483647, %v4443
    %vm4545 = vcmp.eq.f32.partialorder %v4544, 8.507059e+37
    %v4546 = vand.u32 %v4443, 2147483648
    %v4547 = vor.u32 1.1754944e-38, %v4546
    %v4548 = vsel %vm4545, %v4547, %v4543
    %v4549 = vmul.f32 1.0, %v4548
    %v4550 = vrcp.pop %v4444
    %v4551 = vmul.f32 %v4444, %v4550
    %v4552 = vsub.f32 1.0, %v4551
    %v4553 = vmul.f32 %v4550, %v4552
    %v4554 = vadd.f32 %v4550, %v4553
    %vm4555 = vweird.f32 %v4444
    %vm4556 = vweird.f32 %v4550
    %vm4557 = vmor %vm4555, %vm4556
    %v4558 = vsel %vm4557, %v4550, %v4554
    %v4559 = vand.u32 2147483647, %v4444
    %vm4560 = vcmp.eq.f32.partialorder %v4559, 8.507059e+37
    %v4561 = vand.u32 %v4444, 2147483648
    %v4562 = vor.u32 1.1754944e-38, %v4561
    %v4563 = vsel %vm4560, %v4562, %v4558
    %v4564 = vmul.f32 1.0, %v4563
    %v4565 = vxor.u32 %v4382, 2147483648
    %v4566 = vxor.u32 %v4386, 2147483648
    %v4567 = vxor.u32 %v4390, 2147483648
    %v4568 = vxor.u32 %v4394, 2147483648
    %v4569 = vxor.u32 %v4398, 2147483648
    %v4570 = vxor.u32 %v4402, 2147483648
    %v4571 = vxor.u32 %v4406, 2147483648
    %v4572 = vxor.u32 %v4410, 2147483648
    %v4573 = vmul.f32 %v4565, 1.442695
    %v4574 = vpow.pop %v4573
    %v4575 = vmul.f32 %v4566, 1.442695
    %v4576 = vpow.pop %v4575
    %v4577 = vmul.f32 %v4567, 1.442695
    %v4578 = vpow.pop %v4577
    %v4579 = vmul.f32 %v4568, 1.442695
    %v4580 = vpow.pop %v4579
    %v4581 = vmul.f32 %v4569, 1.442695
    %v4582 = vpow.pop %v4581
    %v4583 = vmul.f32 %v4570, 1.442695
    %v4584 = vpow.pop %v4583
    %v4585 = vmul.f32 %v4571, 1.442695
    %v4586 = vpow.pop %v4585
    %v4587 = vmul.f32 %v4572, 1.442695
    %v4588 = vpow.pop %v4587
    %v4589 = vadd.f32 %v4574, 1.0
    %v4590 = vadd.f32 %v4576, 1.0
    %v4591 = vadd.f32 %v4578, 1.0
    %v4592 = vadd.f32 %v4580, 1.0
    %v4593 = vadd.f32 %v4582, 1.0
    %v4594 = vadd.f32 %v4584, 1.0
    %v4595 = vadd.f32 %v4586, 1.0
    %v4596 = vadd.f32 %v4588, 1.0
    %v4597 = vrcp.pop %v4589
    %v4598 = vmul.f32 %v4589, %v4597
    %v4599 = vsub.f32 1.0, %v4598
    %v4600 = vmul.f32 %v4597, %v4599
    %v4601 = vadd.f32 %v4597, %v4600
    %vm4602 = vweird.f32 %v4589
    %vm4603 = vweird.f32 %v4597
    %vm4604 = vmor %vm4602, %vm4603
    %v4605 = vsel %vm4604, %v4597, %v4601
    %v4606 = vand.u32 2147483647, %v4589
    %vm4607 = vcmp.eq.f32.partialorder %v4606, 8.507059e+37
    %v4608 = vand.u32 %v4589, 2147483648
    %v4609 = vor.u32 1.1754944e-38, %v4608
    %v4610 = vsel %vm4607, %v4609, %v4605
    %v4611 = vmul.f32 1.0, %v4610
    %v4612 = vrcp.pop %v4590
    %v4613 = vmul.f32 %v4590, %v4612
    %v4614 = vsub.f32 1.0, %v4613
    %v4615 = vmul.f32 %v4612, %v4614
    %v4616 = vadd.f32 %v4612, %v4615
    %vm4617 = vweird.f32 %v4590
    %vm4618 = vweird.f32 %v4612
    %vm4619 = vmor %vm4617, %vm4618
    %v4620 = vsel %vm4619, %v4612, %v4616
    %v4621 = vand.u32 2147483647, %v4590
    %vm4622 = vcmp.eq.f32.partialorder %v4621, 8.507059e+37
    %v4623 = vand.u32 %v4590, 2147483648
    %v4624 = vor.u32 1.1754944e-38, %v4623
    %v4625 = vsel %vm4622, %v4624, %v4620
    %v4626 = vmul.f32 1.0, %v4625
    %v4627 = vrcp.pop %v4591
    %v4628 = vmul.f32 %v4591, %v4627
    %v4629 = vsub.f32 1.0, %v4628
    %v4630 = vmul.f32 %v4627, %v4629
    %v4631 = vadd.f32 %v4627, %v4630
    %vm4632 = vweird.f32 %v4591
    %vm4633 = vweird.f32 %v4627
    %vm4634 = vmor %vm4632, %vm4633
    %v4635 = vsel %vm4634, %v4627, %v4631
    %v4636 = vand.u32 2147483647, %v4591
    %vm4637 = vcmp.eq.f32.partialorder %v4636, 8.507059e+37
    %v4638 = vand.u32 %v4591, 2147483648
    %v4639 = vor.u32 1.1754944e-38, %v4638
    %v4640 = vsel %vm4637, %v4639, %v4635
    %v4641 = vmul.f32 1.0, %v4640
    %v4642 = vrcp.pop %v4592
    %v4643 = vmul.f32 %v4592, %v4642
    %v4644 = vsub.f32 1.0, %v4643
    %v4645 = vmul.f32 %v4642, %v4644
    %v4646 = vadd.f32 %v4642, %v4645
    %vm4647 = vweird.f32 %v4592
    %vm4648 = vweird.f32 %v4642
    %vm4649 = vmor %vm4647, %vm4648
    %v4650 = vsel %vm4649, %v4642, %v4646
    %v4651 = vand.u32 2147483647, %v4592
    %vm4652 = vcmp.eq.f32.partialorder %v4651, 8.507059e+37
    %v4653 = vand.u32 %v4592, 2147483648
    %v4654 = vor.u32 1.1754944e-38, %v4653
    %v4655 = vsel %vm4652, %v4654, %v4650
    %v4656 = vmul.f32 1.0, %v4655
    %v4657 = vrcp.pop %v4593
    %v4658 = vmul.f32 %v4593, %v4657
    %v4659 = vsub.f32 1.0, %v4658
    %v4660 = vmul.f32 %v4657, %v4659
    %v4661 = vadd.f32 %v4657, %v4660
    %vm4662 = vweird.f32 %v4593
    %vm4663 = vweird.f32 %v4657
    %vm4664 = vmor %vm4662, %vm4663
    %v4665 = vsel %vm4664, %v4657, %v4661
    %v4666 = vand.u32 2147483647, %v4593
    %vm4667 = vcmp.eq.f32.partialorder %v4666, 8.507059e+37
    %v4668 = vand.u32 %v4593, 2147483648
    %v4669 = vor.u32 1.1754944e-38, %v4668
    %v4670 = vsel %vm4667, %v4669, %v4665
    %v4671 = vmul.f32 1.0, %v4670
    %v4672 = vrcp.pop %v4594
    %v4673 = vmul.f32 %v4594, %v4672
    %v4674 = vsub.f32 1.0, %v4673
    %v4675 = vmul.f32 %v4672, %v4674
    %v4676 = vadd.f32 %v4672, %v4675
    %vm4677 = vweird.f32 %v4594
    %vm4678 = vweird.f32 %v4672
    %vm4679 = vmor %vm4677, %vm4678
    %v4680 = vsel %vm4679, %v4672, %v4676
    %v4681 = vand.u32 2147483647, %v4594
    %vm4682 = vcmp.eq.f32.partialorder %v4681, 8.507059e+37
    %v4683 = vand.u32 %v4594, 2147483648
    %v4684 = vor.u32 1.1754944e-38, %v4683
    %v4685 = vsel %vm4682, %v4684, %v4680
    %v4686 = vmul.f32 1.0, %v4685
    %v4687 = vrcp.pop %v4595
    %v4688 = vmul.f32 %v4595, %v4687
    %v4689 = vsub.f32 1.0, %v4688
    %v4690 = vmul.f32 %v4687, %v4689
    %v4691 = vadd.f32 %v4687, %v4690
    %vm4692 = vweird.f32 %v4595
    %vm4693 = vweird.f32 %v4687
    %vm4694 = vmor %vm4692, %vm4693
    %v4695 = vsel %vm4694, %v4687, %v4691
    %v4696 = vand.u32 2147483647, %v4595
    %vm4697 = vcmp.eq.f32.partialorder %v4696, 8.507059e+37
    %v4698 = vand.u32 %v4595, 2147483648
    %v4699 = vor.u32 1.1754944e-38, %v4698
    %v4700 = vsel %vm4697, %v4699, %v4695
    %v4701 = vmul.f32 1.0, %v4700
    %v4702 = vrcp.pop %v4596
    %v4703 = vmul.f32 %v4596, %v4702
    %v4704 = vsub.f32 1.0, %v4703
    %v4705 = vmul.f32 %v4702, %v4704
    %v4706 = vadd.f32 %v4702, %v4705
    %vm4707 = vweird.f32 %v4596
    %vm4708 = vweird.f32 %v4702
    %vm4709 = vmor %vm4707, %vm4708
    %v4710 = vsel %vm4709, %v4702, %v4706
    %v4711 = vand.u32 2147483647, %v4596
    %vm4712 = vcmp.eq.f32.partialorder %v4711, 8.507059e+37
    %v4713 = vand.u32 %v4596, 2147483648
    %v4714 = vor.u32 1.1754944e-38, %v4713
    %v4715 = vsel %vm4712, %v4714, %v4710
    %v4716 = vmul.f32 1.0, %v4715
    %v4717 = vtanh.pop %v4383
    %v4718 = vtanh.pop %v4387
    %v4719 = vtanh.pop %v4391
    %v4720 = vtanh.pop %v4395
    %v4721 = vtanh.pop %v4399
    %v4722 = vtanh.pop %v4403
    %v4723 = vtanh.pop %v4407
    %v4724 = vtanh.pop %v4411
    %v4725 = vxor.u32 %v4384, 2147483648
    %v4726 = vxor.u32 %v4388, 2147483648
    %v4727 = vxor.u32 %v4392, 2147483648
    %v4728 = vxor.u32 %v4396, 2147483648
    %v4729 = vxor.u32 %v4400, 2147483648
    %v4730 = vxor.u32 %v4404, 2147483648
    %v4731 = vxor.u32 %v4408, 2147483648
    %v4732 = vxor.u32 %v4412, 2147483648
    %v4733 = vmul.f32 %v4725, 1.442695
    %v4734 = vpow.pop %v4733
    %v4735 = vmul.f32 %v4726, 1.442695
    %v4736 = vpow.pop %v4735
    %v4737 = vmul.f32 %v4727, 1.442695
    %v4738 = vpow.pop %v4737
    %v4739 = vmul.f32 %v4728, 1.442695
    %v4740 = vpow.pop %v4739
    %v4741 = vmul.f32 %v4729, 1.442695
    %v4742 = vpow.pop %v4741
    %v4743 = vmul.f32 %v4730, 1.442695
    %v4744 = vpow.pop %v4743
    %v4745 = vmul.f32 %v4731, 1.442695
    %v4746 = vpow.pop %v4745
    %v4747 = vmul.f32 %v4732, 1.442695
    %v4748 = vpow.pop %v4747
    %v4749 = vadd.f32 %v4734, 1.0
    %v4750 = vadd.f32 %v4736, 1.0
    %v4751 = vadd.f32 %v4738, 1.0
    %v4752 = vadd.f32 %v4740, 1.0
    %v4753 = vadd.f32 %v4742, 1.0
    %v4754 = vadd.f32 %v4744, 1.0
    %v4755 = vadd.f32 %v4746, 1.0
    %v4756 = vadd.f32 %v4748, 1.0
    %v4757 = vrcp.pop %v4749
    %v4758 = vmul.f32 %v4749, %v4757
    %v4759 = vsub.f32 1.0, %v4758
    %v4760 = vmul.f32 %v4757, %v4759
    %v4761 = vadd.f32 %v4757, %v4760
    %vm4762 = vweird.f32 %v4749
    %vm4763 = vweird.f32 %v4757
    %vm4764 = vmor %vm4762, %vm4763
    %v4765 = vsel %vm4764, %v4757, %v4761
    %v4766 = vand.u32 2147483647, %v4749
    %vm4767 = vcmp.eq.f32.partialorder %v4766, 8.507059e+37
    %v4768 = vand.u32 %v4749, 2147483648
    %v4769 = vor.u32 1.1754944e-38, %v4768
    %v4770 = vsel %vm4767, %v4769, %v4765
    %v4771 = vmul.f32 1.0, %v4770
    %v4772 = vrcp.pop %v4750
    %v4773 = vmul.f32 %v4750, %v4772
    %v4774 = vsub.f32 1.0, %v4773
    %v4775 = vmul.f32 %v4772, %v4774
    %v4776 = vadd.f32 %v4772, %v4775
    %vm4777 = vweird.f32 %v4750
    %vm4778 = vweird.f32 %v4772
    %vm4779 = vmor %vm4777, %vm4778
    %v4780 = vsel %vm4779, %v4772, %v4776
    %v4781 = vand.u32 2147483647, %v4750
    %vm4782 = vcmp.eq.f32.partialorder %v4781, 8.507059e+37
    %v4783 = vand.u32 %v4750, 2147483648
    %v4784 = vor.u32 1.1754944e-38, %v4783
    %v4785 = vsel %vm4782, %v4784, %v4780
    %v4786 = vmul.f32 1.0, %v4785
    %v4787 = vrcp.pop %v4751
    %v4788 = vmul.f32 %v4751, %v4787
    %v4789 = vsub.f32 1.0, %v4788
    %v4790 = vmul.f32 %v4787, %v4789
    %v4791 = vadd.f32 %v4787, %v4790
    %vm4792 = vweird.f32 %v4751
    %vm4793 = vweird.f32 %v4787
    %vm4794 = vmor %vm4792, %vm4793
    %v4795 = vsel %vm4794, %v4787, %v4791
    %v4796 = vand.u32 2147483647, %v4751
    %vm4797 = vcmp.eq.f32.partialorder %v4796, 8.507059e+37
    %v4798 = vand.u32 %v4751, 2147483648
    %v4799 = vor.u32 1.1754944e-38, %v4798
    %v4800 = vsel %vm4797, %v4799, %v4795
    %v4801 = vmul.f32 1.0, %v4800
    %v4802 = vrcp.pop %v4752
    %v4803 = vmul.f32 %v4752, %v4802
    %v4804 = vsub.f32 1.0, %v4803
    %v4805 = vmul.f32 %v4802, %v4804
    %v4806 = vadd.f32 %v4802, %v4805
    %vm4807 = vweird.f32 %v4752
    %vm4808 = vweird.f32 %v4802
    %vm4809 = vmor %vm4807, %vm4808
    %v4810 = vsel %vm4809, %v4802, %v4806
    %v4811 = vand.u32 2147483647, %v4752
    %vm4812 = vcmp.eq.f32.partialorder %v4811, 8.507059e+37
    %v4813 = vand.u32 %v4752, 2147483648
    %v4814 = vor.u32 1.1754944e-38, %v4813
    %v4815 = vsel %vm4812, %v4814, %v4810
    %v4816 = vmul.f32 1.0, %v4815
    %v4817 = vrcp.pop %v4753
    %v4818 = vmul.f32 %v4753, %v4817
    %v4819 = vsub.f32 1.0, %v4818
    %v4820 = vmul.f32 %v4817, %v4819
    %v4821 = vadd.f32 %v4817, %v4820
    %vm4822 = vweird.f32 %v4753
    %vm4823 = vweird.f32 %v4817
    %vm4824 = vmor %vm4822, %vm4823
    %v4825 = vsel %vm4824, %v4817, %v4821
    %v4826 = vand.u32 2147483647, %v4753
    %vm4827 = vcmp.eq.f32.partialorder %v4826, 8.507059e+37
    %v4828 = vand.u32 %v4753, 2147483648
    %v4829 = vor.u32 1.1754944e-38, %v4828
    %v4830 = vsel %vm4827, %v4829, %v4825
    %v4831 = vmul.f32 1.0, %v4830
    %v4832 = vrcp.pop %v4754
    %v4833 = vmul.f32 %v4754, %v4832
    %v4834 = vsub.f32 1.0, %v4833
    %v4835 = vmul.f32 %v4832, %v4834
    %v4836 = vadd.f32 %v4832, %v4835
    %vm4837 = vweird.f32 %v4754
    %vm4838 = vweird.f32 %v4832
    %vm4839 = vmor %vm4837, %vm4838
    %v4840 = vsel %vm4839, %v4832, %v4836
    %v4841 = vand.u32 2147483647, %v4754
    %vm4842 = vcmp.eq.f32.partialorder %v4841, 8.507059e+37
    %v4843 = vand.u32 %v4754, 2147483648
    %v4844 = vor.u32 1.1754944e-38, %v4843
    %v4845 = vsel %vm4842, %v4844, %v4840
    %v4846 = vmul.f32 1.0, %v4845
    %v4847 = vrcp.pop %v4755
    %v4848 = vmul.f32 %v4755, %v4847
    %v4849 = vsub.f32 1.0, %v4848
    %v4850 = vmul.f32 %v4847, %v4849
    %v4851 = vadd.f32 %v4847, %v4850
    %vm4852 = vweird.f32 %v4755
    %vm4853 = vweird.f32 %v4847
    %vm4854 = vmor %vm4852, %vm4853
    %v4855 = vsel %vm4854, %v4847, %v4851
    %v4856 = vand.u32 2147483647, %v4755
    %vm4857 = vcmp.eq.f32.partialorder %v4856, 8.507059e+37
    %v4858 = vand.u32 %v4755, 2147483648
    %v4859 = vor.u32 1.1754944e-38, %v4858
    %v4860 = vsel %vm4857, %v4859, %v4855
    %v4861 = vmul.f32 1.0, %v4860
    %v4862 = vrcp.pop %v4756
    %v4863 = vmul.f32 %v4756, %v4862
    %v4864 = vsub.f32 1.0, %v4863
    %v4865 = vmul.f32 %v4862, %v4864
    %v4866 = vadd.f32 %v4862, %v4865
    %vm4867 = vweird.f32 %v4756
    %vm4868 = vweird.f32 %v4862
    %vm4869 = vmor %vm4867, %vm4868
    %v4870 = vsel %vm4869, %v4862, %v4866
    %v4871 = vand.u32 2147483647, %v4756
    %vm4872 = vcmp.eq.f32.partialorder %v4871, 8.507059e+37
    %v4873 = vand.u32 %v4756, 2147483648
    %v4874 = vor.u32 1.1754944e-38, %v4873
    %v4875 = vsel %vm4872, %v4874, %v4870
    %v4876 = vmul.f32 1.0, %v4875
    %v4877 = vmul.f32 %v4611, %v3426
    %v4878 = vmul.f32 %v4626, %v3427
    %v4879 = vmul.f32 %v4641, %v3428
    %v4880 = vmul.f32 %v4656, %v3429
    %v4881 = vmul.f32 %v4671, %v3430
    %v4882 = vmul.f32 %v4686, %v3431
    %v4883 = vmul.f32 %v4701, %v3432
    %v4884 = vmul.f32 %v4716, %v3433
    %v4885 = vmul.f32 %v4459, %v4717
    %v4886 = vmul.f32 %v4474, %v4718
    %v4887 = vmul.f32 %v4489, %v4719
    %v4888 = vmul.f32 %v4504, %v4720
    %v4889 = vmul.f32 %v4519, %v4721
    %v4890 = vmul.f32 %v4534, %v4722
    %v4891 = vmul.f32 %v4549, %v4723
    %v4892 = vmul.f32 %v4564, %v4724
    %v4893 = vadd.f32 %v4877, %v4885
    %v4894 = vadd.f32 %v4878, %v4886
    %v4895 = vadd.f32 %v4879, %v4887
    %v4896 = vadd.f32 %v4880, %v4888
    %v4897 = vadd.f32 %v4881, %v4889
    %v4898 = vadd.f32 %v4882, %v4890
    %v4899 = vadd.f32 %v4883, %v4891
    %v4900 = vadd.f32 %v4884, %v4892
    %v4901 = vtanh.pop %v4893
    %v4902 = vtanh.pop %v4894
    %v4903 = vtanh.pop %v4895
    %v4904 = vtanh.pop %v4896
    %v4905 = vtanh.pop %v4897
    %v4906 = vtanh.pop %v4898
    %v4907 = vtanh.pop %v4899
    %v4908 = vtanh.pop %v4900
    %v4909 = vmul.f32 %v4771, %v4901
    %v4910 = vmul.f32 %v4786, %v4902
    %v4911 = vmul.f32 %v4801, %v4903
    %v4912 = vmul.f32 %v4816, %v4904
    %v4913 = vmul.f32 %v4831, %v4905
    %v4914 = vmul.f32 %v4846, %v4906
    %v4915 = vmul.f32 %v4861, %v4907
    %v4916 = vmul.f32 %v4876, %v4908
    %s4917 = smul.u32 32, 4
    %s4918 = smul.addr %s4917, 8
    %s4919 = scalar_lea.vmem [#allocation2], %s4918
    %v4920 = vld [vmem:[%s4919] sm:$0xff]
    %v4921 = vld [vmem:[%s4919 + $0x8] sm:$0xff]
    %v4922 = vld [vmem:[%s4919 + $0x10] sm:$0xff]
    %v4923 = vld [vmem:[%s4919 + $0x18] sm:$0xff]
    %v4924 = vld [vmem:[%s4919 + $0x20] sm:$0xff]
    %v4925 = vld [vmem:[%s4919 + $0x28] sm:$0xff]
    %v4926 = vld [vmem:[%s4919 + $0x30] sm:$0xff]
    %v4927 = vld [vmem:[%s4919 + $0x38] sm:$0xff]
    %v4928 = vld [vmem:[%s4919 + $0x40] sm:$0xff]
    %v4929 = vld [vmem:[%s4919 + $0x48] sm:$0xff]
    %v4930 = vld [vmem:[%s4919 + $0x50] sm:$0xff]
    %v4931 = vld [vmem:[%s4919 + $0x58] sm:$0xff]
    %v4932 = vld [vmem:[%s4919 + $0x60] sm:$0xff]
    %v4933 = vld [vmem:[%s4919 + $0x68] sm:$0xff]
    %v4934 = vld [vmem:[%s4919 + $0x70] sm:$0xff]
    %v4935 = vld [vmem:[%s4919 + $0x78] sm:$0xff]
    %v4936 = vld [vmem:[%s4919 + $0x80] sm:$0xff]
    %v4937 = vld [vmem:[%s4919 + $0x88] sm:$0xff]
    %v4938 = vld [vmem:[%s4919 + $0x90] sm:$0xff]
    %v4939 = vld [vmem:[%s4919 + $0x98] sm:$0xff]
    %v4940 = vld [vmem:[%s4919 + $0xa0] sm:$0xff]
    %v4941 = vld [vmem:[%s4919 + $0xa8] sm:$0xff]
    %v4942 = vld [vmem:[%s4919 + $0xb0] sm:$0xff]
    %v4943 = vld [vmem:[%s4919 + $0xb8] sm:$0xff]
    %v4944 = vld [vmem:[%s4919 + $0xc0] sm:$0xff]
    %v4945 = vld [vmem:[%s4919 + $0xc8] sm:$0xff]
    %v4946 = vld [vmem:[%s4919 + $0xd0] sm:$0xff]
    %v4947 = vld [vmem:[%s4919 + $0xd8] sm:$0xff]
    %v4948 = vld [vmem:[%s4919 + $0xe0] sm:$0xff]
    %v4949 = vld [vmem:[%s4919 + $0xe8] sm:$0xff]
    %v4950 = vld [vmem:[%s4919 + $0xf0] sm:$0xff]
    %v4951 = vld [vmem:[%s4919 + $0xf8] sm:$0xff]
    %v4952 = vld [vmem:[%s4919 + $0x100] sm:$0xff]
    %v4953 = vld [vmem:[%s4919 + $0x108] sm:$0xff]
    %v4954 = vld [vmem:[%s4919 + $0x110] sm:$0xff]
    %v4955 = vld [vmem:[%s4919 + $0x118] sm:$0xff]
    %v4956 = vld [vmem:[%s4919 + $0x120] sm:$0xff]
    %v4957 = vld [vmem:[%s4919 + $0x128] sm:$0xff]
    %v4958 = vld [vmem:[%s4919 + $0x130] sm:$0xff]
    %v4959 = vld [vmem:[%s4919 + $0x138] sm:$0xff]
    %v4960 = vld [vmem:[%s4919 + $0x140] sm:$0xff]
    %v4961 = vld [vmem:[%s4919 + $0x148] sm:$0xff]
    %v4962 = vld [vmem:[%s4919 + $0x150] sm:$0xff]
    %v4963 = vld [vmem:[%s4919 + $0x158] sm:$0xff]
    %v4964 = vld [vmem:[%s4919 + $0x160] sm:$0xff]
    %v4965 = vld [vmem:[%s4919 + $0x168] sm:$0xff]
    %v4966 = vld [vmem:[%s4919 + $0x170] sm:$0xff]
    %v4967 = vld [vmem:[%s4919 + $0x178] sm:$0xff]
    %v4968 = vld [vmem:[%s4919 + $0x180] sm:$0xff]
    %v4969 = vld [vmem:[%s4919 + $0x188] sm:$0xff]
    %v4970 = vld [vmem:[%s4919 + $0x190] sm:$0xff]
    %v4971 = vld [vmem:[%s4919 + $0x198] sm:$0xff]
    %v4972 = vld [vmem:[%s4919 + $0x1a0] sm:$0xff]
    %v4973 = vld [vmem:[%s4919 + $0x1a8] sm:$0xff]
    %v4974 = vld [vmem:[%s4919 + $0x1b0] sm:$0xff]
    %v4975 = vld [vmem:[%s4919 + $0x1b8] sm:$0xff]
    %v4976 = vld [vmem:[%s4919 + $0x1c0] sm:$0xff]
    %v4977 = vld [vmem:[%s4919 + $0x1c8] sm:$0xff]
    %v4978 = vld [vmem:[%s4919 + $0x1d0] sm:$0xff]
    %v4979 = vld [vmem:[%s4919 + $0x1d8] sm:$0xff]
    %v4980 = vld [vmem:[%s4919 + $0x1e0] sm:$0xff]
    %v4981 = vld [vmem:[%s4919 + $0x1e8] sm:$0xff]
    %v4982 = vld [vmem:[%s4919 + $0x1f0] sm:$0xff]
    %v4983 = vld [vmem:[%s4919 + $0x1f8] sm:$0xff]
    %4984 = vmatpush.msra.mxu0 %v2143
    %4985 = vmatpush.msra.mxu0 %v2139
    %4986 = vmatpush.msra.mxu0 %v2135
    %4987 = vmatpush.msra.mxu0 %v2131
    %4988 = vmatpush.msra.mxu0 %v2127
    %4989 = vmatpush.msra.mxu0 %v2123
    %4990 = vmatpush.msra.mxu0 %v2119
    %4991 = vmatpush.msra.mxu0 %v2115
    %4992 = vmatpush.msra.mxu0 %v2111
    %4993 = vmatpush.msra.mxu0 %v2107
    %4994 = vmatpush.msra.mxu0 %v2103
    %4995 = vmatpush.msra.mxu0 %v2099
    %4996 = vmatpush.msra.mxu0 %v2095
    %4997 = vmatpush.msra.mxu0 %v2091
    %4998 = vmatpush.msra.mxu0 %v2087
    %4999 = vmatpush.msra.mxu0 %v2083
    %5000 = vmatmul.f32.gmra.mxu0 %v4209
    %v5001 = vpop.f32.mrf.mxu0
    %v5002 = vadd.f32 0.0, %v5001
    %5003 = vmatmul.f32.gmra.mxu0 %v4210
    %v5004 = vpop.f32.mrf.mxu0
    %v5005 = vadd.f32 0.0, %v5004
    %5006 = vmatmul.f32.gmra.mxu0 %v4211
    %v5007 = vpop.f32.mrf.mxu0
    %v5008 = vadd.f32 0.0, %v5007
    %5009 = vmatmul.f32.gmra.mxu0 %v4212
    %v5010 = vpop.f32.mrf.mxu0
    %v5011 = vadd.f32 0.0, %v5010
    %5012 = vmatmul.f32.gmra.mxu0 %v4213
    %v5013 = vpop.f32.mrf.mxu0
    %v5014 = vadd.f32 0.0, %v5013
    %5015 = vmatmul.f32.gmra.mxu0 %v4214
    %v5016 = vpop.f32.mrf.mxu0
    %v5017 = vadd.f32 0.0, %v5016
    %5018 = vmatmul.f32.gmra.mxu0 %v4215
    %v5019 = vpop.f32.mrf.mxu0
    %v5020 = vadd.f32 0.0, %v5019
    %5021 = vmatmul.f32.gmra.mxu0 %v4216
    %v5022 = vpop.f32.mrf.mxu0
    %v5023 = vadd.f32 0.0, %v5022
    %5024 = vdwg.mxu0
    %5025 = vmatpush.msra.mxu0 %v2144
    %5026 = vmatpush.msra.mxu0 %v2140
    %5027 = vmatpush.msra.mxu0 %v2136
    %5028 = vmatpush.msra.mxu0 %v2132
    %5029 = vmatpush.msra.mxu0 %v2128
    %5030 = vmatpush.msra.mxu0 %v2124
    %5031 = vmatpush.msra.mxu0 %v2120
    %5032 = vmatpush.msra.mxu0 %v2116
    %5033 = vmatpush.msra.mxu0 %v2112
    %5034 = vmatpush.msra.mxu0 %v2108
    %5035 = vmatpush.msra.mxu0 %v2104
    %5036 = vmatpush.msra.mxu0 %v2100
    %5037 = vmatpush.msra.mxu0 %v2096
    %5038 = vmatpush.msra.mxu0 %v2092
    %5039 = vmatpush.msra.mxu0 %v2088
    %5040 = vmatpush.msra.mxu0 %v2084
    %5041 = vmatmul.f32.gmra.mxu0 %v4209
    %v5042 = vpop.f32.mrf.mxu0
    %v5043 = vadd.f32 0.0, %v5042
    %5044 = vmatmul.f32.gmra.mxu0 %v4210
    %v5045 = vpop.f32.mrf.mxu0
    %v5046 = vadd.f32 0.0, %v5045
    %5047 = vmatmul.f32.gmra.mxu0 %v4211
    %v5048 = vpop.f32.mrf.mxu0
    %v5049 = vadd.f32 0.0, %v5048
    %5050 = vmatmul.f32.gmra.mxu0 %v4212
    %v5051 = vpop.f32.mrf.mxu0
    %v5052 = vadd.f32 0.0, %v5051
    %5053 = vmatmul.f32.gmra.mxu0 %v4213
    %v5054 = vpop.f32.mrf.mxu0
    %v5055 = vadd.f32 0.0, %v5054
    %5056 = vmatmul.f32.gmra.mxu0 %v4214
    %v5057 = vpop.f32.mrf.mxu0
    %v5058 = vadd.f32 0.0, %v5057
    %5059 = vmatmul.f32.gmra.mxu0 %v4215
    %v5060 = vpop.f32.mrf.mxu0
    %v5061 = vadd.f32 0.0, %v5060
    %5062 = vmatmul.f32.gmra.mxu0 %v4216
    %v5063 = vpop.f32.mrf.mxu0
    %v5064 = vadd.f32 0.0, %v5063
    %5065 = vdwg.mxu0
    %5066 = vmatpush.msra.mxu0 %v2145
    %5067 = vmatpush.msra.mxu0 %v2141
    %5068 = vmatpush.msra.mxu0 %v2137
    %5069 = vmatpush.msra.mxu0 %v2133
    %5070 = vmatpush.msra.mxu0 %v2129
    %5071 = vmatpush.msra.mxu0 %v2125
    %5072 = vmatpush.msra.mxu0 %v2121
    %5073 = vmatpush.msra.mxu0 %v2117
    %5074 = vmatpush.msra.mxu0 %v2113
    %5075 = vmatpush.msra.mxu0 %v2109
    %5076 = vmatpush.msra.mxu0 %v2105
    %5077 = vmatpush.msra.mxu0 %v2101
    %5078 = vmatpush.msra.mxu0 %v2097
    %5079 = vmatpush.msra.mxu0 %v2093
    %5080 = vmatpush.msra.mxu0 %v2089
    %5081 = vmatpush.msra.mxu0 %v2085
    %5082 = vmatmul.f32.gmra.mxu0 %v4209
    %v5083 = vpop.f32.mrf.mxu0
    %v5084 = vadd.f32 0.0, %v5083
    %5085 = vmatmul.f32.gmra.mxu0 %v4210
    %v5086 = vpop.f32.mrf.mxu0
    %v5087 = vadd.f32 0.0, %v5086
    %5088 = vmatmul.f32.gmra.mxu0 %v4211
    %v5089 = vpop.f32.mrf.mxu0
    %v5090 = vadd.f32 0.0, %v5089
    %5091 = vmatmul.f32.gmra.mxu0 %v4212
    %v5092 = vpop.f32.mrf.mxu0
    %v5093 = vadd.f32 0.0, %v5092
    %5094 = vmatmul.f32.gmra.mxu0 %v4213
    %v5095 = vpop.f32.mrf.mxu0
    %v5096 = vadd.f32 0.0, %v5095
    %5097 = vmatmul.f32.gmra.mxu0 %v4214
    %v5098 = vpop.f32.mrf.mxu0
    %v5099 = vadd.f32 0.0, %v5098
    %5100 = vmatmul.f32.gmra.mxu0 %v4215
    %v5101 = vpop.f32.mrf.mxu0
    %v5102 = vadd.f32 0.0, %v5101
    %5103 = vmatmul.f32.gmra.mxu0 %v4216
    %v5104 = vpop.f32.mrf.mxu0
    %v5105 = vadd.f32 0.0, %v5104
    %5106 = vdwg.mxu0
    %5107 = vmatpush.msra.mxu0 %v2146
    %5108 = vmatpush.msra.mxu0 %v2142
    %5109 = vmatpush.msra.mxu0 %v2138
    %5110 = vmatpush.msra.mxu0 %v2134
    %5111 = vmatpush.msra.mxu0 %v2130
    %5112 = vmatpush.msra.mxu0 %v2126
    %5113 = vmatpush.msra.mxu0 %v2122
    %5114 = vmatpush.msra.mxu0 %v2118
    %5115 = vmatpush.msra.mxu0 %v2114
    %5116 = vmatpush.msra.mxu0 %v2110
    %5117 = vmatpush.msra.mxu0 %v2106
    %5118 = vmatpush.msra.mxu0 %v2102
    %5119 = vmatpush.msra.mxu0 %v2098
    %5120 = vmatpush.msra.mxu0 %v2094
    %5121 = vmatpush.msra.mxu0 %v2090
    %5122 = vmatpush.msra.mxu0 %v2086
    %5123 = vmatmul.f32.gmra.mxu0 %v4209
    %v5124 = vpop.f32.mrf.mxu0
    %v5125 = vadd.f32 0.0, %v5124
    %5126 = vmatmul.f32.gmra.mxu0 %v4210
    %v5127 = vpop.f32.mrf.mxu0
    %v5128 = vadd.f32 0.0, %v5127
    %5129 = vmatmul.f32.gmra.mxu0 %v4211
    %v5130 = vpop.f32.mrf.mxu0
    %v5131 = vadd.f32 0.0, %v5130
    %5132 = vmatmul.f32.gmra.mxu0 %v4212
    %v5133 = vpop.f32.mrf.mxu0
    %v5134 = vadd.f32 0.0, %v5133
    %5135 = vmatmul.f32.gmra.mxu0 %v4213
    %v5136 = vpop.f32.mrf.mxu0
    %v5137 = vadd.f32 0.0, %v5136
    %5138 = vmatmul.f32.gmra.mxu0 %v4214
    %v5139 = vpop.f32.mrf.mxu0
    %v5140 = vadd.f32 0.0, %v5139
    %5141 = vmatmul.f32.gmra.mxu0 %v4215
    %v5142 = vpop.f32.mrf.mxu0
    %v5143 = vadd.f32 0.0, %v5142
    %5144 = vmatmul.f32.gmra.mxu0 %v4216
    %v5145 = vpop.f32.mrf.mxu0
    %v5146 = vadd.f32 0.0, %v5145
    %5147 = vdwg.mxu0
    %v5148 = vadd.f32 %v4920, %v5002
    %v5149 = vadd.f32 %v4921, %v5043
    %v5150 = vadd.f32 %v4922, %v5084
    %v5151 = vadd.f32 %v4923, %v5125
    %v5152 = vadd.f32 %v4924, %v5005
    %v5153 = vadd.f32 %v4925, %v5046
    %v5154 = vadd.f32 %v4926, %v5087
    %v5155 = vadd.f32 %v4927, %v5128
    %v5156 = vadd.f32 %v4928, %v5008
    %v5157 = vadd.f32 %v4929, %v5049
    %v5158 = vadd.f32 %v4930, %v5090
    %v5159 = vadd.f32 %v4931, %v5131
    %v5160 = vadd.f32 %v4932, %v5011
    %v5161 = vadd.f32 %v4933, %v5052
    %v5162 = vadd.f32 %v4934, %v5093
    %v5163 = vadd.f32 %v4935, %v5134
    %v5164 = vadd.f32 %v4936, %v5014
    %v5165 = vadd.f32 %v4937, %v5055
    %v5166 = vadd.f32 %v4938, %v5096
    %v5167 = vadd.f32 %v4939, %v5137
    %v5168 = vadd.f32 %v4940, %v5017
    %v5169 = vadd.f32 %v4941, %v5058
    %v5170 = vadd.f32 %v4942, %v5099
    %v5171 = vadd.f32 %v4943, %v5140
    %v5172 = vadd.f32 %v4944, %v5020
    %v5173 = vadd.f32 %v4945, %v5061
    %v5174 = vadd.f32 %v4946, %v5102
    %v5175 = vadd.f32 %v4947, %v5143
    %v5176 = vadd.f32 %v4948, %v5023
    %v5177 = vadd.f32 %v4949, %v5064
    %v5178 = vadd.f32 %v4950, %v5105
    %v5179 = vadd.f32 %v4951, %v5146
    %v5180 = vxor.u32 %v5148, 2147483648
    %v5181 = vxor.u32 %v5152, 2147483648
    %v5182 = vxor.u32 %v5156, 2147483648
    %v5183 = vxor.u32 %v5160, 2147483648
    %v5184 = vxor.u32 %v5164, 2147483648
    %v5185 = vxor.u32 %v5168, 2147483648
    %v5186 = vxor.u32 %v5172, 2147483648
    %v5187 = vxor.u32 %v5176, 2147483648
    %v5188 = vmul.f32 %v5180, 1.442695
    %v5189 = vpow.pop %v5188
    %v5190 = vmul.f32 %v5181, 1.442695
    %v5191 = vpow.pop %v5190
    %v5192 = vmul.f32 %v5182, 1.442695
    %v5193 = vpow.pop %v5192
    %v5194 = vmul.f32 %v5183, 1.442695
    %v5195 = vpow.pop %v5194
    %v5196 = vmul.f32 %v5184, 1.442695
    %v5197 = vpow.pop %v5196
    %v5198 = vmul.f32 %v5185, 1.442695
    %v5199 = vpow.pop %v5198
    %v5200 = vmul.f32 %v5186, 1.442695
    %v5201 = vpow.pop %v5200
    %v5202 = vmul.f32 %v5187, 1.442695
    %v5203 = vpow.pop %v5202
    %v5204 = vadd.f32 %v5189, 1.0
    %v5205 = vadd.f32 %v5191, 1.0
    %v5206 = vadd.f32 %v5193, 1.0
    %v5207 = vadd.f32 %v5195, 1.0
    %v5208 = vadd.f32 %v5197, 1.0
    %v5209 = vadd.f32 %v5199, 1.0
    %v5210 = vadd.f32 %v5201, 1.0
    %v5211 = vadd.f32 %v5203, 1.0
    %v5212 = vrcp.pop %v5204
    %v5213 = vmul.f32 %v5204, %v5212
    %v5214 = vsub.f32 1.0, %v5213
    %v5215 = vmul.f32 %v5212, %v5214
    %v5216 = vadd.f32 %v5212, %v5215
    %vm5217 = vweird.f32 %v5204
    %vm5218 = vweird.f32 %v5212
    %vm5219 = vmor %vm5217, %vm5218
    %v5220 = vsel %vm5219, %v5212, %v5216
    %v5221 = vand.u32 2147483647, %v5204
    %vm5222 = vcmp.eq.f32.partialorder %v5221, 8.507059e+37
    %v5223 = vand.u32 %v5204, 2147483648
    %v5224 = vor.u32 1.1754944e-38, %v5223
    %v5225 = vsel %vm5222, %v5224, %v5220
    %v5226 = vmul.f32 1.0, %v5225
    %v5227 = vrcp.pop %v5205
    %v5228 = vmul.f32 %v5205, %v5227
    %v5229 = vsub.f32 1.0, %v5228
    %v5230 = vmul.f32 %v5227, %v5229
    %v5231 = vadd.f32 %v5227, %v5230
    %vm5232 = vweird.f32 %v5205
    %vm5233 = vweird.f32 %v5227
    %vm5234 = vmor %vm5232, %vm5233
    %v5235 = vsel %vm5234, %v5227, %v5231
    %v5236 = vand.u32 2147483647, %v5205
    %vm5237 = vcmp.eq.f32.partialorder %v5236, 8.507059e+37
    %v5238 = vand.u32 %v5205, 2147483648
    %v5239 = vor.u32 1.1754944e-38, %v5238
    %v5240 = vsel %vm5237, %v5239, %v5235
    %v5241 = vmul.f32 1.0, %v5240
    %v5242 = vrcp.pop %v5206
    %v5243 = vmul.f32 %v5206, %v5242
    %v5244 = vsub.f32 1.0, %v5243
    %v5245 = vmul.f32 %v5242, %v5244
    %v5246 = vadd.f32 %v5242, %v5245
    %vm5247 = vweird.f32 %v5206
    %vm5248 = vweird.f32 %v5242
    %vm5249 = vmor %vm5247, %vm5248
    %v5250 = vsel %vm5249, %v5242, %v5246
    %v5251 = vand.u32 2147483647, %v5206
    %vm5252 = vcmp.eq.f32.partialorder %v5251, 8.507059e+37
    %v5253 = vand.u32 %v5206, 2147483648
    %v5254 = vor.u32 1.1754944e-38, %v5253
    %v5255 = vsel %vm5252, %v5254, %v5250
    %v5256 = vmul.f32 1.0, %v5255
    %v5257 = vrcp.pop %v5207
    %v5258 = vmul.f32 %v5207, %v5257
    %v5259 = vsub.f32 1.0, %v5258
    %v5260 = vmul.f32 %v5257, %v5259
    %v5261 = vadd.f32 %v5257, %v5260
    %vm5262 = vweird.f32 %v5207
    %vm5263 = vweird.f32 %v5257
    %vm5264 = vmor %vm5262, %vm5263
    %v5265 = vsel %vm5264, %v5257, %v5261
    %v5266 = vand.u32 2147483647, %v5207
    %vm5267 = vcmp.eq.f32.partialorder %v5266, 8.507059e+37
    %v5268 = vand.u32 %v5207, 2147483648
    %v5269 = vor.u32 1.1754944e-38, %v5268
    %v5270 = vsel %vm5267, %v5269, %v5265
    %v5271 = vmul.f32 1.0, %v5270
    %v5272 = vrcp.pop %v5208
    %v5273 = vmul.f32 %v5208, %v5272
    %v5274 = vsub.f32 1.0, %v5273
    %v5275 = vmul.f32 %v5272, %v5274
    %v5276 = vadd.f32 %v5272, %v5275
    %vm5277 = vweird.f32 %v5208
    %vm5278 = vweird.f32 %v5272
    %vm5279 = vmor %vm5277, %vm5278
    %v5280 = vsel %vm5279, %v5272, %v5276
    %v5281 = vand.u32 2147483647, %v5208
    %vm5282 = vcmp.eq.f32.partialorder %v5281, 8.507059e+37
    %v5283 = vand.u32 %v5208, 2147483648
    %v5284 = vor.u32 1.1754944e-38, %v5283
    %v5285 = vsel %vm5282, %v5284, %v5280
    %v5286 = vmul.f32 1.0, %v5285
    %v5287 = vrcp.pop %v5209
    %v5288 = vmul.f32 %v5209, %v5287
    %v5289 = vsub.f32 1.0, %v5288
    %v5290 = vmul.f32 %v5287, %v5289
    %v5291 = vadd.f32 %v5287, %v5290
    %vm5292 = vweird.f32 %v5209
    %vm5293 = vweird.f32 %v5287
    %vm5294 = vmor %vm5292, %vm5293
    %v5295 = vsel %vm5294, %v5287, %v5291
    %v5296 = vand.u32 2147483647, %v5209
    %vm5297 = vcmp.eq.f32.partialorder %v5296, 8.507059e+37
    %v5298 = vand.u32 %v5209, 2147483648
    %v5299 = vor.u32 1.1754944e-38, %v5298
    %v5300 = vsel %vm5297, %v5299, %v5295
    %v5301 = vmul.f32 1.0, %v5300
    %v5302 = vrcp.pop %v5210
    %v5303 = vmul.f32 %v5210, %v5302
    %v5304 = vsub.f32 1.0, %v5303
    %v5305 = vmul.f32 %v5302, %v5304
    %v5306 = vadd.f32 %v5302, %v5305
    %vm5307 = vweird.f32 %v5210
    %vm5308 = vweird.f32 %v5302
    %vm5309 = vmor %vm5307, %vm5308
    %v5310 = vsel %vm5309, %v5302, %v5306
    %v5311 = vand.u32 2147483647, %v5210
    %vm5312 = vcmp.eq.f32.partialorder %v5311, 8.507059e+37
    %v5313 = vand.u32 %v5210, 2147483648
    %v5314 = vor.u32 1.1754944e-38, %v5313
    %v5315 = vsel %vm5312, %v5314, %v5310
    %v5316 = vmul.f32 1.0, %v5315
    %v5317 = vrcp.pop %v5211
    %v5318 = vmul.f32 %v5211, %v5317
    %v5319 = vsub.f32 1.0, %v5318
    %v5320 = vmul.f32 %v5317, %v5319
    %v5321 = vadd.f32 %v5317, %v5320
    %vm5322 = vweird.f32 %v5211
    %vm5323 = vweird.f32 %v5317
    %vm5324 = vmor %vm5322, %vm5323
    %v5325 = vsel %vm5324, %v5317, %v5321
    %v5326 = vand.u32 2147483647, %v5211
    %vm5327 = vcmp.eq.f32.partialorder %v5326, 8.507059e+37
    %v5328 = vand.u32 %v5211, 2147483648
    %v5329 = vor.u32 1.1754944e-38, %v5328
    %v5330 = vsel %vm5327, %v5329, %v5325
    %v5331 = vmul.f32 1.0, %v5330
    %v5332 = vxor.u32 %v5149, 2147483648
    %v5333 = vxor.u32 %v5153, 2147483648
    %v5334 = vxor.u32 %v5157, 2147483648
    %v5335 = vxor.u32 %v5161, 2147483648
    %v5336 = vxor.u32 %v5165, 2147483648
    %v5337 = vxor.u32 %v5169, 2147483648
    %v5338 = vxor.u32 %v5173, 2147483648
    %v5339 = vxor.u32 %v5177, 2147483648
    %v5340 = vmul.f32 %v5332, 1.442695
    %v5341 = vpow.pop %v5340
    %v5342 = vmul.f32 %v5333, 1.442695
    %v5343 = vpow.pop %v5342
    %v5344 = vmul.f32 %v5334, 1.442695
    %v5345 = vpow.pop %v5344
    %v5346 = vmul.f32 %v5335, 1.442695
    %v5347 = vpow.pop %v5346
    %v5348 = vmul.f32 %v5336, 1.442695
    %v5349 = vpow.pop %v5348
    %v5350 = vmul.f32 %v5337, 1.442695
    %v5351 = vpow.pop %v5350
    %v5352 = vmul.f32 %v5338, 1.442695
    %v5353 = vpow.pop %v5352
    %v5354 = vmul.f32 %v5339, 1.442695
    %v5355 = vpow.pop %v5354
    %v5356 = vadd.f32 %v5341, 1.0
    %v5357 = vadd.f32 %v5343, 1.0
    %v5358 = vadd.f32 %v5345, 1.0
    %v5359 = vadd.f32 %v5347, 1.0
    %v5360 = vadd.f32 %v5349, 1.0
    %v5361 = vadd.f32 %v5351, 1.0
    %v5362 = vadd.f32 %v5353, 1.0
    %v5363 = vadd.f32 %v5355, 1.0
    %v5364 = vrcp.pop %v5356
    %v5365 = vmul.f32 %v5356, %v5364
    %v5366 = vsub.f32 1.0, %v5365
    %v5367 = vmul.f32 %v5364, %v5366
    %v5368 = vadd.f32 %v5364, %v5367
    %vm5369 = vweird.f32 %v5356
    %vm5370 = vweird.f32 %v5364
    %vm5371 = vmor %vm5369, %vm5370
    %v5372 = vsel %vm5371, %v5364, %v5368
    %v5373 = vand.u32 2147483647, %v5356
    %vm5374 = vcmp.eq.f32.partialorder %v5373, 8.507059e+37
    %v5375 = vand.u32 %v5356, 2147483648
    %v5376 = vor.u32 1.1754944e-38, %v5375
    %v5377 = vsel %vm5374, %v5376, %v5372
    %v5378 = vmul.f32 1.0, %v5377
    %v5379 = vrcp.pop %v5357
    %v5380 = vmul.f32 %v5357, %v5379
    %v5381 = vsub.f32 1.0, %v5380
    %v5382 = vmul.f32 %v5379, %v5381
    %v5383 = vadd.f32 %v5379, %v5382
    %vm5384 = vweird.f32 %v5357
    %vm5385 = vweird.f32 %v5379
    %vm5386 = vmor %vm5384, %vm5385
    %v5387 = vsel %vm5386, %v5379, %v5383
    %v5388 = vand.u32 2147483647, %v5357
    %vm5389 = vcmp.eq.f32.partialorder %v5388, 8.507059e+37
    %v5390 = vand.u32 %v5357, 2147483648
    %v5391 = vor.u32 1.1754944e-38, %v5390
    %v5392 = vsel %vm5389, %v5391, %v5387
    %v5393 = vmul.f32 1.0, %v5392
    %v5394 = vrcp.pop %v5358
    %v5395 = vmul.f32 %v5358, %v5394
    %v5396 = vsub.f32 1.0, %v5395
    %v5397 = vmul.f32 %v5394, %v5396
    %v5398 = vadd.f32 %v5394, %v5397
    %vm5399 = vweird.f32 %v5358
    %vm5400 = vweird.f32 %v5394
    %vm5401 = vmor %vm5399, %vm5400
    %v5402 = vsel %vm5401, %v5394, %v5398
    %v5403 = vand.u32 2147483647, %v5358
    %vm5404 = vcmp.eq.f32.partialorder %v5403, 8.507059e+37
    %v5405 = vand.u32 %v5358, 2147483648
    %v5406 = vor.u32 1.1754944e-38, %v5405
    %v5407 = vsel %vm5404, %v5406, %v5402
    %v5408 = vmul.f32 1.0, %v5407
    %v5409 = vrcp.pop %v5359
    %v5410 = vmul.f32 %v5359, %v5409
    %v5411 = vsub.f32 1.0, %v5410
    %v5412 = vmul.f32 %v5409, %v5411
    %v5413 = vadd.f32 %v5409, %v5412
    %vm5414 = vweird.f32 %v5359
    %vm5415 = vweird.f32 %v5409
    %vm5416 = vmor %vm5414, %vm5415
    %v5417 = vsel %vm5416, %v5409, %v5413
    %v5418 = vand.u32 2147483647, %v5359
    %vm5419 = vcmp.eq.f32.partialorder %v5418, 8.507059e+37
    %v5420 = vand.u32 %v5359, 2147483648
    %v5421 = vor.u32 1.1754944e-38, %v5420
    %v5422 = vsel %vm5419, %v5421, %v5417
    %v5423 = vmul.f32 1.0, %v5422
    %v5424 = vrcp.pop %v5360
    %v5425 = vmul.f32 %v5360, %v5424
    %v5426 = vsub.f32 1.0, %v5425
    %v5427 = vmul.f32 %v5424, %v5426
    %v5428 = vadd.f32 %v5424, %v5427
    %vm5429 = vweird.f32 %v5360
    %vm5430 = vweird.f32 %v5424
    %vm5431 = vmor %vm5429, %vm5430
    %v5432 = vsel %vm5431, %v5424, %v5428
    %v5433 = vand.u32 2147483647, %v5360
    %vm5434 = vcmp.eq.f32.partialorder %v5433, 8.507059e+37
    %v5435 = vand.u32 %v5360, 2147483648
    %v5436 = vor.u32 1.1754944e-38, %v5435
    %v5437 = vsel %vm5434, %v5436, %v5432
    %v5438 = vmul.f32 1.0, %v5437
    %v5439 = vrcp.pop %v5361
    %v5440 = vmul.f32 %v5361, %v5439
    %v5441 = vsub.f32 1.0, %v5440
    %v5442 = vmul.f32 %v5439, %v5441
    %v5443 = vadd.f32 %v5439, %v5442
    %vm5444 = vweird.f32 %v5361
    %vm5445 = vweird.f32 %v5439
    %vm5446 = vmor %vm5444, %vm5445
    %v5447 = vsel %vm5446, %v5439, %v5443
    %v5448 = vand.u32 2147483647, %v5361
    %vm5449 = vcmp.eq.f32.partialorder %v5448, 8.507059e+37
    %v5450 = vand.u32 %v5361, 2147483648
    %v5451 = vor.u32 1.1754944e-38, %v5450
    %v5452 = vsel %vm5449, %v5451, %v5447
    %v5453 = vmul.f32 1.0, %v5452
    %v5454 = vrcp.pop %v5362
    %v5455 = vmul.f32 %v5362, %v5454
    %v5456 = vsub.f32 1.0, %v5455
    %v5457 = vmul.f32 %v5454, %v5456
    %v5458 = vadd.f32 %v5454, %v5457
    %vm5459 = vweird.f32 %v5362
    %vm5460 = vweird.f32 %v5454
    %vm5461 = vmor %vm5459, %vm5460
    %v5462 = vsel %vm5461, %v5454, %v5458
    %v5463 = vand.u32 2147483647, %v5362
    %vm5464 = vcmp.eq.f32.partialorder %v5463, 8.507059e+37
    %v5465 = vand.u32 %v5362, 2147483648
    %v5466 = vor.u32 1.1754944e-38, %v5465
    %v5467 = vsel %vm5464, %v5466, %v5462
    %v5468 = vmul.f32 1.0, %v5467
    %v5469 = vrcp.pop %v5363
    %v5470 = vmul.f32 %v5363, %v5469
    %v5471 = vsub.f32 1.0, %v5470
    %v5472 = vmul.f32 %v5469, %v5471
    %v5473 = vadd.f32 %v5469, %v5472
    %vm5474 = vweird.f32 %v5363
    %vm5475 = vweird.f32 %v5469
    %vm5476 = vmor %vm5474, %vm5475
    %v5477 = vsel %vm5476, %v5469, %v5473
    %v5478 = vand.u32 2147483647, %v5363
    %vm5479 = vcmp.eq.f32.partialorder %v5478, 8.507059e+37
    %v5480 = vand.u32 %v5363, 2147483648
    %v5481 = vor.u32 1.1754944e-38, %v5480
    %v5482 = vsel %vm5479, %v5481, %v5477
    %v5483 = vmul.f32 1.0, %v5482
    %v5484 = vtanh.pop %v5150
    %v5485 = vtanh.pop %v5154
    %v5486 = vtanh.pop %v5158
    %v5487 = vtanh.pop %v5162
    %v5488 = vtanh.pop %v5166
    %v5489 = vtanh.pop %v5170
    %v5490 = vtanh.pop %v5174
    %v5491 = vtanh.pop %v5178
    %v5492 = vxor.u32 %v5151, 2147483648
    %v5493 = vxor.u32 %v5155, 2147483648
    %v5494 = vxor.u32 %v5159, 2147483648
    %v5495 = vxor.u32 %v5163, 2147483648
    %v5496 = vxor.u32 %v5167, 2147483648
    %v5497 = vxor.u32 %v5171, 2147483648
    %v5498 = vxor.u32 %v5175, 2147483648
    %v5499 = vxor.u32 %v5179, 2147483648
    %v5500 = vmul.f32 %v5492, 1.442695
    %v5501 = vpow.pop %v5500
    %v5502 = vmul.f32 %v5493, 1.442695
    %v5503 = vpow.pop %v5502
    %v5504 = vmul.f32 %v5494, 1.442695
    %v5505 = vpow.pop %v5504
    %v5506 = vmul.f32 %v5495, 1.442695
    %v5507 = vpow.pop %v5506
    %v5508 = vmul.f32 %v5496, 1.442695
    %v5509 = vpow.pop %v5508
    %v5510 = vmul.f32 %v5497, 1.442695
    %v5511 = vpow.pop %v5510
    %v5512 = vmul.f32 %v5498, 1.442695
    %v5513 = vpow.pop %v5512
    %v5514 = vmul.f32 %v5499, 1.442695
    %v5515 = vpow.pop %v5514
    %v5516 = vadd.f32 %v5501, 1.0
    %v5517 = vadd.f32 %v5503, 1.0
    %v5518 = vadd.f32 %v5505, 1.0
    %v5519 = vadd.f32 %v5507, 1.0
    %v5520 = vadd.f32 %v5509, 1.0
    %v5521 = vadd.f32 %v5511, 1.0
    %v5522 = vadd.f32 %v5513, 1.0
    %v5523 = vadd.f32 %v5515, 1.0
    %v5524 = vrcp.pop %v5516
    %v5525 = vmul.f32 %v5516, %v5524
    %v5526 = vsub.f32 1.0, %v5525
    %v5527 = vmul.f32 %v5524, %v5526
    %v5528 = vadd.f32 %v5524, %v5527
    %vm5529 = vweird.f32 %v5516
    %vm5530 = vweird.f32 %v5524
    %vm5531 = vmor %vm5529, %vm5530
    %v5532 = vsel %vm5531, %v5524, %v5528
    %v5533 = vand.u32 2147483647, %v5516
    %vm5534 = vcmp.eq.f32.partialorder %v5533, 8.507059e+37
    %v5535 = vand.u32 %v5516, 2147483648
    %v5536 = vor.u32 1.1754944e-38, %v5535
    %v5537 = vsel %vm5534, %v5536, %v5532
    %v5538 = vmul.f32 1.0, %v5537
    %v5539 = vrcp.pop %v5517
    %v5540 = vmul.f32 %v5517, %v5539
    %v5541 = vsub.f32 1.0, %v5540
    %v5542 = vmul.f32 %v5539, %v5541
    %v5543 = vadd.f32 %v5539, %v5542
    %vm5544 = vweird.f32 %v5517
    %vm5545 = vweird.f32 %v5539
    %vm5546 = vmor %vm5544, %vm5545
    %v5547 = vsel %vm5546, %v5539, %v5543
    %v5548 = vand.u32 2147483647, %v5517
    %vm5549 = vcmp.eq.f32.partialorder %v5548, 8.507059e+37
    %v5550 = vand.u32 %v5517, 2147483648
    %v5551 = vor.u32 1.1754944e-38, %v5550
    %v5552 = vsel %vm5549, %v5551, %v5547
    %v5553 = vmul.f32 1.0, %v5552
    %v5554 = vrcp.pop %v5518
    %v5555 = vmul.f32 %v5518, %v5554
    %v5556 = vsub.f32 1.0, %v5555
    %v5557 = vmul.f32 %v5554, %v5556
    %v5558 = vadd.f32 %v5554, %v5557
    %vm5559 = vweird.f32 %v5518
    %vm5560 = vweird.f32 %v5554
    %vm5561 = vmor %vm5559, %vm5560
    %v5562 = vsel %vm5561, %v5554, %v5558
    %v5563 = vand.u32 2147483647, %v5518
    %vm5564 = vcmp.eq.f32.partialorder %v5563, 8.507059e+37
    %v5565 = vand.u32 %v5518, 2147483648
    %v5566 = vor.u32 1.1754944e-38, %v5565
    %v5567 = vsel %vm5564, %v5566, %v5562
    %v5568 = vmul.f32 1.0, %v5567
    %v5569 = vrcp.pop %v5519
    %v5570 = vmul.f32 %v5519, %v5569
    %v5571 = vsub.f32 1.0, %v5570
    %v5572 = vmul.f32 %v5569, %v5571
    %v5573 = vadd.f32 %v5569, %v5572
    %vm5574 = vweird.f32 %v5519
    %vm5575 = vweird.f32 %v5569
    %vm5576 = vmor %vm5574, %vm5575
    %v5577 = vsel %vm5576, %v5569, %v5573
    %v5578 = vand.u32 2147483647, %v5519
    %vm5579 = vcmp.eq.f32.partialorder %v5578, 8.507059e+37
    %v5580 = vand.u32 %v5519, 2147483648
    %v5581 = vor.u32 1.1754944e-38, %v5580
    %v5582 = vsel %vm5579, %v5581, %v5577
    %v5583 = vmul.f32 1.0, %v5582
    %v5584 = vrcp.pop %v5520
    %v5585 = vmul.f32 %v5520, %v5584
    %v5586 = vsub.f32 1.0, %v5585
    %v5587 = vmul.f32 %v5584, %v5586
    %v5588 = vadd.f32 %v5584, %v5587
    %vm5589 = vweird.f32 %v5520
    %vm5590 = vweird.f32 %v5584
    %vm5591 = vmor %vm5589, %vm5590
    %v5592 = vsel %vm5591, %v5584, %v5588
    %v5593 = vand.u32 2147483647, %v5520
    %vm5594 = vcmp.eq.f32.partialorder %v5593, 8.507059e+37
    %v5595 = vand.u32 %v5520, 2147483648
    %v5596 = vor.u32 1.1754944e-38, %v5595
    %v5597 = vsel %vm5594, %v5596, %v5592
    %v5598 = vmul.f32 1.0, %v5597
    %v5599 = vrcp.pop %v5521
    %v5600 = vmul.f32 %v5521, %v5599
    %v5601 = vsub.f32 1.0, %v5600
    %v5602 = vmul.f32 %v5599, %v5601
    %v5603 = vadd.f32 %v5599, %v5602
    %vm5604 = vweird.f32 %v5521
    %vm5605 = vweird.f32 %v5599
    %vm5606 = vmor %vm5604, %vm5605
    %v5607 = vsel %vm5606, %v5599, %v5603
    %v5608 = vand.u32 2147483647, %v5521
    %vm5609 = vcmp.eq.f32.partialorder %v5608, 8.507059e+37
    %v5610 = vand.u32 %v5521, 2147483648
    %v5611 = vor.u32 1.1754944e-38, %v5610
    %v5612 = vsel %vm5609, %v5611, %v5607
    %v5613 = vmul.f32 1.0, %v5612
    %v5614 = vrcp.pop %v5522
    %v5615 = vmul.f32 %v5522, %v5614
    %v5616 = vsub.f32 1.0, %v5615
    %v5617 = vmul.f32 %v5614, %v5616
    %v5618 = vadd.f32 %v5614, %v5617
    %vm5619 = vweird.f32 %v5522
    %vm5620 = vweird.f32 %v5614
    %vm5621 = vmor %vm5619, %vm5620
    %v5622 = vsel %vm5621, %v5614, %v5618
    %v5623 = vand.u32 2147483647, %v5522
    %vm5624 = vcmp.eq.f32.partialorder %v5623, 8.507059e+37
    %v5625 = vand.u32 %v5522, 2147483648
    %v5626 = vor.u32 1.1754944e-38, %v5625
    %v5627 = vsel %vm5624, %v5626, %v5622
    %v5628 = vmul.f32 1.0, %v5627
    %v5629 = vrcp.pop %v5523
    %v5630 = vmul.f32 %v5523, %v5629
    %v5631 = vsub.f32 1.0, %v5630
    %v5632 = vmul.f32 %v5629, %v5631
    %v5633 = vadd.f32 %v5629, %v5632
    %vm5634 = vweird.f32 %v5523
    %vm5635 = vweird.f32 %v5629
    %vm5636 = vmor %vm5634, %vm5635
    %v5637 = vsel %vm5636, %v5629, %v5633
    %v5638 = vand.u32 2147483647, %v5523
    %vm5639 = vcmp.eq.f32.partialorder %v5638, 8.507059e+37
    %v5640 = vand.u32 %v5523, 2147483648
    %v5641 = vor.u32 1.1754944e-38, %v5640
    %v5642 = vsel %vm5639, %v5641, %v5637
    %v5643 = vmul.f32 1.0, %v5642
    %v5644 = vmul.f32 %v5378, %v4193
    %v5645 = vmul.f32 %v5393, %v4194
    %v5646 = vmul.f32 %v5408, %v4195
    %v5647 = vmul.f32 %v5423, %v4196
    %v5648 = vmul.f32 %v5438, %v4197
    %v5649 = vmul.f32 %v5453, %v4198
    %v5650 = vmul.f32 %v5468, %v4199
    %v5651 = vmul.f32 %v5483, %v4200
    %v5652 = vmul.f32 %v5226, %v5484
    %v5653 = vmul.f32 %v5241, %v5485
    %v5654 = vmul.f32 %v5256, %v5486
    %v5655 = vmul.f32 %v5271, %v5487
    %v5656 = vmul.f32 %v5286, %v5488
    %v5657 = vmul.f32 %v5301, %v5489
    %v5658 = vmul.f32 %v5316, %v5490
    %v5659 = vmul.f32 %v5331, %v5491
    %v5660 = vadd.f32 %v5644, %v5652
    %v5661 = vadd.f32 %v5645, %v5653
    %v5662 = vadd.f32 %v5646, %v5654
    %v5663 = vadd.f32 %v5647, %v5655
    %v5664 = vadd.f32 %v5648, %v5656
    %v5665 = vadd.f32 %v5649, %v5657
    %v5666 = vadd.f32 %v5650, %v5658
    %v5667 = vadd.f32 %v5651, %v5659
    %v5668 = vtanh.pop %v5660
    %v5669 = vtanh.pop %v5661
    %v5670 = vtanh.pop %v5662
    %v5671 = vtanh.pop %v5663
    %v5672 = vtanh.pop %v5664
    %v5673 = vtanh.pop %v5665
    %v5674 = vtanh.pop %v5666
    %v5675 = vtanh.pop %v5667
    %v5676 = vmul.f32 %v5538, %v5668
    %v5677 = vmul.f32 %v5553, %v5669
    %v5678 = vmul.f32 %v5568, %v5670
    %v5679 = vmul.f32 %v5583, %v5671
    %v5680 = vmul.f32 %v5598, %v5672
    %v5681 = vmul.f32 %v5613, %v5673
    %v5682 = vmul.f32 %v5628, %v5674
    %v5683 = vmul.f32 %v5643, %v5675
    %5684 = vmatpush.msra.mxu0 %v2143
    %5685 = vmatpush.msra.mxu0 %v2139
    %5686 = vmatpush.msra.mxu0 %v2135
    %5687 = vmatpush.msra.mxu0 %v2131
    %5688 = vmatpush.msra.mxu0 %v2127
    %5689 = vmatpush.msra.mxu0 %v2123
    %5690 = vmatpush.msra.mxu0 %v2119
    %5691 = vmatpush.msra.mxu0 %v2115
    %5692 = vmatpush.msra.mxu0 %v2111
    %5693 = vmatpush.msra.mxu0 %v2107
    %5694 = vmatpush.msra.mxu0 %v2103
    %5695 = vmatpush.msra.mxu0 %v2099
    %5696 = vmatpush.msra.mxu0 %v2095
    %5697 = vmatpush.msra.mxu0 %v2091
    %5698 = vmatpush.msra.mxu0 %v2087
    %5699 = vmatpush.msra.mxu0 %v2083
    %5700 = vmatmul.f32.gmra.mxu0 %v4909
    %v5701 = vpop.f32.mrf.mxu0
    %v5702 = vadd.f32 0.0, %v5701
    %5703 = vmatmul.f32.gmra.mxu0 %v4910
    %v5704 = vpop.f32.mrf.mxu0
    %v5705 = vadd.f32 0.0, %v5704
    %5706 = vmatmul.f32.gmra.mxu0 %v4911
    %v5707 = vpop.f32.mrf.mxu0
    %v5708 = vadd.f32 0.0, %v5707
    %5709 = vmatmul.f32.gmra.mxu0 %v4912
    %v5710 = vpop.f32.mrf.mxu0
    %v5711 = vadd.f32 0.0, %v5710
    %5712 = vmatmul.f32.gmra.mxu0 %v4913
    %v5713 = vpop.f32.mrf.mxu0
    %v5714 = vadd.f32 0.0, %v5713
    %5715 = vmatmul.f32.gmra.mxu0 %v4914
    %v5716 = vpop.f32.mrf.mxu0
    %v5717 = vadd.f32 0.0, %v5716
    %5718 = vmatmul.f32.gmra.mxu0 %v4915
    %v5719 = vpop.f32.mrf.mxu0
    %v5720 = vadd.f32 0.0, %v5719
    %5721 = vmatmul.f32.gmra.mxu0 %v4916
    %v5722 = vpop.f32.mrf.mxu0
    %v5723 = vadd.f32 0.0, %v5722
    %5724 = vdwg.mxu0
    %5725 = vmatpush.msra.mxu0 %v2144
    %5726 = vmatpush.msra.mxu0 %v2140
    %5727 = vmatpush.msra.mxu0 %v2136
    %5728 = vmatpush.msra.mxu0 %v2132
    %5729 = vmatpush.msra.mxu0 %v2128
    %5730 = vmatpush.msra.mxu0 %v2124
    %5731 = vmatpush.msra.mxu0 %v2120
    %5732 = vmatpush.msra.mxu0 %v2116
    %5733 = vmatpush.msra.mxu0 %v2112
    %5734 = vmatpush.msra.mxu0 %v2108
    %5735 = vmatpush.msra.mxu0 %v2104
    %5736 = vmatpush.msra.mxu0 %v2100
    %5737 = vmatpush.msra.mxu0 %v2096
    %5738 = vmatpush.msra.mxu0 %v2092
    %5739 = vmatpush.msra.mxu0 %v2088
    %5740 = vmatpush.msra.mxu0 %v2084
    %5741 = vmatmul.f32.gmra.mxu0 %v4909
    %v5742 = vpop.f32.mrf.mxu0
    %v5743 = vadd.f32 0.0, %v5742
    %5744 = vmatmul.f32.gmra.mxu0 %v4910
    %v5745 = vpop.f32.mrf.mxu0
    %v5746 = vadd.f32 0.0, %v5745
    %5747 = vmatmul.f32.gmra.mxu0 %v4911
    %v5748 = vpop.f32.mrf.mxu0
    %v5749 = vadd.f32 0.0, %v5748
    %5750 = vmatmul.f32.gmra.mxu0 %v4912
    %v5751 = vpop.f32.mrf.mxu0
    %v5752 = vadd.f32 0.0, %v5751
    %5753 = vmatmul.f32.gmra.mxu0 %v4913
    %v5754 = vpop.f32.mrf.mxu0
    %v5755 = vadd.f32 0.0, %v5754
    %5756 = vmatmul.f32.gmra.mxu0 %v4914
    %v5757 = vpop.f32.mrf.mxu0
    %v5758 = vadd.f32 0.0, %v5757
    %5759 = vmatmul.f32.gmra.mxu0 %v4915
    %v5760 = vpop.f32.mrf.mxu0
    %v5761 = vadd.f32 0.0, %v5760
    %5762 = vmatmul.f32.gmra.mxu0 %v4916
    %v5763 = vpop.f32.mrf.mxu0
    %v5764 = vadd.f32 0.0, %v5763
    %5765 = vdwg.mxu0
    %5766 = vmatpush.msra.mxu0 %v2145
    %5767 = vmatpush.msra.mxu0 %v2141
    %5768 = vmatpush.msra.mxu0 %v2137
    %5769 = vmatpush.msra.mxu0 %v2133
    %5770 = vmatpush.msra.mxu0 %v2129
    %5771 = vmatpush.msra.mxu0 %v2125
    %5772 = vmatpush.msra.mxu0 %v2121
    %5773 = vmatpush.msra.mxu0 %v2117
    %5774 = vmatpush.msra.mxu0 %v2113
    %5775 = vmatpush.msra.mxu0 %v2109
    %5776 = vmatpush.msra.mxu0 %v2105
    %5777 = vmatpush.msra.mxu0 %v2101
    %5778 = vmatpush.msra.mxu0 %v2097
    %5779 = vmatpush.msra.mxu0 %v2093
    %5780 = vmatpush.msra.mxu0 %v2089
    %5781 = vmatpush.msra.mxu0 %v2085
    %5782 = vmatmul.f32.gmra.mxu0 %v4909
    %v5783 = vpop.f32.mrf.mxu0
    %v5784 = vadd.f32 0.0, %v5783
    %5785 = vmatmul.f32.gmra.mxu0 %v4910
    %v5786 = vpop.f32.mrf.mxu0
    %v5787 = vadd.f32 0.0, %v5786
    %5788 = vmatmul.f32.gmra.mxu0 %v4911
    %v5789 = vpop.f32.mrf.mxu0
    %v5790 = vadd.f32 0.0, %v5789
    %5791 = vmatmul.f32.gmra.mxu0 %v4912
    %v5792 = vpop.f32.mrf.mxu0
    %v5793 = vadd.f32 0.0, %v5792
    %5794 = vmatmul.f32.gmra.mxu0 %v4913
    %v5795 = vpop.f32.mrf.mxu0
    %v5796 = vadd.f32 0.0, %v5795
    %5797 = vmatmul.f32.gmra.mxu0 %v4914
    %v5798 = vpop.f32.mrf.mxu0
    %v5799 = vadd.f32 0.0, %v5798
    %5800 = vmatmul.f32.gmra.mxu0 %v4915
    %v5801 = vpop.f32.mrf.mxu0
    %v5802 = vadd.f32 0.0, %v5801
    %5803 = vmatmul.f32.gmra.mxu0 %v4916
    %v5804 = vpop.f32.mrf.mxu0
    %v5805 = vadd.f32 0.0, %v5804
    %5806 = vdwg.mxu0
    %5807 = vmatpush.msra.mxu0 %v2146
    %5808 = vmatpush.msra.mxu0 %v2142
    %5809 = vmatpush.msra.mxu0 %v2138
    %5810 = vmatpush.msra.mxu0 %v2134
    %5811 = vmatpush.msra.mxu0 %v2130
    %5812 = vmatpush.msra.mxu0 %v2126
    %5813 = vmatpush.msra.mxu0 %v2122
    %5814 = vmatpush.msra.mxu0 %v2118
    %5815 = vmatpush.msra.mxu0 %v2114
    %5816 = vmatpush.msra.mxu0 %v2110
    %5817 = vmatpush.msra.mxu0 %v2106
    %5818 = vmatpush.msra.mxu0 %v2102
    %5819 = vmatpush.msra.mxu0 %v2098
    %5820 = vmatpush.msra.mxu0 %v2094
    %5821 = vmatpush.msra.mxu0 %v2090
    %5822 = vmatpush.msra.mxu0 %v2086
    %5823 = vmatmul.f32.gmra.mxu0 %v4909
    %v5824 = vpop.f32.mrf.mxu0
    %v5825 = vadd.f32 0.0, %v5824
    %5826 = vmatmul.f32.gmra.mxu0 %v4910
    %v5827 = vpop.f32.mrf.mxu0
    %v5828 = vadd.f32 0.0, %v5827
    %5829 = vmatmul.f32.gmra.mxu0 %v4911
    %v5830 = vpop.f32.mrf.mxu0
    %v5831 = vadd.f32 0.0, %v5830
    %5832 = vmatmul.f32.gmra.mxu0 %v4912
    %v5833 = vpop.f32.mrf.mxu0
    %v5834 = vadd.f32 0.0, %v5833
    %5835 = vmatmul.f32.gmra.mxu0 %v4913
    %v5836 = vpop.f32.mrf.mxu0
    %v5837 = vadd.f32 0.0, %v5836
    %5838 = vmatmul.f32.gmra.mxu0 %v4914
    %v5839 = vpop.f32.mrf.mxu0
    %v5840 = vadd.f32 0.0, %v5839
    %5841 = vmatmul.f32.gmra.mxu0 %v4915
    %v5842 = vpop.f32.mrf.mxu0
    %v5843 = vadd.f32 0.0, %v5842
    %5844 = vmatmul.f32.gmra.mxu0 %v4916
    %v5845 = vpop.f32.mrf.mxu0
    %v5846 = vadd.f32 0.0, %v5845
    %5847 = vdwg.mxu0
    %v5848 = vadd.f32 %v4952, %v5702
    %v5849 = vadd.f32 %v4953, %v5743
    %v5850 = vadd.f32 %v4954, %v5784
    %v5851 = vadd.f32 %v4955, %v5825
    %v5852 = vadd.f32 %v4956, %v5705
    %v5853 = vadd.f32 %v4957, %v5746
    %v5854 = vadd.f32 %v4958, %v5787
    %v5855 = vadd.f32 %v4959, %v5828
    %v5856 = vadd.f32 %v4960, %v5708
    %v5857 = vadd.f32 %v4961, %v5749
    %v5858 = vadd.f32 %v4962, %v5790
    %v5859 = vadd.f32 %v4963, %v5831
    %v5860 = vadd.f32 %v4964, %v5711
    %v5861 = vadd.f32 %v4965, %v5752
    %v5862 = vadd.f32 %v4966, %v5793
    %v5863 = vadd.f32 %v4967, %v5834
    %v5864 = vadd.f32 %v4968, %v5714
    %v5865 = vadd.f32 %v4969, %v5755
    %v5866 = vadd.f32 %v4970, %v5796
    %v5867 = vadd.f32 %v4971, %v5837
    %v5868 = vadd.f32 %v4972, %v5717
    %v5869 = vadd.f32 %v4973, %v5758
    %v5870 = vadd.f32 %v4974, %v5799
    %v5871 = vadd.f32 %v4975, %v5840
    %v5872 = vadd.f32 %v4976, %v5720
    %v5873 = vadd.f32 %v4977, %v5761
    %v5874 = vadd.f32 %v4978, %v5802
    %v5875 = vadd.f32 %v4979, %v5843
    %v5876 = vadd.f32 %v4980, %v5723
    %v5877 = vadd.f32 %v4981, %v5764
    %v5878 = vadd.f32 %v4982, %v5805
    %v5879 = vadd.f32 %v4983, %v5846
    %v5880 = vxor.u32 %v5848, 2147483648
    %v5881 = vxor.u32 %v5852, 2147483648
    %v5882 = vxor.u32 %v5856, 2147483648
    %v5883 = vxor.u32 %v5860, 2147483648
    %v5884 = vxor.u32 %v5864, 2147483648
    %v5885 = vxor.u32 %v5868, 2147483648
    %v5886 = vxor.u32 %v5872, 2147483648
    %v5887 = vxor.u32 %v5876, 2147483648
    %v5888 = vmul.f32 %v5880, 1.442695
    %v5889 = vpow.pop %v5888
    %v5890 = vmul.f32 %v5881, 1.442695
    %v5891 = vpow.pop %v5890
    %v5892 = vmul.f32 %v5882, 1.442695
    %v5893 = vpow.pop %v5892
    %v5894 = vmul.f32 %v5883, 1.442695
    %v5895 = vpow.pop %v5894
    %v5896 = vmul.f32 %v5884, 1.442695
    %v5897 = vpow.pop %v5896
    %v5898 = vmul.f32 %v5885, 1.442695
    %v5899 = vpow.pop %v5898
    %v5900 = vmul.f32 %v5886, 1.442695
    %v5901 = vpow.pop %v5900
    %v5902 = vmul.f32 %v5887, 1.442695
    %v5903 = vpow.pop %v5902
    %v5904 = vadd.f32 %v5889, 1.0
    %v5905 = vadd.f32 %v5891, 1.0
    %v5906 = vadd.f32 %v5893, 1.0
    %v5907 = vadd.f32 %v5895, 1.0
    %v5908 = vadd.f32 %v5897, 1.0
    %v5909 = vadd.f32 %v5899, 1.0
    %v5910 = vadd.f32 %v5901, 1.0
    %v5911 = vadd.f32 %v5903, 1.0
    %v5912 = vrcp.pop %v5904
    %v5913 = vmul.f32 %v5904, %v5912
    %v5914 = vsub.f32 1.0, %v5913
    %v5915 = vmul.f32 %v5912, %v5914
    %v5916 = vadd.f32 %v5912, %v5915
    %vm5917 = vweird.f32 %v5904
    %vm5918 = vweird.f32 %v5912
    %vm5919 = vmor %vm5917, %vm5918
    %v5920 = vsel %vm5919, %v5912, %v5916
    %v5921 = vand.u32 2147483647, %v5904
    %vm5922 = vcmp.eq.f32.partialorder %v5921, 8.507059e+37
    %v5923 = vand.u32 %v5904, 2147483648
    %v5924 = vor.u32 1.1754944e-38, %v5923
    %v5925 = vsel %vm5922, %v5924, %v5920
    %v5926 = vmul.f32 1.0, %v5925
    %v5927 = vrcp.pop %v5905
    %v5928 = vmul.f32 %v5905, %v5927
    %v5929 = vsub.f32 1.0, %v5928
    %v5930 = vmul.f32 %v5927, %v5929
    %v5931 = vadd.f32 %v5927, %v5930
    %vm5932 = vweird.f32 %v5905
    %vm5933 = vweird.f32 %v5927
    %vm5934 = vmor %vm5932, %vm5933
    %v5935 = vsel %vm5934, %v5927, %v5931
    %v5936 = vand.u32 2147483647, %v5905
    %vm5937 = vcmp.eq.f32.partialorder %v5936, 8.507059e+37
    %v5938 = vand.u32 %v5905, 2147483648
    %v5939 = vor.u32 1.1754944e-38, %v5938
    %v5940 = vsel %vm5937, %v5939, %v5935
    %v5941 = vmul.f32 1.0, %v5940
    %v5942 = vrcp.pop %v5906
    %v5943 = vmul.f32 %v5906, %v5942
    %v5944 = vsub.f32 1.0, %v5943
    %v5945 = vmul.f32 %v5942, %v5944
    %v5946 = vadd.f32 %v5942, %v5945
    %vm5947 = vweird.f32 %v5906
    %vm5948 = vweird.f32 %v5942
    %vm5949 = vmor %vm5947, %vm5948
    %v5950 = vsel %vm5949, %v5942, %v5946
    %v5951 = vand.u32 2147483647, %v5906
    %vm5952 = vcmp.eq.f32.partialorder %v5951, 8.507059e+37
    %v5953 = vand.u32 %v5906, 2147483648
    %v5954 = vor.u32 1.1754944e-38, %v5953
    %v5955 = vsel %vm5952, %v5954, %v5950
    %v5956 = vmul.f32 1.0, %v5955
    %v5957 = vrcp.pop %v5907
    %v5958 = vmul.f32 %v5907, %v5957
    %v5959 = vsub.f32 1.0, %v5958
    %v5960 = vmul.f32 %v5957, %v5959
    %v5961 = vadd.f32 %v5957, %v5960
    %vm5962 = vweird.f32 %v5907
    %vm5963 = vweird.f32 %v5957
    %vm5964 = vmor %vm5962, %vm5963
    %v5965 = vsel %vm5964, %v5957, %v5961
    %v5966 = vand.u32 2147483647, %v5907
    %vm5967 = vcmp.eq.f32.partialorder %v5966, 8.507059e+37
    %v5968 = vand.u32 %v5907, 2147483648
    %v5969 = vor.u32 1.1754944e-38, %v5968
    %v5970 = vsel %vm5967, %v5969, %v5965
    %v5971 = vmul.f32 1.0, %v5970
    %v5972 = vrcp.pop %v5908
    %v5973 = vmul.f32 %v5908, %v5972
    %v5974 = vsub.f32 1.0, %v5973
    %v5975 = vmul.f32 %v5972, %v5974
    %v5976 = vadd.f32 %v5972, %v5975
    %vm5977 = vweird.f32 %v5908
    %vm5978 = vweird.f32 %v5972
    %vm5979 = vmor %vm5977, %vm5978
    %v5980 = vsel %vm5979, %v5972, %v5976
    %v5981 = vand.u32 2147483647, %v5908
    %vm5982 = vcmp.eq.f32.partialorder %v5981, 8.507059e+37
    %v5983 = vand.u32 %v5908, 2147483648
    %v5984 = vor.u32 1.1754944e-38, %v5983
    %v5985 = vsel %vm5982, %v5984, %v5980
    %v5986 = vmul.f32 1.0, %v5985
    %v5987 = vrcp.pop %v5909
    %v5988 = vmul.f32 %v5909, %v5987
    %v5989 = vsub.f32 1.0, %v5988
    %v5990 = vmul.f32 %v5987, %v5989
    %v5991 = vadd.f32 %v5987, %v5990
    %vm5992 = vweird.f32 %v5909
    %vm5993 = vweird.f32 %v5987
    %vm5994 = vmor %vm5992, %vm5993
    %v5995 = vsel %vm5994, %v5987, %v5991
    %v5996 = vand.u32 2147483647, %v5909
    %vm5997 = vcmp.eq.f32.partialorder %v5996, 8.507059e+37
    %v5998 = vand.u32 %v5909, 2147483648
    %v5999 = vor.u32 1.1754944e-38, %v5998
    %v6000 = vsel %vm5997, %v5999, %v5995
    %v6001 = vmul.f32 1.0, %v6000
    %v6002 = vrcp.pop %v5910
    %v6003 = vmul.f32 %v5910, %v6002
    %v6004 = vsub.f32 1.0, %v6003
    %v6005 = vmul.f32 %v6002, %v6004
    %v6006 = vadd.f32 %v6002, %v6005
    %vm6007 = vweird.f32 %v5910
    %vm6008 = vweird.f32 %v6002
    %vm6009 = vmor %vm6007, %vm6008
    %v6010 = vsel %vm6009, %v6002, %v6006
    %v6011 = vand.u32 2147483647, %v5910
    %vm6012 = vcmp.eq.f32.partialorder %v6011, 8.507059e+37
    %v6013 = vand.u32 %v5910, 2147483648
    %v6014 = vor.u32 1.1754944e-38, %v6013
    %v6015 = vsel %vm6012, %v6014, %v6010
    %v6016 = vmul.f32 1.0, %v6015
    %v6017 = vrcp.pop %v5911
    %v6018 = vmul.f32 %v5911, %v6017
    %v6019 = vsub.f32 1.0, %v6018
    %v6020 = vmul.f32 %v6017, %v6019
    %v6021 = vadd.f32 %v6017, %v6020
    %vm6022 = vweird.f32 %v5911
    %vm6023 = vweird.f32 %v6017
    %vm6024 = vmor %vm6022, %vm6023
    %v6025 = vsel %vm6024, %v6017, %v6021
    %v6026 = vand.u32 2147483647, %v5911
    %vm6027 = vcmp.eq.f32.partialorder %v6026, 8.507059e+37
    %v6028 = vand.u32 %v5911, 2147483648
    %v6029 = vor.u32 1.1754944e-38, %v6028
    %v6030 = vsel %vm6027, %v6029, %v6025
    %v6031 = vmul.f32 1.0, %v6030
    %v6032 = vxor.u32 %v5849, 2147483648
    %v6033 = vxor.u32 %v5853, 2147483648
    %v6034 = vxor.u32 %v5857, 2147483648
    %v6035 = vxor.u32 %v5861, 2147483648
    %v6036 = vxor.u32 %v5865, 2147483648
    %v6037 = vxor.u32 %v5869, 2147483648
    %v6038 = vxor.u32 %v5873, 2147483648
    %v6039 = vxor.u32 %v5877, 2147483648
    %v6040 = vmul.f32 %v6032, 1.442695
    %v6041 = vpow.pop %v6040
    %v6042 = vmul.f32 %v6033, 1.442695
    %v6043 = vpow.pop %v6042
    %v6044 = vmul.f32 %v6034, 1.442695
    %v6045 = vpow.pop %v6044
    %v6046 = vmul.f32 %v6035, 1.442695
    %v6047 = vpow.pop %v6046
    %v6048 = vmul.f32 %v6036, 1.442695
    %v6049 = vpow.pop %v6048
    %v6050 = vmul.f32 %v6037, 1.442695
    %v6051 = vpow.pop %v6050
    %v6052 = vmul.f32 %v6038, 1.442695
    %v6053 = vpow.pop %v6052
    %v6054 = vmul.f32 %v6039, 1.442695
    %v6055 = vpow.pop %v6054
    %v6056 = vadd.f32 %v6041, 1.0
    %v6057 = vadd.f32 %v6043, 1.0
    %v6058 = vadd.f32 %v6045, 1.0
    %v6059 = vadd.f32 %v6047, 1.0
    %v6060 = vadd.f32 %v6049, 1.0
    %v6061 = vadd.f32 %v6051, 1.0
    %v6062 = vadd.f32 %v6053, 1.0
    %v6063 = vadd.f32 %v6055, 1.0
    %v6064 = vrcp.pop %v6056
    %v6065 = vmul.f32 %v6056, %v6064
    %v6066 = vsub.f32 1.0, %v6065
    %v6067 = vmul.f32 %v6064, %v6066
    %v6068 = vadd.f32 %v6064, %v6067
    %vm6069 = vweird.f32 %v6056
    %vm6070 = vweird.f32 %v6064
    %vm6071 = vmor %vm6069, %vm6070
    %v6072 = vsel %vm6071, %v6064, %v6068
    %v6073 = vand.u32 2147483647, %v6056
    %vm6074 = vcmp.eq.f32.partialorder %v6073, 8.507059e+37
    %v6075 = vand.u32 %v6056, 2147483648
    %v6076 = vor.u32 1.1754944e-38, %v6075
    %v6077 = vsel %vm6074, %v6076, %v6072
    %v6078 = vmul.f32 1.0, %v6077
    %v6079 = vrcp.pop %v6057
    %v6080 = vmul.f32 %v6057, %v6079
    %v6081 = vsub.f32 1.0, %v6080
    %v6082 = vmul.f32 %v6079, %v6081
    %v6083 = vadd.f32 %v6079, %v6082
    %vm6084 = vweird.f32 %v6057
    %vm6085 = vweird.f32 %v6079
    %vm6086 = vmor %vm6084, %vm6085
    %v6087 = vsel %vm6086, %v6079, %v6083
    %v6088 = vand.u32 2147483647, %v6057
    %vm6089 = vcmp.eq.f32.partialorder %v6088, 8.507059e+37
    %v6090 = vand.u32 %v6057, 2147483648
    %v6091 = vor.u32 1.1754944e-38, %v6090
    %v6092 = vsel %vm6089, %v6091, %v6087
    %v6093 = vmul.f32 1.0, %v6092
    %v6094 = vrcp.pop %v6058
    %v6095 = vmul.f32 %v6058, %v6094
    %v6096 = vsub.f32 1.0, %v6095
    %v6097 = vmul.f32 %v6094, %v6096
    %v6098 = vadd.f32 %v6094, %v6097
    %vm6099 = vweird.f32 %v6058
    %vm6100 = vweird.f32 %v6094
    %vm6101 = vmor %vm6099, %vm6100
    %v6102 = vsel %vm6101, %v6094, %v6098
    %v6103 = vand.u32 2147483647, %v6058
    %vm6104 = vcmp.eq.f32.partialorder %v6103, 8.507059e+37
    %v6105 = vand.u32 %v6058, 2147483648
    %v6106 = vor.u32 1.1754944e-38, %v6105
    %v6107 = vsel %vm6104, %v6106, %v6102
    %v6108 = vmul.f32 1.0, %v6107
    %v6109 = vrcp.pop %v6059
    %v6110 = vmul.f32 %v6059, %v6109
    %v6111 = vsub.f32 1.0, %v6110
    %v6112 = vmul.f32 %v6109, %v6111
    %v6113 = vadd.f32 %v6109, %v6112
    %vm6114 = vweird.f32 %v6059
    %vm6115 = vweird.f32 %v6109
    %vm6116 = vmor %vm6114, %vm6115
    %v6117 = vsel %vm6116, %v6109, %v6113
    %v6118 = vand.u32 2147483647, %v6059
    %vm6119 = vcmp.eq.f32.partialorder %v6118, 8.507059e+37
    %v6120 = vand.u32 %v6059, 2147483648
    %v6121 = vor.u32 1.1754944e-38, %v6120
    %v6122 = vsel %vm6119, %v6121, %v6117
    %v6123 = vmul.f32 1.0, %v6122
    %v6124 = vrcp.pop %v6060
    %v6125 = vmul.f32 %v6060, %v6124
    %v6126 = vsub.f32 1.0, %v6125
    %v6127 = vmul.f32 %v6124, %v6126
    %v6128 = vadd.f32 %v6124, %v6127
    %vm6129 = vweird.f32 %v6060
    %vm6130 = vweird.f32 %v6124
    %vm6131 = vmor %vm6129, %vm6130
    %v6132 = vsel %vm6131, %v6124, %v6128
    %v6133 = vand.u32 2147483647, %v6060
    %vm6134 = vcmp.eq.f32.partialorder %v6133, 8.507059e+37
    %v6135 = vand.u32 %v6060, 2147483648
    %v6136 = vor.u32 1.1754944e-38, %v6135
    %v6137 = vsel %vm6134, %v6136, %v6132
    %v6138 = vmul.f32 1.0, %v6137
    %v6139 = vrcp.pop %v6061
    %v6140 = vmul.f32 %v6061, %v6139
    %v6141 = vsub.f32 1.0, %v6140
    %v6142 = vmul.f32 %v6139, %v6141
    %v6143 = vadd.f32 %v6139, %v6142
    %vm6144 = vweird.f32 %v6061
    %vm6145 = vweird.f32 %v6139
    %vm6146 = vmor %vm6144, %vm6145
    %v6147 = vsel %vm6146, %v6139, %v6143
    %v6148 = vand.u32 2147483647, %v6061
    %vm6149 = vcmp.eq.f32.partialorder %v6148, 8.507059e+37
    %v6150 = vand.u32 %v6061, 2147483648
    %v6151 = vor.u32 1.1754944e-38, %v6150
    %v6152 = vsel %vm6149, %v6151, %v6147
    %v6153 = vmul.f32 1.0, %v6152
    %v6154 = vrcp.pop %v6062
    %v6155 = vmul.f32 %v6062, %v6154
    %v6156 = vsub.f32 1.0, %v6155
    %v6157 = vmul.f32 %v6154, %v6156
    %v6158 = vadd.f32 %v6154, %v6157
    %vm6159 = vweird.f32 %v6062
    %vm6160 = vweird.f32 %v6154
    %vm6161 = vmor %vm6159, %vm6160
    %v6162 = vsel %vm6161, %v6154, %v6158
    %v6163 = vand.u32 2147483647, %v6062
    %vm6164 = vcmp.eq.f32.partialorder %v6163, 8.507059e+37
    %v6165 = vand.u32 %v6062, 2147483648
    %v6166 = vor.u32 1.1754944e-38, %v6165
    %v6167 = vsel %vm6164, %v6166, %v6162
    %v6168 = vmul.f32 1.0, %v6167
    %v6169 = vrcp.pop %v6063
    %v6170 = vmul.f32 %v6063, %v6169
    %v6171 = vsub.f32 1.0, %v6170
    %v6172 = vmul.f32 %v6169, %v6171
    %v6173 = vadd.f32 %v6169, %v6172
    %vm6174 = vweird.f32 %v6063
    %vm6175 = vweird.f32 %v6169
    %vm6176 = vmor %vm6174, %vm6175
    %v6177 = vsel %vm6176, %v6169, %v6173
    %v6178 = vand.u32 2147483647, %v6063
    %vm6179 = vcmp.eq.f32.partialorder %v6178, 8.507059e+37
    %v6180 = vand.u32 %v6063, 2147483648
    %v6181 = vor.u32 1.1754944e-38, %v6180
    %v6182 = vsel %vm6179, %v6181, %v6177
    %v6183 = vmul.f32 1.0, %v6182
    %v6184 = vtanh.pop %v5850
    %v6185 = vtanh.pop %v5854
    %v6186 = vtanh.pop %v5858
    %v6187 = vtanh.pop %v5862
    %v6188 = vtanh.pop %v5866
    %v6189 = vtanh.pop %v5870
    %v6190 = vtanh.pop %v5874
    %v6191 = vtanh.pop %v5878
    %v6192 = vxor.u32 %v5851, 2147483648
    %v6193 = vxor.u32 %v5855, 2147483648
    %v6194 = vxor.u32 %v5859, 2147483648
    %v6195 = vxor.u32 %v5863, 2147483648
    %v6196 = vxor.u32 %v5867, 2147483648
    %v6197 = vxor.u32 %v5871, 2147483648
    %v6198 = vxor.u32 %v5875, 2147483648
    %v6199 = vxor.u32 %v5879, 2147483648
    %v6200 = vmul.f32 %v6192, 1.442695
    %v6201 = vpow.pop %v6200
    %v6202 = vmul.f32 %v6193, 1.442695
    %v6203 = vpow.pop %v6202
    %v6204 = vmul.f32 %v6194, 1.442695
    %v6205 = vpow.pop %v6204
    %v6206 = vmul.f32 %v6195, 1.442695
    %v6207 = vpow.pop %v6206
    %v6208 = vmul.f32 %v6196, 1.442695
    %v6209 = vpow.pop %v6208
    %v6210 = vmul.f32 %v6197, 1.442695
    %v6211 = vpow.pop %v6210
    %v6212 = vmul.f32 %v6198, 1.442695
    %v6213 = vpow.pop %v6212
    %v6214 = vmul.f32 %v6199, 1.442695
    %v6215 = vpow.pop %v6214
    %v6216 = vadd.f32 %v6201, 1.0
    %v6217 = vadd.f32 %v6203, 1.0
    %v6218 = vadd.f32 %v6205, 1.0
    %v6219 = vadd.f32 %v6207, 1.0
    %v6220 = vadd.f32 %v6209, 1.0
    %v6221 = vadd.f32 %v6211, 1.0
    %v6222 = vadd.f32 %v6213, 1.0
    %v6223 = vadd.f32 %v6215, 1.0
    %v6224 = vrcp.pop %v6216
    %v6225 = vmul.f32 %v6216, %v6224
    %v6226 = vsub.f32 1.0, %v6225
    %v6227 = vmul.f32 %v6224, %v6226
    %v6228 = vadd.f32 %v6224, %v6227
    %vm6229 = vweird.f32 %v6216
    %vm6230 = vweird.f32 %v6224
    %vm6231 = vmor %vm6229, %vm6230
    %v6232 = vsel %vm6231, %v6224, %v6228
    %v6233 = vand.u32 2147483647, %v6216
    %vm6234 = vcmp.eq.f32.partialorder %v6233, 8.507059e+37
    %v6235 = vand.u32 %v6216, 2147483648
    %v6236 = vor.u32 1.1754944e-38, %v6235
    %v6237 = vsel %vm6234, %v6236, %v6232
    %v6238 = vmul.f32 1.0, %v6237
    %v6239 = vrcp.pop %v6217
    %v6240 = vmul.f32 %v6217, %v6239
    %v6241 = vsub.f32 1.0, %v6240
    %v6242 = vmul.f32 %v6239, %v6241
    %v6243 = vadd.f32 %v6239, %v6242
    %vm6244 = vweird.f32 %v6217
    %vm6245 = vweird.f32 %v6239
    %vm6246 = vmor %vm6244, %vm6245
    %v6247 = vsel %vm6246, %v6239, %v6243
    %v6248 = vand.u32 2147483647, %v6217
    %vm6249 = vcmp.eq.f32.partialorder %v6248, 8.507059e+37
    %v6250 = vand.u32 %v6217, 2147483648
    %v6251 = vor.u32 1.1754944e-38, %v6250
    %v6252 = vsel %vm6249, %v6251, %v6247
    %v6253 = vmul.f32 1.0, %v6252
    %v6254 = vrcp.pop %v6218
    %v6255 = vmul.f32 %v6218, %v6254
    %v6256 = vsub.f32 1.0, %v6255
    %v6257 = vmul.f32 %v6254, %v6256
    %v6258 = vadd.f32 %v6254, %v6257
    %vm6259 = vweird.f32 %v6218
    %vm6260 = vweird.f32 %v6254
    %vm6261 = vmor %vm6259, %vm6260
    %v6262 = vsel %vm6261, %v6254, %v6258
    %v6263 = vand.u32 2147483647, %v6218
    %vm6264 = vcmp.eq.f32.partialorder %v6263, 8.507059e+37
    %v6265 = vand.u32 %v6218, 2147483648
    %v6266 = vor.u32 1.1754944e-38, %v6265
    %v6267 = vsel %vm6264, %v6266, %v6262
    %v6268 = vmul.f32 1.0, %v6267
    %v6269 = vrcp.pop %v6219
    %v6270 = vmul.f32 %v6219, %v6269
    %v6271 = vsub.f32 1.0, %v6270
    %v6272 = vmul.f32 %v6269, %v6271
    %v6273 = vadd.f32 %v6269, %v6272
    %vm6274 = vweird.f32 %v6219
    %vm6275 = vweird.f32 %v6269
    %vm6276 = vmor %vm6274, %vm6275
    %v6277 = vsel %vm6276, %v6269, %v6273
    %v6278 = vand.u32 2147483647, %v6219
    %vm6279 = vcmp.eq.f32.partialorder %v6278, 8.507059e+37
    %v6280 = vand.u32 %v6219, 2147483648
    %v6281 = vor.u32 1.1754944e-38, %v6280
    %v6282 = vsel %vm6279, %v6281, %v6277
    %v6283 = vmul.f32 1.0, %v6282
    %v6284 = vrcp.pop %v6220
    %v6285 = vmul.f32 %v6220, %v6284
    %v6286 = vsub.f32 1.0, %v6285
    %v6287 = vmul.f32 %v6284, %v6286
    %v6288 = vadd.f32 %v6284, %v6287
    %vm6289 = vweird.f32 %v6220
    %vm6290 = vweird.f32 %v6284
    %vm6291 = vmor %vm6289, %vm6290
    %v6292 = vsel %vm6291, %v6284, %v6288
    %v6293 = vand.u32 2147483647, %v6220
    %vm6294 = vcmp.eq.f32.partialorder %v6293, 8.507059e+37
    %v6295 = vand.u32 %v6220, 2147483648
    %v6296 = vor.u32 1.1754944e-38, %v6295
    %v6297 = vsel %vm6294, %v6296, %v6292
    %v6298 = vmul.f32 1.0, %v6297
    %v6299 = vrcp.pop %v6221
    %v6300 = vmul.f32 %v6221, %v6299
    %v6301 = vsub.f32 1.0, %v6300
    %v6302 = vmul.f32 %v6299, %v6301
    %v6303 = vadd.f32 %v6299, %v6302
    %vm6304 = vweird.f32 %v6221
    %vm6305 = vweird.f32 %v6299
    %vm6306 = vmor %vm6304, %vm6305
    %v6307 = vsel %vm6306, %v6299, %v6303
    %v6308 = vand.u32 2147483647, %v6221
    %vm6309 = vcmp.eq.f32.partialorder %v6308, 8.507059e+37
    %v6310 = vand.u32 %v6221, 2147483648
    %v6311 = vor.u32 1.1754944e-38, %v6310
    %v6312 = vsel %vm6309, %v6311, %v6307
    %v6313 = vmul.f32 1.0, %v6312
    %v6314 = vrcp.pop %v6222
    %v6315 = vmul.f32 %v6222, %v6314
    %v6316 = vsub.f32 1.0, %v6315
    %v6317 = vmul.f32 %v6314, %v6316
    %v6318 = vadd.f32 %v6314, %v6317
    %vm6319 = vweird.f32 %v6222
    %vm6320 = vweird.f32 %v6314
    %vm6321 = vmor %vm6319, %vm6320
    %v6322 = vsel %vm6321, %v6314, %v6318
    %v6323 = vand.u32 2147483647, %v6222
    %vm6324 = vcmp.eq.f32.partialorder %v6323, 8.507059e+37
    %v6325 = vand.u32 %v6222, 2147483648
    %v6326 = vor.u32 1.1754944e-38, %v6325
    %v6327 = vsel %vm6324, %v6326, %v6322
    %v6328 = vmul.f32 1.0, %v6327
    %v6329 = vrcp.pop %v6223
    %v6330 = vmul.f32 %v6223, %v6329
    %v6331 = vsub.f32 1.0, %v6330
    %v6332 = vmul.f32 %v6329, %v6331
    %v6333 = vadd.f32 %v6329, %v6332
    %vm6334 = vweird.f32 %v6223
    %vm6335 = vweird.f32 %v6329
    %vm6336 = vmor %vm6334, %vm6335
    %v6337 = vsel %vm6336, %v6329, %v6333
    %v6338 = vand.u32 2147483647, %v6223
    %vm6339 = vcmp.eq.f32.partialorder %v6338, 8.507059e+37
    %v6340 = vand.u32 %v6223, 2147483648
    %v6341 = vor.u32 1.1754944e-38, %v6340
    %v6342 = vsel %vm6339, %v6341, %v6337
    %v6343 = vmul.f32 1.0, %v6342
    %v6344 = vmul.f32 %v6078, %v4893
    %v6345 = vmul.f32 %v6093, %v4894
    %v6346 = vmul.f32 %v6108, %v4895
    %v6347 = vmul.f32 %v6123, %v4896
    %v6348 = vmul.f32 %v6138, %v4897
    %v6349 = vmul.f32 %v6153, %v4898
    %v6350 = vmul.f32 %v6168, %v4899
    %v6351 = vmul.f32 %v6183, %v4900
    %v6352 = vmul.f32 %v5926, %v6184
    %v6353 = vmul.f32 %v5941, %v6185
    %v6354 = vmul.f32 %v5956, %v6186
    %v6355 = vmul.f32 %v5971, %v6187
    %v6356 = vmul.f32 %v5986, %v6188
    %v6357 = vmul.f32 %v6001, %v6189
    %v6358 = vmul.f32 %v6016, %v6190
    %v6359 = vmul.f32 %v6031, %v6191
    %v6360 = vadd.f32 %v6344, %v6352
    %v6361 = vadd.f32 %v6345, %v6353
    %v6362 = vadd.f32 %v6346, %v6354
    %v6363 = vadd.f32 %v6347, %v6355
    %v6364 = vadd.f32 %v6348, %v6356
    %v6365 = vadd.f32 %v6349, %v6357
    %v6366 = vadd.f32 %v6350, %v6358
    %v6367 = vadd.f32 %v6351, %v6359
    %v6368 = vtanh.pop %v6360
    %v6369 = vtanh.pop %v6361
    %v6370 = vtanh.pop %v6362
    %v6371 = vtanh.pop %v6363
    %v6372 = vtanh.pop %v6364
    %v6373 = vtanh.pop %v6365
    %v6374 = vtanh.pop %v6366
    %v6375 = vtanh.pop %v6367
    %v6376 = vmul.f32 %v6238, %v6368
    %v6377 = vmul.f32 %v6253, %v6369
    %v6378 = vmul.f32 %v6268, %v6370
    %v6379 = vmul.f32 %v6283, %v6371
    %v6380 = vmul.f32 %v6298, %v6372
    %v6381 = vmul.f32 %v6313, %v6373
    %v6382 = vmul.f32 %v6328, %v6374
    %v6383 = vmul.f32 %v6343, %v6375
    %s6384 = smul.u32 48, 4
    %s6385 = smul.addr %s6384, 8
    %s6386 = scalar_lea.vmem [#allocation2], %s6385
    %v6387 = vld [vmem:[%s6386] sm:$0xff]
    %v6388 = vld [vmem:[%s6386 + $0x8] sm:$0xff]
    %v6389 = vld [vmem:[%s6386 + $0x10] sm:$0xff]
    %v6390 = vld [vmem:[%s6386 + $0x18] sm:$0xff]
    %v6391 = vld [vmem:[%s6386 + $0x20] sm:$0xff]
    %v6392 = vld [vmem:[%s6386 + $0x28] sm:$0xff]
    %v6393 = vld [vmem:[%s6386 + $0x30] sm:$0xff]
    %v6394 = vld [vmem:[%s6386 + $0x38] sm:$0xff]
    %v6395 = vld [vmem:[%s6386 + $0x40] sm:$0xff]
    %v6396 = vld [vmem:[%s6386 + $0x48] sm:$0xff]
    %v6397 = vld [vmem:[%s6386 + $0x50] sm:$0xff]
    %v6398 = vld [vmem:[%s6386 + $0x58] sm:$0xff]
    %v6399 = vld [vmem:[%s6386 + $0x60] sm:$0xff]
    %v6400 = vld [vmem:[%s6386 + $0x68] sm:$0xff]
    %v6401 = vld [vmem:[%s6386 + $0x70] sm:$0xff]
    %v6402 = vld [vmem:[%s6386 + $0x78] sm:$0xff]
    %v6403 = vld [vmem:[%s6386 + $0x80] sm:$0xff]
    %v6404 = vld [vmem:[%s6386 + $0x88] sm:$0xff]
    %v6405 = vld [vmem:[%s6386 + $0x90] sm:$0xff]
    %v6406 = vld [vmem:[%s6386 + $0x98] sm:$0xff]
    %v6407 = vld [vmem:[%s6386 + $0xa0] sm:$0xff]
    %v6408 = vld [vmem:[%s6386 + $0xa8] sm:$0xff]
    %v6409 = vld [vmem:[%s6386 + $0xb0] sm:$0xff]
    %v6410 = vld [vmem:[%s6386 + $0xb8] sm:$0xff]
    %v6411 = vld [vmem:[%s6386 + $0xc0] sm:$0xff]
    %v6412 = vld [vmem:[%s6386 + $0xc8] sm:$0xff]
    %v6413 = vld [vmem:[%s6386 + $0xd0] sm:$0xff]
    %v6414 = vld [vmem:[%s6386 + $0xd8] sm:$0xff]
    %v6415 = vld [vmem:[%s6386 + $0xe0] sm:$0xff]
    %v6416 = vld [vmem:[%s6386 + $0xe8] sm:$0xff]
    %v6417 = vld [vmem:[%s6386 + $0xf0] sm:$0xff]
    %v6418 = vld [vmem:[%s6386 + $0xf8] sm:$0xff]
    %v6419 = vld [vmem:[%s6386 + $0x100] sm:$0xff]
    %v6420 = vld [vmem:[%s6386 + $0x108] sm:$0xff]
    %v6421 = vld [vmem:[%s6386 + $0x110] sm:$0xff]
    %v6422 = vld [vmem:[%s6386 + $0x118] sm:$0xff]
    %v6423 = vld [vmem:[%s6386 + $0x120] sm:$0xff]
    %v6424 = vld [vmem:[%s6386 + $0x128] sm:$0xff]
    %v6425 = vld [vmem:[%s6386 + $0x130] sm:$0xff]
    %v6426 = vld [vmem:[%s6386 + $0x138] sm:$0xff]
    %v6427 = vld [vmem:[%s6386 + $0x140] sm:$0xff]
    %v6428 = vld [vmem:[%s6386 + $0x148] sm:$0xff]
    %v6429 = vld [vmem:[%s6386 + $0x150] sm:$0xff]
    %v6430 = vld [vmem:[%s6386 + $0x158] sm:$0xff]
    %v6431 = vld [vmem:[%s6386 + $0x160] sm:$0xff]
    %v6432 = vld [vmem:[%s6386 + $0x168] sm:$0xff]
    %v6433 = vld [vmem:[%s6386 + $0x170] sm:$0xff]
    %v6434 = vld [vmem:[%s6386 + $0x178] sm:$0xff]
    %v6435 = vld [vmem:[%s6386 + $0x180] sm:$0xff]
    %v6436 = vld [vmem:[%s6386 + $0x188] sm:$0xff]
    %v6437 = vld [vmem:[%s6386 + $0x190] sm:$0xff]
    %v6438 = vld [vmem:[%s6386 + $0x198] sm:$0xff]
    %v6439 = vld [vmem:[%s6386 + $0x1a0] sm:$0xff]
    %v6440 = vld [vmem:[%s6386 + $0x1a8] sm:$0xff]
    %v6441 = vld [vmem:[%s6386 + $0x1b0] sm:$0xff]
    %v6442 = vld [vmem:[%s6386 + $0x1b8] sm:$0xff]
    %v6443 = vld [vmem:[%s6386 + $0x1c0] sm:$0xff]
    %v6444 = vld [vmem:[%s6386 + $0x1c8] sm:$0xff]
    %v6445 = vld [vmem:[%s6386 + $0x1d0] sm:$0xff]
    %v6446 = vld [vmem:[%s6386 + $0x1d8] sm:$0xff]
    %v6447 = vld [vmem:[%s6386 + $0x1e0] sm:$0xff]
    %v6448 = vld [vmem:[%s6386 + $0x1e8] sm:$0xff]
    %v6449 = vld [vmem:[%s6386 + $0x1f0] sm:$0xff]
    %v6450 = vld [vmem:[%s6386 + $0x1f8] sm:$0xff]
    %6451 = vmatpush.msra.mxu0 %v2143
    %6452 = vmatpush.msra.mxu0 %v2139
    %6453 = vmatpush.msra.mxu0 %v2135
    %6454 = vmatpush.msra.mxu0 %v2131
    %6455 = vmatpush.msra.mxu0 %v2127
    %6456 = vmatpush.msra.mxu0 %v2123
    %6457 = vmatpush.msra.mxu0 %v2119
    %6458 = vmatpush.msra.mxu0 %v2115
    %6459 = vmatpush.msra.mxu0 %v2111
    %6460 = vmatpush.msra.mxu0 %v2107
    %6461 = vmatpush.msra.mxu0 %v2103
    %6462 = vmatpush.msra.mxu0 %v2099
    %6463 = vmatpush.msra.mxu0 %v2095
    %6464 = vmatpush.msra.mxu0 %v2091
    %6465 = vmatpush.msra.mxu0 %v2087
    %6466 = vmatpush.msra.mxu0 %v2083
    %6467 = vmatmul.f32.gmra.mxu0 %v5676
    %v6468 = vpop.f32.mrf.mxu0
    %v6469 = vadd.f32 0.0, %v6468
    %6470 = vmatmul.f32.gmra.mxu0 %v5677
    %v6471 = vpop.f32.mrf.mxu0
    %v6472 = vadd.f32 0.0, %v6471
    %6473 = vmatmul.f32.gmra.mxu0 %v5678
    %v6474 = vpop.f32.mrf.mxu0
    %v6475 = vadd.f32 0.0, %v6474
    %6476 = vmatmul.f32.gmra.mxu0 %v5679
    %v6477 = vpop.f32.mrf.mxu0
    %v6478 = vadd.f32 0.0, %v6477
    %6479 = vmatmul.f32.gmra.mxu0 %v5680
    %v6480 = vpop.f32.mrf.mxu0
    %v6481 = vadd.f32 0.0, %v6480
    %6482 = vmatmul.f32.gmra.mxu0 %v5681
    %v6483 = vpop.f32.mrf.mxu0
    %v6484 = vadd.f32 0.0, %v6483
    %6485 = vmatmul.f32.gmra.mxu0 %v5682
    %v6486 = vpop.f32.mrf.mxu0
    %v6487 = vadd.f32 0.0, %v6486
    %6488 = vmatmul.f32.gmra.mxu0 %v5683
    %v6489 = vpop.f32.mrf.mxu0
    %v6490 = vadd.f32 0.0, %v6489
    %6491 = vdwg.mxu0
    %6492 = vmatpush.msra.mxu0 %v2144
    %6493 = vmatpush.msra.mxu0 %v2140
    %6494 = vmatpush.msra.mxu0 %v2136
    %6495 = vmatpush.msra.mxu0 %v2132
    %6496 = vmatpush.msra.mxu0 %v2128
    %6497 = vmatpush.msra.mxu0 %v2124
    %6498 = vmatpush.msra.mxu0 %v2120
    %6499 = vmatpush.msra.mxu0 %v2116
    %6500 = vmatpush.msra.mxu0 %v2112
    %6501 = vmatpush.msra.mxu0 %v2108
    %6502 = vmatpush.msra.mxu0 %v2104
    %6503 = vmatpush.msra.mxu0 %v2100
    %6504 = vmatpush.msra.mxu0 %v2096
    %6505 = vmatpush.msra.mxu0 %v2092
    %6506 = vmatpush.msra.mxu0 %v2088
    %6507 = vmatpush.msra.mxu0 %v2084
    %6508 = vmatmul.f32.gmra.mxu0 %v5676
    %v6509 = vpop.f32.mrf.mxu0
    %v6510 = vadd.f32 0.0, %v6509
    %6511 = vmatmul.f32.gmra.mxu0 %v5677
    %v6512 = vpop.f32.mrf.mxu0
    %v6513 = vadd.f32 0.0, %v6512
    %6514 = vmatmul.f32.gmra.mxu0 %v5678
    %v6515 = vpop.f32.mrf.mxu0
    %v6516 = vadd.f32 0.0, %v6515
    %6517 = vmatmul.f32.gmra.mxu0 %v5679
    %v6518 = vpop.f32.mrf.mxu0
    %v6519 = vadd.f32 0.0, %v6518
    %6520 = vmatmul.f32.gmra.mxu0 %v5680
    %v6521 = vpop.f32.mrf.mxu0
    %v6522 = vadd.f32 0.0, %v6521
    %6523 = vmatmul.f32.gmra.mxu0 %v5681
    %v6524 = vpop.f32.mrf.mxu0
    %v6525 = vadd.f32 0.0, %v6524
    %6526 = vmatmul.f32.gmra.mxu0 %v5682
    %v6527 = vpop.f32.mrf.mxu0
    %v6528 = vadd.f32 0.0, %v6527
    %6529 = vmatmul.f32.gmra.mxu0 %v5683
    %v6530 = vpop.f32.mrf.mxu0
    %v6531 = vadd.f32 0.0, %v6530
    %6532 = vdwg.mxu0
    %6533 = vmatpush.msra.mxu0 %v2145
    %6534 = vmatpush.msra.mxu0 %v2141
    %6535 = vmatpush.msra.mxu0 %v2137
    %6536 = vmatpush.msra.mxu0 %v2133
    %6537 = vmatpush.msra.mxu0 %v2129
    %6538 = vmatpush.msra.mxu0 %v2125
    %6539 = vmatpush.msra.mxu0 %v2121
    %6540 = vmatpush.msra.mxu0 %v2117
    %6541 = vmatpush.msra.mxu0 %v2113
    %6542 = vmatpush.msra.mxu0 %v2109
    %6543 = vmatpush.msra.mxu0 %v2105
    %6544 = vmatpush.msra.mxu0 %v2101
    %6545 = vmatpush.msra.mxu0 %v2097
    %6546 = vmatpush.msra.mxu0 %v2093
    %6547 = vmatpush.msra.mxu0 %v2089
    %6548 = vmatpush.msra.mxu0 %v2085
    %6549 = vmatmul.f32.gmra.mxu0 %v5676
    %v6550 = vpop.f32.mrf.mxu0
    %v6551 = vadd.f32 0.0, %v6550
    %6552 = vmatmul.f32.gmra.mxu0 %v5677
    %v6553 = vpop.f32.mrf.mxu0
    %v6554 = vadd.f32 0.0, %v6553
    %6555 = vmatmul.f32.gmra.mxu0 %v5678
    %v6556 = vpop.f32.mrf.mxu0
    %v6557 = vadd.f32 0.0, %v6556
    %6558 = vmatmul.f32.gmra.mxu0 %v5679
    %v6559 = vpop.f32.mrf.mxu0
    %v6560 = vadd.f32 0.0, %v6559
    %6561 = vmatmul.f32.gmra.mxu0 %v5680
    %v6562 = vpop.f32.mrf.mxu0
    %v6563 = vadd.f32 0.0, %v6562
    %6564 = vmatmul.f32.gmra.mxu0 %v5681
    %v6565 = vpop.f32.mrf.mxu0
    %v6566 = vadd.f32 0.0, %v6565
    %6567 = vmatmul.f32.gmra.mxu0 %v5682
    %v6568 = vpop.f32.mrf.mxu0
    %v6569 = vadd.f32 0.0, %v6568
    %6570 = vmatmul.f32.gmra.mxu0 %v5683
    %v6571 = vpop.f32.mrf.mxu0
    %v6572 = vadd.f32 0.0, %v6571
    %6573 = vdwg.mxu0
    %6574 = vmatpush.msra.mxu0 %v2146
    %6575 = vmatpush.msra.mxu0 %v2142
    %6576 = vmatpush.msra.mxu0 %v2138
    %6577 = vmatpush.msra.mxu0 %v2134
    %6578 = vmatpush.msra.mxu0 %v2130
    %6579 = vmatpush.msra.mxu0 %v2126
    %6580 = vmatpush.msra.mxu0 %v2122
    %6581 = vmatpush.msra.mxu0 %v2118
    %6582 = vmatpush.msra.mxu0 %v2114
    %6583 = vmatpush.msra.mxu0 %v2110
    %6584 = vmatpush.msra.mxu0 %v2106
    %6585 = vmatpush.msra.mxu0 %v2102
    %6586 = vmatpush.msra.mxu0 %v2098
    %6587 = vmatpush.msra.mxu0 %v2094
    %6588 = vmatpush.msra.mxu0 %v2090
    %6589 = vmatpush.msra.mxu0 %v2086
    %6590 = vmatmul.f32.gmra.mxu0 %v5676
    %v6591 = vpop.f32.mrf.mxu0
    %v6592 = vadd.f32 0.0, %v6591
    %6593 = vmatmul.f32.gmra.mxu0 %v5677
    %v6594 = vpop.f32.mrf.mxu0
    %v6595 = vadd.f32 0.0, %v6594
    %6596 = vmatmul.f32.gmra.mxu0 %v5678
    %v6597 = vpop.f32.mrf.mxu0
    %v6598 = vadd.f32 0.0, %v6597
    %6599 = vmatmul.f32.gmra.mxu0 %v5679
    %v6600 = vpop.f32.mrf.mxu0
    %v6601 = vadd.f32 0.0, %v6600
    %6602 = vmatmul.f32.gmra.mxu0 %v5680
    %v6603 = vpop.f32.mrf.mxu0
    %v6604 = vadd.f32 0.0, %v6603
    %6605 = vmatmul.f32.gmra.mxu0 %v5681
    %v6606 = vpop.f32.mrf.mxu0
    %v6607 = vadd.f32 0.0, %v6606
    %6608 = vmatmul.f32.gmra.mxu0 %v5682
    %v6609 = vpop.f32.mrf.mxu0
    %v6610 = vadd.f32 0.0, %v6609
    %6611 = vmatmul.f32.gmra.mxu0 %v5683
    %v6612 = vpop.f32.mrf.mxu0
    %v6613 = vadd.f32 0.0, %v6612
    %6614 = vdwg.mxu0
    %v6615 = vadd.f32 %v6387, %v6469
    %v6616 = vadd.f32 %v6388, %v6510
    %v6617 = vadd.f32 %v6389, %v6551
    %v6618 = vadd.f32 %v6390, %v6592
    %v6619 = vadd.f32 %v6391, %v6472
    %v6620 = vadd.f32 %v6392, %v6513
    %v6621 = vadd.f32 %v6393, %v6554
    %v6622 = vadd.f32 %v6394, %v6595
    %v6623 = vadd.f32 %v6395, %v6475
    %v6624 = vadd.f32 %v6396, %v6516
    %v6625 = vadd.f32 %v6397, %v6557
    %v6626 = vadd.f32 %v6398, %v6598
    %v6627 = vadd.f32 %v6399, %v6478
    %v6628 = vadd.f32 %v6400, %v6519
    %v6629 = vadd.f32 %v6401, %v6560
    %v6630 = vadd.f32 %v6402, %v6601
    %v6631 = vadd.f32 %v6403, %v6481
    %v6632 = vadd.f32 %v6404, %v6522
    %v6633 = vadd.f32 %v6405, %v6563
    %v6634 = vadd.f32 %v6406, %v6604
    %v6635 = vadd.f32 %v6407, %v6484
    %v6636 = vadd.f32 %v6408, %v6525
    %v6637 = vadd.f32 %v6409, %v6566
    %v6638 = vadd.f32 %v6410, %v6607
    %v6639 = vadd.f32 %v6411, %v6487
    %v6640 = vadd.f32 %v6412, %v6528
    %v6641 = vadd.f32 %v6413, %v6569
    %v6642 = vadd.f32 %v6414, %v6610
    %v6643 = vadd.f32 %v6415, %v6490
    %v6644 = vadd.f32 %v6416, %v6531
    %v6645 = vadd.f32 %v6417, %v6572
    %v6646 = vadd.f32 %v6418, %v6613
    %v6647 = vxor.u32 %v6615, 2147483648
    %v6648 = vxor.u32 %v6619, 2147483648
    %v6649 = vxor.u32 %v6623, 2147483648
    %v6650 = vxor.u32 %v6627, 2147483648
    %v6651 = vxor.u32 %v6631, 2147483648
    %v6652 = vxor.u32 %v6635, 2147483648
    %v6653 = vxor.u32 %v6639, 2147483648
    %v6654 = vxor.u32 %v6643, 2147483648
    %v6655 = vmul.f32 %v6647, 1.442695
    %v6656 = vpow.pop %v6655
    %v6657 = vmul.f32 %v6648, 1.442695
    %v6658 = vpow.pop %v6657
    %v6659 = vmul.f32 %v6649, 1.442695
    %v6660 = vpow.pop %v6659
    %v6661 = vmul.f32 %v6650, 1.442695
    %v6662 = vpow.pop %v6661
    %v6663 = vmul.f32 %v6651, 1.442695
    %v6664 = vpow.pop %v6663
    %v6665 = vmul.f32 %v6652, 1.442695
    %v6666 = vpow.pop %v6665
    %v6667 = vmul.f32 %v6653, 1.442695
    %v6668 = vpow.pop %v6667
    %v6669 = vmul.f32 %v6654, 1.442695
    %v6670 = vpow.pop %v6669
    %v6671 = vadd.f32 %v6656, 1.0
    %v6672 = vadd.f32 %v6658, 1.0
    %v6673 = vadd.f32 %v6660, 1.0
    %v6674 = vadd.f32 %v6662, 1.0
    %v6675 = vadd.f32 %v6664, 1.0
    %v6676 = vadd.f32 %v6666, 1.0
    %v6677 = vadd.f32 %v6668, 1.0
    %v6678 = vadd.f32 %v6670, 1.0
    %v6679 = vrcp.pop %v6671
    %v6680 = vmul.f32 %v6671, %v6679
    %v6681 = vsub.f32 1.0, %v6680
    %v6682 = vmul.f32 %v6679, %v6681
    %v6683 = vadd.f32 %v6679, %v6682
    %vm6684 = vweird.f32 %v6671
    %vm6685 = vweird.f32 %v6679
    %vm6686 = vmor %vm6684, %vm6685
    %v6687 = vsel %vm6686, %v6679, %v6683
    %v6688 = vand.u32 2147483647, %v6671
    %vm6689 = vcmp.eq.f32.partialorder %v6688, 8.507059e+37
    %v6690 = vand.u32 %v6671, 2147483648
    %v6691 = vor.u32 1.1754944e-38, %v6690
    %v6692 = vsel %vm6689, %v6691, %v6687
    %v6693 = vmul.f32 1.0, %v6692
    %v6694 = vrcp.pop %v6672
    %v6695 = vmul.f32 %v6672, %v6694
    %v6696 = vsub.f32 1.0, %v6695
    %v6697 = vmul.f32 %v6694, %v6696
    %v6698 = vadd.f32 %v6694, %v6697
    %vm6699 = vweird.f32 %v6672
    %vm6700 = vweird.f32 %v6694
    %vm6701 = vmor %vm6699, %vm6700
    %v6702 = vsel %vm6701, %v6694, %v6698
    %v6703 = vand.u32 2147483647, %v6672
    %vm6704 = vcmp.eq.f32.partialorder %v6703, 8.507059e+37
    %v6705 = vand.u32 %v6672, 2147483648
    %v6706 = vor.u32 1.1754944e-38, %v6705
    %v6707 = vsel %vm6704, %v6706, %v6702
    %v6708 = vmul.f32 1.0, %v6707
    %v6709 = vrcp.pop %v6673
    %v6710 = vmul.f32 %v6673, %v6709
    %v6711 = vsub.f32 1.0, %v6710
    %v6712 = vmul.f32 %v6709, %v6711
    %v6713 = vadd.f32 %v6709, %v6712
    %vm6714 = vweird.f32 %v6673
    %vm6715 = vweird.f32 %v6709
    %vm6716 = vmor %vm6714, %vm6715
    %v6717 = vsel %vm6716, %v6709, %v6713
    %v6718 = vand.u32 2147483647, %v6673
    %vm6719 = vcmp.eq.f32.partialorder %v6718, 8.507059e+37
    %v6720 = vand.u32 %v6673, 2147483648
    %v6721 = vor.u32 1.1754944e-38, %v6720
    %v6722 = vsel %vm6719, %v6721, %v6717
    %v6723 = vmul.f32 1.0, %v6722
    %v6724 = vrcp.pop %v6674
    %v6725 = vmul.f32 %v6674, %v6724
    %v6726 = vsub.f32 1.0, %v6725
    %v6727 = vmul.f32 %v6724, %v6726
    %v6728 = vadd.f32 %v6724, %v6727
    %vm6729 = vweird.f32 %v6674
    %vm6730 = vweird.f32 %v6724
    %vm6731 = vmor %vm6729, %vm6730
    %v6732 = vsel %vm6731, %v6724, %v6728
    %v6733 = vand.u32 2147483647, %v6674
    %vm6734 = vcmp.eq.f32.partialorder %v6733, 8.507059e+37
    %v6735 = vand.u32 %v6674, 2147483648
    %v6736 = vor.u32 1.1754944e-38, %v6735
    %v6737 = vsel %vm6734, %v6736, %v6732
    %v6738 = vmul.f32 1.0, %v6737
    %v6739 = vrcp.pop %v6675
    %v6740 = vmul.f32 %v6675, %v6739
    %v6741 = vsub.f32 1.0, %v6740
    %v6742 = vmul.f32 %v6739, %v6741
    %v6743 = vadd.f32 %v6739, %v6742
    %vm6744 = vweird.f32 %v6675
    %vm6745 = vweird.f32 %v6739
    %vm6746 = vmor %vm6744, %vm6745
    %v6747 = vsel %vm6746, %v6739, %v6743
    %v6748 = vand.u32 2147483647, %v6675
    %vm6749 = vcmp.eq.f32.partialorder %v6748, 8.507059e+37
    %v6750 = vand.u32 %v6675, 2147483648
    %v6751 = vor.u32 1.1754944e-38, %v6750
    %v6752 = vsel %vm6749, %v6751, %v6747
    %v6753 = vmul.f32 1.0, %v6752
    %v6754 = vrcp.pop %v6676
    %v6755 = vmul.f32 %v6676, %v6754
    %v6756 = vsub.f32 1.0, %v6755
    %v6757 = vmul.f32 %v6754, %v6756
    %v6758 = vadd.f32 %v6754, %v6757
    %vm6759 = vweird.f32 %v6676
    %vm6760 = vweird.f32 %v6754
    %vm6761 = vmor %vm6759, %vm6760
    %v6762 = vsel %vm6761, %v6754, %v6758
    %v6763 = vand.u32 2147483647, %v6676
    %vm6764 = vcmp.eq.f32.partialorder %v6763, 8.507059e+37
    %v6765 = vand.u32 %v6676, 2147483648
    %v6766 = vor.u32 1.1754944e-38, %v6765
    %v6767 = vsel %vm6764, %v6766, %v6762
    %v6768 = vmul.f32 1.0, %v6767
    %v6769 = vrcp.pop %v6677
    %v6770 = vmul.f32 %v6677, %v6769
    %v6771 = vsub.f32 1.0, %v6770
    %v6772 = vmul.f32 %v6769, %v6771
    %v6773 = vadd.f32 %v6769, %v6772
    %vm6774 = vweird.f32 %v6677
    %vm6775 = vweird.f32 %v6769
    %vm6776 = vmor %vm6774, %vm6775
    %v6777 = vsel %vm6776, %v6769, %v6773
    %v6778 = vand.u32 2147483647, %v6677
    %vm6779 = vcmp.eq.f32.partialorder %v6778, 8.507059e+37
    %v6780 = vand.u32 %v6677, 2147483648
    %v6781 = vor.u32 1.1754944e-38, %v6780
    %v6782 = vsel %vm6779, %v6781, %v6777
    %v6783 = vmul.f32 1.0, %v6782
    %v6784 = vrcp.pop %v6678
    %v6785 = vmul.f32 %v6678, %v6784
    %v6786 = vsub.f32 1.0, %v6785
    %v6787 = vmul.f32 %v6784, %v6786
    %v6788 = vadd.f32 %v6784, %v6787
    %vm6789 = vweird.f32 %v6678
    %vm6790 = vweird.f32 %v6784
    %vm6791 = vmor %vm6789, %vm6790
    %v6792 = vsel %vm6791, %v6784, %v6788
    %v6793 = vand.u32 2147483647, %v6678
    %vm6794 = vcmp.eq.f32.partialorder %v6793, 8.507059e+37
    %v6795 = vand.u32 %v6678, 2147483648
    %v6796 = vor.u32 1.1754944e-38, %v6795
    %v6797 = vsel %vm6794, %v6796, %v6792
    %v6798 = vmul.f32 1.0, %v6797
    %v6799 = vxor.u32 %v6616, 2147483648
    %v6800 = vxor.u32 %v6620, 2147483648
    %v6801 = vxor.u32 %v6624, 2147483648
    %v6802 = vxor.u32 %v6628, 2147483648
    %v6803 = vxor.u32 %v6632, 2147483648
    %v6804 = vxor.u32 %v6636, 2147483648
    %v6805 = vxor.u32 %v6640, 2147483648
    %v6806 = vxor.u32 %v6644, 2147483648
    %v6807 = vmul.f32 %v6799, 1.442695
    %v6808 = vpow.pop %v6807
    %v6809 = vmul.f32 %v6800, 1.442695
    %v6810 = vpow.pop %v6809
    %v6811 = vmul.f32 %v6801, 1.442695
    %v6812 = vpow.pop %v6811
    %v6813 = vmul.f32 %v6802, 1.442695
    %v6814 = vpow.pop %v6813
    %v6815 = vmul.f32 %v6803, 1.442695
    %v6816 = vpow.pop %v6815
    %v6817 = vmul.f32 %v6804, 1.442695
    %v6818 = vpow.pop %v6817
    %v6819 = vmul.f32 %v6805, 1.442695
    %v6820 = vpow.pop %v6819
    %v6821 = vmul.f32 %v6806, 1.442695
    %v6822 = vpow.pop %v6821
    %v6823 = vadd.f32 %v6808, 1.0
    %v6824 = vadd.f32 %v6810, 1.0
    %v6825 = vadd.f32 %v6812, 1.0
    %v6826 = vadd.f32 %v6814, 1.0
    %v6827 = vadd.f32 %v6816, 1.0
    %v6828 = vadd.f32 %v6818, 1.0
    %v6829 = vadd.f32 %v6820, 1.0
    %v6830 = vadd.f32 %v6822, 1.0
    %v6831 = vrcp.pop %v6823
    %v6832 = vmul.f32 %v6823, %v6831
    %v6833 = vsub.f32 1.0, %v6832
    %v6834 = vmul.f32 %v6831, %v6833
    %v6835 = vadd.f32 %v6831, %v6834
    %vm6836 = vweird.f32 %v6823
    %vm6837 = vweird.f32 %v6831
    %vm6838 = vmor %vm6836, %vm6837
    %v6839 = vsel %vm6838, %v6831, %v6835
    %v6840 = vand.u32 2147483647, %v6823
    %vm6841 = vcmp.eq.f32.partialorder %v6840, 8.507059e+37
    %v6842 = vand.u32 %v6823, 2147483648
    %v6843 = vor.u32 1.1754944e-38, %v6842
    %v6844 = vsel %vm6841, %v6843, %v6839
    %v6845 = vmul.f32 1.0, %v6844
    %v6846 = vrcp.pop %v6824
    %v6847 = vmul.f32 %v6824, %v6846
    %v6848 = vsub.f32 1.0, %v6847
    %v6849 = vmul.f32 %v6846, %v6848
    %v6850 = vadd.f32 %v6846, %v6849
    %vm6851 = vweird.f32 %v6824
    %vm6852 = vweird.f32 %v6846
    %vm6853 = vmor %vm6851, %vm6852
    %v6854 = vsel %vm6853, %v6846, %v6850
    %v6855 = vand.u32 2147483647, %v6824
    %vm6856 = vcmp.eq.f32.partialorder %v6855, 8.507059e+37
    %v6857 = vand.u32 %v6824, 2147483648
    %v6858 = vor.u32 1.1754944e-38, %v6857
    %v6859 = vsel %vm6856, %v6858, %v6854
    %v6860 = vmul.f32 1.0, %v6859
    %v6861 = vrcp.pop %v6825
    %v6862 = vmul.f32 %v6825, %v6861
    %v6863 = vsub.f32 1.0, %v6862
    %v6864 = vmul.f32 %v6861, %v6863
    %v6865 = vadd.f32 %v6861, %v6864
    %vm6866 = vweird.f32 %v6825
    %vm6867 = vweird.f32 %v6861
    %vm6868 = vmor %vm6866, %vm6867
    %v6869 = vsel %vm6868, %v6861, %v6865
    %v6870 = vand.u32 2147483647, %v6825
    %vm6871 = vcmp.eq.f32.partialorder %v6870, 8.507059e+37
    %v6872 = vand.u32 %v6825, 2147483648
    %v6873 = vor.u32 1.1754944e-38, %v6872
    %v6874 = vsel %vm6871, %v6873, %v6869
    %v6875 = vmul.f32 1.0, %v6874
    %v6876 = vrcp.pop %v6826
    %v6877 = vmul.f32 %v6826, %v6876
    %v6878 = vsub.f32 1.0, %v6877
    %v6879 = vmul.f32 %v6876, %v6878
    %v6880 = vadd.f32 %v6876, %v6879
    %vm6881 = vweird.f32 %v6826
    %vm6882 = vweird.f32 %v6876
    %vm6883 = vmor %vm6881, %vm6882
    %v6884 = vsel %vm6883, %v6876, %v6880
    %v6885 = vand.u32 2147483647, %v6826
    %vm6886 = vcmp.eq.f32.partialorder %v6885, 8.507059e+37
    %v6887 = vand.u32 %v6826, 2147483648
    %v6888 = vor.u32 1.1754944e-38, %v6887
    %v6889 = vsel %vm6886, %v6888, %v6884
    %v6890 = vmul.f32 1.0, %v6889
    %v6891 = vrcp.pop %v6827
    %v6892 = vmul.f32 %v6827, %v6891
    %v6893 = vsub.f32 1.0, %v6892
    %v6894 = vmul.f32 %v6891, %v6893
    %v6895 = vadd.f32 %v6891, %v6894
    %vm6896 = vweird.f32 %v6827
    %vm6897 = vweird.f32 %v6891
    %vm6898 = vmor %vm6896, %vm6897
    %v6899 = vsel %vm6898, %v6891, %v6895
    %v6900 = vand.u32 2147483647, %v6827
    %vm6901 = vcmp.eq.f32.partialorder %v6900, 8.507059e+37
    %v6902 = vand.u32 %v6827, 2147483648
    %v6903 = vor.u32 1.1754944e-38, %v6902
    %v6904 = vsel %vm6901, %v6903, %v6899
    %v6905 = vmul.f32 1.0, %v6904
    %v6906 = vrcp.pop %v6828
    %v6907 = vmul.f32 %v6828, %v6906
    %v6908 = vsub.f32 1.0, %v6907
    %v6909 = vmul.f32 %v6906, %v6908
    %v6910 = vadd.f32 %v6906, %v6909
    %vm6911 = vweird.f32 %v6828
    %vm6912 = vweird.f32 %v6906
    %vm6913 = vmor %vm6911, %vm6912
    %v6914 = vsel %vm6913, %v6906, %v6910
    %v6915 = vand.u32 2147483647, %v6828
    %vm6916 = vcmp.eq.f32.partialorder %v6915, 8.507059e+37
    %v6917 = vand.u32 %v6828, 2147483648
    %v6918 = vor.u32 1.1754944e-38, %v6917
    %v6919 = vsel %vm6916, %v6918, %v6914
    %v6920 = vmul.f32 1.0, %v6919
    %v6921 = vrcp.pop %v6829
    %v6922 = vmul.f32 %v6829, %v6921
    %v6923 = vsub.f32 1.0, %v6922
    %v6924 = vmul.f32 %v6921, %v6923
    %v6925 = vadd.f32 %v6921, %v6924
    %vm6926 = vweird.f32 %v6829
    %vm6927 = vweird.f32 %v6921
    %vm6928 = vmor %vm6926, %vm6927
    %v6929 = vsel %vm6928, %v6921, %v6925
    %v6930 = vand.u32 2147483647, %v6829
    %vm6931 = vcmp.eq.f32.partialorder %v6930, 8.507059e+37
    %v6932 = vand.u32 %v6829, 2147483648
    %v6933 = vor.u32 1.1754944e-38, %v6932
    %v6934 = vsel %vm6931, %v6933, %v6929
    %v6935 = vmul.f32 1.0, %v6934
    %v6936 = vrcp.pop %v6830
    %v6937 = vmul.f32 %v6830, %v6936
    %v6938 = vsub.f32 1.0, %v6937
    %v6939 = vmul.f32 %v6936, %v6938
    %v6940 = vadd.f32 %v6936, %v6939
    %vm6941 = vweird.f32 %v6830
    %vm6942 = vweird.f32 %v6936
    %vm6943 = vmor %vm6941, %vm6942
    %v6944 = vsel %vm6943, %v6936, %v6940
    %v6945 = vand.u32 2147483647, %v6830
    %vm6946 = vcmp.eq.f32.partialorder %v6945, 8.507059e+37
    %v6947 = vand.u32 %v6830, 2147483648
    %v6948 = vor.u32 1.1754944e-38, %v6947
    %v6949 = vsel %vm6946, %v6948, %v6944
    %v6950 = vmul.f32 1.0, %v6949
    %v6951 = vtanh.pop %v6617
    %v6952 = vtanh.pop %v6621
    %v6953 = vtanh.pop %v6625
    %v6954 = vtanh.pop %v6629
    %v6955 = vtanh.pop %v6633
    %v6956 = vtanh.pop %v6637
    %v6957 = vtanh.pop %v6641
    %v6958 = vtanh.pop %v6645
    %v6959 = vxor.u32 %v6618, 2147483648
    %v6960 = vxor.u32 %v6622, 2147483648
    %v6961 = vxor.u32 %v6626, 2147483648
    %v6962 = vxor.u32 %v6630, 2147483648
    %v6963 = vxor.u32 %v6634, 2147483648
    %v6964 = vxor.u32 %v6638, 2147483648
    %v6965 = vxor.u32 %v6642, 2147483648
    %v6966 = vxor.u32 %v6646, 2147483648
    %v6967 = vmul.f32 %v6959, 1.442695
    %v6968 = vpow.pop %v6967
    %v6969 = vmul.f32 %v6960, 1.442695
    %v6970 = vpow.pop %v6969
    %v6971 = vmul.f32 %v6961, 1.442695
    %v6972 = vpow.pop %v6971
    %v6973 = vmul.f32 %v6962, 1.442695
    %v6974 = vpow.pop %v6973
    %v6975 = vmul.f32 %v6963, 1.442695
    %v6976 = vpow.pop %v6975
    %v6977 = vmul.f32 %v6964, 1.442695
    %v6978 = vpow.pop %v6977
    %v6979 = vmul.f32 %v6965, 1.442695
    %v6980 = vpow.pop %v6979
    %v6981 = vmul.f32 %v6966, 1.442695
    %v6982 = vpow.pop %v6981
    %v6983 = vadd.f32 %v6968, 1.0
    %v6984 = vadd.f32 %v6970, 1.0
    %v6985 = vadd.f32 %v6972, 1.0
    %v6986 = vadd.f32 %v6974, 1.0
    %v6987 = vadd.f32 %v6976, 1.0
    %v6988 = vadd.f32 %v6978, 1.0
    %v6989 = vadd.f32 %v6980, 1.0
    %v6990 = vadd.f32 %v6982, 1.0
    %v6991 = vrcp.pop %v6983
    %v6992 = vmul.f32 %v6983, %v6991
    %v6993 = vsub.f32 1.0, %v6992
    %v6994 = vmul.f32 %v6991, %v6993
    %v6995 = vadd.f32 %v6991, %v6994
    %vm6996 = vweird.f32 %v6983
    %vm6997 = vweird.f32 %v6991
    %vm6998 = vmor %vm6996, %vm6997
    %v6999 = vsel %vm6998, %v6991, %v6995
    %v7000 = vand.u32 2147483647, %v6983
    %vm7001 = vcmp.eq.f32.partialorder %v7000, 8.507059e+37
    %v7002 = vand.u32 %v6983, 2147483648
    %v7003 = vor.u32 1.1754944e-38, %v7002
    %v7004 = vsel %vm7001, %v7003, %v6999
    %v7005 = vmul.f32 1.0, %v7004
    %v7006 = vrcp.pop %v6984
    %v7007 = vmul.f32 %v6984, %v7006
    %v7008 = vsub.f32 1.0, %v7007
    %v7009 = vmul.f32 %v7006, %v7008
    %v7010 = vadd.f32 %v7006, %v7009
    %vm7011 = vweird.f32 %v6984
    %vm7012 = vweird.f32 %v7006
    %vm7013 = vmor %vm7011, %vm7012
    %v7014 = vsel %vm7013, %v7006, %v7010
    %v7015 = vand.u32 2147483647, %v6984
    %vm7016 = vcmp.eq.f32.partialorder %v7015, 8.507059e+37
    %v7017 = vand.u32 %v6984, 2147483648
    %v7018 = vor.u32 1.1754944e-38, %v7017
    %v7019 = vsel %vm7016, %v7018, %v7014
    %v7020 = vmul.f32 1.0, %v7019
    %v7021 = vrcp.pop %v6985
    %v7022 = vmul.f32 %v6985, %v7021
    %v7023 = vsub.f32 1.0, %v7022
    %v7024 = vmul.f32 %v7021, %v7023
    %v7025 = vadd.f32 %v7021, %v7024
    %vm7026 = vweird.f32 %v6985
    %vm7027 = vweird.f32 %v7021
    %vm7028 = vmor %vm7026, %vm7027
    %v7029 = vsel %vm7028, %v7021, %v7025
    %v7030 = vand.u32 2147483647, %v6985
    %vm7031 = vcmp.eq.f32.partialorder %v7030, 8.507059e+37
    %v7032 = vand.u32 %v6985, 2147483648
    %v7033 = vor.u32 1.1754944e-38, %v7032
    %v7034 = vsel %vm7031, %v7033, %v7029
    %v7035 = vmul.f32 1.0, %v7034
    %v7036 = vrcp.pop %v6986
    %v7037 = vmul.f32 %v6986, %v7036
    %v7038 = vsub.f32 1.0, %v7037
    %v7039 = vmul.f32 %v7036, %v7038
    %v7040 = vadd.f32 %v7036, %v7039
    %vm7041 = vweird.f32 %v6986
    %vm7042 = vweird.f32 %v7036
    %vm7043 = vmor %vm7041, %vm7042
    %v7044 = vsel %vm7043, %v7036, %v7040
    %v7045 = vand.u32 2147483647, %v6986
    %vm7046 = vcmp.eq.f32.partialorder %v7045, 8.507059e+37
    %v7047 = vand.u32 %v6986, 2147483648
    %v7048 = vor.u32 1.1754944e-38, %v7047
    %v7049 = vsel %vm7046, %v7048, %v7044
    %v7050 = vmul.f32 1.0, %v7049
    %v7051 = vrcp.pop %v6987
    %v7052 = vmul.f32 %v6987, %v7051
    %v7053 = vsub.f32 1.0, %v7052
    %v7054 = vmul.f32 %v7051, %v7053
    %v7055 = vadd.f32 %v7051, %v7054
    %vm7056 = vweird.f32 %v6987
    %vm7057 = vweird.f32 %v7051
    %vm7058 = vmor %vm7056, %vm7057
    %v7059 = vsel %vm7058, %v7051, %v7055
    %v7060 = vand.u32 2147483647, %v6987
    %vm7061 = vcmp.eq.f32.partialorder %v7060, 8.507059e+37
    %v7062 = vand.u32 %v6987, 2147483648
    %v7063 = vor.u32 1.1754944e-38, %v7062
    %v7064 = vsel %vm7061, %v7063, %v7059
    %v7065 = vmul.f32 1.0, %v7064
    %v7066 = vrcp.pop %v6988
    %v7067 = vmul.f32 %v6988, %v7066
    %v7068 = vsub.f32 1.0, %v7067
    %v7069 = vmul.f32 %v7066, %v7068
    %v7070 = vadd.f32 %v7066, %v7069
    %vm7071 = vweird.f32 %v6988
    %vm7072 = vweird.f32 %v7066
    %vm7073 = vmor %vm7071, %vm7072
    %v7074 = vsel %vm7073, %v7066, %v7070
    %v7075 = vand.u32 2147483647, %v6988
    %vm7076 = vcmp.eq.f32.partialorder %v7075, 8.507059e+37
    %v7077 = vand.u32 %v6988, 2147483648
    %v7078 = vor.u32 1.1754944e-38, %v7077
    %v7079 = vsel %vm7076, %v7078, %v7074
    %v7080 = vmul.f32 1.0, %v7079
    %v7081 = vrcp.pop %v6989
    %v7082 = vmul.f32 %v6989, %v7081
    %v7083 = vsub.f32 1.0, %v7082
    %v7084 = vmul.f32 %v7081, %v7083
    %v7085 = vadd.f32 %v7081, %v7084
    %vm7086 = vweird.f32 %v6989
    %vm7087 = vweird.f32 %v7081
    %vm7088 = vmor %vm7086, %vm7087
    %v7089 = vsel %vm7088, %v7081, %v7085
    %v7090 = vand.u32 2147483647, %v6989
    %vm7091 = vcmp.eq.f32.partialorder %v7090, 8.507059e+37
    %v7092 = vand.u32 %v6989, 2147483648
    %v7093 = vor.u32 1.1754944e-38, %v7092
    %v7094 = vsel %vm7091, %v7093, %v7089
    %v7095 = vmul.f32 1.0, %v7094
    %v7096 = vrcp.pop %v6990
    %v7097 = vmul.f32 %v6990, %v7096
    %v7098 = vsub.f32 1.0, %v7097
    %v7099 = vmul.f32 %v7096, %v7098
    %v7100 = vadd.f32 %v7096, %v7099
    %vm7101 = vweird.f32 %v6990
    %vm7102 = vweird.f32 %v7096
    %vm7103 = vmor %vm7101, %vm7102
    %v7104 = vsel %vm7103, %v7096, %v7100
    %v7105 = vand.u32 2147483647, %v6990
    %vm7106 = vcmp.eq.f32.partialorder %v7105, 8.507059e+37
    %v7107 = vand.u32 %v6990, 2147483648
    %v7108 = vor.u32 1.1754944e-38, %v7107
    %v7109 = vsel %vm7106, %v7108, %v7104
    %v7110 = vmul.f32 1.0, %v7109
    %v7111 = vmul.f32 %v6845, %v5660
    %v7112 = vmul.f32 %v6860, %v5661
    %v7113 = vmul.f32 %v6875, %v5662
    %v7114 = vmul.f32 %v6890, %v5663
    %v7115 = vmul.f32 %v6905, %v5664
    %v7116 = vmul.f32 %v6920, %v5665
    %v7117 = vmul.f32 %v6935, %v5666
    %v7118 = vmul.f32 %v6950, %v5667
    %v7119 = vmul.f32 %v6693, %v6951
    %v7120 = vmul.f32 %v6708, %v6952
    %v7121 = vmul.f32 %v6723, %v6953
    %v7122 = vmul.f32 %v6738, %v6954
    %v7123 = vmul.f32 %v6753, %v6955
    %v7124 = vmul.f32 %v6768, %v6956
    %v7125 = vmul.f32 %v6783, %v6957
    %v7126 = vmul.f32 %v6798, %v6958
    %v7127 = vadd.f32 %v7111, %v7119
    %v7128 = vadd.f32 %v7112, %v7120
    %v7129 = vadd.f32 %v7113, %v7121
    %v7130 = vadd.f32 %v7114, %v7122
    %v7131 = vadd.f32 %v7115, %v7123
    %v7132 = vadd.f32 %v7116, %v7124
    %v7133 = vadd.f32 %v7117, %v7125
    %v7134 = vadd.f32 %v7118, %v7126
    %v7135 = vtanh.pop %v7127
    %v7136 = vtanh.pop %v7128
    %v7137 = vtanh.pop %v7129
    %v7138 = vtanh.pop %v7130
    %v7139 = vtanh.pop %v7131
    %v7140 = vtanh.pop %v7132
    %v7141 = vtanh.pop %v7133
    %v7142 = vtanh.pop %v7134
    %v7143 = vmul.f32 %v7005, %v7135
    %v7144 = vmul.f32 %v7020, %v7136
    %v7145 = vmul.f32 %v7035, %v7137
    %v7146 = vmul.f32 %v7050, %v7138
    %v7147 = vmul.f32 %v7065, %v7139
    %v7148 = vmul.f32 %v7080, %v7140
    %v7149 = vmul.f32 %v7095, %v7141
    %v7150 = vmul.f32 %v7110, %v7142
    %7151 = vmatpush.msra.mxu0 %v2143
    %7152 = vmatpush.msra.mxu0 %v2139
    %7153 = vmatpush.msra.mxu0 %v2135
    %7154 = vmatpush.msra.mxu0 %v2131
    %7155 = vmatpush.msra.mxu0 %v2127
    %7156 = vmatpush.msra.mxu0 %v2123
    %7157 = vmatpush.msra.mxu0 %v2119
    %7158 = vmatpush.msra.mxu0 %v2115
    %7159 = vmatpush.msra.mxu0 %v2111
    %7160 = vmatpush.msra.mxu0 %v2107
    %7161 = vmatpush.msra.mxu0 %v2103
    %7162 = vmatpush.msra.mxu0 %v2099
    %7163 = vmatpush.msra.mxu0 %v2095
    %7164 = vmatpush.msra.mxu0 %v2091
    %7165 = vmatpush.msra.mxu0 %v2087
    %7166 = vmatpush.msra.mxu0 %v2083
    %7167 = vmatmul.f32.gmra.mxu0 %v6376
    %v7168 = vpop.f32.mrf.mxu0
    %v7169 = vadd.f32 0.0, %v7168
    %7170 = vmatmul.f32.gmra.mxu0 %v6377
    %v7171 = vpop.f32.mrf.mxu0
    %v7172 = vadd.f32 0.0, %v7171
    %7173 = vmatmul.f32.gmra.mxu0 %v6378
    %v7174 = vpop.f32.mrf.mxu0
    %v7175 = vadd.f32 0.0, %v7174
    %7176 = vmatmul.f32.gmra.mxu0 %v6379
    %v7177 = vpop.f32.mrf.mxu0
    %v7178 = vadd.f32 0.0, %v7177
    %7179 = vmatmul.f32.gmra.mxu0 %v6380
    %v7180 = vpop.f32.mrf.mxu0
    %v7181 = vadd.f32 0.0, %v7180
    %7182 = vmatmul.f32.gmra.mxu0 %v6381
    %v7183 = vpop.f32.mrf.mxu0
    %v7184 = vadd.f32 0.0, %v7183
    %7185 = vmatmul.f32.gmra.mxu0 %v6382
    %v7186 = vpop.f32.mrf.mxu0
    %v7187 = vadd.f32 0.0, %v7186
    %7188 = vmatmul.f32.gmra.mxu0 %v6383
    %v7189 = vpop.f32.mrf.mxu0
    %v7190 = vadd.f32 0.0, %v7189
    %7191 = vdwg.mxu0
    %7192 = vmatpush.msra.mxu0 %v2144
    %7193 = vmatpush.msra.mxu0 %v2140
    %7194 = vmatpush.msra.mxu0 %v2136
    %7195 = vmatpush.msra.mxu0 %v2132
    %7196 = vmatpush.msra.mxu0 %v2128
    %7197 = vmatpush.msra.mxu0 %v2124
    %7198 = vmatpush.msra.mxu0 %v2120
    %7199 = vmatpush.msra.mxu0 %v2116
    %7200 = vmatpush.msra.mxu0 %v2112
    %7201 = vmatpush.msra.mxu0 %v2108
    %7202 = vmatpush.msra.mxu0 %v2104
    %7203 = vmatpush.msra.mxu0 %v2100
    %7204 = vmatpush.msra.mxu0 %v2096
    %7205 = vmatpush.msra.mxu0 %v2092
    %7206 = vmatpush.msra.mxu0 %v2088
    %7207 = vmatpush.msra.mxu0 %v2084
    %7208 = vmatmul.f32.gmra.mxu0 %v6376
    %v7209 = vpop.f32.mrf.mxu0
    %v7210 = vadd.f32 0.0, %v7209
    %7211 = vmatmul.f32.gmra.mxu0 %v6377
    %v7212 = vpop.f32.mrf.mxu0
    %v7213 = vadd.f32 0.0, %v7212
    %7214 = vmatmul.f32.gmra.mxu0 %v6378
    %v7215 = vpop.f32.mrf.mxu0
    %v7216 = vadd.f32 0.0, %v7215
    %7217 = vmatmul.f32.gmra.mxu0 %v6379
    %v7218 = vpop.f32.mrf.mxu0
    %v7219 = vadd.f32 0.0, %v7218
    %7220 = vmatmul.f32.gmra.mxu0 %v6380
    %v7221 = vpop.f32.mrf.mxu0
    %v7222 = vadd.f32 0.0, %v7221
    %7223 = vmatmul.f32.gmra.mxu0 %v6381
    %v7224 = vpop.f32.mrf.mxu0
    %v7225 = vadd.f32 0.0, %v7224
    %7226 = vmatmul.f32.gmra.mxu0 %v6382
    %v7227 = vpop.f32.mrf.mxu0
    %v7228 = vadd.f32 0.0, %v7227
    %7229 = vmatmul.f32.gmra.mxu0 %v6383
    %v7230 = vpop.f32.mrf.mxu0
    %v7231 = vadd.f32 0.0, %v7230
    %7232 = vdwg.mxu0
    %7233 = vmatpush.msra.mxu0 %v2145
    %7234 = vmatpush.msra.mxu0 %v2141
    %7235 = vmatpush.msra.mxu0 %v2137
    %7236 = vmatpush.msra.mxu0 %v2133
    %7237 = vmatpush.msra.mxu0 %v2129
    %7238 = vmatpush.msra.mxu0 %v2125
    %7239 = vmatpush.msra.mxu0 %v2121
    %7240 = vmatpush.msra.mxu0 %v2117
    %7241 = vmatpush.msra.mxu0 %v2113
    %7242 = vmatpush.msra.mxu0 %v2109
    %7243 = vmatpush.msra.mxu0 %v2105
    %7244 = vmatpush.msra.mxu0 %v2101
    %7245 = vmatpush.msra.mxu0 %v2097
    %7246 = vmatpush.msra.mxu0 %v2093
    %7247 = vmatpush.msra.mxu0 %v2089
    %7248 = vmatpush.msra.mxu0 %v2085
    %7249 = vmatmul.f32.gmra.mxu0 %v6376
    %v7250 = vpop.f32.mrf.mxu0
    %v7251 = vadd.f32 0.0, %v7250
    %7252 = vmatmul.f32.gmra.mxu0 %v6377
    %v7253 = vpop.f32.mrf.mxu0
    %v7254 = vadd.f32 0.0, %v7253
    %7255 = vmatmul.f32.gmra.mxu0 %v6378
    %v7256 = vpop.f32.mrf.mxu0
    %v7257 = vadd.f32 0.0, %v7256
    %7258 = vmatmul.f32.gmra.mxu0 %v6379
    %v7259 = vpop.f32.mrf.mxu0
    %v7260 = vadd.f32 0.0, %v7259
    %7261 = vmatmul.f32.gmra.mxu0 %v6380
    %v7262 = vpop.f32.mrf.mxu0
    %v7263 = vadd.f32 0.0, %v7262
    %7264 = vmatmul.f32.gmra.mxu0 %v6381
    %v7265 = vpop.f32.mrf.mxu0
    %v7266 = vadd.f32 0.0, %v7265
    %7267 = vmatmul.f32.gmra.mxu0 %v6382
    %v7268 = vpop.f32.mrf.mxu0
    %v7269 = vadd.f32 0.0, %v7268
    %7270 = vmatmul.f32.gmra.mxu0 %v6383
    %v7271 = vpop.f32.mrf.mxu0
    %v7272 = vadd.f32 0.0, %v7271
    %7273 = vdwg.mxu0
    %7274 = vmatpush.msra.mxu0 %v2146
    %7275 = vmatpush.msra.mxu0 %v2142
    %7276 = vmatpush.msra.mxu0 %v2138
    %7277 = vmatpush.msra.mxu0 %v2134
    %7278 = vmatpush.msra.mxu0 %v2130
    %7279 = vmatpush.msra.mxu0 %v2126
    %7280 = vmatpush.msra.mxu0 %v2122
    %7281 = vmatpush.msra.mxu0 %v2118
    %7282 = vmatpush.msra.mxu0 %v2114
    %7283 = vmatpush.msra.mxu0 %v2110
    %7284 = vmatpush.msra.mxu0 %v2106
    %7285 = vmatpush.msra.mxu0 %v2102
    %7286 = vmatpush.msra.mxu0 %v2098
    %7287 = vmatpush.msra.mxu0 %v2094
    %7288 = vmatpush.msra.mxu0 %v2090
    %7289 = vmatpush.msra.mxu0 %v2086
    %7290 = vmatmul.f32.gmra.mxu0 %v6376
    %v7291 = vpop.f32.mrf.mxu0
    %v7292 = vadd.f32 0.0, %v7291
    %7293 = vmatmul.f32.gmra.mxu0 %v6377
    %v7294 = vpop.f32.mrf.mxu0
    %v7295 = vadd.f32 0.0, %v7294
    %7296 = vmatmul.f32.gmra.mxu0 %v6378
    %v7297 = vpop.f32.mrf.mxu0
    %v7298 = vadd.f32 0.0, %v7297
    %7299 = vmatmul.f32.gmra.mxu0 %v6379
    %v7300 = vpop.f32.mrf.mxu0
    %v7301 = vadd.f32 0.0, %v7300
    %7302 = vmatmul.f32.gmra.mxu0 %v6380
    %v7303 = vpop.f32.mrf.mxu0
    %v7304 = vadd.f32 0.0, %v7303
    %7305 = vmatmul.f32.gmra.mxu0 %v6381
    %v7306 = vpop.f32.mrf.mxu0
    %v7307 = vadd.f32 0.0, %v7306
    %7308 = vmatmul.f32.gmra.mxu0 %v6382
    %v7309 = vpop.f32.mrf.mxu0
    %v7310 = vadd.f32 0.0, %v7309
    %7311 = vmatmul.f32.gmra.mxu0 %v6383
    %v7312 = vpop.f32.mrf.mxu0
    %v7313 = vadd.f32 0.0, %v7312
    %7314 = vdwg.mxu0
    %v7315 = vadd.f32 %v6419, %v7169
    %v7316 = vadd.f32 %v6420, %v7210
    %v7317 = vadd.f32 %v6421, %v7251
    %v7318 = vadd.f32 %v6422, %v7292
    %v7319 = vadd.f32 %v6423, %v7172
    %v7320 = vadd.f32 %v6424, %v7213
    %v7321 = vadd.f32 %v6425, %v7254
    %v7322 = vadd.f32 %v6426, %v7295
    %v7323 = vadd.f32 %v6427, %v7175
    %v7324 = vadd.f32 %v6428, %v7216
    %v7325 = vadd.f32 %v6429, %v7257
    %v7326 = vadd.f32 %v6430, %v7298
    %v7327 = vadd.f32 %v6431, %v7178
    %v7328 = vadd.f32 %v6432, %v7219
    %v7329 = vadd.f32 %v6433, %v7260
    %v7330 = vadd.f32 %v6434, %v7301
    %v7331 = vadd.f32 %v6435, %v7181
    %v7332 = vadd.f32 %v6436, %v7222
    %v7333 = vadd.f32 %v6437, %v7263
    %v7334 = vadd.f32 %v6438, %v7304
    %v7335 = vadd.f32 %v6439, %v7184
    %v7336 = vadd.f32 %v6440, %v7225
    %v7337 = vadd.f32 %v6441, %v7266
    %v7338 = vadd.f32 %v6442, %v7307
    %v7339 = vadd.f32 %v6443, %v7187
    %v7340 = vadd.f32 %v6444, %v7228
    %v7341 = vadd.f32 %v6445, %v7269
    %v7342 = vadd.f32 %v6446, %v7310
    %v7343 = vadd.f32 %v6447, %v7190
    %v7344 = vadd.f32 %v6448, %v7231
    %v7345 = vadd.f32 %v6449, %v7272
    %v7346 = vadd.f32 %v6450, %v7313
    %v7347 = vxor.u32 %v7315, 2147483648
    %v7348 = vxor.u32 %v7319, 2147483648
    %v7349 = vxor.u32 %v7323, 2147483648
    %v7350 = vxor.u32 %v7327, 2147483648
    %v7351 = vxor.u32 %v7331, 2147483648
    %v7352 = vxor.u32 %v7335, 2147483648
    %v7353 = vxor.u32 %v7339, 2147483648
    %v7354 = vxor.u32 %v7343, 2147483648
    %v7355 = vmul.f32 %v7347, 1.442695
    %v7356 = vpow.pop %v7355
    %v7357 = vmul.f32 %v7348, 1.442695
    %v7358 = vpow.pop %v7357
    %v7359 = vmul.f32 %v7349, 1.442695
    %v7360 = vpow.pop %v7359
    %v7361 = vmul.f32 %v7350, 1.442695
    %v7362 = vpow.pop %v7361
    %v7363 = vmul.f32 %v7351, 1.442695
    %v7364 = vpow.pop %v7363
    %v7365 = vmul.f32 %v7352, 1.442695
    %v7366 = vpow.pop %v7365
    %v7367 = vmul.f32 %v7353, 1.442695
    %v7368 = vpow.pop %v7367
    %v7369 = vmul.f32 %v7354, 1.442695
    %v7370 = vpow.pop %v7369
    %v7371 = vadd.f32 %v7356, 1.0
    %v7372 = vadd.f32 %v7358, 1.0
    %v7373 = vadd.f32 %v7360, 1.0
    %v7374 = vadd.f32 %v7362, 1.0
    %v7375 = vadd.f32 %v7364, 1.0
    %v7376 = vadd.f32 %v7366, 1.0
    %v7377 = vadd.f32 %v7368, 1.0
    %v7378 = vadd.f32 %v7370, 1.0
    %v7379 = vrcp.pop %v7371
    %v7380 = vmul.f32 %v7371, %v7379
    %v7381 = vsub.f32 1.0, %v7380
    %v7382 = vmul.f32 %v7379, %v7381
    %v7383 = vadd.f32 %v7379, %v7382
    %vm7384 = vweird.f32 %v7371
    %vm7385 = vweird.f32 %v7379
    %vm7386 = vmor %vm7384, %vm7385
    %v7387 = vsel %vm7386, %v7379, %v7383
    %v7388 = vand.u32 2147483647, %v7371
    %vm7389 = vcmp.eq.f32.partialorder %v7388, 8.507059e+37
    %v7390 = vand.u32 %v7371, 2147483648
    %v7391 = vor.u32 1.1754944e-38, %v7390
    %v7392 = vsel %vm7389, %v7391, %v7387
    %v7393 = vmul.f32 1.0, %v7392
    %v7394 = vrcp.pop %v7372
    %v7395 = vmul.f32 %v7372, %v7394
    %v7396 = vsub.f32 1.0, %v7395
    %v7397 = vmul.f32 %v7394, %v7396
    %v7398 = vadd.f32 %v7394, %v7397
    %vm7399 = vweird.f32 %v7372
    %vm7400 = vweird.f32 %v7394
    %vm7401 = vmor %vm7399, %vm7400
    %v7402 = vsel %vm7401, %v7394, %v7398
    %v7403 = vand.u32 2147483647, %v7372
    %vm7404 = vcmp.eq.f32.partialorder %v7403, 8.507059e+37
    %v7405 = vand.u32 %v7372, 2147483648
    %v7406 = vor.u32 1.1754944e-38, %v7405
    %v7407 = vsel %vm7404, %v7406, %v7402
    %v7408 = vmul.f32 1.0, %v7407
    %v7409 = vrcp.pop %v7373
    %v7410 = vmul.f32 %v7373, %v7409
    %v7411 = vsub.f32 1.0, %v7410
    %v7412 = vmul.f32 %v7409, %v7411
    %v7413 = vadd.f32 %v7409, %v7412
    %vm7414 = vweird.f32 %v7373
    %vm7415 = vweird.f32 %v7409
    %vm7416 = vmor %vm7414, %vm7415
    %v7417 = vsel %vm7416, %v7409, %v7413
    %v7418 = vand.u32 2147483647, %v7373
    %vm7419 = vcmp.eq.f32.partialorder %v7418, 8.507059e+37
    %v7420 = vand.u32 %v7373, 2147483648
    %v7421 = vor.u32 1.1754944e-38, %v7420
    %v7422 = vsel %vm7419, %v7421, %v7417
    %v7423 = vmul.f32 1.0, %v7422
    %v7424 = vrcp.pop %v7374
    %v7425 = vmul.f32 %v7374, %v7424
    %v7426 = vsub.f32 1.0, %v7425
    %v7427 = vmul.f32 %v7424, %v7426
    %v7428 = vadd.f32 %v7424, %v7427
    %vm7429 = vweird.f32 %v7374
    %vm7430 = vweird.f32 %v7424
    %vm7431 = vmor %vm7429, %vm7430
    %v7432 = vsel %vm7431, %v7424, %v7428
    %v7433 = vand.u32 2147483647, %v7374
    %vm7434 = vcmp.eq.f32.partialorder %v7433, 8.507059e+37
    %v7435 = vand.u32 %v7374, 2147483648
    %v7436 = vor.u32 1.1754944e-38, %v7435
    %v7437 = vsel %vm7434, %v7436, %v7432
    %v7438 = vmul.f32 1.0, %v7437
    %v7439 = vrcp.pop %v7375
    %v7440 = vmul.f32 %v7375, %v7439
    %v7441 = vsub.f32 1.0, %v7440
    %v7442 = vmul.f32 %v7439, %v7441
    %v7443 = vadd.f32 %v7439, %v7442
    %vm7444 = vweird.f32 %v7375
    %vm7445 = vweird.f32 %v7439
    %vm7446 = vmor %vm7444, %vm7445
    %v7447 = vsel %vm7446, %v7439, %v7443
    %v7448 = vand.u32 2147483647, %v7375
    %vm7449 = vcmp.eq.f32.partialorder %v7448, 8.507059e+37
    %v7450 = vand.u32 %v7375, 2147483648
    %v7451 = vor.u32 1.1754944e-38, %v7450
    %v7452 = vsel %vm7449, %v7451, %v7447
    %v7453 = vmul.f32 1.0, %v7452
    %v7454 = vrcp.pop %v7376
    %v7455 = vmul.f32 %v7376, %v7454
    %v7456 = vsub.f32 1.0, %v7455
    %v7457 = vmul.f32 %v7454, %v7456
    %v7458 = vadd.f32 %v7454, %v7457
    %vm7459 = vweird.f32 %v7376
    %vm7460 = vweird.f32 %v7454
    %vm7461 = vmor %vm7459, %vm7460
    %v7462 = vsel %vm7461, %v7454, %v7458
    %v7463 = vand.u32 2147483647, %v7376
    %vm7464 = vcmp.eq.f32.partialorder %v7463, 8.507059e+37
    %v7465 = vand.u32 %v7376, 2147483648
    %v7466 = vor.u32 1.1754944e-38, %v7465
    %v7467 = vsel %vm7464, %v7466, %v7462
    %v7468 = vmul.f32 1.0, %v7467
    %v7469 = vrcp.pop %v7377
    %v7470 = vmul.f32 %v7377, %v7469
    %v7471 = vsub.f32 1.0, %v7470
    %v7472 = vmul.f32 %v7469, %v7471
    %v7473 = vadd.f32 %v7469, %v7472
    %vm7474 = vweird.f32 %v7377
    %vm7475 = vweird.f32 %v7469
    %vm7476 = vmor %vm7474, %vm7475
    %v7477 = vsel %vm7476, %v7469, %v7473
    %v7478 = vand.u32 2147483647, %v7377
    %vm7479 = vcmp.eq.f32.partialorder %v7478, 8.507059e+37
    %v7480 = vand.u32 %v7377, 2147483648
    %v7481 = vor.u32 1.1754944e-38, %v7480
    %v7482 = vsel %vm7479, %v7481, %v7477
    %v7483 = vmul.f32 1.0, %v7482
    %v7484 = vrcp.pop %v7378
    %v7485 = vmul.f32 %v7378, %v7484
    %v7486 = vsub.f32 1.0, %v7485
    %v7487 = vmul.f32 %v7484, %v7486
    %v7488 = vadd.f32 %v7484, %v7487
    %vm7489 = vweird.f32 %v7378
    %vm7490 = vweird.f32 %v7484
    %vm7491 = vmor %vm7489, %vm7490
    %v7492 = vsel %vm7491, %v7484, %v7488
    %v7493 = vand.u32 2147483647, %v7378
    %vm7494 = vcmp.eq.f32.partialorder %v7493, 8.507059e+37
    %v7495 = vand.u32 %v7378, 2147483648
    %v7496 = vor.u32 1.1754944e-38, %v7495
    %v7497 = vsel %vm7494, %v7496, %v7492
    %v7498 = vmul.f32 1.0, %v7497
    %v7499 = vxor.u32 %v7316, 2147483648
    %v7500 = vxor.u32 %v7320, 2147483648
    %v7501 = vxor.u32 %v7324, 2147483648
    %v7502 = vxor.u32 %v7328, 2147483648
    %v7503 = vxor.u32 %v7332, 2147483648
    %v7504 = vxor.u32 %v7336, 2147483648
    %v7505 = vxor.u32 %v7340, 2147483648
    %v7506 = vxor.u32 %v7344, 2147483648
    %v7507 = vmul.f32 %v7499, 1.442695
    %v7508 = vpow.pop %v7507
    %v7509 = vmul.f32 %v7500, 1.442695
    %v7510 = vpow.pop %v7509
    %v7511 = vmul.f32 %v7501, 1.442695
    %v7512 = vpow.pop %v7511
    %v7513 = vmul.f32 %v7502, 1.442695
    %v7514 = vpow.pop %v7513
    %v7515 = vmul.f32 %v7503, 1.442695
    %v7516 = vpow.pop %v7515
    %v7517 = vmul.f32 %v7504, 1.442695
    %v7518 = vpow.pop %v7517
    %v7519 = vmul.f32 %v7505, 1.442695
    %v7520 = vpow.pop %v7519
    %v7521 = vmul.f32 %v7506, 1.442695
    %v7522 = vpow.pop %v7521
    %v7523 = vadd.f32 %v7508, 1.0
    %v7524 = vadd.f32 %v7510, 1.0
    %v7525 = vadd.f32 %v7512, 1.0
    %v7526 = vadd.f32 %v7514, 1.0
    %v7527 = vadd.f32 %v7516, 1.0
    %v7528 = vadd.f32 %v7518, 1.0
    %v7529 = vadd.f32 %v7520, 1.0
    %v7530 = vadd.f32 %v7522, 1.0
    %v7531 = vrcp.pop %v7523
    %v7532 = vmul.f32 %v7523, %v7531
    %v7533 = vsub.f32 1.0, %v7532
    %v7534 = vmul.f32 %v7531, %v7533
    %v7535 = vadd.f32 %v7531, %v7534
    %vm7536 = vweird.f32 %v7523
    %vm7537 = vweird.f32 %v7531
    %vm7538 = vmor %vm7536, %vm7537
    %v7539 = vsel %vm7538, %v7531, %v7535
    %v7540 = vand.u32 2147483647, %v7523
    %vm7541 = vcmp.eq.f32.partialorder %v7540, 8.507059e+37
    %v7542 = vand.u32 %v7523, 2147483648
    %v7543 = vor.u32 1.1754944e-38, %v7542
    %v7544 = vsel %vm7541, %v7543, %v7539
    %v7545 = vmul.f32 1.0, %v7544
    %v7546 = vrcp.pop %v7524
    %v7547 = vmul.f32 %v7524, %v7546
    %v7548 = vsub.f32 1.0, %v7547
    %v7549 = vmul.f32 %v7546, %v7548
    %v7550 = vadd.f32 %v7546, %v7549
    %vm7551 = vweird.f32 %v7524
    %vm7552 = vweird.f32 %v7546
    %vm7553 = vmor %vm7551, %vm7552
    %v7554 = vsel %vm7553, %v7546, %v7550
    %v7555 = vand.u32 2147483647, %v7524
    %vm7556 = vcmp.eq.f32.partialorder %v7555, 8.507059e+37
    %v7557 = vand.u32 %v7524, 2147483648
    %v7558 = vor.u32 1.1754944e-38, %v7557
    %v7559 = vsel %vm7556, %v7558, %v7554
    %v7560 = vmul.f32 1.0, %v7559
    %v7561 = vrcp.pop %v7525
    %v7562 = vmul.f32 %v7525, %v7561
    %v7563 = vsub.f32 1.0, %v7562
    %v7564 = vmul.f32 %v7561, %v7563
    %v7565 = vadd.f32 %v7561, %v7564
    %vm7566 = vweird.f32 %v7525
    %vm7567 = vweird.f32 %v7561
    %vm7568 = vmor %vm7566, %vm7567
    %v7569 = vsel %vm7568, %v7561, %v7565
    %v7570 = vand.u32 2147483647, %v7525
    %vm7571 = vcmp.eq.f32.partialorder %v7570, 8.507059e+37
    %v7572 = vand.u32 %v7525, 2147483648
    %v7573 = vor.u32 1.1754944e-38, %v7572
    %v7574 = vsel %vm7571, %v7573, %v7569
    %v7575 = vmul.f32 1.0, %v7574
    %v7576 = vrcp.pop %v7526
    %v7577 = vmul.f32 %v7526, %v7576
    %v7578 = vsub.f32 1.0, %v7577
    %v7579 = vmul.f32 %v7576, %v7578
    %v7580 = vadd.f32 %v7576, %v7579
    %vm7581 = vweird.f32 %v7526
    %vm7582 = vweird.f32 %v7576
    %vm7583 = vmor %vm7581, %vm7582
    %v7584 = vsel %vm7583, %v7576, %v7580
    %v7585 = vand.u32 2147483647, %v7526
    %vm7586 = vcmp.eq.f32.partialorder %v7585, 8.507059e+37
    %v7587 = vand.u32 %v7526, 2147483648
    %v7588 = vor.u32 1.1754944e-38, %v7587
    %v7589 = vsel %vm7586, %v7588, %v7584
    %v7590 = vmul.f32 1.0, %v7589
    %v7591 = vrcp.pop %v7527
    %v7592 = vmul.f32 %v7527, %v7591
    %v7593 = vsub.f32 1.0, %v7592
    %v7594 = vmul.f32 %v7591, %v7593
    %v7595 = vadd.f32 %v7591, %v7594
    %vm7596 = vweird.f32 %v7527
    %vm7597 = vweird.f32 %v7591
    %vm7598 = vmor %vm7596, %vm7597
    %v7599 = vsel %vm7598, %v7591, %v7595
    %v7600 = vand.u32 2147483647, %v7527
    %vm7601 = vcmp.eq.f32.partialorder %v7600, 8.507059e+37
    %v7602 = vand.u32 %v7527, 2147483648
    %v7603 = vor.u32 1.1754944e-38, %v7602
    %v7604 = vsel %vm7601, %v7603, %v7599
    %v7605 = vmul.f32 1.0, %v7604
    %v7606 = vrcp.pop %v7528
    %v7607 = vmul.f32 %v7528, %v7606
    %v7608 = vsub.f32 1.0, %v7607
    %v7609 = vmul.f32 %v7606, %v7608
    %v7610 = vadd.f32 %v7606, %v7609
    %vm7611 = vweird.f32 %v7528
    %vm7612 = vweird.f32 %v7606
    %vm7613 = vmor %vm7611, %vm7612
    %v7614 = vsel %vm7613, %v7606, %v7610
    %v7615 = vand.u32 2147483647, %v7528
    %vm7616 = vcmp.eq.f32.partialorder %v7615, 8.507059e+37
    %v7617 = vand.u32 %v7528, 2147483648
    %v7618 = vor.u32 1.1754944e-38, %v7617
    %v7619 = vsel %vm7616, %v7618, %v7614
    %v7620 = vmul.f32 1.0, %v7619
    %v7621 = vrcp.pop %v7529
    %v7622 = vmul.f32 %v7529, %v7621
    %v7623 = vsub.f32 1.0, %v7622
    %v7624 = vmul.f32 %v7621, %v7623
    %v7625 = vadd.f32 %v7621, %v7624
    %vm7626 = vweird.f32 %v7529
    %vm7627 = vweird.f32 %v7621
    %vm7628 = vmor %vm7626, %vm7627
    %v7629 = vsel %vm7628, %v7621, %v7625
    %v7630 = vand.u32 2147483647, %v7529
    %vm7631 = vcmp.eq.f32.partialorder %v7630, 8.507059e+37
    %v7632 = vand.u32 %v7529, 2147483648
    %v7633 = vor.u32 1.1754944e-38, %v7632
    %v7634 = vsel %vm7631, %v7633, %v7629
    %v7635 = vmul.f32 1.0, %v7634
    %v7636 = vrcp.pop %v7530
    %v7637 = vmul.f32 %v7530, %v7636
    %v7638 = vsub.f32 1.0, %v7637
    %v7639 = vmul.f32 %v7636, %v7638
    %v7640 = vadd.f32 %v7636, %v7639
    %vm7641 = vweird.f32 %v7530
    %vm7642 = vweird.f32 %v7636
    %vm7643 = vmor %vm7641, %vm7642
    %v7644 = vsel %vm7643, %v7636, %v7640
    %v7645 = vand.u32 2147483647, %v7530
    %vm7646 = vcmp.eq.f32.partialorder %v7645, 8.507059e+37
    %v7647 = vand.u32 %v7530, 2147483648
    %v7648 = vor.u32 1.1754944e-38, %v7647
    %v7649 = vsel %vm7646, %v7648, %v7644
    %v7650 = vmul.f32 1.0, %v7649
    %v7651 = vtanh.pop %v7317
    %v7652 = vtanh.pop %v7321
    %v7653 = vtanh.pop %v7325
    %v7654 = vtanh.pop %v7329
    %v7655 = vtanh.pop %v7333
    %v7656 = vtanh.pop %v7337
    %v7657 = vtanh.pop %v7341
    %v7658 = vtanh.pop %v7345
    %v7659 = vxor.u32 %v7318, 2147483648
    %v7660 = vxor.u32 %v7322, 2147483648
    %v7661 = vxor.u32 %v7326, 2147483648
    %v7662 = vxor.u32 %v7330, 2147483648
    %v7663 = vxor.u32 %v7334, 2147483648
    %v7664 = vxor.u32 %v7338, 2147483648
    %v7665 = vxor.u32 %v7342, 2147483648
    %v7666 = vxor.u32 %v7346, 2147483648
    %v7667 = vmul.f32 %v7659, 1.442695
    %v7668 = vpow.pop %v7667
    %v7669 = vmul.f32 %v7660, 1.442695
    %v7670 = vpow.pop %v7669
    %v7671 = vmul.f32 %v7661, 1.442695
    %v7672 = vpow.pop %v7671
    %v7673 = vmul.f32 %v7662, 1.442695
    %v7674 = vpow.pop %v7673
    %v7675 = vmul.f32 %v7663, 1.442695
    %v7676 = vpow.pop %v7675
    %v7677 = vmul.f32 %v7664, 1.442695
    %v7678 = vpow.pop %v7677
    %v7679 = vmul.f32 %v7665, 1.442695
    %v7680 = vpow.pop %v7679
    %v7681 = vmul.f32 %v7666, 1.442695
    %v7682 = vpow.pop %v7681
    %v7683 = vadd.f32 %v7668, 1.0
    %v7684 = vadd.f32 %v7670, 1.0
    %v7685 = vadd.f32 %v7672, 1.0
    %v7686 = vadd.f32 %v7674, 1.0
    %v7687 = vadd.f32 %v7676, 1.0
    %v7688 = vadd.f32 %v7678, 1.0
    %v7689 = vadd.f32 %v7680, 1.0
    %v7690 = vadd.f32 %v7682, 1.0
    %v7691 = vrcp.pop %v7683
    %v7692 = vmul.f32 %v7683, %v7691
    %v7693 = vsub.f32 1.0, %v7692
    %v7694 = vmul.f32 %v7691, %v7693
    %v7695 = vadd.f32 %v7691, %v7694
    %vm7696 = vweird.f32 %v7683
    %vm7697 = vweird.f32 %v7691
    %vm7698 = vmor %vm7696, %vm7697
    %v7699 = vsel %vm7698, %v7691, %v7695
    %v7700 = vand.u32 2147483647, %v7683
    %vm7701 = vcmp.eq.f32.partialorder %v7700, 8.507059e+37
    %v7702 = vand.u32 %v7683, 2147483648
    %v7703 = vor.u32 1.1754944e-38, %v7702
    %v7704 = vsel %vm7701, %v7703, %v7699
    %v7705 = vmul.f32 1.0, %v7704
    %v7706 = vrcp.pop %v7684
    %v7707 = vmul.f32 %v7684, %v7706
    %v7708 = vsub.f32 1.0, %v7707
    %v7709 = vmul.f32 %v7706, %v7708
    %v7710 = vadd.f32 %v7706, %v7709
    %vm7711 = vweird.f32 %v7684
    %vm7712 = vweird.f32 %v7706
    %vm7713 = vmor %vm7711, %vm7712
    %v7714 = vsel %vm7713, %v7706, %v7710
    %v7715 = vand.u32 2147483647, %v7684
    %vm7716 = vcmp.eq.f32.partialorder %v7715, 8.507059e+37
    %v7717 = vand.u32 %v7684, 2147483648
    %v7718 = vor.u32 1.1754944e-38, %v7717
    %v7719 = vsel %vm7716, %v7718, %v7714
    %v7720 = vmul.f32 1.0, %v7719
    %v7721 = vrcp.pop %v7685
    %v7722 = vmul.f32 %v7685, %v7721
    %v7723 = vsub.f32 1.0, %v7722
    %v7724 = vmul.f32 %v7721, %v7723
    %v7725 = vadd.f32 %v7721, %v7724
    %vm7726 = vweird.f32 %v7685
    %vm7727 = vweird.f32 %v7721
    %vm7728 = vmor %vm7726, %vm7727
    %v7729 = vsel %vm7728, %v7721, %v7725
    %v7730 = vand.u32 2147483647, %v7685
    %vm7731 = vcmp.eq.f32.partialorder %v7730, 8.507059e+37
    %v7732 = vand.u32 %v7685, 2147483648
    %v7733 = vor.u32 1.1754944e-38, %v7732
    %v7734 = vsel %vm7731, %v7733, %v7729
    %v7735 = vmul.f32 1.0, %v7734
    %v7736 = vrcp.pop %v7686
    %v7737 = vmul.f32 %v7686, %v7736
    %v7738 = vsub.f32 1.0, %v7737
    %v7739 = vmul.f32 %v7736, %v7738
    %v7740 = vadd.f32 %v7736, %v7739
    %vm7741 = vweird.f32 %v7686
    %vm7742 = vweird.f32 %v7736
    %vm7743 = vmor %vm7741, %vm7742
    %v7744 = vsel %vm7743, %v7736, %v7740
    %v7745 = vand.u32 2147483647, %v7686
    %vm7746 = vcmp.eq.f32.partialorder %v7745, 8.507059e+37
    %v7747 = vand.u32 %v7686, 2147483648
    %v7748 = vor.u32 1.1754944e-38, %v7747
    %v7749 = vsel %vm7746, %v7748, %v7744
    %v7750 = vmul.f32 1.0, %v7749
    %v7751 = vrcp.pop %v7687
    %v7752 = vmul.f32 %v7687, %v7751
    %v7753 = vsub.f32 1.0, %v7752
    %v7754 = vmul.f32 %v7751, %v7753
    %v7755 = vadd.f32 %v7751, %v7754
    %vm7756 = vweird.f32 %v7687
    %vm7757 = vweird.f32 %v7751
    %vm7758 = vmor %vm7756, %vm7757
    %v7759 = vsel %vm7758, %v7751, %v7755
    %v7760 = vand.u32 2147483647, %v7687
    %vm7761 = vcmp.eq.f32.partialorder %v7760, 8.507059e+37
    %v7762 = vand.u32 %v7687, 2147483648
    %v7763 = vor.u32 1.1754944e-38, %v7762
    %v7764 = vsel %vm7761, %v7763, %v7759
    %v7765 = vmul.f32 1.0, %v7764
    %v7766 = vrcp.pop %v7688
    %v7767 = vmul.f32 %v7688, %v7766
    %v7768 = vsub.f32 1.0, %v7767
    %v7769 = vmul.f32 %v7766, %v7768
    %v7770 = vadd.f32 %v7766, %v7769
    %vm7771 = vweird.f32 %v7688
    %vm7772 = vweird.f32 %v7766
    %vm7773 = vmor %vm7771, %vm7772
    %v7774 = vsel %vm7773, %v7766, %v7770
    %v7775 = vand.u32 2147483647, %v7688
    %vm7776 = vcmp.eq.f32.partialorder %v7775, 8.507059e+37
    %v7777 = vand.u32 %v7688, 2147483648
    %v7778 = vor.u32 1.1754944e-38, %v7777
    %v7779 = vsel %vm7776, %v7778, %v7774
    %v7780 = vmul.f32 1.0, %v7779
    %v7781 = vrcp.pop %v7689
    %v7782 = vmul.f32 %v7689, %v7781
    %v7783 = vsub.f32 1.0, %v7782
    %v7784 = vmul.f32 %v7781, %v7783
    %v7785 = vadd.f32 %v7781, %v7784
    %vm7786 = vweird.f32 %v7689
    %vm7787 = vweird.f32 %v7781
    %vm7788 = vmor %vm7786, %vm7787
    %v7789 = vsel %vm7788, %v7781, %v7785
    %v7790 = vand.u32 2147483647, %v7689
    %vm7791 = vcmp.eq.f32.partialorder %v7790, 8.507059e+37
    %v7792 = vand.u32 %v7689, 2147483648
    %v7793 = vor.u32 1.1754944e-38, %v7792
    %v7794 = vsel %vm7791, %v7793, %v7789
    %v7795 = vmul.f32 1.0, %v7794
    %v7796 = vrcp.pop %v7690
    %v7797 = vmul.f32 %v7690, %v7796
    %v7798 = vsub.f32 1.0, %v7797
    %v7799 = vmul.f32 %v7796, %v7798
    %v7800 = vadd.f32 %v7796, %v7799
    %vm7801 = vweird.f32 %v7690
    %vm7802 = vweird.f32 %v7796
    %vm7803 = vmor %vm7801, %vm7802
    %v7804 = vsel %vm7803, %v7796, %v7800
    %v7805 = vand.u32 2147483647, %v7690
    %vm7806 = vcmp.eq.f32.partialorder %v7805, 8.507059e+37
    %v7807 = vand.u32 %v7690, 2147483648
    %v7808 = vor.u32 1.1754944e-38, %v7807
    %v7809 = vsel %vm7806, %v7808, %v7804
    %v7810 = vmul.f32 1.0, %v7809
    %v7811 = vmul.f32 %v7545, %v6360
    %v7812 = vmul.f32 %v7560, %v6361
    %v7813 = vmul.f32 %v7575, %v6362
    %v7814 = vmul.f32 %v7590, %v6363
    %v7815 = vmul.f32 %v7605, %v6364
    %v7816 = vmul.f32 %v7620, %v6365
    %v7817 = vmul.f32 %v7635, %v6366
    %v7818 = vmul.f32 %v7650, %v6367
    %v7819 = vmul.f32 %v7393, %v7651
    %v7820 = vmul.f32 %v7408, %v7652
    %v7821 = vmul.f32 %v7423, %v7653
    %v7822 = vmul.f32 %v7438, %v7654
    %v7823 = vmul.f32 %v7453, %v7655
    %v7824 = vmul.f32 %v7468, %v7656
    %v7825 = vmul.f32 %v7483, %v7657
    %v7826 = vmul.f32 %v7498, %v7658
    %v7827 = vadd.f32 %v7811, %v7819
    %v7828 = vadd.f32 %v7812, %v7820
    %v7829 = vadd.f32 %v7813, %v7821
    %v7830 = vadd.f32 %v7814, %v7822
    %v7831 = vadd.f32 %v7815, %v7823
    %v7832 = vadd.f32 %v7816, %v7824
    %v7833 = vadd.f32 %v7817, %v7825
    %v7834 = vadd.f32 %v7818, %v7826
    %v7835 = vtanh.pop %v7827
    %v7836 = vtanh.pop %v7828
    %v7837 = vtanh.pop %v7829
    %v7838 = vtanh.pop %v7830
    %v7839 = vtanh.pop %v7831
    %v7840 = vtanh.pop %v7832
    %v7841 = vtanh.pop %v7833
    %v7842 = vtanh.pop %v7834
    %v7843 = vmul.f32 %v7705, %v7835
    %v7844 = vmul.f32 %v7720, %v7836
    %v7845 = vmul.f32 %v7735, %v7837
    %v7846 = vmul.f32 %v7750, %v7838
    %v7847 = vmul.f32 %v7765, %v7839
    %v7848 = vmul.f32 %v7780, %v7840
    %v7849 = vmul.f32 %v7795, %v7841
    %v7850 = vmul.f32 %v7810, %v7842
    %v7851 = vld [vmem:[#allocation6] sm:$0xff]
    %v7852 = vld [vmem:[#allocation6 + $0x8] sm:$0xff]
    %v7853 = vld [vmem:[#allocation6 + $0x10] sm:$0xff]
    %v7854 = vld [vmem:[#allocation6 + $0x18] sm:$0xff]
    %v7855 = vld [vmem:[#allocation6 + $0x20] sm:$0xff]
    %v7856 = vld [vmem:[#allocation6 + $0x28] sm:$0xff]
    %v7857 = vld [vmem:[#allocation6 + $0x30] sm:$0xff]
    %v7858 = vld [vmem:[#allocation6 + $0x38] sm:$0xff]
    %v7859 = vld [vmem:[#allocation6 + $0x40] sm:$0xff]
    %v7860 = vld [vmem:[#allocation6 + $0x48] sm:$0xff]
    %v7861 = vld [vmem:[#allocation6 + $0x50] sm:$0xff]
    %v7862 = vld [vmem:[#allocation6 + $0x58] sm:$0xff]
    %v7863 = vld [vmem:[#allocation6 + $0x60] sm:$0xff]
    %v7864 = vld [vmem:[#allocation6 + $0x68] sm:$0xff]
    %v7865 = vld [vmem:[#allocation6 + $0x70] sm:$0xff]
    %v7866 = vld [vmem:[#allocation6 + $0x78] sm:$0xff]
    %v7867 = vld [vmem:[%s7] sm:$0x1]
    %v7869 = vperm.slane %v7867, 0
    %7871 = vmatpush.msra.mxu0 %v7866
    %7872 = vmatpush.msra.mxu0 %v7865
    %7873 = vmatpush.msra.mxu0 %v7864
    %7874 = vmatpush.msra.mxu0 %v7863
    %7875 = vmatpush.msra.mxu0 %v7862
    %7876 = vmatpush.msra.mxu0 %v7861
    %7877 = vmatpush.msra.mxu0 %v7860
    %7878 = vmatpush.msra.mxu0 %v7859
    %7879 = vmatpush.msra.mxu0 %v7858
    %7880 = vmatpush.msra.mxu0 %v7857
    %7881 = vmatpush.msra.mxu0 %v7856
    %7882 = vmatpush.msra.mxu0 %v7855
    %7883 = vmatpush.msra.mxu0 %v7854
    %7884 = vmatpush.msra.mxu0 %v7853
    %7885 = vmatpush.msra.mxu0 %v7852
    %7886 = vmatpush.msra.mxu0 %v7851
    %7887 = vmatmul.f32.gmra.mxu0 %v7143
    %v7888 = vpop.f32.mrf.mxu0
    %v7889 = vadd.f32 %v7869, %v7888
    %7890 = vmatmul.f32.gmra.mxu0 %v7144
    %v7891 = vpop.f32.mrf.mxu0
    %v7892 = vadd.f32 %v7869, %v7891
    %7893 = vmatmul.f32.gmra.mxu0 %v7145
    %v7894 = vpop.f32.mrf.mxu0
    %v7895 = vadd.f32 %v7869, %v7894
    %7896 = vmatmul.f32.gmra.mxu0 %v7146
    %v7897 = vpop.f32.mrf.mxu0
    %v7898 = vadd.f32 %v7869, %v7897
    %7899 = vmatmul.f32.gmra.mxu0 %v7147
    %v7900 = vpop.f32.mrf.mxu0
    %v7901 = vadd.f32 %v7869, %v7900
    %7902 = vmatmul.f32.gmra.mxu0 %v7148
    %v7903 = vpop.f32.mrf.mxu0
    %v7904 = vadd.f32 %v7869, %v7903
    %7905 = vmatmul.f32.gmra.mxu0 %v7149
    %v7906 = vpop.f32.mrf.mxu0
    %v7907 = vadd.f32 %v7869, %v7906
    %7908 = vmatmul.f32.gmra.mxu0 %v7150
    %v7909 = vpop.f32.mrf.mxu0
    %v7910 = vadd.f32 %v7869, %v7909
    %7911 = vdwg.mxu0
    %7912 = vst [vmem:[#allocation8] sm:$0xff] %v7889
    %7913 = vst [vmem:[#allocation8 + $0x8] sm:$0xff] %v7892
    %7914 = vst [vmem:[#allocation8 + $0x10] sm:$0xff] %v7895
    %7915 = vst [vmem:[#allocation8 + $0x18] sm:$0xff] %v7898
    %7916 = vst [vmem:[#allocation8 + $0x20] sm:$0xff] %v7901
    %7917 = vst [vmem:[#allocation8 + $0x28] sm:$0xff] %v7904
    %7918 = vst [vmem:[#allocation8 + $0x30] sm:$0xff] %v7907
    %7919 = vst [vmem:[#allocation8 + $0x38] sm:$0xff] %v7910
    %7920 = vmatpush.msra.mxu0 %v7866
    %7921 = vmatpush.msra.mxu0 %v7865
    %7922 = vmatpush.msra.mxu0 %v7864
    %7923 = vmatpush.msra.mxu0 %v7863
    %7924 = vmatpush.msra.mxu0 %v7862
    %7925 = vmatpush.msra.mxu0 %v7861
    %7926 = vmatpush.msra.mxu0 %v7860
    %7927 = vmatpush.msra.mxu0 %v7859
    %7928 = vmatpush.msra.mxu0 %v7858
    %7929 = vmatpush.msra.mxu0 %v7857
    %7930 = vmatpush.msra.mxu0 %v7856
    %7931 = vmatpush.msra.mxu0 %v7855
    %7932 = vmatpush.msra.mxu0 %v7854
    %7933 = vmatpush.msra.mxu0 %v7853
    %7934 = vmatpush.msra.mxu0 %v7852
    %7935 = vmatpush.msra.mxu0 %v7851
    %7936 = vmatmul.f32.gmra.mxu0 %v7843
    %v7937 = vpop.f32.mrf.mxu0
    %v7938 = vadd.f32 %v7869, %v7937
    %7939 = vmatmul.f32.gmra.mxu0 %v7844
    %v7940 = vpop.f32.mrf.mxu0
    %v7941 = vadd.f32 %v7869, %v7940
    %7942 = vmatmul.f32.gmra.mxu0 %v7845
    %v7943 = vpop.f32.mrf.mxu0
    %v7944 = vadd.f32 %v7869, %v7943
    %7945 = vmatmul.f32.gmra.mxu0 %v7846
    %v7946 = vpop.f32.mrf.mxu0
    %v7947 = vadd.f32 %v7869, %v7946
    %7948 = vmatmul.f32.gmra.mxu0 %v7847
    %v7949 = vpop.f32.mrf.mxu0
    %v7950 = vadd.f32 %v7869, %v7949
    %7951 = vmatmul.f32.gmra.mxu0 %v7848
    %v7952 = vpop.f32.mrf.mxu0
    %v7953 = vadd.f32 %v7869, %v7952
    %7954 = vmatmul.f32.gmra.mxu0 %v7849
    %v7955 = vpop.f32.mrf.mxu0
    %v7956 = vadd.f32 %v7869, %v7955
    %7957 = vmatmul.f32.gmra.mxu0 %v7850
    %v7958 = vpop.f32.mrf.mxu0
    %v7959 = vadd.f32 %v7869, %v7958
    %7960 = vdwg.mxu0
    %7961 = vst [vmem:[#allocation8 + $0x40] sm:$0xff] %v7938
    %7962 = vst [vmem:[#allocation8 + $0x48] sm:$0xff] %v7941
    %7963 = vst [vmem:[#allocation8 + $0x50] sm:$0xff] %v7944
    %7964 = vst [vmem:[#allocation8 + $0x58] sm:$0xff] %v7947
    %7965 = vst [vmem:[#allocation8 + $0x60] sm:$0xff] %v7950
    %7966 = vst [vmem:[#allocation8 + $0x68] sm:$0xff] %v7953
    %7967 = vst [vmem:[#allocation8 + $0x70] sm:$0xff] %v7956
    %7968 = vst [vmem:[#allocation8 + $0x78] sm:$0xff] %v7959
    // Predicated region
    $region42: #{tpu_custom_call.1} parent=1 // pred_check
      _
    $region43: #{tpu_custom_call.1} parent=1 // pred_check_branch
      %7970 = sbr.rel (0) target = $region45
    $region44: #{tpu_custom_call.1} parent=1 // pred_region
      %7972 = vsyncadd [#allocation5], 0
      %s7973 = sshll.u32 [#allocation8], 4
      %s7974 = int_to_ptr.vmem [resolvable:$true] %s7973
      %s7975 = sshll.u32 %s8, 4
      %s7976 = int_to_ptr.hbm [resolvable:$true] %s7975
      %7981 = dma.vmem_to_hbm [thread:$0]  %s7974, 2048, %s7976, [#allocation5], 128, 128, 8
    $region45: #{tpu_custom_call.1} parent=1 // pred_fallthru
      _
    // Predicated region
    $region46: #{tpu_custom_call.1} parent=1 // pred_check
      _
    $region47: #{tpu_custom_call.1} parent=1 // pred_check_branch
      %7983 = sbr.rel (0) target = $region49
    $region48: #{tpu_custom_call.1} parent=1 // pred_region
      %7985 = dma.done [#allocation5], 2048
    $region49: #{tpu_custom_call.1} parent=1 // pred_fallthru
      _
    %7986 = vsyncpa [#allocation4], 1
    %7987 = vsyncpa [#allocation7], 1
    %7988 = vsyncpa [#allocation5], 1

</llo_original>
